<compile_context>
chip_gen: v7x
topology: tpu7x:2x2x1
jax: 0.10.0
libtpu: 0.0.40
codegen_flags: <defaults>
</compile_context>

<pallas_src>
import functools
import math

import jax
import jax.numpy as jnp
from jax import lax
from jax.experimental import pallas as pl
from jax.experimental.pallas import tpu as pltpu


MATMUL_DTYPE = jnp.bfloat16  # MXU operand dtype; accumulation is always f32.


def _gelu_exact(x):
    # exact (erf) GELU, matching torch.nn.GELU / F.gelu default (f32 math)
    return 0.5 * x * (1.0 + lax.erf(x * (1.0 / math.sqrt(2.0))))


def _layernorm(x, gamma, beta, eps):
    mean = jnp.mean(x, axis=-1, keepdims=True)
    xc = x - mean
    var = jnp.mean(xc * xc, axis=-1, keepdims=True)
    return xc * lax.rsqrt(var + eps) * gamma + beta


# ---------------------------- fused whole-network kernel ----------------------------

def _fused_transformer_kernel(
        src_ref, w_in_ref, b_in_ref, pe_ref,
        w_qkv_ref, b_qkv_ref, w_o_ref, b_o_ref,
        ln1_g_ref, ln1_b_ref, w_ff1_ref, b_ff1_ref,
        w_ff2_ref, b_ff2_ref, ln2_g_ref, ln2_b_ref,
        ln_f_g_ref, ln_f_b_ref, w_p1_ref, b_p1_ref,
        w_p2_ref, b_p2_ref, w_p3_ref, b_p3_ref,
        pred_ref, act_ref, *, nhead, eps, Bc, S, D):
    """Grid = (batch_chunk ["parallel"], layer ["arbitrary"]).  act_ref is a VMEM scratch that
    holds the (Bc*S, D) activation resident across the layer axis."""
    l = pl.program_id(1)
    M = Bc * S
    Dh = D // nhead

    # ---- phase 0: input projection + positional-encoding add (layer 0 only) ----
    @pl.when(l == 0)
    def _():
        x = src_ref[...].reshape(M, -1)                               # (M, input_dim) f32
        y = jnp.dot(x.astype(w_in_ref.dtype), w_in_ref[...],
                    preferred_element_type=jnp.float32) + b_in_ref[...]
        y = y.reshape(Bc, S, D) + pe_ref[...][None, :, :]             # + pe[s] per position
        act_ref[...] = y.reshape(M, D)

    # ---- encoder layer l (post-LN, GELU), activation kept in VMEM scratch ----
    x2 = act_ref[...]                                                 # (M, D) f32
    qkv = jnp.dot(x2.astype(w_qkv_ref.dtype), w_qkv_ref[0],
                  preferred_element_type=jnp.float32) + b_qkv_ref[0]  # (M, 3D) f32
    # lane slices at 128-boundaries, then tile-aligned leading-dim split to (Bc, S, D)
    q3 = qkv[:, :D].reshape(Bc, S, D)
    k3 = qkv[:, D:2 * D].reshape(Bc, S, D)
    v3 = qkv[:, 2 * D:].reshape(Bc, S, D)

    w_o = w_o_ref[0]                                                  # (D, D) bf16
    attn2 = jnp.zeros((M, D), jnp.float32)
    for h in range(nhead):
        sl = slice(h * Dh, (h + 1) * Dh)
        qh = q3[:, :, sl].astype(MATMUL_DTYPE)                        # (Bc, S, Dh)
        kh = k3[:, :, sl].astype(MATMUL_DTYPE)
        vh = v3[:, :, sl].astype(MATMUL_DTYPE)
        # scale 1/sqrt(Dh) is folded into the Q columns of w_qkv at init time
        s = jnp.einsum('bqd,bkd->bqk', qh, kh,
                       preferred_element_type=jnp.float32)            # (Bc, S, S) f32
        m = jnp.max(s, axis=-1, keepdims=True)
        p = jnp.exp(s - m)
        p = p * pl.reciprocal(jnp.sum(p, axis=-1, keepdims=True), approx=True)
        ctx = jnp.einsum('bqk,bkd->bqd', p.astype(MATMUL_DTYPE), vh,
                         preferred_element_type=jnp.float32)          # (Bc, S, Dh) f32
        # fold the out-projection per head (no concat / relayout): ctx_h @ W_o[h*Dh:(h+1)*Dh]
        attn2 = attn2 + jnp.dot(ctx.reshape(M, Dh).astype(MATMUL_DTYPE), w_o[sl, :],
                                preferred_element_type=jnp.float32)
    attn2 = attn2 + b_o_ref[0]
    x2 = _layernorm(x2 + attn2, ln1_g_ref[0], ln1_b_ref[0], eps)

    h1 = jnp.dot(x2.astype(w_ff1_ref.dtype), w_ff1_ref[0],
                 preferred_element_type=jnp.float32) + b_ff1_ref[0]
    h1 = _gelu_exact(h1)
    h2 = jnp.dot(h1.astype(w_ff2_ref.dtype), w_ff2_ref[0],
                 preferred_element_type=jnp.float32) + b_ff2_ref[0]
    x2 = _layernorm(x2 + h2, ln2_g_ref[0], ln2_b_ref[0], eps)
    act_ref[...] = x2

    # ---- final phase: LayerNorm on last tokens + 3-layer MLP head (last layer only) ----
    # LayerNorm is per-row, so LN(output)[:, -1, :] == LN(output[:, -1, :]).
    @pl.when(l == pl.num_programs(1) - 1)
    def _():
        last = x2.reshape(Bc, S, D)[:, S - 1, :]                      # (Bc, D)
        y = _layernorm(last, ln_f_g_ref[...], ln_f_b_ref[...], eps)
        hh = jnp.dot(y.astype(w_p1_ref.dtype), w_p1_ref[...],
                     preferred_element_type=jnp.float32) + b_p1_ref[...]
        hh = _gelu_exact(hh)
        hh = jnp.dot(hh.astype(w_p2_ref.dtype), w_p2_ref[...],
                     preferred_element_type=jnp.float32) + b_p2_ref[...]
        hh = _gelu_exact(hh)
        # final matmul lane-padded to 128 output columns -> lane-dense store (col 0 is real)
        out = jnp.dot(hh.astype(w_p3_ref.dtype), w_p3_ref[...],
                      preferred_element_type=jnp.float32) + b_p3_ref[...]   # (Bc, 128)
        pred_ref[0] = out


# ---------------------------- wrapper ----------------------------

def transformer_predictor_forward(src, params, *, nhead, eps=1e-5):
    """src: (B, S, input_dim) -> (B, 1). Eval mode (dropout = identity), src_mask = None."""
    B, S, input_dim = src.shape
    D = params["w_in"].shape[1]
    L = params["w_qkv"].shape[0]
    F = params["w_ff1"].shape[2]
    D2 = params["w_p1"].shape[1]
    D4 = params["w_p2"].shape[1]
    PN = params["w_p3_pad"].shape[1]       # lane-padded head output width (128)

    # Reference PositionalEncoding broadcast quirk (see header note).
    assert B == S, "reference PositionalEncoding broadcast requires B == S"

    NB = 2 if B % 2 == 0 else 1            # >=2-way "parallel" axis keeps both v7x TCs busy
    Bc = B // NB

    def cst(shape):                         # constant-index block (loaded once, stays resident)
        rank = len(shape)
        return pl.BlockSpec(shape, lambda nb, l: (0,) * rank)

    def per_layer(tail):                    # per-layer weight block, indexed by the layer axis
        rank = len(tail)
        return pl.BlockSpec((1,) + tail, lambda nb, l: (l,) + (0,) * rank)

    kernel = functools.partial(_fused_transformer_kernel,
                               nhead=nhead, eps=eps, Bc=Bc, S=S, D=D)

    pred_pad = pl.pallas_call(
        kernel,
        out_shape=jax.ShapeDtypeStruct((NB, Bc, PN), jnp.float32),
        grid=(NB, L),
        in_specs=[
            pl.BlockSpec((Bc, S, input_dim), lambda nb, l: (nb, 0, 0)),
            cst((input_dim, D)), cst((1, D)), cst((S, D)),
            per_layer((D, 3 * D)), per_layer((1, 3 * D)),
            per_layer((D, D)), per_layer((1, D)),
            per_layer((1, D)), per_layer((1, D)),
            per_layer((D, F)), per_layer((1, F)),
            per_layer((F, D)), per_layer((1, D)),
            per_layer((1, D)), per_layer((1, D)),
            cst((1, D)), cst((1, D)),
            cst((D, D2)), cst((1, D2)),
            cst((D2, D4)), cst((1, D4)),
            cst((D4, PN)), cst((1, PN)),
        ],
        out_specs=pl.BlockSpec((1, Bc, PN), lambda nb, l: (nb, 0, 0)),
        scratch_shapes=[pltpu.VMEM((Bc * S, D), jnp.float32)],   # layer-resident activation
        compiler_params=pltpu.CompilerParams(
            dimension_semantics=("parallel", "arbitrary"),
            vmem_limit_bytes=32 * 1024 * 1024),
    )(src,
      params["w_in"], params["b_in"], params["pe"][:S],
      params["w_qkv"], params["b_qkv"], params["w_o"], params["b_o"],
      params["ln1_g"], params["ln1_b"], params["w_ff1"], params["b_ff1"],
      params["w_ff2"], params["b_ff2"], params["ln2_g"], params["ln2_b"],
      params["ln_f_g"], params["ln_f_b"], params["w_p1"], params["b_p1"],
      params["w_p2"], params["b_p2"], params["w_p3_pad"], params["b_p3_pad"])

    return pred_pad.reshape(B, PN)[:, :1]


# ---------------------------- parameters ----------------------------

def make_pe(max_len, d_model):
    position = jnp.arange(max_len, dtype=jnp.float32)[:, None]
    div_term = jnp.exp(jnp.arange(0, d_model, 2, dtype=jnp.float32)
                       * (-math.log(10000.0) / d_model))
    pe = jnp.zeros((max_len, d_model), jnp.float32)
    pe = pe.at[:, 0::2].set(jnp.sin(position * div_term))
    pe = pe.at[:, 1::2].set(jnp.cos(position * div_term))
    return pe


def init_params(seed, input_dim, d_model, nhead, num_layers, dim_feedforward, seq_len,
                head_pad=128):
    key = jax.random.PRNGKey(seed)
    cnt = [0]

    def nrm(shape):
        cnt[0] += 1
        return 0.02 * jax.random.normal(jax.random.fold_in(key, cnt[0]), shape,
                                        dtype=jnp.float32)

    zeros = lambda *s: jnp.zeros(s, jnp.float32)
    ones = lambda *s: jnp.ones(s, jnp.float32)

    L, D, F = num_layers, d_model, dim_feedforward
    D2, D4 = d_model // 2, d_model // 4
    scale = 1.0 / math.sqrt(d_model // nhead)

    # attention scale folded into the Q slice of the packed QKV projection (free at runtime)
    w_qkv = nrm((L, D, 3 * D))
    w_qkv = w_qkv.at[:, :, :D].multiply(scale)
    b_qkv = zeros(L, 1, 3 * D)
    b_qkv = b_qkv.at[:, :, :D].multiply(scale)

    # predictor output lane-padded to `head_pad` columns (lane-dense store; column 0 is real)
    w_p3 = nrm((D4, 1))
    w_p3_pad = jnp.zeros((D4, head_pad), jnp.float32).at[:, :1].set(w_p3)

    return {
        "w_in": nrm((input_dim, D)).astype(MATMUL_DTYPE), "b_in": zeros(1, D),
        "pe": make_pe(seq_len, D),
        "w_qkv": w_qkv.astype(MATMUL_DTYPE), "b_qkv": b_qkv,
        "w_o": nrm((L, D, D)).astype(MATMUL_DTYPE), "b_o": zeros(L, 1, D),
        "ln1_g": ones(L, 1, D), "ln1_b": zeros(L, 1, D),
        "w_ff1": nrm((L, D, F)).astype(MATMUL_DTYPE), "b_ff1": zeros(L, 1, F),
        "w_ff2": nrm((L, F, D)).astype(MATMUL_DTYPE), "b_ff2": zeros(L, 1, D),
        "ln2_g": ones(L, 1, D), "ln2_b": zeros(L, 1, D),
        "ln_f_g": ones(1, D), "ln_f_b": zeros(1, D),
        "w_p1": nrm((D, D2)).astype(MATMUL_DTYPE), "b_p1": zeros(1, D2),
        "w_p2": nrm((D2, D4)).astype(MATMUL_DTYPE), "b_p2": zeros(1, D4),
        "w_p3_pad": w_p3_pad.astype(MATMUL_DTYPE), "b_p3_pad": zeros(1, head_pad),
    }


# ---------------------------- demo ----------------------------

if __name__ == "__main__":
    # small config (constructor args of TransformerPredictor)
    INPUT_DIM = 16
    D_MODEL = 128
    NHEAD = 8
    NUM_LAYERS = 2
    DIM_FF = 256
    B = S = 8  # B == S required by the reference PositionalEncoding broadcast (see header note)

    params = init_params(42, INPUT_DIM, D_MODEL, NHEAD, NUM_LAYERS, DIM_FF, seq_len=S)

    src = jax.random.normal(jax.random.PRNGKey(0), (B, S, INPUT_DIM), dtype=jnp.float32)

    pred = transformer_predictor_forward(src, params, nhead=NHEAD)
    pred = jax.block_until_ready(pred)

    assert pred.shape == (B, 1), pred.shape
    assert bool(jnp.all(jnp.isfinite(pred)))
    print("KERNEL_OK")
</pallas_src>

<mosaic_0001>
module attributes {stable_mosaic.version = 11 : i64} {
  func.func @_fused_transformer_kernel(%arg0: i32, %arg1: i32, %arg2: memref<4x8x16xf32, #tpu.memory_space<vmem>>, %arg3: memref<16x128xbf16, #tpu.memory_space<vmem>>, %arg4: memref<1x128xf32, #tpu.memory_space<vmem>>, %arg5: memref<8x128xf32, #tpu.memory_space<vmem>>, %arg6: memref<1x128x384xbf16, #tpu.memory_space<vmem>>, %arg7: memref<1x1x384xf32, #tpu.memory_space<vmem>>, %arg8: memref<1x128x128xbf16, #tpu.memory_space<vmem>>, %arg9: memref<1x1x128xf32, #tpu.memory_space<vmem>>, %arg10: memref<1x1x128xf32, #tpu.memory_space<vmem>>, %arg11: memref<1x1x128xf32, #tpu.memory_space<vmem>>, %arg12: memref<1x128x256xbf16, #tpu.memory_space<vmem>>, %arg13: memref<1x1x256xf32, #tpu.memory_space<vmem>>, %arg14: memref<1x256x128xbf16, #tpu.memory_space<vmem>>, %arg15: memref<1x1x128xf32, #tpu.memory_space<vmem>>, %arg16: memref<1x1x128xf32, #tpu.memory_space<vmem>>, %arg17: memref<1x1x128xf32, #tpu.memory_space<vmem>>, %arg18: memref<1x128xf32, #tpu.memory_space<vmem>>, %arg19: memref<1x128xf32, #tpu.memory_space<vmem>>, %arg20: memref<128x64xbf16, #tpu.memory_space<vmem>>, %arg21: memref<1x64xf32, #tpu.memory_space<vmem>>, %arg22: memref<64x32xbf16, #tpu.memory_space<vmem>>, %arg23: memref<1x32xf32, #tpu.memory_space<vmem>>, %arg24: memref<32x128xbf16, #tpu.memory_space<vmem>>, %arg25: memref<1x128xf32, #tpu.memory_space<vmem>>, %arg26: memref<1x4x128xf32, #tpu.memory_space<vmem>>, %arg27: memref<32x128xf32, #tpu.memory_space<vmem>>) attributes {dimension_semantics = [#tpu.dimension_semantics<parallel>, #tpu.dimension_semantics<arbitrary>], iteration_bounds = array<i64: 2, 2>, scalar_prefetch = 0 : i64, scratch_operands = 1 : i64, tpu.core_type = #tpu.core_type<tc>, window_params = [{transform_indices = @transform_0, window_bounds = array<i64: 4, 8, 16>}, {pipeline_mode = #tpu.pipeline_mode<synchronous>, transform_indices = @transform_1, window_bounds = array<i64: 16, 128>}, {pipeline_mode = #tpu.pipeline_mode<synchronous>, transform_indices = @transform_2, window_bounds = array<i64: 1, 128>}, {pipeline_mode = #tpu.pipeline_mode<synchronous>, transform_indices = @transform_3, window_bounds = array<i64: 8, 128>}, {transform_indices = @transform_4, window_bounds = array<i64: 1, 128, 384>}, {transform_indices = @transform_5, window_bounds = array<i64: 1, 1, 384>}, {transform_indices = @transform_6, window_bounds = array<i64: 1, 128, 128>}, {transform_indices = @transform_7, window_bounds = array<i64: 1, 1, 128>}, {transform_indices = @transform_8, window_bounds = array<i64: 1, 1, 128>}, {transform_indices = @transform_9, window_bounds = array<i64: 1, 1, 128>}, {transform_indices = @transform_10, window_bounds = array<i64: 1, 128, 256>}, {transform_indices = @transform_11, window_bounds = array<i64: 1, 1, 256>}, {transform_indices = @transform_12, window_bounds = array<i64: 1, 256, 128>}, {transform_indices = @transform_13, window_bounds = array<i64: 1, 1, 128>}, {transform_indices = @transform_14, window_bounds = array<i64: 1, 1, 128>}, {transform_indices = @transform_15, window_bounds = array<i64: 1, 1, 128>}, {pipeline_mode = #tpu.pipeline_mode<synchronous>, transform_indices = @transform_16, window_bounds = array<i64: 1, 128>}, {pipeline_mode = #tpu.pipeline_mode<synchronous>, transform_indices = @transform_17, window_bounds = array<i64: 1, 128>}, {pipeline_mode = #tpu.pipeline_mode<synchronous>, transform_indices = @transform_18, window_bounds = array<i64: 128, 64>}, {pipeline_mode = #tpu.pipeline_mode<synchronous>, transform_indices = @transform_19, window_bounds = array<i64: 1, 64>}, {pipeline_mode = #tpu.pipeline_mode<synchronous>, transform_indices = @transform_20, window_bounds = array<i64: 64, 32>}, {pipeline_mode = #tpu.pipeline_mode<synchronous>, transform_indices = @transform_21, window_bounds = array<i64: 1, 32>}, {pipeline_mode = #tpu.pipeline_mode<synchronous>, transform_indices = @transform_22, window_bounds = array<i64: 32, 128>}, {pipeline_mode = #tpu.pipeline_mode<synchronous>, transform_indices = @transform_23, window_bounds = array<i64: 1, 128>}, {transform_indices = @transform_24, window_bounds = array<i64: 1, 4, 128>}]} {
    %c0_i32 = arith.constant 0 : i32
    %0 = arith.cmpi eq, %arg1, %c0_i32 : i32
    %1 = arith.extui %0 : i1 to i32
    %c0_i32_0 = arith.constant 0 : i32
    %2 = arith.cmpi ne, %1, %c0_i32_0 : i32
    scf.if %2 {
      %c0_97 = arith.constant 0 : index
      %c0_98 = arith.constant 0 : index
      %c0_99 = arith.constant 0 : index
      %295 = vector.load %arg2[%c0_97, %c0_98, %c0_99] : memref<4x8x16xf32, #tpu.memory_space<vmem>>, vector<4x8x16xf32>
      %296 = vector.shape_cast %295 : vector<4x8x16xf32> to vector<32x16xf32>
      %297 = arith.truncf %296 : vector<32x16xf32> to vector<32x16xbf16>
      %c0_100 = arith.constant 0 : index
      %c0_101 = arith.constant 0 : index
      %298 = vector.load %arg3[%c0_100, %c0_101] : memref<16x128xbf16, #tpu.memory_space<vmem>>, vector<16x128xbf16>
      %cst_102 = arith.constant dense<0.000000e+00> : vector<32x128xf32>
      %299 = tpu.matmul %297, %298, %cst_102 {dimension_numbers = #tpu.dot_dimension_numbers<[1], [0], [0], [1], [0, 0, 1, 1], [], []>} : vector<32x16xbf16>, vector<16x128xbf16>, vector<32x128xf32> -> vector<32x128xf32>
      %c0_103 = arith.constant 0 : index
      %c0_104 = arith.constant 0 : index
      %300 = vector.load %arg4[%c0_103, %c0_104] : memref<1x128xf32, #tpu.memory_space<vmem>>, vector<1x128xf32>
      %301 = vector.broadcast %300 : vector<1x128xf32> to vector<32x128xf32>
      %302 = arith.addf %299, %301 : vector<32x128xf32>
      %303 = vector.shape_cast %302 : vector<32x128xf32> to vector<4x8x128xf32>
      %c0_105 = arith.constant 0 : index
      %c0_106 = arith.constant 0 : index
      %304 = vector.load %arg5[%c0_105, %c0_106] : memref<8x128xf32, #tpu.memory_space<vmem>>, vector<8x128xf32>
      %305 = vector.shape_cast %304 : vector<8x128xf32> to vector<1x8x128xf32>
      %306 = vector.broadcast %305 : vector<1x8x128xf32> to vector<4x8x128xf32>
      %307 = arith.addf %303, %306 : vector<4x8x128xf32>
      %308 = vector.shape_cast %307 : vector<4x8x128xf32> to vector<32x128xf32>
      %c0_107 = arith.constant 0 : index
      %c0_108 = arith.constant 0 : index
      %309 = vector.load %arg27[%c0_107, %c0_108] : memref<32x128xf32, #tpu.memory_space<vmem>>, vector<32x128xf32>
      tpu.vector_store %arg27[%c0_107, %c0_108], %308 {strides = array<i32>} : memref<32x128xf32, #tpu.memory_space<vmem>>, vector<32x128xf32>,
    } else {
    }
    %c0 = arith.constant 0 : index
    %c0_1 = arith.constant 0 : index
    %3 = vector.load %arg27[%c0, %c0_1] : memref<32x128xf32, #tpu.memory_space<vmem>>, vector<32x128xf32>
    %4 = arith.truncf %3 : vector<32x128xf32> to vector<32x128xbf16>
    %c0_2 = arith.constant 0 : index
    %c0_3 = arith.constant 0 : index
    %c0_4 = arith.constant 0 : index
    %5 = vector.load %arg6[%c0_2, %c0_3, %c0_4] : memref<1x128x384xbf16, #tpu.memory_space<vmem>>, vector<1x128x384xbf16>
    %6 = vector.shape_cast %5 : vector<1x128x384xbf16> to vector<128x384xbf16>
    %cst = arith.constant dense<0.000000e+00> : vector<32x384xf32>
    %7 = tpu.matmul %4, %6, %cst {dimension_numbers = #tpu.dot_dimension_numbers<[1], [0], [0], [1], [0, 0, 1, 1], [], []>} : vector<32x128xbf16>, vector<128x384xbf16>, vector<32x384xf32> -> vector<32x384xf32>
    %c0_5 = arith.constant 0 : index
    %c0_6 = arith.constant 0 : index
    %c0_7 = arith.constant 0 : index
    %8 = vector.load %arg7[%c0_5, %c0_6, %c0_7] : memref<1x1x384xf32, #tpu.memory_space<vmem>>, vector<1x1x384xf32>
    %9 = vector.shape_cast %8 : vector<1x1x384xf32> to vector<1x384xf32>
    %10 = vector.broadcast %9 : vector<1x384xf32> to vector<32x384xf32>
    %11 = arith.addf %7, %10 : vector<32x384xf32>
    %12 = vector.extract_strided_slice %11 {offsets = [0, 0], sizes = [32, 128], strides = [1, 1]} : vector<32x384xf32> to vector<32x128xf32>
    %13 = vector.shape_cast %12 : vector<32x128xf32> to vector<4x8x128xf32>
    %14 = vector.extract_strided_slice %11 {offsets = [0, 128], sizes = [32, 128], strides = [1, 1]} : vector<32x384xf32> to vector<32x128xf32>
    %15 = vector.shape_cast %14 : vector<32x128xf32> to vector<4x8x128xf32>
    %16 = vector.extract_strided_slice %11 {offsets = [0, 256], sizes = [32, 128], strides = [1, 1]} : vector<32x384xf32> to vector<32x128xf32>
    %17 = vector.shape_cast %16 : vector<32x128xf32> to vector<4x8x128xf32>
    %c0_8 = arith.constant 0 : index
    %c0_9 = arith.constant 0 : index
    %c0_10 = arith.constant 0 : index
    %18 = vector.load %arg8[%c0_8, %c0_9, %c0_10] : memref<1x128x128xbf16, #tpu.memory_space<vmem>>, vector<1x128x128xbf16>
    %19 = vector.shape_cast %18 : vector<1x128x128xbf16> to vector<128x128xbf16>
    %cst_11 = arith.constant 0.000000e+00 : f32
    %20 = vector.broadcast %cst_11 : f32 to vector<32x128xf32>
    %21 = vector.extract_strided_slice %13 {offsets = [0, 0, 0], sizes = [4, 8, 16], strides = [1, 1, 1]} : vector<4x8x128xf32> to vector<4x8x16xf32>
    %22 = arith.truncf %21 : vector<4x8x16xf32> to vector<4x8x16xbf16>
    %23 = vector.extract_strided_slice %15 {offsets = [0, 0, 0], sizes = [4, 8, 16], strides = [1, 1, 1]} : vector<4x8x128xf32> to vector<4x8x16xf32>
    %24 = arith.truncf %23 : vector<4x8x16xf32> to vector<4x8x16xbf16>
    %25 = vector.extract_strided_slice %17 {offsets = [0, 0, 0], sizes = [4, 8, 16], strides = [1, 1, 1]} : vector<4x8x128xf32> to vector<4x8x16xf32>
    %26 = arith.truncf %25 : vector<4x8x16xf32> to vector<4x8x16xbf16>
    "tpu.trace_start"() <{level = 10 : i32, message = "bqd,bkd->bqk"}> : () -> ()
    %cst_12 = arith.constant dense<0.000000e+00> : vector<4x8x8xf32>
    %27 = tpu.matmul %22, %24, %cst_12 {dimension_numbers = #tpu.dot_dimension_numbers<[2], [2], [1], [1], [0, 0, 0, 1, 1, 1], [0], [0]>} : vector<4x8x16xbf16>, vector<4x8x16xbf16>, vector<4x8x8xf32> -> vector<4x8x8xf32>
    "tpu.trace_stop"() : () -> ()
    %cst_13 = arith.constant dense<0xFF800000> : vector<4x8xf32>
    %28 = vector.multi_reduction <maximumf>, %27, %cst_13 [2] : vector<4x8x8xf32> to vector<4x8xf32>
    %29 = vector.shape_cast %28 : vector<4x8xf32> to vector<4x8x1xf32>
    %30 = vector.broadcast %29 : vector<4x8x1xf32> to vector<4x8x8xf32>
    %31 = arith.subf %27, %30 : vector<4x8x8xf32>
    %32 = math.exp %31 : vector<4x8x8xf32>
    %cst_14 = arith.constant dense<0.000000e+00> : vector<4x8xf32>
    %33 = vector.multi_reduction <add>, %32, %cst_14 [2] : vector<4x8x8xf32> to vector<4x8xf32>
    %34 = vector.shape_cast %33 : vector<4x8xf32> to vector<4x8x1xf32>
    %35 = tpu.reciprocal %34 {approx = true} : vector<4x8x1xf32> -> vector<4x8x1xf32>
    %36 = vector.broadcast %35 : vector<4x8x1xf32> to vector<4x8x8xf32>
    %37 = arith.mulf %32, %36 : vector<4x8x8xf32>
    %38 = arith.truncf %37 : vector<4x8x8xf32> to vector<4x8x8xbf16>
    "tpu.trace_start"() <{level = 10 : i32, message = "bqk,bkd->bqd"}> : () -> ()
    %cst_15 = arith.constant dense<0.000000e+00> : vector<4x8x16xf32>
    %39 = tpu.matmul %38, %26, %cst_15 {dimension_numbers = #tpu.dot_dimension_numbers<[2], [1], [1], [2], [0, 0, 0, 1, 1, 2], [0], [0]>} : vector<4x8x8xbf16>, vector<4x8x16xbf16>, vector<4x8x16xf32> -> vector<4x8x16xf32>
    "tpu.trace_stop"() : () -> ()
    %40 = vector.shape_cast %39 : vector<4x8x16xf32> to vector<32x16xf32>
    %41 = arith.truncf %40 : vector<32x16xf32> to vector<32x16xbf16>
    %42 = vector.extract_strided_slice %19 {offsets = [0, 0], sizes = [16, 128], strides = [1, 1]} : vector<128x128xbf16> to vector<16x128xbf16>
    %cst_16 = arith.constant dense<0.000000e+00> : vector<32x128xf32>
    %43 = tpu.matmul %41, %42, %cst_16 {dimension_numbers = #tpu.dot_dimension_numbers<[1], [0], [0], [1], [0, 0, 1, 1], [], []>} : vector<32x16xbf16>, vector<16x128xbf16>, vector<32x128xf32> -> vector<32x128xf32>
    %44 = arith.addf %20, %43 : vector<32x128xf32>
    %45 = vector.extract_strided_slice %13 {offsets = [0, 0, 16], sizes = [4, 8, 16], strides = [1, 1, 1]} : vector<4x8x128xf32> to vector<4x8x16xf32>
    %46 = arith.truncf %45 : vector<4x8x16xf32> to vector<4x8x16xbf16>
    %47 = vector.extract_strided_slice %15 {offsets = [0, 0, 16], sizes = [4, 8, 16], strides = [1, 1, 1]} : vector<4x8x128xf32> to vector<4x8x16xf32>
    %48 = arith.truncf %47 : vector<4x8x16xf32> to vector<4x8x16xbf16>
    %49 = vector.extract_strided_slice %17 {offsets = [0, 0, 16], sizes = [4, 8, 16], strides = [1, 1, 1]} : vector<4x8x128xf32> to vector<4x8x16xf32>
    %50 = arith.truncf %49 : vector<4x8x16xf32> to vector<4x8x16xbf16>
    "tpu.trace_start"() <{level = 10 : i32, message = "bqd,bkd->bqk"}> : () -> ()
    %cst_17 = arith.constant dense<0.000000e+00> : vector<4x8x8xf32>
    %51 = tpu.matmul %46, %48, %cst_17 {dimension_numbers = #tpu.dot_dimension_numbers<[2], [2], [1], [1], [0, 0, 0, 1, 1, 1], [0], [0]>} : vector<4x8x16xbf16>, vector<4x8x16xbf16>, vector<4x8x8xf32> -> vector<4x8x8xf32>
    "tpu.trace_stop"() : () -> ()
    %cst_18 = arith.constant dense<0xFF800000> : vector<4x8xf32>
    %52 = vector.multi_reduction <maximumf>, %51, %cst_18 [2] : vector<4x8x8xf32> to vector<4x8xf32>
    %53 = vector.shape_cast %52 : vector<4x8xf32> to vector<4x8x1xf32>
    %54 = vector.broadcast %53 : vector<4x8x1xf32> to vector<4x8x8xf32>
    %55 = arith.subf %51, %54 : vector<4x8x8xf32>
    %56 = math.exp %55 : vector<4x8x8xf32>
    %cst_19 = arith.constant dense<0.000000e+00> : vector<4x8xf32>
    %57 = vector.multi_reduction <add>, %56, %cst_19 [2] : vector<4x8x8xf32> to vector<4x8xf32>
    %58 = vector.shape_cast %57 : vector<4x8xf32> to vector<4x8x1xf32>
    %59 = tpu.reciprocal %58 {approx = true} : vector<4x8x1xf32> -> vector<4x8x1xf32>
    %60 = vector.broadcast %59 : vector<4x8x1xf32> to vector<4x8x8xf32>
    %61 = arith.mulf %56, %60 : vector<4x8x8xf32>
    %62 = arith.truncf %61 : vector<4x8x8xf32> to vector<4x8x8xbf16>
    "tpu.trace_start"() <{level = 10 : i32, message = "bqk,bkd->bqd"}> : () -> ()
    %cst_20 = arith.constant dense<0.000000e+00> : vector<4x8x16xf32>
    %63 = tpu.matmul %62, %50, %cst_20 {dimension_numbers = #tpu.dot_dimension_numbers<[2], [1], [1], [2], [0, 0, 0, 1, 1, 2], [0], [0]>} : vector<4x8x8xbf16>, vector<4x8x16xbf16>, vector<4x8x16xf32> -> vector<4x8x16xf32>
    "tpu.trace_stop"() : () -> ()
    %64 = vector.shape_cast %63 : vector<4x8x16xf32> to vector<32x16xf32>
    %65 = arith.truncf %64 : vector<32x16xf32> to vector<32x16xbf16>
    %66 = vector.extract_strided_slice %19 {offsets = [16, 0], sizes = [16, 128], strides = [1, 1]} : vector<128x128xbf16> to vector<16x128xbf16>
    %cst_21 = arith.constant dense<0.000000e+00> : vector<32x128xf32>
    %67 = tpu.matmul %65, %66, %cst_21 {dimension_numbers = #tpu.dot_dimension_numbers<[1], [0], [0], [1], [0, 0, 1, 1], [], []>} : vector<32x16xbf16>, vector<16x128xbf16>, vector<32x128xf32> -> vector<32x128xf32>
    %68 = arith.addf %44, %67 : vector<32x128xf32>
    %69 = vector.extract_strided_slice %13 {offsets = [0, 0, 32], sizes = [4, 8, 16], strides = [1, 1, 1]} : vector<4x8x128xf32> to vector<4x8x16xf32>
    %70 = arith.truncf %69 : vector<4x8x16xf32> to vector<4x8x16xbf16>
    %71 = vector.extract_strided_slice %15 {offsets = [0, 0, 32], sizes = [4, 8, 16], strides = [1, 1, 1]} : vector<4x8x128xf32> to vector<4x8x16xf32>
    %72 = arith.truncf %71 : vector<4x8x16xf32> to vector<4x8x16xbf16>
    %73 = vector.extract_strided_slice %17 {offsets = [0, 0, 32], sizes = [4, 8, 16], strides = [1, 1, 1]} : vector<4x8x128xf32> to vector<4x8x16xf32>
    %74 = arith.truncf %73 : vector<4x8x16xf32> to vector<4x8x16xbf16>
    "tpu.trace_start"() <{level = 10 : i32, message = "bqd,bkd->bqk"}> : () -> ()
    %cst_22 = arith.constant dense<0.000000e+00> : vector<4x8x8xf32>
    %75 = tpu.matmul %70, %72, %cst_22 {dimension_numbers = #tpu.dot_dimension_numbers<[2], [2], [1], [1], [0, 0, 0, 1, 1, 1], [0], [0]>} : vector<4x8x16xbf16>, vector<4x8x16xbf16>, vector<4x8x8xf32> -> vector<4x8x8xf32>
    "tpu.trace_stop"() : () -> ()
    %cst_23 = arith.constant dense<0xFF800000> : vector<4x8xf32>
    %76 = vector.multi_reduction <maximumf>, %75, %cst_23 [2] : vector<4x8x8xf32> to vector<4x8xf32>
    %77 = vector.shape_cast %76 : vector<4x8xf32> to vector<4x8x1xf32>
    %78 = vector.broadcast %77 : vector<4x8x1xf32> to vector<4x8x8xf32>
    %79 = arith.subf %75, %78 : vector<4x8x8xf32>
    %80 = math.exp %79 : vector<4x8x8xf32>
    %cst_24 = arith.constant dense<0.000000e+00> : vector<4x8xf32>
    %81 = vector.multi_reduction <add>, %80, %cst_24 [2] : vector<4x8x8xf32> to vector<4x8xf32>
    %82 = vector.shape_cast %81 : vector<4x8xf32> to vector<4x8x1xf32>
    %83 = tpu.reciprocal %82 {approx = true} : vector<4x8x1xf32> -> vector<4x8x1xf32>
    %84 = vector.broadcast %83 : vector<4x8x1xf32> to vector<4x8x8xf32>
    %85 = arith.mulf %80, %84 : vector<4x8x8xf32>
    %86 = arith.truncf %85 : vector<4x8x8xf32> to vector<4x8x8xbf16>
    "tpu.trace_start"() <{level = 10 : i32, message = "bqk,bkd->bqd"}> : () -> ()
    %cst_25 = arith.constant dense<0.000000e+00> : vector<4x8x16xf32>
    %87 = tpu.matmul %86, %74, %cst_25 {dimension_numbers = #tpu.dot_dimension_numbers<[2], [1], [1], [2], [0, 0, 0, 1, 1, 2], [0], [0]>} : vector<4x8x8xbf16>, vector<4x8x16xbf16>, vector<4x8x16xf32> -> vector<4x8x16xf32>
    "tpu.trace_stop"() : () -> ()
    %88 = vector.shape_cast %87 : vector<4x8x16xf32> to vector<32x16xf32>
    %89 = arith.truncf %88 : vector<32x16xf32> to vector<32x16xbf16>
    %90 = vector.extract_strided_slice %19 {offsets = [32, 0], sizes = [16, 128], strides = [1, 1]} : vector<128x128xbf16> to vector<16x128xbf16>
    %cst_26 = arith.constant dense<0.000000e+00> : vector<32x128xf32>
    %91 = tpu.matmul %89, %90, %cst_26 {dimension_numbers = #tpu.dot_dimension_numbers<[1], [0], [0], [1], [0, 0, 1, 1], [], []>} : vector<32x16xbf16>, vector<16x128xbf16>, vector<32x128xf32> -> vector<32x128xf32>
    %92 = arith.addf %68, %91 : vector<32x128xf32>
    %93 = vector.extract_strided_slice %13 {offsets = [0, 0, 48], sizes = [4, 8, 16], strides = [1, 1, 1]} : vector<4x8x128xf32> to vector<4x8x16xf32>
    %94 = arith.truncf %93 : vector<4x8x16xf32> to vector<4x8x16xbf16>
    %95 = vector.extract_strided_slice %15 {offsets = [0, 0, 48], sizes = [4, 8, 16], strides = [1, 1, 1]} : vector<4x8x128xf32> to vector<4x8x16xf32>
    %96 = arith.truncf %95 : vector<4x8x16xf32> to vector<4x8x16xbf16>
    %97 = vector.extract_strided_slice %17 {offsets = [0, 0, 48], sizes = [4, 8, 16], strides = [1, 1, 1]} : vector<4x8x128xf32> to vector<4x8x16xf32>
    %98 = arith.truncf %97 : vector<4x8x16xf32> to vector<4x8x16xbf16>
    "tpu.trace_start"() <{level = 10 : i32, message = "bqd,bkd->bqk"}> : () -> ()
    %cst_27 = arith.constant dense<0.000000e+00> : vector<4x8x8xf32>
    %99 = tpu.matmul %94, %96, %cst_27 {dimension_numbers = #tpu.dot_dimension_numbers<[2], [2], [1], [1], [0, 0, 0, 1, 1, 1], [0], [0]>} : vector<4x8x16xbf16>, vector<4x8x16xbf16>, vector<4x8x8xf32> -> vector<4x8x8xf32>
    "tpu.trace_stop"() : () -> ()
    %cst_28 = arith.constant dense<0xFF800000> : vector<4x8xf32>
    %100 = vector.multi_reduction <maximumf>, %99, %cst_28 [2] : vector<4x8x8xf32> to vector<4x8xf32>
    %101 = vector.shape_cast %100 : vector<4x8xf32> to vector<4x8x1xf32>
    %102 = vector.broadcast %101 : vector<4x8x1xf32> to vector<4x8x8xf32>
    %103 = arith.subf %99, %102 : vector<4x8x8xf32>
    %104 = math.exp %103 : vector<4x8x8xf32>
    %cst_29 = arith.constant dense<0.000000e+00> : vector<4x8xf32>
    %105 = vector.multi_reduction <add>, %104, %cst_29 [2] : vector<4x8x8xf32> to vector<4x8xf32>
    %106 = vector.shape_cast %105 : vector<4x8xf32> to vector<4x8x1xf32>
    %107 = tpu.reciprocal %106 {approx = true} : vector<4x8x1xf32> -> vector<4x8x1xf32>
    %108 = vector.broadcast %107 : vector<4x8x1xf32> to vector<4x8x8xf32>
    %109 = arith.mulf %104, %108 : vector<4x8x8xf32>
    %110 = arith.truncf %109 : vector<4x8x8xf32> to vector<4x8x8xbf16>
    "tpu.trace_start"() <{level = 10 : i32, message = "bqk,bkd->bqd"}> : () -> ()
    %cst_30 = arith.constant dense<0.000000e+00> : vector<4x8x16xf32>
    %111 = tpu.matmul %110, %98, %cst_30 {dimension_numbers = #tpu.dot_dimension_numbers<[2], [1], [1], [2], [0, 0, 0, 1, 1, 2], [0], [0]>} : vector<4x8x8xbf16>, vector<4x8x16xbf16>, vector<4x8x16xf32> -> vector<4x8x16xf32>
    "tpu.trace_stop"() : () -> ()
    %112 = vector.shape_cast %111 : vector<4x8x16xf32> to vector<32x16xf32>
    %113 = arith.truncf %112 : vector<32x16xf32> to vector<32x16xbf16>
    %114 = vector.extract_strided_slice %19 {offsets = [48, 0], sizes = [16, 128], strides = [1, 1]} : vector<128x128xbf16> to vector<16x128xbf16>
    %cst_31 = arith.constant dense<0.000000e+00> : vector<32x128xf32>
    %115 = tpu.matmul %113, %114, %cst_31 {dimension_numbers = #tpu.dot_dimension_numbers<[1], [0], [0], [1], [0, 0, 1, 1], [], []>} : vector<32x16xbf16>, vector<16x128xbf16>, vector<32x128xf32> -> vector<32x128xf32>
    %116 = arith.addf %92, %115 : vector<32x128xf32>
    %117 = vector.extract_strided_slice %13 {offsets = [0, 0, 64], sizes = [4, 8, 16], strides = [1, 1, 1]} : vector<4x8x128xf32> to vector<4x8x16xf32>
    %118 = arith.truncf %117 : vector<4x8x16xf32> to vector<4x8x16xbf16>
    %119 = vector.extract_strided_slice %15 {offsets = [0, 0, 64], sizes = [4, 8, 16], strides = [1, 1, 1]} : vector<4x8x128xf32> to vector<4x8x16xf32>
    %120 = arith.truncf %119 : vector<4x8x16xf32> to vector<4x8x16xbf16>
    %121 = vector.extract_strided_slice %17 {offsets = [0, 0, 64], sizes = [4, 8, 16], strides = [1, 1, 1]} : vector<4x8x128xf32> to vector<4x8x16xf32>
    %122 = arith.truncf %121 : vector<4x8x16xf32> to vector<4x8x16xbf16>
    "tpu.trace_start"() <{level = 10 : i32, message = "bqd,bkd->bqk"}> : () -> ()
    %cst_32 = arith.constant dense<0.000000e+00> : vector<4x8x8xf32>
    %123 = tpu.matmul %118, %120, %cst_32 {dimension_numbers = #tpu.dot_dimension_numbers<[2], [2], [1], [1], [0, 0, 0, 1, 1, 1], [0], [0]>} : vector<4x8x16xbf16>, vector<4x8x16xbf16>, vector<4x8x8xf32> -> vector<4x8x8xf32>
    "tpu.trace_stop"() : () -> ()
    %cst_33 = arith.constant dense<0xFF800000> : vector<4x8xf32>
    %124 = vector.multi_reduction <maximumf>, %123, %cst_33 [2] : vector<4x8x8xf32> to vector<4x8xf32>
    %125 = vector.shape_cast %124 : vector<4x8xf32> to vector<4x8x1xf32>
    %126 = vector.broadcast %125 : vector<4x8x1xf32> to vector<4x8x8xf32>
    %127 = arith.subf %123, %126 : vector<4x8x8xf32>
    %128 = math.exp %127 : vector<4x8x8xf32>
    %cst_34 = arith.constant dense<0.000000e+00> : vector<4x8xf32>
    %129 = vector.multi_reduction <add>, %128, %cst_34 [2] : vector<4x8x8xf32> to vector<4x8xf32>
    %130 = vector.shape_cast %129 : vector<4x8xf32> to vector<4x8x1xf32>
    %131 = tpu.reciprocal %130 {approx = true} : vector<4x8x1xf32> -> vector<4x8x1xf32>
    %132 = vector.broadcast %131 : vector<4x8x1xf32> to vector<4x8x8xf32>
    %133 = arith.mulf %128, %132 : vector<4x8x8xf32>
    %134 = arith.truncf %133 : vector<4x8x8xf32> to vector<4x8x8xbf16>
    "tpu.trace_start"() <{level = 10 : i32, message = "bqk,bkd->bqd"}> : () -> ()
    %cst_35 = arith.constant dense<0.000000e+00> : vector<4x8x16xf32>
    %135 = tpu.matmul %134, %122, %cst_35 {dimension_numbers = #tpu.dot_dimension_numbers<[2], [1], [1], [2], [0, 0, 0, 1, 1, 2], [0], [0]>} : vector<4x8x8xbf16>, vector<4x8x16xbf16>, vector<4x8x16xf32> -> vector<4x8x16xf32>
    "tpu.trace_stop"() : () -> ()
    %136 = vector.shape_cast %135 : vector<4x8x16xf32> to vector<32x16xf32>
    %137 = arith.truncf %136 : vector<32x16xf32> to vector<32x16xbf16>
    %138 = vector.extract_strided_slice %19 {offsets = [64, 0], sizes = [16, 128], strides = [1, 1]} : vector<128x128xbf16> to vector<16x128xbf16>
    %cst_36 = arith.constant dense<0.000000e+00> : vector<32x128xf32>
    %139 = tpu.matmul %137, %138, %cst_36 {dimension_numbers = #tpu.dot_dimension_numbers<[1], [0], [0], [1], [0, 0, 1, 1], [], []>} : vector<32x16xbf16>, vector<16x128xbf16>, vector<32x128xf32> -> vector<32x128xf32>
    %140 = arith.addf %116, %139 : vector<32x128xf32>
    %141 = vector.extract_strided_slice %13 {offsets = [0, 0, 80], sizes = [4, 8, 16], strides = [1, 1, 1]} : vector<4x8x128xf32> to vector<4x8x16xf32>
    %142 = arith.truncf %141 : vector<4x8x16xf32> to vector<4x8x16xbf16>
    %143 = vector.extract_strided_slice %15 {offsets = [0, 0, 80], sizes = [4, 8, 16], strides = [1, 1, 1]} : vector<4x8x128xf32> to vector<4x8x16xf32>
    %144 = arith.truncf %143 : vector<4x8x16xf32> to vector<4x8x16xbf16>
    %145 = vector.extract_strided_slice %17 {offsets = [0, 0, 80], sizes = [4, 8, 16], strides = [1, 1, 1]} : vector<4x8x128xf32> to vector<4x8x16xf32>
    %146 = arith.truncf %145 : vector<4x8x16xf32> to vector<4x8x16xbf16>
    "tpu.trace_start"() <{level = 10 : i32, message = "bqd,bkd->bqk"}> : () -> ()
    %cst_37 = arith.constant dense<0.000000e+00> : vector<4x8x8xf32>
    %147 = tpu.matmul %142, %144, %cst_37 {dimension_numbers = #tpu.dot_dimension_numbers<[2], [2], [1], [1], [0, 0, 0, 1, 1, 1], [0], [0]>} : vector<4x8x16xbf16>, vector<4x8x16xbf16>, vector<4x8x8xf32> -> vector<4x8x8xf32>
    "tpu.trace_stop"() : () -> ()
    %cst_38 = arith.constant dense<0xFF800000> : vector<4x8xf32>
    %148 = vector.multi_reduction <maximumf>, %147, %cst_38 [2] : vector<4x8x8xf32> to vector<4x8xf32>
    %149 = vector.shape_cast %148 : vector<4x8xf32> to vector<4x8x1xf32>
    %150 = vector.broadcast %149 : vector<4x8x1xf32> to vector<4x8x8xf32>
    %151 = arith.subf %147, %150 : vector<4x8x8xf32>
    %152 = math.exp %151 : vector<4x8x8xf32>
    %cst_39 = arith.constant dense<0.000000e+00> : vector<4x8xf32>
    %153 = vector.multi_reduction <add>, %152, %cst_39 [2] : vector<4x8x8xf32> to vector<4x8xf32>
    %154 = vector.shape_cast %153 : vector<4x8xf32> to vector<4x8x1xf32>
    %155 = tpu.reciprocal %154 {approx = true} : vector<4x8x1xf32> -> vector<4x8x1xf32>
    %156 = vector.broadcast %155 : vector<4x8x1xf32> to vector<4x8x8xf32>
    %157 = arith.mulf %152, %156 : vector<4x8x8xf32>
    %158 = arith.truncf %157 : vector<4x8x8xf32> to vector<4x8x8xbf16>
    "tpu.trace_start"() <{level = 10 : i32, message = "bqk,bkd->bqd"}> : () -> ()
    %cst_40 = arith.constant dense<0.000000e+00> : vector<4x8x16xf32>
    %159 = tpu.matmul %158, %146, %cst_40 {dimension_numbers = #tpu.dot_dimension_numbers<[2], [1], [1], [2], [0, 0, 0, 1, 1, 2], [0], [0]>} : vector<4x8x8xbf16>, vector<4x8x16xbf16>, vector<4x8x16xf32> -> vector<4x8x16xf32>
    "tpu.trace_stop"() : () -> ()
    %160 = vector.shape_cast %159 : vector<4x8x16xf32> to vector<32x16xf32>
    %161 = arith.truncf %160 : vector<32x16xf32> to vector<32x16xbf16>
    %162 = vector.extract_strided_slice %19 {offsets = [80, 0], sizes = [16, 128], strides = [1, 1]} : vector<128x128xbf16> to vector<16x128xbf16>
    %cst_41 = arith.constant dense<0.000000e+00> : vector<32x128xf32>
    %163 = tpu.matmul %161, %162, %cst_41 {dimension_numbers = #tpu.dot_dimension_numbers<[1], [0], [0], [1], [0, 0, 1, 1], [], []>} : vector<32x16xbf16>, vector<16x128xbf16>, vector<32x128xf32> -> vector<32x128xf32>
    %164 = arith.addf %140, %163 : vector<32x128xf32>
    %165 = vector.extract_strided_slice %13 {offsets = [0, 0, 96], sizes = [4, 8, 16], strides = [1, 1, 1]} : vector<4x8x128xf32> to vector<4x8x16xf32>
    %166 = arith.truncf %165 : vector<4x8x16xf32> to vector<4x8x16xbf16>
    %167 = vector.extract_strided_slice %15 {offsets = [0, 0, 96], sizes = [4, 8, 16], strides = [1, 1, 1]} : vector<4x8x128xf32> to vector<4x8x16xf32>
    %168 = arith.truncf %167 : vector<4x8x16xf32> to vector<4x8x16xbf16>
    %169 = vector.extract_strided_slice %17 {offsets = [0, 0, 96], sizes = [4, 8, 16], strides = [1, 1, 1]} : vector<4x8x128xf32> to vector<4x8x16xf32>
    %170 = arith.truncf %169 : vector<4x8x16xf32> to vector<4x8x16xbf16>
    "tpu.trace_start"() <{level = 10 : i32, message = "bqd,bkd->bqk"}> : () -> ()
    %cst_42 = arith.constant dense<0.000000e+00> : vector<4x8x8xf32>
    %171 = tpu.matmul %166, %168, %cst_42 {dimension_numbers = #tpu.dot_dimension_numbers<[2], [2], [1], [1], [0, 0, 0, 1, 1, 1], [0], [0]>} : vector<4x8x16xbf16>, vector<4x8x16xbf16>, vector<4x8x8xf32> -> vector<4x8x8xf32>
    "tpu.trace_stop"() : () -> ()
    %cst_43 = arith.constant dense<0xFF800000> : vector<4x8xf32>
    %172 = vector.multi_reduction <maximumf>, %171, %cst_43 [2] : vector<4x8x8xf32> to vector<4x8xf32>
    %173 = vector.shape_cast %172 : vector<4x8xf32> to vector<4x8x1xf32>
    %174 = vector.broadcast %173 : vector<4x8x1xf32> to vector<4x8x8xf32>
    %175 = arith.subf %171, %174 : vector<4x8x8xf32>
    %176 = math.exp %175 : vector<4x8x8xf32>
    %cst_44 = arith.constant dense<0.000000e+00> : vector<4x8xf32>
    %177 = vector.multi_reduction <add>, %176, %cst_44 [2] : vector<4x8x8xf32> to vector<4x8xf32>
    %178 = vector.shape_cast %177 : vector<4x8xf32> to vector<4x8x1xf32>
    %179 = tpu.reciprocal %178 {approx = true} : vector<4x8x1xf32> -> vector<4x8x1xf32>
    %180 = vector.broadcast %179 : vector<4x8x1xf32> to vector<4x8x8xf32>
    %181 = arith.mulf %176, %180 : vector<4x8x8xf32>
    %182 = arith.truncf %181 : vector<4x8x8xf32> to vector<4x8x8xbf16>
    "tpu.trace_start"() <{level = 10 : i32, message = "bqk,bkd->bqd"}> : () -> ()
    %cst_45 = arith.constant dense<0.000000e+00> : vector<4x8x16xf32>
    %183 = tpu.matmul %182, %170, %cst_45 {dimension_numbers = #tpu.dot_dimension_numbers<[2], [1], [1], [2], [0, 0, 0, 1, 1, 2], [0], [0]>} : vector<4x8x8xbf16>, vector<4x8x16xbf16>, vector<4x8x16xf32> -> vector<4x8x16xf32>
    "tpu.trace_stop"() : () -> ()
    %184 = vector.shape_cast %183 : vector<4x8x16xf32> to vector<32x16xf32>
    %185 = arith.truncf %184 : vector<32x16xf32> to vector<32x16xbf16>
    %186 = vector.extract_strided_slice %19 {offsets = [96, 0], sizes = [16, 128], strides = [1, 1]} : vector<128x128xbf16> to vector<16x128xbf16>
    %cst_46 = arith.constant dense<0.000000e+00> : vector<32x128xf32>
    %187 = tpu.matmul %185, %186, %cst_46 {dimension_numbers = #tpu.dot_dimension_numbers<[1], [0], [0], [1], [0, 0, 1, 1], [], []>} : vector<32x16xbf16>, vector<16x128xbf16>, vector<32x128xf32> -> vector<32x128xf32>
    %188 = arith.addf %164, %187 : vector<32x128xf32>
    %189 = vector.extract_strided_slice %13 {offsets = [0, 0, 112], sizes = [4, 8, 16], strides = [1, 1, 1]} : vector<4x8x128xf32> to vector<4x8x16xf32>
    %190 = arith.truncf %189 : vector<4x8x16xf32> to vector<4x8x16xbf16>
    %191 = vector.extract_strided_slice %15 {offsets = [0, 0, 112], sizes = [4, 8, 16], strides = [1, 1, 1]} : vector<4x8x128xf32> to vector<4x8x16xf32>
    %192 = arith.truncf %191 : vector<4x8x16xf32> to vector<4x8x16xbf16>
    %193 = vector.extract_strided_slice %17 {offsets = [0, 0, 112], sizes = [4, 8, 16], strides = [1, 1, 1]} : vector<4x8x128xf32> to vector<4x8x16xf32>
    %194 = arith.truncf %193 : vector<4x8x16xf32> to vector<4x8x16xbf16>
    "tpu.trace_start"() <{level = 10 : i32, message = "bqd,bkd->bqk"}> : () -> ()
    %cst_47 = arith.constant dense<0.000000e+00> : vector<4x8x8xf32>
    %195 = tpu.matmul %190, %192, %cst_47 {dimension_numbers = #tpu.dot_dimension_numbers<[2], [2], [1], [1], [0, 0, 0, 1, 1, 1], [0], [0]>} : vector<4x8x16xbf16>, vector<4x8x16xbf16>, vector<4x8x8xf32> -> vector<4x8x8xf32>
    "tpu.trace_stop"() : () -> ()
    %cst_48 = arith.constant dense<0xFF800000> : vector<4x8xf32>
    %196 = vector.multi_reduction <maximumf>, %195, %cst_48 [2] : vector<4x8x8xf32> to vector<4x8xf32>
    %197 = vector.shape_cast %196 : vector<4x8xf32> to vector<4x8x1xf32>
    %198 = vector.broadcast %197 : vector<4x8x1xf32> to vector<4x8x8xf32>
    %199 = arith.subf %195, %198 : vector<4x8x8xf32>
    %200 = math.exp %199 : vector<4x8x8xf32>
    %cst_49 = arith.constant dense<0.000000e+00> : vector<4x8xf32>
    %201 = vector.multi_reduction <add>, %200, %cst_49 [2] : vector<4x8x8xf32> to vector<4x8xf32>
    %202 = vector.shape_cast %201 : vector<4x8xf32> to vector<4x8x1xf32>
    %203 = tpu.reciprocal %202 {approx = true} : vector<4x8x1xf32> -> vector<4x8x1xf32>
    %204 = vector.broadcast %203 : vector<4x8x1xf32> to vector<4x8x8xf32>
    %205 = arith.mulf %200, %204 : vector<4x8x8xf32>
    %206 = arith.truncf %205 : vector<4x8x8xf32> to vector<4x8x8xbf16>
    "tpu.trace_start"() <{level = 10 : i32, message = "bqk,bkd->bqd"}> : () -> ()
    %cst_50 = arith.constant dense<0.000000e+00> : vector<4x8x16xf32>
    %207 = tpu.matmul %206, %194, %cst_50 {dimension_numbers = #tpu.dot_dimension_numbers<[2], [1], [1], [2], [0, 0, 0, 1, 1, 2], [0], [0]>} : vector<4x8x8xbf16>, vector<4x8x16xbf16>, vector<4x8x16xf32> -> vector<4x8x16xf32>
    "tpu.trace_stop"() : () -> ()
    %208 = vector.shape_cast %207 : vector<4x8x16xf32> to vector<32x16xf32>
    %209 = arith.truncf %208 : vector<32x16xf32> to vector<32x16xbf16>
    %210 = vector.extract_strided_slice %19 {offsets = [112, 0], sizes = [16, 128], strides = [1, 1]} : vector<128x128xbf16> to vector<16x128xbf16>
    %cst_51 = arith.constant dense<0.000000e+00> : vector<32x128xf32>
    %211 = tpu.matmul %209, %210, %cst_51 {dimension_numbers = #tpu.dot_dimension_numbers<[1], [0], [0], [1], [0, 0, 1, 1], [], []>} : vector<32x16xbf16>, vector<16x128xbf16>, vector<32x128xf32> -> vector<32x128xf32>
    %212 = arith.addf %188, %211 : vector<32x128xf32>
    %c0_52 = arith.constant 0 : index
    %c0_53 = arith.constant 0 : index
    %c0_54 = arith.constant 0 : index
    %213 = vector.load %arg9[%c0_52, %c0_53, %c0_54] : memref<1x1x128xf32, #tpu.memory_space<vmem>>, vector<1x1x128xf32>
    %214 = vector.shape_cast %213 : vector<1x1x128xf32> to vector<1x128xf32>
    %215 = vector.broadcast %214 : vector<1x128xf32> to vector<32x128xf32>
    %216 = arith.addf %212, %215 : vector<32x128xf32>
    %217 = arith.addf %3, %216 : vector<32x128xf32>
    %c0_55 = arith.constant 0 : index
    %c0_56 = arith.constant 0 : index
    %c0_57 = arith.constant 0 : index
    %218 = vector.load %arg10[%c0_55, %c0_56, %c0_57] : memref<1x1x128xf32, #tpu.memory_space<vmem>>, vector<1x1x128xf32>
    %219 = vector.shape_cast %218 : vector<1x1x128xf32> to vector<1x128xf32>
    %c0_58 = arith.constant 0 : index
    %c0_59 = arith.constant 0 : index
    %c0_60 = arith.constant 0 : index
    %220 = vector.load %arg11[%c0_58, %c0_59, %c0_60] : memref<1x1x128xf32, #tpu.memory_space<vmem>>, vector<1x1x128xf32>
    %221 = vector.shape_cast %220 : vector<1x1x128xf32> to vector<1x128xf32>
    %cst_61 = arith.constant dense<0.000000e+00> : vector<32xf32>
    %222 = vector.multi_reduction <add>, %217, %cst_61 [1] : vector<32x128xf32> to vector<32xf32>
    %223 = vector.shape_cast %222 : vector<32xf32> to vector<32x1xf32>
    %cst_62 = arith.constant 1.280000e+02 : f32
    %224 = vector.broadcast %cst_62 : f32 to vector<32x1xf32>
    %225 = arith.divf %223, %224 : vector<32x1xf32>
    %226 = vector.broadcast %225 : vector<32x1xf32> to vector<32x128xf32>
    %227 = arith.subf %217, %226 : vector<32x128xf32>
    %228 = arith.mulf %227, %227 : vector<32x128xf32>
    %cst_63 = arith.constant dense<0.000000e+00> : vector<32xf32>
    %229 = vector.multi_reduction <add>, %228, %cst_63 [1] : vector<32x128xf32> to vector<32xf32>
    %230 = vector.shape_cast %229 : vector<32xf32> to vector<32x1xf32>
    %cst_64 = arith.constant 1.280000e+02 : f32
    %231 = vector.broadcast %cst_64 : f32 to vector<32x1xf32>
    %232 = arith.divf %230, %231 : vector<32x1xf32>
    %cst_65 = arith.constant 9.99999974E-6 : f32
    %233 = vector.broadcast %cst_65 : f32 to vector<32x1xf32>
    %234 = arith.addf %232, %233 : vector<32x1xf32>
    %235 = math.rsqrt %234 : vector<32x1xf32>
    %236 = vector.broadcast %235 : vector<32x1xf32> to vector<32x128xf32>
    %237 = arith.mulf %227, %236 : vector<32x128xf32>
    %238 = vector.broadcast %219 : vector<1x128xf32> to vector<32x128xf32>
    %239 = arith.mulf %237, %238 : vector<32x128xf32>
    %240 = vector.broadcast %221 : vector<1x128xf32> to vector<32x128xf32>
    %241 = arith.addf %239, %240 : vector<32x128xf32>
    %242 = arith.truncf %241 : vector<32x128xf32> to vector<32x128xbf16>
    %c0_66 = arith.constant 0 : index
    %c0_67 = arith.constant 0 : index
    %c0_68 = arith.constant 0 : index
    %243 = vector.load %arg12[%c0_66, %c0_67, %c0_68] : memref<1x128x256xbf16, #tpu.memory_space<vmem>>, vector<1x128x256xbf16>
    %244 = vector.shape_cast %243 : vector<1x128x256xbf16> to vector<128x256xbf16>
    %cst_69 = arith.constant dense<0.000000e+00> : vector<32x256xf32>
    %245 = tpu.matmul %242, %244, %cst_69 {dimension_numbers = #tpu.dot_dimension_numbers<[1], [0], [0], [1], [0, 0, 1, 1], [], []>} : vector<32x128xbf16>, vector<128x256xbf16>, vector<32x256xf32> -> vector<32x256xf32>
    %c0_70 = arith.constant 0 : index
    %c0_71 = arith.constant 0 : index
    %c0_72 = arith.constant 0 : index
    %246 = vector.load %arg13[%c0_70, %c0_71, %c0_72] : memref<1x1x256xf32, #tpu.memory_space<vmem>>, vector<1x1x256xf32>
    %247 = vector.shape_cast %246 : vector<1x1x256xf32> to vector<1x256xf32>
    %248 = vector.broadcast %247 : vector<1x256xf32> to vector<32x256xf32>
    %249 = arith.addf %245, %248 : vector<32x256xf32>
    %cst_73 = arith.constant 5.000000e-01 : f32
    %250 = vector.broadcast %cst_73 : f32 to vector<32x256xf32>
    %251 = arith.mulf %250, %249 : vector<32x256xf32>
    %cst_74 = arith.constant 0.707106769 : f32
    %252 = vector.broadcast %cst_74 : f32 to vector<32x256xf32>
    %253 = arith.mulf %249, %252 : vector<32x256xf32>
    %254 = math.erf %253 : vector<32x256xf32>
    %cst_75 = arith.constant 1.000000e+00 : f32
    %255 = vector.broadcast %cst_75 : f32 to vector<32x256xf32>
    %256 = arith.addf %255, %254 : vector<32x256xf32>
    %257 = arith.mulf %251, %256 : vector<32x256xf32>
    %258 = arith.truncf %257 : vector<32x256xf32> to vector<32x256xbf16>
    %c0_76 = arith.constant 0 : index
    %c0_77 = arith.constant 0 : index
    %c0_78 = arith.constant 0 : index
    %259 = vector.load %arg14[%c0_76, %c0_77, %c0_78] : memref<1x256x128xbf16, #tpu.memory_space<vmem>>, vector<1x256x128xbf16>
    %260 = vector.shape_cast %259 : vector<1x256x128xbf16> to vector<256x128xbf16>
    %cst_79 = arith.constant dense<0.000000e+00> : vector<32x128xf32>
    %261 = tpu.matmul %258, %260, %cst_79 {dimension_numbers = #tpu.dot_dimension_numbers<[1], [0], [0], [1], [0, 0, 1, 1], [], []>} : vector<32x256xbf16>, vector<256x128xbf16>, vector<32x128xf32> -> vector<32x128xf32>
    %c0_80 = arith.constant 0 : index
    %c0_81 = arith.constant 0 : index
    %c0_82 = arith.constant 0 : index
    %262 = vector.load %arg15[%c0_80, %c0_81, %c0_82] : memref<1x1x128xf32, #tpu.memory_space<vmem>>, vector<1x1x128xf32>
    %263 = vector.shape_cast %262 : vector<1x1x128xf32> to vector<1x128xf32>
    %264 = vector.broadcast %263 : vector<1x128xf32> to vector<32x128xf32>
    %265 = arith.addf %261, %264 : vector<32x128xf32>
    %266 = arith.addf %241, %265 : vector<32x128xf32>
    %c0_83 = arith.constant 0 : index
    %c0_84 = arith.constant 0 : index
    %c0_85 = arith.constant 0 : index
    %267 = vector.load %arg16[%c0_83, %c0_84, %c0_85] : memref<1x1x128xf32, #tpu.memory_space<vmem>>, vector<1x1x128xf32>
    %268 = vector.shape_cast %267 : vector<1x1x128xf32> to vector<1x128xf32>
    %c0_86 = arith.constant 0 : index
    %c0_87 = arith.constant 0 : index
    %c0_88 = arith.constant 0 : index
    %269 = vector.load %arg17[%c0_86, %c0_87, %c0_88] : memref<1x1x128xf32, #tpu.memory_space<vmem>>, vector<1x1x128xf32>
    %270 = vector.shape_cast %269 : vector<1x1x128xf32> to vector<1x128xf32>
    %cst_89 = arith.constant dense<0.000000e+00> : vector<32xf32>
    %271 = vector.multi_reduction <add>, %266, %cst_89 [1] : vector<32x128xf32> to vector<32xf32>
    %272 = vector.shape_cast %271 : vector<32xf32> to vector<32x1xf32>
    %cst_90 = arith.constant 1.280000e+02 : f32
    %273 = vector.broadcast %cst_90 : f32 to vector<32x1xf32>
    %274 = arith.divf %272, %273 : vector<32x1xf32>
    %275 = vector.broadcast %274 : vector<32x1xf32> to vector<32x128xf32>
    %276 = arith.subf %266, %275 : vector<32x128xf32>
    %277 = arith.mulf %276, %276 : vector<32x128xf32>
    %cst_91 = arith.constant dense<0.000000e+00> : vector<32xf32>
    %278 = vector.multi_reduction <add>, %277, %cst_91 [1] : vector<32x128xf32> to vector<32xf32>
    %279 = vector.shape_cast %278 : vector<32xf32> to vector<32x1xf32>
    %cst_92 = arith.constant 1.280000e+02 : f32
    %280 = vector.broadcast %cst_92 : f32 to vector<32x1xf32>
    %281 = arith.divf %279, %280 : vector<32x1xf32>
    %cst_93 = arith.constant 9.99999974E-6 : f32
    %282 = vector.broadcast %cst_93 : f32 to vector<32x1xf32>
    %283 = arith.addf %281, %282 : vector<32x1xf32>
    %284 = math.rsqrt %283 : vector<32x1xf32>
    %285 = vector.broadcast %284 : vector<32x1xf32> to vector<32x128xf32>
    %286 = arith.mulf %276, %285 : vector<32x128xf32>
    %287 = vector.broadcast %268 : vector<1x128xf32> to vector<32x128xf32>
    %288 = arith.mulf %286, %287 : vector<32x128xf32>
    %289 = vector.broadcast %270 : vector<1x128xf32> to vector<32x128xf32>
    %290 = arith.addf %288, %289 : vector<32x128xf32>
    %c0_94 = arith.constant 0 : index
    %c0_95 = arith.constant 0 : index
    %291 = vector.load %arg27[%c0_94, %c0_95] : memref<32x128xf32, #tpu.memory_space<vmem>>, vector<32x128xf32>
    tpu.vector_store %arg27[%c0_94, %c0_95], %290 {strides = array<i32>} : memref<32x128xf32, #tpu.memory_space<vmem>>, vector<32x128xf32>,
    %c1_i32 = arith.constant 1 : i32
    %292 = arith.cmpi eq, %arg1, %c1_i32 : i32
    %293 = arith.extui %292 : i1 to i32
    %c0_i32_96 = arith.constant 0 : i32
    %294 = arith.cmpi ne, %293, %c0_i32_96 : i32
    scf.if %294 {
      %295 = vector.shape_cast %290 : vector<32x128xf32> to vector<4x8x128xf32>
      %296 = vector.extract_strided_slice %295 {offsets = [0, 7, 0], sizes = [4, 1, 128], strides = [1, 1, 1]} : vector<4x8x128xf32> to vector<4x1x128xf32>
      %297 = vector.shape_cast %296 : vector<4x1x128xf32> to vector<4x128xf32>
      %c0_97 = arith.constant 0 : index
      %c0_98 = arith.constant 0 : index
      %298 = vector.load %arg18[%c0_97, %c0_98] : memref<1x128xf32, #tpu.memory_space<vmem>>, vector<1x128xf32>
      %c0_99 = arith.constant 0 : index
      %c0_100 = arith.constant 0 : index
      %299 = vector.load %arg19[%c0_99, %c0_100] : memref<1x128xf32, #tpu.memory_space<vmem>>, vector<1x128xf32>
      %cst_101 = arith.constant dense<0.000000e+00> : vector<4xf32>
      %300 = vector.multi_reduction <add>, %297, %cst_101 [1] : vector<4x128xf32> to vector<4xf32>
      %301 = vector.shape_cast %300 : vector<4xf32> to vector<4x1xf32>
      %cst_102 = arith.constant 1.280000e+02 : f32
      %302 = vector.broadcast %cst_102 : f32 to vector<4x1xf32>
      %303 = arith.divf %301, %302 : vector<4x1xf32>
      %304 = vector.broadcast %303 : vector<4x1xf32> to vector<4x128xf32>
      %305 = arith.subf %297, %304 : vector<4x128xf32>
      %306 = arith.mulf %305, %305 : vector<4x128xf32>
      %cst_103 = arith.constant dense<0.000000e+00> : vector<4xf32>
      %307 = vector.multi_reduction <add>, %306, %cst_103 [1] : vector<4x128xf32> to vector<4xf32>
      %308 = vector.shape_cast %307 : vector<4xf32> to vector<4x1xf32>
      %cst_104 = arith.constant 1.280000e+02 : f32
      %309 = vector.broadcast %cst_104 : f32 to vector<4x1xf32>
      %310 = arith.divf %308, %309 : vector<4x1xf32>
      %cst_105 = arith.constant 9.99999974E-6 : f32
      %311 = vector.broadcast %cst_105 : f32 to vector<4x1xf32>
      %312 = arith.addf %310, %311 : vector<4x1xf32>
      %313 = math.rsqrt %312 : vector<4x1xf32>
      %314 = vector.broadcast %313 : vector<4x1xf32> to vector<4x128xf32>
      %315 = arith.mulf %305, %314 : vector<4x128xf32>
      %316 = vector.broadcast %298 : vector<1x128xf32> to vector<4x128xf32>
      %317 = arith.mulf %315, %316 : vector<4x128xf32>
      %318 = vector.broadcast %299 : vector<1x128xf32> to vector<4x128xf32>
      %319 = arith.addf %317, %318 : vector<4x128xf32>
      %320 = arith.truncf %319 : vector<4x128xf32> to vector<4x128xbf16>
      %c0_106 = arith.constant 0 : index
      %c0_107 = arith.constant 0 : index
      %321 = vector.load %arg20[%c0_106, %c0_107] : memref<128x64xbf16, #tpu.memory_space<vmem>>, vector<128x64xbf16>
      %cst_108 = arith.constant dense<0.000000e+00> : vector<4x64xf32>
      %322 = tpu.matmul %320, %321, %cst_108 {dimension_numbers = #tpu.dot_dimension_numbers<[1], [0], [0], [1], [0, 0, 1, 1], [], []>} : vector<4x128xbf16>, vector<128x64xbf16>, vector<4x64xf32> -> vector<4x64xf32>
      %c0_109 = arith.constant 0 : index
      %c0_110 = arith.constant 0 : index
      %323 = vector.load %arg21[%c0_109, %c0_110] : memref<1x64xf32, #tpu.memory_space<vmem>>, vector<1x64xf32>
      %324 = vector.broadcast %323 : vector<1x64xf32> to vector<4x64xf32>
      %325 = arith.addf %322, %324 : vector<4x64xf32>
      %cst_111 = arith.constant 5.000000e-01 : f32
      %326 = vector.broadcast %cst_111 : f32 to vector<4x64xf32>
      %327 = arith.mulf %326, %325 : vector<4x64xf32>
      %cst_112 = arith.constant 0.707106769 : f32
      %328 = vector.broadcast %cst_112 : f32 to vector<4x64xf32>
      %329 = arith.mulf %325, %328 : vector<4x64xf32>
      %330 = math.erf %329 : vector<4x64xf32>
      %cst_113 = arith.constant 1.000000e+00 : f32
      %331 = vector.broadcast %cst_113 : f32 to vector<4x64xf32>
      %332 = arith.addf %331, %330 : vector<4x64xf32>
      %333 = arith.mulf %327, %332 : vector<4x64xf32>
      %334 = arith.truncf %333 : vector<4x64xf32> to vector<4x64xbf16>
      %c0_114 = arith.constant 0 : index
      %c0_115 = arith.constant 0 : index
      %335 = vector.load %arg22[%c0_114, %c0_115] : memref<64x32xbf16, #tpu.memory_space<vmem>>, vector<64x32xbf16>
      %cst_116 = arith.constant dense<0.000000e+00> : vector<4x32xf32>
      %336 = tpu.matmul %334, %335, %cst_116 {dimension_numbers = #tpu.dot_dimension_numbers<[1], [0], [0], [1], [0, 0, 1, 1], [], []>} : vector<4x64xbf16>, vector<64x32xbf16>, vector<4x32xf32> -> vector<4x32xf32>
      %c0_117 = arith.constant 0 : index
      %c0_118 = arith.constant 0 : index
      %337 = vector.load %arg23[%c0_117, %c0_118] : memref<1x32xf32, #tpu.memory_space<vmem>>, vector<1x32xf32>
      %338 = vector.broadcast %337 : vector<1x32xf32> to vector<4x32xf32>
      %339 = arith.addf %336, %338 : vector<4x32xf32>
      %cst_119 = arith.constant 5.000000e-01 : f32
      %340 = vector.broadcast %cst_119 : f32 to vector<4x32xf32>
      %341 = arith.mulf %340, %339 : vector<4x32xf32>
      %cst_120 = arith.constant 0.707106769 : f32
      %342 = vector.broadcast %cst_120 : f32 to vector<4x32xf32>
      %343 = arith.mulf %339, %342 : vector<4x32xf32>
      %344 = math.erf %343 : vector<4x32xf32>
      %cst_121 = arith.constant 1.000000e+00 : f32
      %345 = vector.broadcast %cst_121 : f32 to vector<4x32xf32>
      %346 = arith.addf %345, %344 : vector<4x32xf32>
      %347 = arith.mulf %341, %346 : vector<4x32xf32>
      %348 = arith.truncf %347 : vector<4x32xf32> to vector<4x32xbf16>
      %c0_122 = arith.constant 0 : index
      %c0_123 = arith.constant 0 : index
      %349 = vector.load %arg24[%c0_122, %c0_123] : memref<32x128xbf16, #tpu.memory_space<vmem>>, vector<32x128xbf16>
      %cst_124 = arith.constant dense<0.000000e+00> : vector<4x128xf32>
      %350 = tpu.matmul %348, %349, %cst_124 {dimension_numbers = #tpu.dot_dimension_numbers<[1], [0], [0], [1], [0, 0, 1, 1], [], []>} : vector<4x32xbf16>, vector<32x128xbf16>, vector<4x128xf32> -> vector<4x128xf32>
      %c0_125 = arith.constant 0 : index
      %c0_126 = arith.constant 0 : index
      %351 = vector.load %arg25[%c0_125, %c0_126] : memref<1x128xf32, #tpu.memory_space<vmem>>, vector<1x128xf32>
      %352 = vector.broadcast %351 : vector<1x128xf32> to vector<4x128xf32>
      %353 = arith.addf %350, %352 : vector<4x128xf32>
      %c0_127 = arith.constant 0 : index
      %c0_128 = arith.constant 0 : index
      %c0_129 = arith.constant 0 : index
      %354 = vector.load %arg26[%c0_127, %c0_128, %c0_129] : memref<1x4x128xf32, #tpu.memory_space<vmem>>, vector<1x4x128xf32>
      %355 = vector.shape_cast %354 : vector<1x4x128xf32> to vector<4x128xf32>
      %356 = vector.shape_cast %353 : vector<4x128xf32> to vector<1x4x128xf32>
      tpu.vector_store %arg26[%c0_127, %c0_128, %c0_129], %356 {strides = array<i32>} : memref<1x4x128xf32, #tpu.memory_space<vmem>>, vector<1x4x128xf32>,
    } else {
    }
    return
  }
  func.func @transform_0(%arg0: i32, %arg1: i32) -> (i32, i32, i32) {
    %c0_i32 = arith.constant 0 : i32
    %c0_i32_0 = arith.constant 0 : i32
    %c0_i32_1 = arith.constant 0 : i32
    return %arg0, %c0_i32, %c0_i32_0 : i32, i32, i32
  }
  func.func @transform_1(%arg0: i32, %arg1: i32) -> (i32, i32) {
    %c0_i32 = arith.constant 0 : i32
    %c0_i32_0 = arith.constant 0 : i32
    %c0_i32_1 = arith.constant 0 : i32
    return %c0_i32, %c0_i32_0 : i32, i32
  }
  func.func @transform_2(%arg0: i32, %arg1: i32) -> (i32, i32) {
    %c0_i32 = arith.constant 0 : i32
    %c0_i32_0 = arith.constant 0 : i32
    %c0_i32_1 = arith.constant 0 : i32
    return %c0_i32, %c0_i32_0 : i32, i32
  }
  func.func @transform_3(%arg0: i32, %arg1: i32) -> (i32, i32) {
    %c0_i32 = arith.constant 0 : i32
    %c0_i32_0 = arith.constant 0 : i32
    %c0_i32_1 = arith.constant 0 : i32
    return %c0_i32, %c0_i32_0 : i32, i32
  }
  func.func @transform_4(%arg0: i32, %arg1: i32) -> (i32, i32, i32) {
    %c0_i32 = arith.constant 0 : i32
    %c0_i32_0 = arith.constant 0 : i32
    %c0_i32_1 = arith.constant 0 : i32
    return %arg1, %c0_i32, %c0_i32_0 : i32, i32, i32
  }
  func.func @transform_5(%arg0: i32, %arg1: i32) -> (i32, i32, i32) {
    %c0_i32 = arith.constant 0 : i32
    %c0_i32_0 = arith.constant 0 : i32
    %c0_i32_1 = arith.constant 0 : i32
    return %arg1, %c0_i32, %c0_i32_0 : i32, i32, i32
  }
  func.func @transform_6(%arg0: i32, %arg1: i32) -> (i32, i32, i32) {
    %c0_i32 = arith.constant 0 : i32
    %c0_i32_0 = arith.constant 0 : i32
    %c0_i32_1 = arith.constant 0 : i32
    return %arg1, %c0_i32, %c0_i32_0 : i32, i32, i32
  }
  func.func @transform_7(%arg0: i32, %arg1: i32) -> (i32, i32, i32) {
    %c0_i32 = arith.constant 0 : i32
    %c0_i32_0 = arith.constant 0 : i32
    %c0_i32_1 = arith.constant 0 : i32
    return %arg1, %c0_i32, %c0_i32_0 : i32, i32, i32
  }
  func.func @transform_8(%arg0: i32, %arg1: i32) -> (i32, i32, i32) {
    %c0_i32 = arith.constant 0 : i32
    %c0_i32_0 = arith.constant 0 : i32
    %c0_i32_1 = arith.constant 0 : i32
    return %arg1, %c0_i32, %c0_i32_0 : i32, i32, i32
  }
  func.func @transform_9(%arg0: i32, %arg1: i32) -> (i32, i32, i32) {
    %c0_i32 = arith.constant 0 : i32
    %c0_i32_0 = arith.constant 0 : i32
    %c0_i32_1 = arith.constant 0 : i32
    return %arg1, %c0_i32, %c0_i32_0 : i32, i32, i32
  }
  func.func @transform_10(%arg0: i32, %arg1: i32) -> (i32, i32, i32) {
    %c0_i32 = arith.constant 0 : i32
    %c0_i32_0 = arith.constant 0 : i32
    %c0_i32_1 = arith.constant 0 : i32
    return %arg1, %c0_i32, %c0_i32_0 : i32, i32, i32
  }
  func.func @transform_11(%arg0: i32, %arg1: i32) -> (i32, i32, i32) {
    %c0_i32 = arith.constant 0 : i32
    %c0_i32_0 = arith.constant 0 : i32
    %c0_i32_1 = arith.constant 0 : i32
    return %arg1, %c0_i32, %c0_i32_0 : i32, i32, i32
  }
  func.func @transform_12(%arg0: i32, %arg1: i32) -> (i32, i32, i32) {
    %c0_i32 = arith.constant 0 : i32
    %c0_i32_0 = arith.constant 0 : i32
    %c0_i32_1 = arith.constant 0 : i32
    return %arg1, %c0_i32, %c0_i32_0 : i32, i32, i32
  }
  func.func @transform_13(%arg0: i32, %arg1: i32) -> (i32, i32, i32) {
    %c0_i32 = arith.constant 0 : i32
    %c0_i32_0 = arith.constant 0 : i32
    %c0_i32_1 = arith.constant 0 : i32
    return %arg1, %c0_i32, %c0_i32_0 : i32, i32, i32
  }
  func.func @transform_14(%arg0: i32, %arg1: i32) -> (i32, i32, i32) {
    %c0_i32 = arith.constant 0 : i32
    %c0_i32_0 = arith.constant 0 : i32
    %c0_i32_1 = arith.constant 0 : i32
    return %arg1, %c0_i32, %c0_i32_0 : i32, i32, i32
  }
  func.func @transform_15(%arg0: i32, %arg1: i32) -> (i32, i32, i32) {
    %c0_i32 = arith.constant 0 : i32
    %c0_i32_0 = arith.constant 0 : i32
    %c0_i32_1 = arith.constant 0 : i32
    return %arg1, %c0_i32, %c0_i32_0 : i32, i32, i32
  }
  func.func @transform_16(%arg0: i32, %arg1: i32) -> (i32, i32) {
    %c0_i32 = arith.constant 0 : i32
    %c0_i32_0 = arith.constant 0 : i32
    %c0_i32_1 = arith.constant 0 : i32
    return %c0_i32, %c0_i32_0 : i32, i32
  }
  func.func @transform_17(%arg0: i32, %arg1: i32) -> (i32, i32) {
    %c0_i32 = arith.constant 0 : i32
    %c0_i32_0 = arith.constant 0 : i32
    %c0_i32_1 = arith.constant 0 : i32
    return %c0_i32, %c0_i32_0 : i32, i32
  }
  func.func @transform_18(%arg0: i32, %arg1: i32) -> (i32, i32) {
    %c0_i32 = arith.constant 0 : i32
    %c0_i32_0 = arith.constant 0 : i32
    %c0_i32_1 = arith.constant 0 : i32
    return %c0_i32, %c0_i32_0 : i32, i32
  }
  func.func @transform_19(%arg0: i32, %arg1: i32) -> (i32, i32) {
    %c0_i32 = arith.constant 0 : i32
    %c0_i32_0 = arith.constant 0 : i32
    %c0_i32_1 = arith.constant 0 : i32
    return %c0_i32, %c0_i32_0 : i32, i32
  }
  func.func @transform_20(%arg0: i32, %arg1: i32) -> (i32, i32) {
    %c0_i32 = arith.constant 0 : i32
    %c0_i32_0 = arith.constant 0 : i32
    %c0_i32_1 = arith.constant 0 : i32
    return %c0_i32, %c0_i32_0 : i32, i32
  }
  func.func @transform_21(%arg0: i32, %arg1: i32) -> (i32, i32) {
    %c0_i32 = arith.constant 0 : i32
    %c0_i32_0 = arith.constant 0 : i32
    %c0_i32_1 = arith.constant 0 : i32
    return %c0_i32, %c0_i32_0 : i32, i32
  }
  func.func @transform_22(%arg0: i32, %arg1: i32) -> (i32, i32) {
    %c0_i32 = arith.constant 0 : i32
    %c0_i32_0 = arith.constant 0 : i32
    %c0_i32_1 = arith.constant 0 : i32
    return %c0_i32, %c0_i32_0 : i32, i32
  }
  func.func @transform_23(%arg0: i32, %arg1: i32) -> (i32, i32) {
    %c0_i32 = arith.constant 0 : i32
    %c0_i32_0 = arith.constant 0 : i32
    %c0_i32_1 = arith.constant 0 : i32
    return %c0_i32, %c0_i32_0 : i32, i32
  }
  func.func @transform_24(%arg0: i32, %arg1: i32) -> (i32, i32, i32) {
    %c0_i32 = arith.constant 0 : i32
    %c0_i32_0 = arith.constant 0 : i32
    %c0_i32_1 = arith.constant 0 : i32
    return %arg0, %c0_i32, %c0_i32_0 : i32, i32, i32
  }
}

</mosaic_0001>

<llo_original>
// kernel: tpu_custom_call.1
$region0: #{tpu_custom_call.1}
  #allocation0 [shape = 'u32[]', space=smem, size = 0x4, offset = 0x4, fixed_abs, tag = 'smem constant byte address 0x4 - core index']
  #allocation1 [shape = 'u32[144,128]{1,0:T(1,128)}', space=vmem, size = 0x12000, scoped, tag = 'internal scratch']
  #allocation2 [shape = 'f32[32,128]{1,0:T(8,128)}', space=vmem, size = 0x4000, scoped, tag = 'scratch operand']
  %s0 = inlined_call_operand.hbm [shape: f32[8,8,16], index: 0, kind: input, shape index: {}]
  %s1 = inlined_call_operand.hbm [shape: bf16[16,128], index: 1, kind: input, shape index: {}]
  %s2 = inlined_call_operand.vmem [shape: f32[1,128], index: 2, kind: input, shape index: {}]
  %s3 = inlined_call_operand.hbm [shape: f32[8,128], index: 3, kind: input, shape index: {}]
  %s4 = inlined_call_operand.hbm [shape: bf16[2,128,384], index: 4, kind: input, shape index: {}]
  %s5 = inlined_call_operand.hbm [shape: f32[2,1,384], index: 5, kind: input, shape index: {}]
  %s6 = inlined_call_operand.vmem [shape: bf16[2,128,128], index: 6, kind: input, shape index: {}]
  %s7 = inlined_call_operand.hbm [shape: f32[2,1,128], index: 7, kind: input, shape index: {}]
  %s8 = inlined_call_operand.hbm [shape: f32[2,1,128], index: 8, kind: input, shape index: {}]
  %s9 = inlined_call_operand.hbm [shape: f32[2,1,128], index: 9, kind: input, shape index: {}]
  %s10 = inlined_call_operand.hbm [shape: bf16[2,128,256], index: 10, kind: input, shape index: {}]
  %s11 = inlined_call_operand.hbm [shape: f32[2,1,256], index: 11, kind: input, shape index: {}]
  %s12 = inlined_call_operand.hbm [shape: bf16[2,256,128], index: 12, kind: input, shape index: {}]
  %s13 = inlined_call_operand.hbm [shape: f32[2,1,128], index: 13, kind: input, shape index: {}]
  %s14 = inlined_call_operand.vmem [shape: f32[2,1,128], index: 14, kind: input, shape index: {}]
  %s15 = inlined_call_operand.vmem [shape: f32[2,1,128], index: 15, kind: input, shape index: {}]
  %s16 = inlined_call_operand.vmem [shape: f32[1,128], index: 16, kind: input, shape index: {}]
  %s17 = inlined_call_operand.vmem [shape: f32[1,128], index: 17, kind: input, shape index: {}]
  %s18 = inlined_call_operand.vmem [shape: bf16[128,64], index: 18, kind: input, shape index: {}]
  %s19 = inlined_call_operand.vmem [shape: f32[1,64], index: 19, kind: input, shape index: {}]
  %s20 = inlined_call_operand.vmem [shape: bf16[64,32], index: 20, kind: input, shape index: {}]
  %s21 = inlined_call_operand.vmem [shape: f32[1,32], index: 21, kind: input, shape index: {}]
  %s22 = inlined_call_operand.vmem [shape: bf16[32,128], index: 22, kind: input, shape index: {}]
  %s23 = inlined_call_operand.vmem [shape: f32[1,128], index: 23, kind: input, shape index: {}]
  %s24 = inlined_call_operand.hbm [shape: f32[2,4,128], index: 24, kind: output, shape index: {}]
  %s25 = sld [smem:[#allocation0]]
  $region185: #{tpu_custom_call.1} parent=0
    _
  %s27 = ssub.s32 1, %s25
  %s28 = scalar_select 0, %s27, %s25
  $region1: #{tpu_custom_call.1} parent=0
    #allocation3 [shape = 'u8[32768]{0}', space=vmem, size = 0x8000, scoped, tag = 'input window, operand 0']
    #allocation4 [shape = 's32[2]{0}', space=sflag, size = 0x8, scoped, tag = 'scoped memory for tpu_custom_call.1']
    #allocation5 [shape = 's32[2]{0}', space=sflag, size = 0x8, scoped, tag = 'scoped memory for tpu_custom_call.1']
    #allocation6 [shape = 'u8[4096]{0}', space=vmem, size = 0x1000, scoped, tag = 'input window, operand 1, single buffered']
    #allocation7 [shape = 's32[1]{0}', space=sflag, size = 0x4, scoped, tag = 'scoped memory for tpu_custom_call.1']
    #allocation8 [shape = 'u8[4096]{0}', space=vmem, size = 0x1000, scoped, tag = 'input window, operand 3, single buffered']
    #allocation9 [shape = 'u8[196608]{0}', space=vmem, size = 0x30000, scoped, tag = 'input window, operand 4']
    #allocation10 [shape = 's32[2]{0}', space=sflag, size = 0x8, scoped, tag = 'scoped memory for tpu_custom_call.1']
    #allocation11 [shape = 'u8[3072]{0}', space=vmem, size = 0xc00, scoped, tag = 'input window, operand 5']
    #allocation12 [shape = 'u8[1024]{0}', space=vmem, size = 0x400, scoped, tag = 'input window, operand 7']
    #allocation13 [shape = 's32[2]{0}', space=sflag, size = 0x8, scoped, tag = 'scoped memory for tpu_custom_call.1']
    #allocation14 [shape = 'u8[1024]{0}', space=vmem, size = 0x400, scoped, tag = 'input window, operand 8']
    #allocation15 [shape = 'u8[1024]{0}', space=vmem, size = 0x400, scoped, tag = 'input window, operand 9']
    #allocation16 [shape = 's32[2]{0}', space=sflag, size = 0x8, scoped, tag = 'scoped memory for tpu_custom_call.1']
    #allocation17 [shape = 'u8[131072]{0}', space=vmem, size = 0x20000, scoped, tag = 'input window, operand 10']
    #allocation18 [shape = 'u8[2048]{0}', space=vmem, size = 0x800, scoped, tag = 'input window, operand 11']
    #allocation19 [shape = 's32[2]{0}', space=sflag, size = 0x8, scoped, tag = 'scoped memory for tpu_custom_call.1']
    #allocation20 [shape = 'u8[131072]{0}', space=vmem, size = 0x20000, scoped, tag = 'input window, operand 12']
    #allocation21 [shape = 'u8[1024]{0}', space=vmem, size = 0x400, scoped, tag = 'input window, operand 13']
    #allocation22 [shape = 's32[2]{0}', space=sflag, size = 0x8, scoped, tag = 'scoped memory for tpu_custom_call.1']
    #allocation23 [shape = 'u8[4096]{0}', space=vmem, size = 0x1000, scoped, tag = 'output window, operand 0']
    %29 = vsyncpa [#allocation4], 0
    %s30 = scalar_lea.sflag [#allocation4], 1
    %31 = vsyncpa %s30, 0
    %32 = vsyncpa [#allocation7], 0
    %33 = vsyncpa [#allocation10], 0
    %s34 = scalar_lea.sflag [#allocation10], 1
    %35 = vsyncpa %s34, 0
    %36 = vsyncpa [#allocation13], 0
    %s37 = scalar_lea.sflag [#allocation13], 1
    %38 = vsyncpa %s37, 0
    %39 = vsyncpa [#allocation16], 0
    %s40 = scalar_lea.sflag [#allocation16], 1
    %41 = vsyncpa %s40, 0
    %42 = vsyncpa [#allocation19], 0
    %s43 = scalar_lea.sflag [#allocation19], 1
    %44 = vsyncpa %s43, 0
    %45 = vsyncpa [#allocation22], 0
    %s46 = scalar_lea.sflag [#allocation22], 1
    %47 = vsyncpa %s46, 0
    %48 = vsyncpa [#allocation5], 0
    %s49 = scalar_lea.sflag [#allocation5], 1
    %50 = vsyncpa %s49, 0
    loop: start=0, step=1, limit=6
    $region2: #{tpu_custom_call.1} parent=1 // loop_pre_header
      _
    $region3: #{tpu_custom_call.1} parent=1 // loop_header
      %s52 = sphi 0, %s56
      %p53 = scmp.ge.s32.totalorder %s52, 6
      %s59 = sphi 0, %s71
      %s60 = sphi 0, %s67
      %s61 = sphi 0, %s59
      %s62 = sphi 0, %s60
      %s63 = sphi 0, %s61
      %s64 = sphi 0, %s62
      %s74 = sphi 0, %s76
      %s77 = sphi 0, %s74
      %s78 = sphi 0, %s77
      %s94 = sphi 0, %s78
      %s98 = sphi 0, %s98
      %s100 = sphi 0, %s98
      %s101 = sphi 0, %s100
      %s115 = sphi 0, %s101
      %s119 = sphi 0, %s119
      %s121 = sphi 0, %s119
      %s122 = sphi 0, %s121
      %s136 = sphi 0, %s122
      %s140 = sphi 0, %s140
      %s142 = sphi 0, %s140
      %s143 = sphi 0, %s142
      %s157 = sphi 0, %s143
      %s163 = sphi 0, %s165
      %s166 = sphi 0, %s163
      %s167 = sphi 0, %s166
      %s183 = sphi 0, %s167
      %s189 = sphi 0, %s191
      %s192 = sphi 0, %s189
      %s193 = sphi 0, %s192
      %s209 = sphi 0, %s193
      %s215 = sphi 0, %s217
      %s218 = sphi 0, %s215
      %s219 = sphi 0, %s218
      %s235 = sphi 0, %s219
      %s241 = sphi 0, %s243
      %s244 = sphi 0, %s241
      %s245 = sphi 0, %s244
      %s261 = sphi 0, %s245
      %s267 = sphi 0, %s269
      %s270 = sphi 0, %s267
      %s271 = sphi 0, %s270
      %s287 = sphi 0, %s271
      %s293 = sphi 0, %s295
      %s296 = sphi 0, %s293
      %s297 = sphi 0, %s296
      %s313 = sphi 0, %s297
      %s319 = sphi 0, %s321
      %s322 = sphi 0, %s319
      %s323 = sphi 0, %s322
      %s339 = sphi 0, %s323
      %s345 = sphi 0, %s347
      %s348 = sphi 0, %s345
      %s349 = sphi 0, %s348
      %s365 = sphi 0, %s349
      %s371 = sphi 0, %s373
      %s374 = sphi 0, %s371
      %s375 = sphi 0, %s374
      %s391 = sphi 0, %s375
      %s397 = sphi 0, %s399
      %s400 = sphi 0, %s397
      %s401 = sphi 0, %s400
      %s417 = sphi 0, %s401
      %s423 = sphi 0, %s425
      %s426 = sphi 0, %s423
      %s427 = sphi 0, %s426
      %s443 = sphi 0, %s427
      %s449 = sphi 0, %s451
      %s452 = sphi 0, %s449
      %s453 = sphi 0, %s452
      %s469 = sphi 0, %s453
      %s473 = sphi 0, %s473
      %s475 = sphi 0, %s473
      %s476 = sphi 0, %s475
      %s490 = sphi 0, %s476
      %s494 = sphi 0, %s494
      %s496 = sphi 0, %s494
      %s497 = sphi 0, %s496
      %s511 = sphi 0, %s497
      %s515 = sphi 0, %s515
      %s517 = sphi 0, %s515
      %s518 = sphi 0, %s517
      %s532 = sphi 0, %s518
      %s536 = sphi 0, %s536
      %s538 = sphi 0, %s536
      %s539 = sphi 0, %s538
      %s553 = sphi 0, %s539
      %s557 = sphi 0, %s557
      %s559 = sphi 0, %s557
      %s560 = sphi 0, %s559
      %s574 = sphi 0, %s560
      %s578 = sphi 0, %s578
      %s580 = sphi 0, %s578
      %s581 = sphi 0, %s580
      %s595 = sphi 0, %s581
      %s599 = sphi 0, %s599
      %s601 = sphi 0, %s599
      %s602 = sphi 0, %s601
      %s616 = sphi 0, %s602
      %s620 = sphi 0, %s620
      %s622 = sphi 0, %s620
      %s623 = sphi 0, %s622
      %s637 = sphi 0, %s623
      %s643 = sphi 0, %s645
      %s646 = sphi 0, %s643
      %s647 = sphi 0, %s646
      %s663 = sphi 0, %s647
    $region4: #{tpu_custom_call.1} parent=1 // loop_header_branch
      %55 = sbr.rel (%p53) target = $region8
    $region5: #{tpu_custom_call.1} parent=1 // loop_body
      %s57 = ssub.s32 %s52, 1
      %s58 = ssub.s32 %s52, 2
      %s65 = sadd.s32 1, %s60
      %p66 = scmp.ge.s32.totalorder %s65, 2
      %s67 = scalar_select %p66, 0, %s65
      %s68 = sadd.s32 1, %s59
      %s69 = scalar_select %p66, %s68, %s59
      %p70 = scmp.ge.s32.totalorder %s69, 2
      %s71 = scalar_select %p70, 0, %s69
      %s72 = ssub.s32 %s59, %s71
      %p73 = scmp.eq.s32.totalorder %s72, 0
      %s75 = sadd.s32 %s74, 1
      %s76 = scalar_select %p73, %s74, %s75
      %p79 = pneg %p73
      %p80 = scmp.eq.s32.totalorder %s52, 3
      %p81 = por %p79, %p80
      %p82 = scmp.ne.s32.totalorder %s74, %s77
      %p83 = scmp.eq.s32.totalorder %s52, 0
      %p84 = por %p82, %p83
      %p85 = scmp.ne.s32.totalorder %s74, %s77
      %p86 = scmp.eq.s32.totalorder %s57, 3
      %p87 = por %p85, %p86
      %p88 = scmp.ne.s32.totalorder %s77, %s78
      %p89 = scmp.eq.s32.totalorder %s57, 0
      %p90 = por %p88, %p89
      %p91 = scmp.ne.s32.totalorder %s77, %s78
      %p92 = scmp.eq.s32.totalorder %s58, 3
      %p93 = por %p91, %p92
      %p95 = scmp.ne.s32.totalorder %s78, %s94
      %p96 = scmp.eq.s32.totalorder %s58, 0
      %p97 = por %p95, %p96
      %s99 = sadd.s32 %s98, 1
      %p102 = scmp.eq.s32.totalorder %s52, 3
      %p103 = scmp.ne.s32.totalorder %s98, %s100
      %p104 = scmp.eq.s32.totalorder %s52, 0
      %p105 = por %p103, %p104
      %p106 = scmp.ne.s32.totalorder %s98, %s100
      %p107 = scmp.eq.s32.totalorder %s57, 3
      %p108 = por %p106, %p107
      %p109 = scmp.ne.s32.totalorder %s100, %s101
      %p110 = scmp.eq.s32.totalorder %s57, 0
      %p111 = por %p109, %p110
      %p112 = scmp.ne.s32.totalorder %s100, %s101
      %p113 = scmp.eq.s32.totalorder %s58, 3
      %p114 = por %p112, %p113
      %p116 = scmp.ne.s32.totalorder %s101, %s115
      %p117 = scmp.eq.s32.totalorder %s58, 0
      %p118 = por %p116, %p117
      %s120 = sadd.s32 %s119, 1
      %p123 = scmp.eq.s32.totalorder %s52, 3
      %p124 = scmp.ne.s32.totalorder %s119, %s121
      %p125 = scmp.eq.s32.totalorder %s52, 0
      %p126 = por %p124, %p125
      %p127 = scmp.ne.s32.totalorder %s119, %s121
      %p128 = scmp.eq.s32.totalorder %s57, 3
      %p129 = por %p127, %p128
      %p130 = scmp.ne.s32.totalorder %s121, %s122
      %p131 = scmp.eq.s32.totalorder %s57, 0
      %p132 = por %p130, %p131
      %p133 = scmp.ne.s32.totalorder %s121, %s122
      %p134 = scmp.eq.s32.totalorder %s58, 3
      %p135 = por %p133, %p134
      %p137 = scmp.ne.s32.totalorder %s122, %s136
      %p138 = scmp.eq.s32.totalorder %s58, 0
      %p139 = por %p137, %p138
      %s141 = sadd.s32 %s140, 1
      %p144 = scmp.eq.s32.totalorder %s52, 3
      %p145 = scmp.ne.s32.totalorder %s140, %s142
      %p146 = scmp.eq.s32.totalorder %s52, 0
      %p147 = por %p145, %p146
      %p148 = scmp.ne.s32.totalorder %s140, %s142
      %p149 = scmp.eq.s32.totalorder %s57, 3
      %p150 = por %p148, %p149
      %p151 = scmp.ne.s32.totalorder %s142, %s143
      %p152 = scmp.eq.s32.totalorder %s57, 0
      %p153 = por %p151, %p152
      %p154 = scmp.ne.s32.totalorder %s142, %s143
      %p155 = scmp.eq.s32.totalorder %s58, 3
      %p156 = por %p154, %p155
      %p158 = scmp.ne.s32.totalorder %s143, %s157
      %p159 = scmp.eq.s32.totalorder %s58, 0
      %p160 = por %p158, %p159
      %s161 = ssub.s32 %s60, %s67
      %p162 = scmp.eq.s32.totalorder %s161, 0
      %s164 = sadd.s32 %s163, 1
      %s165 = scalar_select %p162, %s163, %s164
      %p168 = pneg %p162
      %p169 = scmp.eq.s32.totalorder %s52, 3
      %p170 = por %p168, %p169
      %p171 = scmp.ne.s32.totalorder %s163, %s166
      %p172 = scmp.eq.s32.totalorder %s52, 0
      %p173 = por %p171, %p172
      %p174 = scmp.ne.s32.totalorder %s163, %s166
      %p175 = scmp.eq.s32.totalorder %s57, 3
      %p176 = por %p174, %p175
      %p177 = scmp.ne.s32.totalorder %s166, %s167
      %p178 = scmp.eq.s32.totalorder %s57, 0
      %p179 = por %p177, %p178
      %p180 = scmp.ne.s32.totalorder %s166, %s167
      %p181 = scmp.eq.s32.totalorder %s58, 3
      %p182 = por %p180, %p181
      %p184 = scmp.ne.s32.totalorder %s167, %s183
      %p185 = scmp.eq.s32.totalorder %s58, 0
      %p186 = por %p184, %p185
      %s187 = ssub.s32 %s60, %s67
      %p188 = scmp.eq.s32.totalorder %s187, 0
      %s190 = sadd.s32 %s189, 1
      %s191 = scalar_select %p188, %s189, %s190
      %p194 = pneg %p188
      %p195 = scmp.eq.s32.totalorder %s52, 3
      %p196 = por %p194, %p195
      %p197 = scmp.ne.s32.totalorder %s189, %s192
      %p198 = scmp.eq.s32.totalorder %s52, 0
      %p199 = por %p197, %p198
      %p200 = scmp.ne.s32.totalorder %s189, %s192
      %p201 = scmp.eq.s32.totalorder %s57, 3
      %p202 = por %p200, %p201
      %p203 = scmp.ne.s32.totalorder %s192, %s193
      %p204 = scmp.eq.s32.totalorder %s57, 0
      %p205 = por %p203, %p204
      %p206 = scmp.ne.s32.totalorder %s192, %s193
      %p207 = scmp.eq.s32.totalorder %s58, 3
      %p208 = por %p206, %p207
      %p210 = scmp.ne.s32.totalorder %s193, %s209
      %p211 = scmp.eq.s32.totalorder %s58, 0
      %p212 = por %p210, %p211
      %s213 = ssub.s32 %s60, %s67
      %p214 = scmp.eq.s32.totalorder %s213, 0
      %s216 = sadd.s32 %s215, 1
      %s217 = scalar_select %p214, %s215, %s216
      %p220 = pneg %p214
      %p221 = scmp.eq.s32.totalorder %s52, 3
      %p222 = por %p220, %p221
      %p223 = scmp.ne.s32.totalorder %s215, %s218
      %p224 = scmp.eq.s32.totalorder %s52, 0
      %p225 = por %p223, %p224
      %p226 = scmp.ne.s32.totalorder %s215, %s218
      %p227 = scmp.eq.s32.totalorder %s57, 3
      %p228 = por %p226, %p227
      %p229 = scmp.ne.s32.totalorder %s218, %s219
      %p230 = scmp.eq.s32.totalorder %s57, 0
      %p231 = por %p229, %p230
      %p232 = scmp.ne.s32.totalorder %s218, %s219
      %p233 = scmp.eq.s32.totalorder %s58, 3
      %p234 = por %p232, %p233
      %p236 = scmp.ne.s32.totalorder %s219, %s235
      %p237 = scmp.eq.s32.totalorder %s58, 0
      %p238 = por %p236, %p237
      %s239 = ssub.s32 %s60, %s67
      %p240 = scmp.eq.s32.totalorder %s239, 0
      %s242 = sadd.s32 %s241, 1
      %s243 = scalar_select %p240, %s241, %s242
      %p246 = pneg %p240
      %p247 = scmp.eq.s32.totalorder %s52, 3
      %p248 = por %p246, %p247
      %p249 = scmp.ne.s32.totalorder %s241, %s244
      %p250 = scmp.eq.s32.totalorder %s52, 0
      %p251 = por %p249, %p250
      %p252 = scmp.ne.s32.totalorder %s241, %s244
      %p253 = scmp.eq.s32.totalorder %s57, 3
      %p254 = por %p252, %p253
      %p255 = scmp.ne.s32.totalorder %s244, %s245
      %p256 = scmp.eq.s32.totalorder %s57, 0
      %p257 = por %p255, %p256
      %p258 = scmp.ne.s32.totalorder %s244, %s245
      %p259 = scmp.eq.s32.totalorder %s58, 3
      %p260 = por %p258, %p259
      %p262 = scmp.ne.s32.totalorder %s245, %s261
      %p263 = scmp.eq.s32.totalorder %s58, 0
      %p264 = por %p262, %p263
      %s265 = ssub.s32 %s60, %s67
      %p266 = scmp.eq.s32.totalorder %s265, 0
      %s268 = sadd.s32 %s267, 1
      %s269 = scalar_select %p266, %s267, %s268
      %p272 = pneg %p266
      %p273 = scmp.eq.s32.totalorder %s52, 3
      %p274 = por %p272, %p273
      %p275 = scmp.ne.s32.totalorder %s267, %s270
      %p276 = scmp.eq.s32.totalorder %s52, 0
      %p277 = por %p275, %p276
      %p278 = scmp.ne.s32.totalorder %s267, %s270
      %p279 = scmp.eq.s32.totalorder %s57, 3
      %p280 = por %p278, %p279
      %p281 = scmp.ne.s32.totalorder %s270, %s271
      %p282 = scmp.eq.s32.totalorder %s57, 0
      %p283 = por %p281, %p282
      %p284 = scmp.ne.s32.totalorder %s270, %s271
      %p285 = scmp.eq.s32.totalorder %s58, 3
      %p286 = por %p284, %p285
      %p288 = scmp.ne.s32.totalorder %s271, %s287
      %p289 = scmp.eq.s32.totalorder %s58, 0
      %p290 = por %p288, %p289
      %s291 = ssub.s32 %s60, %s67
      %p292 = scmp.eq.s32.totalorder %s291, 0
      %s294 = sadd.s32 %s293, 1
      %s295 = scalar_select %p292, %s293, %s294
      %p298 = pneg %p292
      %p299 = scmp.eq.s32.totalorder %s52, 3
      %p300 = por %p298, %p299
      %p301 = scmp.ne.s32.totalorder %s293, %s296
      %p302 = scmp.eq.s32.totalorder %s52, 0
      %p303 = por %p301, %p302
      %p304 = scmp.ne.s32.totalorder %s293, %s296
      %p305 = scmp.eq.s32.totalorder %s57, 3
      %p306 = por %p304, %p305
      %p307 = scmp.ne.s32.totalorder %s296, %s297
      %p308 = scmp.eq.s32.totalorder %s57, 0
      %p309 = por %p307, %p308
      %p310 = scmp.ne.s32.totalorder %s296, %s297
      %p311 = scmp.eq.s32.totalorder %s58, 3
      %p312 = por %p310, %p311
      %p314 = scmp.ne.s32.totalorder %s297, %s313
      %p315 = scmp.eq.s32.totalorder %s58, 0
      %p316 = por %p314, %p315
      %s317 = ssub.s32 %s60, %s67
      %p318 = scmp.eq.s32.totalorder %s317, 0
      %s320 = sadd.s32 %s319, 1
      %s321 = scalar_select %p318, %s319, %s320
      %p324 = pneg %p318
      %p325 = scmp.eq.s32.totalorder %s52, 3
      %p326 = por %p324, %p325
      %p327 = scmp.ne.s32.totalorder %s319, %s322
      %p328 = scmp.eq.s32.totalorder %s52, 0
      %p329 = por %p327, %p328
      %p330 = scmp.ne.s32.totalorder %s319, %s322
      %p331 = scmp.eq.s32.totalorder %s57, 3
      %p332 = por %p330, %p331
      %p333 = scmp.ne.s32.totalorder %s322, %s323
      %p334 = scmp.eq.s32.totalorder %s57, 0
      %p335 = por %p333, %p334
      %p336 = scmp.ne.s32.totalorder %s322, %s323
      %p337 = scmp.eq.s32.totalorder %s58, 3
      %p338 = por %p336, %p337
      %p340 = scmp.ne.s32.totalorder %s323, %s339
      %p341 = scmp.eq.s32.totalorder %s58, 0
      %p342 = por %p340, %p341
      %s343 = ssub.s32 %s60, %s67
      %p344 = scmp.eq.s32.totalorder %s343, 0
      %s346 = sadd.s32 %s345, 1
      %s347 = scalar_select %p344, %s345, %s346
      %p350 = pneg %p344
      %p351 = scmp.eq.s32.totalorder %s52, 3
      %p352 = por %p350, %p351
      %p353 = scmp.ne.s32.totalorder %s345, %s348
      %p354 = scmp.eq.s32.totalorder %s52, 0
      %p355 = por %p353, %p354
      %p356 = scmp.ne.s32.totalorder %s345, %s348
      %p357 = scmp.eq.s32.totalorder %s57, 3
      %p358 = por %p356, %p357
      %p359 = scmp.ne.s32.totalorder %s348, %s349
      %p360 = scmp.eq.s32.totalorder %s57, 0
      %p361 = por %p359, %p360
      %p362 = scmp.ne.s32.totalorder %s348, %s349
      %p363 = scmp.eq.s32.totalorder %s58, 3
      %p364 = por %p362, %p363
      %p366 = scmp.ne.s32.totalorder %s349, %s365
      %p367 = scmp.eq.s32.totalorder %s58, 0
      %p368 = por %p366, %p367
      %s369 = ssub.s32 %s60, %s67
      %p370 = scmp.eq.s32.totalorder %s369, 0
      %s372 = sadd.s32 %s371, 1
      %s373 = scalar_select %p370, %s371, %s372
      %p376 = pneg %p370
      %p377 = scmp.eq.s32.totalorder %s52, 3
      %p378 = por %p376, %p377
      %p379 = scmp.ne.s32.totalorder %s371, %s374
      %p380 = scmp.eq.s32.totalorder %s52, 0
      %p381 = por %p379, %p380
      %p382 = scmp.ne.s32.totalorder %s371, %s374
      %p383 = scmp.eq.s32.totalorder %s57, 3
      %p384 = por %p382, %p383
      %p385 = scmp.ne.s32.totalorder %s374, %s375
      %p386 = scmp.eq.s32.totalorder %s57, 0
      %p387 = por %p385, %p386
      %p388 = scmp.ne.s32.totalorder %s374, %s375
      %p389 = scmp.eq.s32.totalorder %s58, 3
      %p390 = por %p388, %p389
      %p392 = scmp.ne.s32.totalorder %s375, %s391
      %p393 = scmp.eq.s32.totalorder %s58, 0
      %p394 = por %p392, %p393
      %s395 = ssub.s32 %s60, %s67
      %p396 = scmp.eq.s32.totalorder %s395, 0
      %s398 = sadd.s32 %s397, 1
      %s399 = scalar_select %p396, %s397, %s398
      %p402 = pneg %p396
      %p403 = scmp.eq.s32.totalorder %s52, 3
      %p404 = por %p402, %p403
      %p405 = scmp.ne.s32.totalorder %s397, %s400
      %p406 = scmp.eq.s32.totalorder %s52, 0
      %p407 = por %p405, %p406
      %p408 = scmp.ne.s32.totalorder %s397, %s400
      %p409 = scmp.eq.s32.totalorder %s57, 3
      %p410 = por %p408, %p409
      %p411 = scmp.ne.s32.totalorder %s400, %s401
      %p412 = scmp.eq.s32.totalorder %s57, 0
      %p413 = por %p411, %p412
      %p414 = scmp.ne.s32.totalorder %s400, %s401
      %p415 = scmp.eq.s32.totalorder %s58, 3
      %p416 = por %p414, %p415
      %p418 = scmp.ne.s32.totalorder %s401, %s417
      %p419 = scmp.eq.s32.totalorder %s58, 0
      %p420 = por %p418, %p419
      %s421 = ssub.s32 %s60, %s67
      %p422 = scmp.eq.s32.totalorder %s421, 0
      %s424 = sadd.s32 %s423, 1
      %s425 = scalar_select %p422, %s423, %s424
      %p428 = pneg %p422
      %p429 = scmp.eq.s32.totalorder %s52, 3
      %p430 = por %p428, %p429
      %p431 = scmp.ne.s32.totalorder %s423, %s426
      %p432 = scmp.eq.s32.totalorder %s52, 0
      %p433 = por %p431, %p432
      %p434 = scmp.ne.s32.totalorder %s423, %s426
      %p435 = scmp.eq.s32.totalorder %s57, 3
      %p436 = por %p434, %p435
      %p437 = scmp.ne.s32.totalorder %s426, %s427
      %p438 = scmp.eq.s32.totalorder %s57, 0
      %p439 = por %p437, %p438
      %p440 = scmp.ne.s32.totalorder %s426, %s427
      %p441 = scmp.eq.s32.totalorder %s58, 3
      %p442 = por %p440, %p441
      %p444 = scmp.ne.s32.totalorder %s427, %s443
      %p445 = scmp.eq.s32.totalorder %s58, 0
      %p446 = por %p444, %p445
      %s447 = ssub.s32 %s60, %s67
      %p448 = scmp.eq.s32.totalorder %s447, 0
      %s450 = sadd.s32 %s449, 1
      %s451 = scalar_select %p448, %s449, %s450
      %p454 = pneg %p448
      %p455 = scmp.eq.s32.totalorder %s52, 3
      %p456 = por %p454, %p455
      %p457 = scmp.ne.s32.totalorder %s449, %s452
      %p458 = scmp.eq.s32.totalorder %s52, 0
      %p459 = por %p457, %p458
      %p460 = scmp.ne.s32.totalorder %s449, %s452
      %p461 = scmp.eq.s32.totalorder %s57, 3
      %p462 = por %p460, %p461
      %p463 = scmp.ne.s32.totalorder %s452, %s453
      %p464 = scmp.eq.s32.totalorder %s57, 0
      %p465 = por %p463, %p464
      %p466 = scmp.ne.s32.totalorder %s452, %s453
      %p467 = scmp.eq.s32.totalorder %s58, 3
      %p468 = por %p466, %p467
      %p470 = scmp.ne.s32.totalorder %s453, %s469
      %p471 = scmp.eq.s32.totalorder %s58, 0
      %p472 = por %p470, %p471
      %s474 = sadd.s32 %s473, 1
      %p477 = scmp.eq.s32.totalorder %s52, 3
      %p478 = scmp.ne.s32.totalorder %s473, %s475
      %p479 = scmp.eq.s32.totalorder %s52, 0
      %p480 = por %p478, %p479
      %p481 = scmp.ne.s32.totalorder %s473, %s475
      %p482 = scmp.eq.s32.totalorder %s57, 3
      %p483 = por %p481, %p482
      %p484 = scmp.ne.s32.totalorder %s475, %s476
      %p485 = scmp.eq.s32.totalorder %s57, 0
      %p486 = por %p484, %p485
      %p487 = scmp.ne.s32.totalorder %s475, %s476
      %p488 = scmp.eq.s32.totalorder %s58, 3
      %p489 = por %p487, %p488
      %p491 = scmp.ne.s32.totalorder %s476, %s490
      %p492 = scmp.eq.s32.totalorder %s58, 0
      %p493 = por %p491, %p492
      %s495 = sadd.s32 %s494, 1
      %p498 = scmp.eq.s32.totalorder %s52, 3
      %p499 = scmp.ne.s32.totalorder %s494, %s496
      %p500 = scmp.eq.s32.totalorder %s52, 0
      %p501 = por %p499, %p500
      %p502 = scmp.ne.s32.totalorder %s494, %s496
      %p503 = scmp.eq.s32.totalorder %s57, 3
      %p504 = por %p502, %p503
      %p505 = scmp.ne.s32.totalorder %s496, %s497
      %p506 = scmp.eq.s32.totalorder %s57, 0
      %p507 = por %p505, %p506
      %p508 = scmp.ne.s32.totalorder %s496, %s497
      %p509 = scmp.eq.s32.totalorder %s58, 3
      %p510 = por %p508, %p509
      %p512 = scmp.ne.s32.totalorder %s497, %s511
      %p513 = scmp.eq.s32.totalorder %s58, 0
      %p514 = por %p512, %p513
      %s516 = sadd.s32 %s515, 1
      %p519 = scmp.eq.s32.totalorder %s52, 3
      %p520 = scmp.ne.s32.totalorder %s515, %s517
      %p521 = scmp.eq.s32.totalorder %s52, 0
      %p522 = por %p520, %p521
      %p523 = scmp.ne.s32.totalorder %s515, %s517
      %p524 = scmp.eq.s32.totalorder %s57, 3
      %p525 = por %p523, %p524
      %p526 = scmp.ne.s32.totalorder %s517, %s518
      %p527 = scmp.eq.s32.totalorder %s57, 0
      %p528 = por %p526, %p527
      %p529 = scmp.ne.s32.totalorder %s517, %s518
      %p530 = scmp.eq.s32.totalorder %s58, 3
      %p531 = por %p529, %p530
      %p533 = scmp.ne.s32.totalorder %s518, %s532
      %p534 = scmp.eq.s32.totalorder %s58, 0
      %p535 = por %p533, %p534
      %s537 = sadd.s32 %s536, 1
      %p540 = scmp.eq.s32.totalorder %s52, 3
      %p541 = scmp.ne.s32.totalorder %s536, %s538
      %p542 = scmp.eq.s32.totalorder %s52, 0
      %p543 = por %p541, %p542
      %p544 = scmp.ne.s32.totalorder %s536, %s538
      %p545 = scmp.eq.s32.totalorder %s57, 3
      %p546 = por %p544, %p545
      %p547 = scmp.ne.s32.totalorder %s538, %s539
      %p548 = scmp.eq.s32.totalorder %s57, 0
      %p549 = por %p547, %p548
      %p550 = scmp.ne.s32.totalorder %s538, %s539
      %p551 = scmp.eq.s32.totalorder %s58, 3
      %p552 = por %p550, %p551
      %p554 = scmp.ne.s32.totalorder %s539, %s553
      %p555 = scmp.eq.s32.totalorder %s58, 0
      %p556 = por %p554, %p555
      %s558 = sadd.s32 %s557, 1
      %p561 = scmp.eq.s32.totalorder %s52, 3
      %p562 = scmp.ne.s32.totalorder %s557, %s559
      %p563 = scmp.eq.s32.totalorder %s52, 0
      %p564 = por %p562, %p563
      %p565 = scmp.ne.s32.totalorder %s557, %s559
      %p566 = scmp.eq.s32.totalorder %s57, 3
      %p567 = por %p565, %p566
      %p568 = scmp.ne.s32.totalorder %s559, %s560
      %p569 = scmp.eq.s32.totalorder %s57, 0
      %p570 = por %p568, %p569
      %p571 = scmp.ne.s32.totalorder %s559, %s560
      %p572 = scmp.eq.s32.totalorder %s58, 3
      %p573 = por %p571, %p572
      %p575 = scmp.ne.s32.totalorder %s560, %s574
      %p576 = scmp.eq.s32.totalorder %s58, 0
      %p577 = por %p575, %p576
      %s579 = sadd.s32 %s578, 1
      %p582 = scmp.eq.s32.totalorder %s52, 3
      %p583 = scmp.ne.s32.totalorder %s578, %s580
      %p584 = scmp.eq.s32.totalorder %s52, 0
      %p585 = por %p583, %p584
      %p586 = scmp.ne.s32.totalorder %s578, %s580
      %p587 = scmp.eq.s32.totalorder %s57, 3
      %p588 = por %p586, %p587
      %p589 = scmp.ne.s32.totalorder %s580, %s581
      %p590 = scmp.eq.s32.totalorder %s57, 0
      %p591 = por %p589, %p590
      %p592 = scmp.ne.s32.totalorder %s580, %s581
      %p593 = scmp.eq.s32.totalorder %s58, 3
      %p594 = por %p592, %p593
      %p596 = scmp.ne.s32.totalorder %s581, %s595
      %p597 = scmp.eq.s32.totalorder %s58, 0
      %p598 = por %p596, %p597
      %s600 = sadd.s32 %s599, 1
      %p603 = scmp.eq.s32.totalorder %s52, 3
      %p604 = scmp.ne.s32.totalorder %s599, %s601
      %p605 = scmp.eq.s32.totalorder %s52, 0
      %p606 = por %p604, %p605
      %p607 = scmp.ne.s32.totalorder %s599, %s601
      %p608 = scmp.eq.s32.totalorder %s57, 3
      %p609 = por %p607, %p608
      %p610 = scmp.ne.s32.totalorder %s601, %s602
      %p611 = scmp.eq.s32.totalorder %s57, 0
      %p612 = por %p610, %p611
      %p613 = scmp.ne.s32.totalorder %s601, %s602
      %p614 = scmp.eq.s32.totalorder %s58, 3
      %p615 = por %p613, %p614
      %p617 = scmp.ne.s32.totalorder %s602, %s616
      %p618 = scmp.eq.s32.totalorder %s58, 0
      %p619 = por %p617, %p618
      %s621 = sadd.s32 %s620, 1
      %p624 = scmp.eq.s32.totalorder %s52, 3
      %p625 = scmp.ne.s32.totalorder %s620, %s622
      %p626 = scmp.eq.s32.totalorder %s52, 0
      %p627 = por %p625, %p626
      %p628 = scmp.ne.s32.totalorder %s620, %s622
      %p629 = scmp.eq.s32.totalorder %s57, 3
      %p630 = por %p628, %p629
      %p631 = scmp.ne.s32.totalorder %s622, %s623
      %p632 = scmp.eq.s32.totalorder %s57, 0
      %p633 = por %p631, %p632
      %p634 = scmp.ne.s32.totalorder %s622, %s623
      %p635 = scmp.eq.s32.totalorder %s58, 3
      %p636 = por %p634, %p635
      %p638 = scmp.ne.s32.totalorder %s623, %s637
      %p639 = scmp.eq.s32.totalorder %s58, 0
      %p640 = por %p638, %p639
      %s641 = ssub.s32 %s59, %s71
      %p642 = scmp.eq.s32.totalorder %s641, 0
      %s644 = sadd.s32 %s643, 1
      %s645 = scalar_select %p642, %s643, %s644
      %p648 = pneg %p642
      %p649 = scmp.eq.s32.totalorder %s52, 3
      %p650 = por %p648, %p649
      %p651 = scmp.ne.s32.totalorder %s643, %s646
      %p652 = scmp.eq.s32.totalorder %s52, 0
      %p653 = por %p651, %p652
      %p654 = scmp.ne.s32.totalorder %s643, %s646
      %p655 = scmp.eq.s32.totalorder %s57, 3
      %p656 = por %p654, %p655
      %p657 = scmp.ne.s32.totalorder %s646, %s647
      %p658 = scmp.eq.s32.totalorder %s57, 0
      %p659 = por %p657, %p658
      %p660 = scmp.ne.s32.totalorder %s646, %s647
      %p661 = scmp.eq.s32.totalorder %s58, 3
      %p662 = por %p660, %p661
      %p664 = scmp.ne.s32.totalorder %s647, %s663
      %p665 = scmp.eq.s32.totalorder %s58, 0
      %p666 = por %p664, %p665
      %p667 = scmp.le.s32.totalorder 1, %s52
      %p668 = scmp.lt.s32.totalorder %s52, 5
      %p669 = pnand %p667, %p668
      %p670 = pneg %p669
      // Predicated region
      $region9: #{tpu_custom_call.1} parent=5 // pred_check
        _
      $region10: #{tpu_custom_call.1} parent=5 // pred_check_branch
        %672 = sbr.rel (%p669) target = $region12
      $region11: #{tpu_custom_call.1} parent=5 // pred_region
        %s673 = ssub.s32 %s52, 1
        // Predicated region
        $region13: #{tpu_custom_call.1} parent=11 // pred_check
          %p674 = pneg %p111
        $region14: #{tpu_custom_call.1} parent=11 // pred_check_branch
          %676 = sbr.rel (%p674) target = $region16
        $region15: #{tpu_custom_call.1} parent=11 // pred_region
          %s678 = ssub.s32 128, 128
          %679 = vsyncadd [#allocation7], %s678
          %s680 = sshll.u32 [#allocation6], 4
          %s681 = int_to_ptr.vmem [resolvable:$true] %s680
          %686 = dma.hbm_to_vmem [thread:$0]  %s1, 128, %s681, [#allocation7], 64, 64, 4
        $region16: #{tpu_custom_call.1} parent=11 // pred_fallthru
          _
        // Predicated region
        $region17: #{tpu_custom_call.1} parent=11 // pred_check
          %p687 = pneg %p132
        $region18: #{tpu_custom_call.1} parent=11 // pred_check_branch
          %689 = sbr.rel (%p687) target = $region20
        $region19: #{tpu_custom_call.1} parent=11 // pred_region
          _
        $region20: #{tpu_custom_call.1} parent=11 // pred_fallthru
          _
        // Predicated region
        $region21: #{tpu_custom_call.1} parent=11 // pred_check
          %p690 = pneg %p153
        $region22: #{tpu_custom_call.1} parent=11 // pred_check_branch
          %692 = sbr.rel (%p690) target = $region24
        $region23: #{tpu_custom_call.1} parent=11 // pred_region
          %s694 = ssub.s32 128, 128
          %695 = vsyncadd [#allocation7], %s694
          %s697 = sshll.u32 [#allocation8], 4
          %s698 = int_to_ptr.vmem [resolvable:$true] %s697
          %700 = dma.hbm_to_vmem [thread:$0]  %s3, 128, %s698, [#allocation7]
        $region24: #{tpu_custom_call.1} parent=11 // pred_fallthru
          _
        // Predicated region
        $region25: #{tpu_custom_call.1} parent=11 // pred_check
          %p701 = pneg %p486
        $region26: #{tpu_custom_call.1} parent=11 // pred_check_branch
          %703 = sbr.rel (%p701) target = $region28
        $region27: #{tpu_custom_call.1} parent=11 // pred_region
          _
        $region28: #{tpu_custom_call.1} parent=11 // pred_fallthru
          _
        // Predicated region
        $region29: #{tpu_custom_call.1} parent=11 // pred_check
          %p704 = pneg %p507
        $region30: #{tpu_custom_call.1} parent=11 // pred_check_branch
          %706 = sbr.rel (%p704) target = $region32
        $region31: #{tpu_custom_call.1} parent=11 // pred_region
          _
        $region32: #{tpu_custom_call.1} parent=11 // pred_fallthru
          _
        // Predicated region
        $region33: #{tpu_custom_call.1} parent=11 // pred_check
          %p707 = pneg %p528
        $region34: #{tpu_custom_call.1} parent=11 // pred_check_branch
          %709 = sbr.rel (%p707) target = $region36
        $region35: #{tpu_custom_call.1} parent=11 // pred_region
          _
        $region36: #{tpu_custom_call.1} parent=11 // pred_fallthru
          _
        // Predicated region
        $region37: #{tpu_custom_call.1} parent=11 // pred_check
          %p710 = pneg %p549
        $region38: #{tpu_custom_call.1} parent=11 // pred_check_branch
          %712 = sbr.rel (%p710) target = $region40
        $region39: #{tpu_custom_call.1} parent=11 // pred_region
          _
        $region40: #{tpu_custom_call.1} parent=11 // pred_fallthru
          _
        // Predicated region
        $region41: #{tpu_custom_call.1} parent=11 // pred_check
          %p713 = pneg %p570
        $region42: #{tpu_custom_call.1} parent=11 // pred_check_branch
          %715 = sbr.rel (%p713) target = $region44
        $region43: #{tpu_custom_call.1} parent=11 // pred_region
          _
        $region44: #{tpu_custom_call.1} parent=11 // pred_fallthru
          _
        // Predicated region
        $region45: #{tpu_custom_call.1} parent=11 // pred_check
          %p716 = pneg %p591
        $region46: #{tpu_custom_call.1} parent=11 // pred_check_branch
          %718 = sbr.rel (%p716) target = $region48
        $region47: #{tpu_custom_call.1} parent=11 // pred_region
          _
        $region48: #{tpu_custom_call.1} parent=11 // pred_fallthru
          _
        // Predicated region
        $region49: #{tpu_custom_call.1} parent=11 // pred_check
          %p719 = pneg %p612
        $region50: #{tpu_custom_call.1} parent=11 // pred_check_branch
          %721 = sbr.rel (%p719) target = $region52
        $region51: #{tpu_custom_call.1} parent=11 // pred_region
          _
        $region52: #{tpu_custom_call.1} parent=11 // pred_fallthru
          _
        // Predicated region
        $region53: #{tpu_custom_call.1} parent=11 // pred_check
          %p722 = pneg %p633
        $region54: #{tpu_custom_call.1} parent=11 // pred_check_branch
          %724 = sbr.rel (%p722) target = $region56
        $region55: #{tpu_custom_call.1} parent=11 // pred_region
          _
        $region56: #{tpu_custom_call.1} parent=11 // pred_fallthru
          _
      $region12: #{tpu_custom_call.1} parent=5 // pred_fallthru
        _
      %p725 = scmp.lt.s32.totalorder %s52, 4
      // Predicated region
      $region57: #{tpu_custom_call.1} parent=5 // pred_check
        %p726 = pneg %p725
      $region58: #{tpu_custom_call.1} parent=5 // pred_check_branch
        %728 = sbr.rel (%p726) target = $region60
      $region59: #{tpu_custom_call.1} parent=5 // pred_region
        // Predicated region
        $region61: #{tpu_custom_call.1} parent=59 // pred_check
          %p729 = pneg %p84
        $region62: #{tpu_custom_call.1} parent=59 // pred_check_branch
          %731 = sbr.rel (%p729) target = $region64
        $region63: #{tpu_custom_call.1} parent=59 // pred_region
          %s732 = sand.u32 %s74, 1
          %s733 = scalar_lea.sflag [#allocation4], %s732
          %s734 = sand.u32 %s74, 1
          %s735 = smul.addr %s734, 32
          %s736 = scalar_lea.vmem [#allocation3], %s735
          %s737 = smul.u32 4, %s59
          %s739 = ssub.s32 512, 512
          %740 = vsyncadd %s733, %s739
          %s741 = smul.addr %s737, 128
          %s742 = scalar_lea.hbm %s0, %s741
          %s743 = sshll.u32 %s736, 4
          %s744 = int_to_ptr.vmem [resolvable:$true] %s743
          %749 = dma.hbm_to_vmem [thread:$0]  %s742, 512, %s744, %s733, 128, 128, 8
        $region64: #{tpu_custom_call.1} parent=59 // pred_fallthru
          _
        // Predicated region
        $region65: #{tpu_custom_call.1} parent=59 // pred_check
          %p750 = pneg %p173
        $region66: #{tpu_custom_call.1} parent=59 // pred_check_branch
          %752 = sbr.rel (%p750) target = $region68
        $region67: #{tpu_custom_call.1} parent=59 // pred_region
          %s753 = sand.u32 %s52, 1
          %s754 = scalar_lea.sflag [#allocation10], %s753
          %s755 = sand.u32 %s163, 1
          %s756 = smul.addr %s755, 192
          %s757 = scalar_lea.vmem [#allocation9], %s756
          %s759 = ssub.s32 3072, 3072
          %760 = vsyncadd %s754, %s759
          %s761 = smul.addr %s60, 48
          %s762 = smul.addr %s761, 64
          %s763 = scalar_lea.hbm %s4, %s762
          %s764 = sshll.u32 %s757, 4
          %s765 = int_to_ptr.vmem [resolvable:$true] %s764
          %770 = dma.hbm_to_vmem [thread:$0]  %s763, 3072, %s765, %s754, 192, 192, 12
        $region68: #{tpu_custom_call.1} parent=59 // pred_fallthru
          _
        // Predicated region
        $region69: #{tpu_custom_call.1} parent=59 // pred_check
          %p771 = pneg %p199
        $region70: #{tpu_custom_call.1} parent=59 // pred_check_branch
          %773 = sbr.rel (%p771) target = $region72
        $region71: #{tpu_custom_call.1} parent=59 // pred_region
          %s774 = sand.u32 %s52, 1
          %s775 = scalar_lea.sflag [#allocation10], %s774
          %s776 = sand.u32 %s189, 1
          %s777 = smul.addr %s776, 3
          %s778 = scalar_lea.vmem [#allocation11], %s777
          %s780 = ssub.s32 48, 48
          %781 = vsyncadd %s775, %s780
          %s782 = smul.addr %s60, 3
          %s783 = smul.addr %s782, 16
          %s784 = scalar_lea.hbm %s5, %s783
          %s786 = sshll.u32 %s778, 4
          %s787 = int_to_ptr.vmem [resolvable:$true] %s786
          %789 = dma.hbm_to_vmem [thread:$0]  %s784, 48, %s787, %s775
        $region72: #{tpu_custom_call.1} parent=59 // pred_fallthru
          _
        // Predicated region
        $region73: #{tpu_custom_call.1} parent=59 // pred_check
          %p790 = pneg %p225
        $region74: #{tpu_custom_call.1} parent=59 // pred_check_branch
          %792 = sbr.rel (%p790) target = $region76
        $region75: #{tpu_custom_call.1} parent=59 // pred_region
          %p793 = scmp.lt.s32.totalorder %s60, 1
          %s794 = scalar_select %p793, %s60, 1
          %s795 = smul.addr %s794, 16
          %s796 = smul.addr %s795, 4
          %s797 = scalar_lea.vmem %s6, %s796
        $region76: #{tpu_custom_call.1} parent=59 // pred_fallthru
          _
        // Predicated region
        $region77: #{tpu_custom_call.1} parent=59 // pred_check
          %p798 = pneg %p251
        $region78: #{tpu_custom_call.1} parent=59 // pred_check_branch
          %800 = sbr.rel (%p798) target = $region80
        $region79: #{tpu_custom_call.1} parent=59 // pred_region
          %s801 = sand.u32 %s52, 1
          %s802 = scalar_lea.sflag [#allocation13], %s801
          %s803 = sand.u32 %s241, 1
          %s804 = scalar_lea.vmem [#allocation12], %s803
          %s806 = ssub.s32 16, 16
          %807 = vsyncadd %s802, %s806
          %s808 = smul.addr %s60, 16
          %s809 = scalar_lea.hbm %s7, %s808
          %s811 = sshll.u32 %s804, 4
          %s812 = int_to_ptr.vmem [resolvable:$true] %s811
          %814 = dma.hbm_to_vmem [thread:$0]  %s809, 16, %s812, %s802
        $region80: #{tpu_custom_call.1} parent=59 // pred_fallthru
          _
        // Predicated region
        $region81: #{tpu_custom_call.1} parent=59 // pred_check
          %p815 = pneg %p277
        $region82: #{tpu_custom_call.1} parent=59 // pred_check_branch
          %817 = sbr.rel (%p815) target = $region84
        $region83: #{tpu_custom_call.1} parent=59 // pred_region
          %s818 = sand.u32 %s52, 1
          %s819 = scalar_lea.sflag [#allocation13], %s818
          %s820 = sand.u32 %s267, 1
          %s821 = scalar_lea.vmem [#allocation14], %s820
          %s823 = ssub.s32 16, 16
          %824 = vsyncadd %s819, %s823
          %s825 = smul.addr %s60, 16
          %s826 = scalar_lea.hbm %s8, %s825
          %s828 = sshll.u32 %s821, 4
          %s829 = int_to_ptr.vmem [resolvable:$true] %s828
          %831 = dma.hbm_to_vmem [thread:$0]  %s826, 16, %s829, %s819
        $region84: #{tpu_custom_call.1} parent=59 // pred_fallthru
          _
        // Predicated region
        $region85: #{tpu_custom_call.1} parent=59 // pred_check
          %p832 = pneg %p303
        $region86: #{tpu_custom_call.1} parent=59 // pred_check_branch
          %834 = sbr.rel (%p832) target = $region88
        $region87: #{tpu_custom_call.1} parent=59 // pred_region
          %s835 = sand.u32 %s52, 1
          %s836 = scalar_lea.sflag [#allocation16], %s835
          %s837 = sand.u32 %s293, 1
          %s838 = scalar_lea.vmem [#allocation15], %s837
          %s840 = ssub.s32 16, 16
          %841 = vsyncadd %s836, %s840
          %s842 = smul.addr %s60, 16
          %s843 = scalar_lea.hbm %s9, %s842
          %s845 = sshll.u32 %s838, 4
          %s846 = int_to_ptr.vmem [resolvable:$true] %s845
          %848 = dma.hbm_to_vmem [thread:$0]  %s843, 16, %s846, %s836
        $region88: #{tpu_custom_call.1} parent=59 // pred_fallthru
          _
        // Predicated region
        $region89: #{tpu_custom_call.1} parent=59 // pred_check
          %p849 = pneg %p329
        $region90: #{tpu_custom_call.1} parent=59 // pred_check_branch
          %851 = sbr.rel (%p849) target = $region92
        $region91: #{tpu_custom_call.1} parent=59 // pred_region
          %s852 = sand.u32 %s52, 1
          %s853 = scalar_lea.sflag [#allocation16], %s852
          %s854 = sand.u32 %s319, 1
          %s855 = smul.addr %s854, 128
          %s856 = scalar_lea.vmem [#allocation17], %s855
          %s858 = ssub.s32 2048, 2048
          %859 = vsyncadd %s853, %s858
          %s860 = smul.addr %s60, 32
          %s861 = smul.addr %s860, 64
          %s862 = scalar_lea.hbm %s10, %s861
          %s863 = sshll.u32 %s856, 4
          %s864 = int_to_ptr.vmem [resolvable:$true] %s863
          %869 = dma.hbm_to_vmem [thread:$0]  %s862, 2048, %s864, %s853, 128, 128, 8
        $region92: #{tpu_custom_call.1} parent=59 // pred_fallthru
          _
        // Predicated region
        $region93: #{tpu_custom_call.1} parent=59 // pred_check
          %p870 = pneg %p355
        $region94: #{tpu_custom_call.1} parent=59 // pred_check_branch
          %872 = sbr.rel (%p870) target = $region96
        $region95: #{tpu_custom_call.1} parent=59 // pred_region
          %s873 = sand.u32 %s52, 1
          %s874 = scalar_lea.sflag [#allocation19], %s873
          %s875 = sand.u32 %s345, 1
          %s876 = smul.addr %s875, 2
          %s877 = scalar_lea.vmem [#allocation18], %s876
          %s879 = ssub.s32 32, 32
          %880 = vsyncadd %s874, %s879
          %s881 = smul.addr %s60, 2
          %s882 = smul.addr %s881, 16
          %s883 = scalar_lea.hbm %s11, %s882
          %s885 = sshll.u32 %s877, 4
          %s886 = int_to_ptr.vmem [resolvable:$true] %s885
          %888 = dma.hbm_to_vmem [thread:$0]  %s883, 32, %s886, %s874
        $region96: #{tpu_custom_call.1} parent=59 // pred_fallthru
          _
        // Predicated region
        $region97: #{tpu_custom_call.1} parent=59 // pred_check
          %p889 = pneg %p381
        $region98: #{tpu_custom_call.1} parent=59 // pred_check_branch
          %891 = sbr.rel (%p889) target = $region100
        $region99: #{tpu_custom_call.1} parent=59 // pred_region
          %s892 = sand.u32 %s52, 1
          %s893 = scalar_lea.sflag [#allocation19], %s892
          %s894 = sand.u32 %s371, 1
          %s895 = smul.addr %s894, 128
          %s896 = scalar_lea.vmem [#allocation20], %s895
          %s898 = ssub.s32 2048, 2048
          %899 = vsyncadd %s893, %s898
          %s900 = smul.addr %s60, 32
          %s901 = smul.addr %s900, 64
          %s902 = scalar_lea.hbm %s12, %s901
          %s903 = sshll.u32 %s896, 4
          %s904 = int_to_ptr.vmem [resolvable:$true] %s903
          %909 = dma.hbm_to_vmem [thread:$0]  %s902, 2048, %s904, %s893, 64, 64, 4
        $region100: #{tpu_custom_call.1} parent=59 // pred_fallthru
          _
        // Predicated region
        $region101: #{tpu_custom_call.1} parent=59 // pred_check
          %p910 = pneg %p407
        $region102: #{tpu_custom_call.1} parent=59 // pred_check_branch
          %912 = sbr.rel (%p910) target = $region104
        $region103: #{tpu_custom_call.1} parent=59 // pred_region
          %s913 = sand.u32 %s397, 1
          %s914 = scalar_lea.sflag [#allocation22], %s913
          %s915 = sand.u32 %s397, 1
          %s916 = scalar_lea.vmem [#allocation21], %s915
          %s918 = ssub.s32 16, 16
          %919 = vsyncadd %s914, %s918
          %s920 = smul.addr %s60, 16
          %s921 = scalar_lea.hbm %s13, %s920
          %s923 = sshll.u32 %s916, 4
          %s924 = int_to_ptr.vmem [resolvable:$true] %s923
          %926 = dma.hbm_to_vmem [thread:$0]  %s921, 16, %s924, %s914
        $region104: #{tpu_custom_call.1} parent=59 // pred_fallthru
          _
        // Predicated region
        $region105: #{tpu_custom_call.1} parent=59 // pred_check
          %p927 = pneg %p433
        $region106: #{tpu_custom_call.1} parent=59 // pred_check_branch
          %929 = sbr.rel (%p927) target = $region108
        $region107: #{tpu_custom_call.1} parent=59 // pred_region
          %p930 = scmp.lt.s32.totalorder %s60, 1
          %s931 = scalar_select %p930, %s60, 1
          %s932 = scalar_lea.vmem %s14, %s931
        $region108: #{tpu_custom_call.1} parent=59 // pred_fallthru
          _
        // Predicated region
        $region109: #{tpu_custom_call.1} parent=59 // pred_check
          %p933 = pneg %p459
        $region110: #{tpu_custom_call.1} parent=59 // pred_check_branch
          %935 = sbr.rel (%p933) target = $region112
        $region111: #{tpu_custom_call.1} parent=59 // pred_region
          %p936 = scmp.lt.s32.totalorder %s60, 1
          %s937 = scalar_select %p936, %s60, 1
          %s938 = scalar_lea.vmem %s15, %s937
        $region112: #{tpu_custom_call.1} parent=59 // pred_fallthru
          _
      $region60: #{tpu_custom_call.1} parent=5 // pred_fallthru
        _
      %p939 = scmp.le.s32.totalorder 1, %s52
      %p940 = scmp.lt.s32.totalorder %s52, 5
      %p941 = pnand %p939, %p940
      %p942 = pneg %p941
      // Predicated region
      $region113: #{tpu_custom_call.1} parent=5 // pred_check
        _
      $region114: #{tpu_custom_call.1} parent=5 // pred_check_branch
        %944 = sbr.rel (%p941) target = $region116
      $region115: #{tpu_custom_call.1} parent=5 // pred_region
        %s945 = ssub.s32 %s52, 1
        %s946 = sand.u32 %s77, 1
        %s947 = scalar_lea.sflag [#allocation4], %s946
        %s948 = sand.u32 %s77, 1
        %s949 = smul.addr %s948, 32
        %s950 = scalar_lea.vmem [#allocation3], %s949
        // Predicated region
        $region117: #{tpu_custom_call.1} parent=115 // pred_check
          %p951 = pneg %p90
        $region118: #{tpu_custom_call.1} parent=115 // pred_check_branch
          %953 = sbr.rel (%p951) target = $region120
        $region119: #{tpu_custom_call.1} parent=115 // pred_region
          %954 = dma.done %s947, 512
        $region120: #{tpu_custom_call.1} parent=115 // pred_fallthru
          _
        // Predicated region
        $region121: #{tpu_custom_call.1} parent=115 // pred_check
          %p955 = pneg %p111
        $region122: #{tpu_custom_call.1} parent=115 // pred_check_branch
          %957 = sbr.rel (%p955) target = $region124
        $region123: #{tpu_custom_call.1} parent=115 // pred_region
          %958 = dma.done [#allocation7], 128
        $region124: #{tpu_custom_call.1} parent=115 // pred_fallthru
          _
        // Predicated region
        $region125: #{tpu_custom_call.1} parent=115 // pred_check
          %p959 = pneg %p153
        $region126: #{tpu_custom_call.1} parent=115 // pred_check_branch
          %961 = sbr.rel (%p959) target = $region128
        $region127: #{tpu_custom_call.1} parent=115 // pred_region
          %962 = dma.done [#allocation7], 128
        $region128: #{tpu_custom_call.1} parent=115 // pred_fallthru
          _
        %s963 = sand.u32 %s57, 1
        %s964 = scalar_lea.sflag [#allocation10], %s963
        %s965 = sand.u32 %s166, 1
        %s966 = smul.addr %s965, 192
        %s967 = scalar_lea.vmem [#allocation9], %s966
        // Predicated region
        $region129: #{tpu_custom_call.1} parent=115 // pred_check
          %p968 = pneg %p179
        $region130: #{tpu_custom_call.1} parent=115 // pred_check_branch
          %970 = sbr.rel (%p968) target = $region132
        $region131: #{tpu_custom_call.1} parent=115 // pred_region
          %971 = dma.done %s964, 3072
        $region132: #{tpu_custom_call.1} parent=115 // pred_fallthru
          _
        %s972 = sand.u32 %s57, 1
        %s973 = scalar_lea.sflag [#allocation10], %s972
        %s974 = sand.u32 %s192, 1
        %s975 = smul.addr %s974, 3
        %s976 = scalar_lea.vmem [#allocation11], %s975
        // Predicated region
        $region133: #{tpu_custom_call.1} parent=115 // pred_check
          %p977 = pneg %p205
        $region134: #{tpu_custom_call.1} parent=115 // pred_check_branch
          %979 = sbr.rel (%p977) target = $region136
        $region135: #{tpu_custom_call.1} parent=115 // pred_region
          %980 = dma.done %s973, 48
        $region136: #{tpu_custom_call.1} parent=115 // pred_fallthru
          _
        %s981 = sand.u32 %s57, 1
        %s982 = scalar_lea.sflag [#allocation13], %s981
        %s983 = sand.u32 %s244, 1
        %s984 = scalar_lea.vmem [#allocation12], %s983
        // Predicated region
        $region137: #{tpu_custom_call.1} parent=115 // pred_check
          %p985 = pneg %p257
        $region138: #{tpu_custom_call.1} parent=115 // pred_check_branch
          %987 = sbr.rel (%p985) target = $region140
        $region139: #{tpu_custom_call.1} parent=115 // pred_region
          %988 = dma.done %s982, 16
        $region140: #{tpu_custom_call.1} parent=115 // pred_fallthru
          _
        %s989 = sand.u32 %s57, 1
        %s990 = scalar_lea.sflag [#allocation13], %s989
        %s991 = sand.u32 %s270, 1
        %s992 = scalar_lea.vmem [#allocation14], %s991
        // Predicated region
        $region141: #{tpu_custom_call.1} parent=115 // pred_check
          %p993 = pneg %p283
        $region142: #{tpu_custom_call.1} parent=115 // pred_check_branch
          %995 = sbr.rel (%p993) target = $region144
        $region143: #{tpu_custom_call.1} parent=115 // pred_region
          %996 = dma.done %s990, 16
        $region144: #{tpu_custom_call.1} parent=115 // pred_fallthru
          _
        %s997 = sand.u32 %s57, 1
        %s998 = scalar_lea.sflag [#allocation16], %s997
        %s999 = sand.u32 %s296, 1
        %s1000 = scalar_lea.vmem [#allocation15], %s999
        // Predicated region
        $region145: #{tpu_custom_call.1} parent=115 // pred_check
          %p1001 = pneg %p309
        $region146: #{tpu_custom_call.1} parent=115 // pred_check_branch
          %1003 = sbr.rel (%p1001) target = $region148
        $region147: #{tpu_custom_call.1} parent=115 // pred_region
          %1004 = dma.done %s998, 16
        $region148: #{tpu_custom_call.1} parent=115 // pred_fallthru
          _
        %s1005 = sand.u32 %s57, 1
        %s1006 = scalar_lea.sflag [#allocation16], %s1005
        %s1007 = sand.u32 %s322, 1
        %s1008 = smul.addr %s1007, 128
        %s1009 = scalar_lea.vmem [#allocation17], %s1008
        // Predicated region
        $region149: #{tpu_custom_call.1} parent=115 // pred_check
          %p1010 = pneg %p335
        $region150: #{tpu_custom_call.1} parent=115 // pred_check_branch
          %1012 = sbr.rel (%p1010) target = $region152
        $region151: #{tpu_custom_call.1} parent=115 // pred_region
          %1013 = dma.done %s1006, 2048
        $region152: #{tpu_custom_call.1} parent=115 // pred_fallthru
          _
        %s1014 = sand.u32 %s57, 1
        %s1015 = scalar_lea.sflag [#allocation19], %s1014
        %s1016 = sand.u32 %s348, 1
        %s1017 = smul.addr %s1016, 2
        %s1018 = scalar_lea.vmem [#allocation18], %s1017
        // Predicated region
        $region153: #{tpu_custom_call.1} parent=115 // pred_check
          %p1019 = pneg %p361
        $region154: #{tpu_custom_call.1} parent=115 // pred_check_branch
          %1021 = sbr.rel (%p1019) target = $region156
        $region155: #{tpu_custom_call.1} parent=115 // pred_region
          %1022 = dma.done %s1015, 32
        $region156: #{tpu_custom_call.1} parent=115 // pred_fallthru
          _
        %s1023 = sand.u32 %s57, 1
        %s1024 = scalar_lea.sflag [#allocation19], %s1023
        %s1025 = sand.u32 %s374, 1
        %s1026 = smul.addr %s1025, 128
        %s1027 = scalar_lea.vmem [#allocation20], %s1026
        // Predicated region
        $region157: #{tpu_custom_call.1} parent=115 // pred_check
          %p1028 = pneg %p387
        $region158: #{tpu_custom_call.1} parent=115 // pred_check_branch
          %1030 = sbr.rel (%p1028) target = $region160
        $region159: #{tpu_custom_call.1} parent=115 // pred_region
          %1031 = dma.done %s1024, 2048
        $region160: #{tpu_custom_call.1} parent=115 // pred_fallthru
          _
        %s1032 = sand.u32 %s400, 1
        %s1033 = scalar_lea.sflag [#allocation22], %s1032
        %s1034 = sand.u32 %s400, 1
        %s1035 = scalar_lea.vmem [#allocation21], %s1034
        // Predicated region
        $region161: #{tpu_custom_call.1} parent=115 // pred_check
          %p1036 = pneg %p413
        $region162: #{tpu_custom_call.1} parent=115 // pred_check_branch
          %1038 = sbr.rel (%p1036) target = $region164
        $region163: #{tpu_custom_call.1} parent=115 // pred_region
          %1039 = dma.done %s1033, 16
        $region164: #{tpu_custom_call.1} parent=115 // pred_fallthru
          _
        %s1040 = sand.u32 %s77, 1
        %s1041 = scalar_lea.sflag [#allocation4], %s1040
        %s1042 = sand.u32 %s77, 1
        %s1043 = smul.addr %s1042, 32
        %s1044 = scalar_lea.vmem [#allocation3], %s1043
        %p1045 = pneg %p90
        %p1046 = pneg %p87
        %p1047 = pneg %p111
        %p1048 = pneg %p108
        %p1049 = pneg %p132
        %p1050 = pneg %p129
        %p1051 = pneg %p153
        %p1052 = pneg %p150
        %s1053 = sand.u32 %s57, 1
        %s1054 = scalar_lea.sflag [#allocation10], %s1053
        %s1055 = sand.u32 %s166, 1
        %s1056 = smul.addr %s1055, 192
        %s1057 = scalar_lea.vmem [#allocation9], %s1056
        %p1058 = pneg %p179
        %p1059 = pneg %p176
        %s1060 = sand.u32 %s57, 1
        %s1061 = scalar_lea.sflag [#allocation10], %s1060
        %s1062 = sand.u32 %s192, 1
        %s1063 = smul.addr %s1062, 3
        %s1064 = scalar_lea.vmem [#allocation11], %s1063
        %p1065 = pneg %p205
        %p1066 = pneg %p202
        %p1067 = scmp.lt.s32.totalorder %s62, 1
        %s1068 = scalar_select %p1067, %s62, 1
        %s1069 = smul.addr %s1068, 16
        %s1070 = smul.addr %s1069, 4
        %s1071 = scalar_lea.vmem %s6, %s1070
        %p1072 = pneg %p231
        %p1073 = pneg %p228
        %s1074 = sand.u32 %s57, 1
        %s1075 = scalar_lea.sflag [#allocation13], %s1074
        %s1076 = sand.u32 %s244, 1
        %s1077 = scalar_lea.vmem [#allocation12], %s1076
        %p1078 = pneg %p257
        %p1079 = pneg %p254
        %s1080 = sand.u32 %s57, 1
        %s1081 = scalar_lea.sflag [#allocation13], %s1080
        %s1082 = sand.u32 %s270, 1
        %s1083 = scalar_lea.vmem [#allocation14], %s1082
        %p1084 = pneg %p283
        %p1085 = pneg %p280
        %s1086 = sand.u32 %s57, 1
        %s1087 = scalar_lea.sflag [#allocation16], %s1086
        %s1088 = sand.u32 %s296, 1
        %s1089 = scalar_lea.vmem [#allocation15], %s1088
        %p1090 = pneg %p309
        %p1091 = pneg %p306
        %s1092 = sand.u32 %s57, 1
        %s1093 = scalar_lea.sflag [#allocation16], %s1092
        %s1094 = sand.u32 %s322, 1
        %s1095 = smul.addr %s1094, 128
        %s1096 = scalar_lea.vmem [#allocation17], %s1095
        %p1097 = pneg %p335
        %p1098 = pneg %p332
        %s1099 = sand.u32 %s57, 1
        %s1100 = scalar_lea.sflag [#allocation19], %s1099
        %s1101 = sand.u32 %s348, 1
        %s1102 = smul.addr %s1101, 2
        %s1103 = scalar_lea.vmem [#allocation18], %s1102
        %p1104 = pneg %p361
        %p1105 = pneg %p358
        %s1106 = sand.u32 %s57, 1
        %s1107 = scalar_lea.sflag [#allocation19], %s1106
        %s1108 = sand.u32 %s374, 1
        %s1109 = smul.addr %s1108, 128
        %s1110 = scalar_lea.vmem [#allocation20], %s1109
        %p1111 = pneg %p387
        %p1112 = pneg %p384
        %s1113 = sand.u32 %s400, 1
        %s1114 = scalar_lea.sflag [#allocation22], %s1113
        %s1115 = sand.u32 %s400, 1
        %s1116 = scalar_lea.vmem [#allocation21], %s1115
        %p1117 = pneg %p413
        %p1118 = pneg %p410
        %p1119 = scmp.lt.s32.totalorder %s62, 1
        %s1120 = scalar_select %p1119, %s62, 1
        %s1121 = scalar_lea.vmem %s14, %s1120
        %p1122 = pneg %p439
        %p1123 = pneg %p436
        %p1124 = scmp.lt.s32.totalorder %s62, 1
        %s1125 = scalar_select %p1124, %s62, 1
        %s1126 = scalar_lea.vmem %s15, %s1125
        %p1127 = pneg %p465
        %p1128 = pneg %p462
        %p1129 = pneg %p486
        %p1130 = pneg %p483
        %p1131 = pneg %p507
        %p1132 = pneg %p504
        %p1133 = pneg %p528
        %p1134 = pneg %p525
        %p1135 = pneg %p549
        %p1136 = pneg %p546
        %p1137 = pneg %p570
        %p1138 = pneg %p567
        %p1139 = pneg %p591
        %p1140 = pneg %p588
        %p1141 = pneg %p612
        %p1142 = pneg %p609
        %p1143 = pneg %p633
        %p1144 = pneg %p630
        %p1145 = pneg %p659
        %p1146 = pneg %p656
        %s1147 = sand.u32 %s646, 1
        %s1148 = scalar_lea.sflag [#allocation5], %s1147
        %s1149 = sand.u32 %s646, 1
        %s1150 = smul.addr %s1149, 4
        %s1151 = scalar_lea.vmem [#allocation23], %s1150
        %s1152 = smul.u32 4, %s61
        %p1153 = scmp.lt.s32.totalorder %s62, 1
        %s1154 = scalar_select %p1153, %s62, 1
        %s1155 = smul.addr %s1154, 16
        %s1156 = smul.addr %s1155, 4
        %s1157 = scalar_lea.vmem %s6, %s1156
        %p1158 = scmp.lt.s32.totalorder %s62, 1
        %s1159 = scalar_select %p1158, %s62, 1
        %s1160 = scalar_lea.vmem %s14, %s1159
        %p1161 = scmp.lt.s32.totalorder %s62, 1
        %s1162 = scalar_select %p1161, %s62, 1
        %s1163 = scalar_lea.vmem %s15, %s1162
        %p1165 = scmp.eq.s32.totalorder %s62, 0
        // Predicated region
        $region165: #{tpu_custom_call.1} parent=115 // pred_check
          %p1166 = pneg %p1165
        $region166: #{tpu_custom_call.1} parent=115 // pred_check_branch
          %1168 = sbr.rel (%p1166) target = $region168
        $region167: #{tpu_custom_call.1} parent=115 // pred_region
          %v1169 = vld [vmem:[%s950] sm:$0xff]
          %v1170 = vld [vmem:[%s950 + $0x8] sm:$0xff]
          %v1171 = vld [vmem:[%s950 + $0x10] sm:$0xff]
          %v1172 = vld [vmem:[%s950 + $0x18] sm:$0xff]
          %v1173 = vpack.c.bf16 %v1170, %v1169
          %v1174 = vpack.c.bf16 %v1172, %v1171
          %v1175 = vld [vmem:[#allocation6] sm:$0xf]
          %v1176 = vld [vmem:[#allocation6 + $0x4] sm:$0xf]
          %v1177 = vld [vmem:[%s2] sm:$0x1]
          %v1179 = vlaneseq
          %v1180 = vshrl.u32 %v1179, 7
          %v1181 = vsub.s32 0, %v1180
          %v1182 = vrot.slane %v1177, %v1181
          %v1186 = vunpack.c.l.b16 %v1175
          %v1187 = vunpack.c.l.b16 %v1176
          %v1188 = vpack.c.b16 %v1187, %v1186
          %vm1190 = vcmask 130048
          %v1192 = vsel %vm1190, %v1173, 0
          %v1195 = vsel %vm1190, %v1174, 0
          %1197 = vmatprep.subr.bf16.mxu0 0
          %1198 = vmatpush1.bf16.msra.mxu0 %v1188
          %1199 = vmatprep.subr.bf16.mxu0 0
          %1200 = vmatpush1.bf16.msra.mxu0 0
          %1201 = vmatprep.subr.bf16.mxu0 0
          %1202 = vmatpush1.bf16.msra.mxu0 0
          %1203 = vmatprep.subr.bf16.mxu0 0
          %1204 = vmatpush1.bf16.msra.mxu0 0
          %1205 = vmatprep.subr.bf16.mxu0 0
          %1206 = vmatpush1.bf16.msra.mxu0 0
          %1207 = vmatprep.subr.bf16.mxu0 0
          %1208 = vmatpush1.bf16.msra.mxu0 0
          %1209 = vmatprep.subr.bf16.mxu0 0
          %1210 = vmatpush1.bf16.msra.mxu0 0
          %1211 = vmatprep.subr.bf16.mxu0 0
          %1212 = vmatpush1.bf16.msra.mxu0 0
          %1213 = vmatprep.subr.bf16.mxu0 0
          %1214 = vmatpush1.bf16.msra.mxu0 0
          %1215 = vmatprep.subr.bf16.mxu0 0
          %1216 = vmatpush1.bf16.msra.mxu0 0
          %1217 = vmatprep.subr.bf16.mxu0 0
          %1218 = vmatpush1.bf16.msra.mxu0 0
          %1219 = vmatprep.subr.bf16.mxu0 0
          %1220 = vmatpush1.bf16.msra.mxu0 0
          %1221 = vmatprep.subr.bf16.mxu0 0
          %1222 = vmatpush1.bf16.msra.mxu0 0
          %1223 = vmatprep.subr.bf16.mxu0 0
          %1224 = vmatpush1.bf16.msra.mxu0 0
          %1225 = vmatprep.subr.bf16.mxu0 0
          %1226 = vmatpush1.bf16.msra.mxu0 0
          %1227 = vmatprep.subr.bf16.mxu0 0
          %1228 = vmatpush1.bf16.msra.mxu0 0
          %1229 = vmatprep.mubr.bf16.mxu0 0
          %1230 = vmatmul.mubr.bf16.gmra.mrb[0].mxu0 %v1192
          %v1231 = vpop.f32.mrb[0].mxu0
          %v1232 = vadd.f32 %v1182, %v1231
          %v1233 = vpop.f32.mrb[0].mxu0
          %v1234 = vpop.f32.mrb[0].mxu0
          %v1235 = vadd.f32 %v1182, %v1234
          %v1236 = vpop.f32.mrb[0].mxu0
          %1237 = vmatprep.mubr.bf16.mxu0 0
          %1238 = vmatmul.mubr.bf16.gmra.mrb[0].mxu0 %v1195
          %v1239 = vpop.f32.mrb[0].mxu0
          %v1240 = vadd.f32 %v1182, %v1239
          %v1241 = vpop.f32.mrb[0].mxu0
          %v1242 = vpop.f32.mrb[0].mxu0
          %v1243 = vadd.f32 %v1182, %v1242
          %v1244 = vpop.f32.mrb[0].mxu0
          %1245 = vdwg.mxu0
          %v1246 = vld [vmem:[#allocation8] sm:$0xff]
          %v1247 = vadd.f32 %v1232, %v1246
          %v1248 = vadd.f32 %v1235, %v1246
          %v1249 = vadd.f32 %v1240, %v1246
          %v1250 = vadd.f32 %v1243, %v1246
          %1251 = vst [vmem:[#allocation2] sm:$0xff] %v1247
          %1252 = vst [vmem:[#allocation2 + $0x8] sm:$0xff] %v1248
          %1253 = vst [vmem:[#allocation2 + $0x10] sm:$0xff] %v1249
          %1254 = vst [vmem:[#allocation2 + $0x18] sm:$0xff] %v1250
        $region168: #{tpu_custom_call.1} parent=115 // pred_fallthru
          _
        %v1255 = vld [vmem:[#allocation2] sm:$0xff]
        %v1256 = vld [vmem:[#allocation2 + $0x8] sm:$0xff]
        %v1257 = vld [vmem:[#allocation2 + $0x10] sm:$0xff]
        %v1258 = vld [vmem:[#allocation2 + $0x18] sm:$0xff]
        %v1259 = vpack.c.bf16 %v1256, %v1255
        %v1260 = vpack.c.bf16 %v1258, %v1257
        %v1261 = vld [vmem:[%s967] sm:$0xff]
        %v1262 = vld [vmem:[%s967 + $0x8] sm:$0xf]
        %v1263 = vld [vmem:[%s967 + $0xc] sm:$0xff]
        %v1264 = vld [vmem:[%s967 + $0x14] sm:$0xf]
        %v1265 = vld [vmem:[%s967 + $0x18] sm:$0xff]
        %v1266 = vld [vmem:[%s967 + $0x20] sm:$0xf]
        %v1267 = vld [vmem:[%s967 + $0x24] sm:$0xff]
        %v1268 = vld [vmem:[%s967 + $0x2c] sm:$0xf]
        %v1269 = vld [vmem:[%s967 + $0x30] sm:$0xff]
        %v1270 = vld [vmem:[%s967 + $0x38] sm:$0xf]
        %v1271 = vld [vmem:[%s967 + $0x3c] sm:$0xff]
        %v1272 = vld [vmem:[%s967 + $0x44] sm:$0xf]
        %v1273 = vld [vmem:[%s967 + $0x48] sm:$0xff]
        %v1274 = vld [vmem:[%s967 + $0x50] sm:$0xf]
        %v1275 = vld [vmem:[%s967 + $0x54] sm:$0xff]
        %v1276 = vld [vmem:[%s967 + $0x5c] sm:$0xf]
        %v1277 = vld [vmem:[%s967 + $0x60] sm:$0xff]
        %v1278 = vld [vmem:[%s967 + $0x68] sm:$0xf]
        %v1279 = vld [vmem:[%s967 + $0x6c] sm:$0xff]
        %v1280 = vld [vmem:[%s967 + $0x74] sm:$0xf]
        %v1281 = vld [vmem:[%s967 + $0x78] sm:$0xff]
        %v1282 = vld [vmem:[%s967 + $0x80] sm:$0xf]
        %v1283 = vld [vmem:[%s967 + $0x84] sm:$0xff]
        %v1284 = vld [vmem:[%s967 + $0x8c] sm:$0xf]
        %v1285 = vld [vmem:[%s967 + $0x90] sm:$0xff]
        %v1286 = vld [vmem:[%s967 + $0x98] sm:$0xf]
        %v1287 = vld [vmem:[%s967 + $0x9c] sm:$0xff]
        %v1288 = vld [vmem:[%s967 + $0xa4] sm:$0xf]
        %v1289 = vld [vmem:[%s967 + $0xa8] sm:$0xff]
        %v1290 = vld [vmem:[%s967 + $0xb0] sm:$0xf]
        %v1291 = vld [vmem:[%s967 + $0xb4] sm:$0xff]
        %v1292 = vld [vmem:[%s967 + $0xbc] sm:$0xf]
        %v1293 = vld [vmem:[%s976] sm:$0x7]
        %v1295 = vlaneseq
        %v1296 = vshrl.u32 %v1295, 7
        %v1297 = vsub.s32 0, %v1296
        %v1298 = vrot.slane %v1293, %v1297
        %v1299 = vlaneseq
        %v1300 = vshrl.u32 %v1299, 7
        %v1301 = vsub.s32 1, %v1300
        %v1302 = vrot.slane %v1293, %v1301
        %v1303 = vlaneseq
        %v1304 = vshrl.u32 %v1303, 7
        %v1305 = vsub.s32 2, %v1304
        %v1306 = vrot.slane %v1293, %v1305
        %v1342 = vunpack.c.l.b16 %v1261
        %v1343 = vunpack.c.h.b16 %v1261
        %v1344 = vunpack.c.l.b16 %v1262
        %v1345 = vunpack.c.l.b16 %v1263
        %v1346 = vunpack.c.h.b16 %v1263
        %v1347 = vunpack.c.l.b16 %v1264
        %v1348 = vunpack.c.l.b16 %v1265
        %v1349 = vunpack.c.h.b16 %v1265
        %v1350 = vunpack.c.l.b16 %v1266
        %v1351 = vunpack.c.l.b16 %v1267
        %v1352 = vunpack.c.h.b16 %v1267
        %v1353 = vunpack.c.l.b16 %v1268
        %v1354 = vunpack.c.l.b16 %v1269
        %v1355 = vunpack.c.h.b16 %v1269
        %v1356 = vunpack.c.l.b16 %v1270
        %v1357 = vunpack.c.l.b16 %v1271
        %v1358 = vunpack.c.h.b16 %v1271
        %v1359 = vunpack.c.l.b16 %v1272
        %v1360 = vunpack.c.l.b16 %v1273
        %v1361 = vunpack.c.h.b16 %v1273
        %v1362 = vunpack.c.l.b16 %v1274
        %v1363 = vunpack.c.l.b16 %v1275
        %v1364 = vunpack.c.h.b16 %v1275
        %v1365 = vunpack.c.l.b16 %v1276
        %v1366 = vunpack.c.l.b16 %v1277
        %v1367 = vunpack.c.h.b16 %v1277
        %v1368 = vunpack.c.l.b16 %v1278
        %v1369 = vunpack.c.l.b16 %v1279
        %v1370 = vunpack.c.h.b16 %v1279
        %v1371 = vunpack.c.l.b16 %v1280
        %v1372 = vunpack.c.l.b16 %v1281
        %v1373 = vunpack.c.h.b16 %v1281
        %v1374 = vunpack.c.l.b16 %v1282
        %v1375 = vunpack.c.l.b16 %v1283
        %v1376 = vunpack.c.h.b16 %v1283
        %v1377 = vunpack.c.l.b16 %v1284
        %v1378 = vunpack.c.l.b16 %v1285
        %v1379 = vunpack.c.h.b16 %v1285
        %v1380 = vunpack.c.l.b16 %v1286
        %v1381 = vunpack.c.l.b16 %v1287
        %v1382 = vunpack.c.h.b16 %v1287
        %v1383 = vunpack.c.l.b16 %v1288
        %v1384 = vunpack.c.l.b16 %v1289
        %v1385 = vunpack.c.h.b16 %v1289
        %v1386 = vunpack.c.l.b16 %v1290
        %v1387 = vunpack.c.l.b16 %v1291
        %v1388 = vunpack.c.h.b16 %v1291
        %v1389 = vunpack.c.l.b16 %v1292
        %v1390 = vpack.c.b16 %v1345, %v1342
        %v1391 = vpack.c.b16 %v1346, %v1343
        %v1392 = vpack.c.b16 %v1347, %v1344
        %v1393 = vpack.c.b16 %v1351, %v1348
        %v1394 = vpack.c.b16 %v1352, %v1349
        %v1395 = vpack.c.b16 %v1353, %v1350
        %v1396 = vpack.c.b16 %v1357, %v1354
        %v1397 = vpack.c.b16 %v1358, %v1355
        %v1398 = vpack.c.b16 %v1359, %v1356
        %v1399 = vpack.c.b16 %v1363, %v1360
        %v1400 = vpack.c.b16 %v1364, %v1361
        %v1401 = vpack.c.b16 %v1365, %v1362
        %v1402 = vpack.c.b16 %v1369, %v1366
        %v1403 = vpack.c.b16 %v1370, %v1367
        %v1404 = vpack.c.b16 %v1371, %v1368
        %v1405 = vpack.c.b16 %v1375, %v1372
        %v1406 = vpack.c.b16 %v1376, %v1373
        %v1407 = vpack.c.b16 %v1377, %v1374
        %v1408 = vpack.c.b16 %v1381, %v1378
        %v1409 = vpack.c.b16 %v1382, %v1379
        %v1410 = vpack.c.b16 %v1383, %v1380
        %v1411 = vpack.c.b16 %v1387, %v1384
        %v1412 = vpack.c.b16 %v1388, %v1385
        %v1413 = vpack.c.b16 %v1389, %v1386
        %1438 = vmatprep.subr.bf16.mxu0 %v1391
        %1439 = vmatpush1.bf16.msra.mxu0 %v1390
        %1440 = vmatprep.subr.bf16.mxu0 %v1394
        %1441 = vmatpush1.bf16.msra.mxu0 %v1393
        %1442 = vmatprep.subr.bf16.mxu0 %v1397
        %1443 = vmatpush1.bf16.msra.mxu0 %v1396
        %1444 = vmatprep.subr.bf16.mxu0 %v1400
        %1445 = vmatpush1.bf16.msra.mxu0 %v1399
        %1446 = vmatprep.subr.bf16.mxu0 %v1403
        %1447 = vmatpush1.bf16.msra.mxu0 %v1402
        %1448 = vmatprep.subr.bf16.mxu0 %v1406
        %1449 = vmatpush1.bf16.msra.mxu0 %v1405
        %1450 = vmatprep.subr.bf16.mxu0 %v1409
        %1451 = vmatpush1.bf16.msra.mxu0 %v1408
        %1452 = vmatprep.subr.bf16.mxu0 %v1412
        %1453 = vmatpush1.bf16.msra.mxu0 %v1411
        %1454 = vmatprep.subr.bf16.mxu0 0
        %1455 = vmatpush1.bf16.msra.mxu0 0
        %1456 = vmatprep.subr.bf16.mxu0 0
        %1457 = vmatpush1.bf16.msra.mxu0 0
        %1458 = vmatprep.subr.bf16.mxu0 0
        %1459 = vmatpush1.bf16.msra.mxu0 0
        %1460 = vmatprep.subr.bf16.mxu0 0
        %1461 = vmatpush1.bf16.msra.mxu0 0
        %1462 = vmatprep.subr.bf16.mxu0 0
        %1463 = vmatpush1.bf16.msra.mxu0 0
        %1464 = vmatprep.subr.bf16.mxu0 0
        %1465 = vmatpush1.bf16.msra.mxu0 0
        %1466 = vmatprep.subr.bf16.mxu0 0
        %1467 = vmatpush1.bf16.msra.mxu0 0
        %1468 = vmatprep.subr.bf16.mxu0 0
        %1469 = vmatpush1.bf16.msra.mxu0 0
        %1470 = vmatprep.mubr.bf16.mxu0 0
        %1471 = vmatmul.mubr.bf16.gmra.mrb[0].mxu0 %v1259
        %v1472 = vpop.f32.mrb[0].mxu0
        %v1473 = vadd.f32 %v1298, %v1472
        %v1474 = vpop.f32.mrb[0].mxu0
        %v1475 = vadd.f32 %v1302, %v1474
        %v1476 = vpop.f32.mrb[0].mxu0
        %v1477 = vadd.f32 %v1298, %v1476
        %v1478 = vpop.f32.mrb[0].mxu0
        %v1479 = vadd.f32 %v1302, %v1478
        %1480 = vmatprep.mubr.bf16.mxu0 0
        %1481 = vmatmul.mubr.bf16.gmra.mrb[0].mxu0 %v1260
        %v1482 = vpop.f32.mrb[0].mxu0
        %v1483 = vadd.f32 %v1298, %v1482
        %v1484 = vpop.f32.mrb[0].mxu0
        %v1485 = vadd.f32 %v1302, %v1484
        %v1486 = vpop.f32.mrb[0].mxu0
        %v1487 = vadd.f32 %v1298, %v1486
        %v1488 = vpop.f32.mrb[0].mxu0
        %v1489 = vadd.f32 %v1302, %v1488
        %1490 = vdwg.mxu0
        %1491 = vmatprep.subr.bf16.mxu0 0
        %1492 = vmatpush1.bf16.msra.mxu0 %v1392
        %1493 = vmatprep.subr.bf16.mxu0 0
        %1494 = vmatpush1.bf16.msra.mxu0 %v1395
        %1495 = vmatprep.subr.bf16.mxu0 0
        %1496 = vmatpush1.bf16.msra.mxu0 %v1398
        %1497 = vmatprep.subr.bf16.mxu0 0
        %1498 = vmatpush1.bf16.msra.mxu0 %v1401
        %1499 = vmatprep.subr.bf16.mxu0 0
        %1500 = vmatpush1.bf16.msra.mxu0 %v1404
        %1501 = vmatprep.subr.bf16.mxu0 0
        %1502 = vmatpush1.bf16.msra.mxu0 %v1407
        %1503 = vmatprep.subr.bf16.mxu0 0
        %1504 = vmatpush1.bf16.msra.mxu0 %v1410
        %1505 = vmatprep.subr.bf16.mxu0 0
        %1506 = vmatpush1.bf16.msra.mxu0 %v1413
        %1507 = vmatprep.subr.bf16.mxu0 0
        %1508 = vmatpush1.bf16.msra.mxu0 0
        %1509 = vmatprep.subr.bf16.mxu0 0
        %1510 = vmatpush1.bf16.msra.mxu0 0
        %1511 = vmatprep.subr.bf16.mxu0 0
        %1512 = vmatpush1.bf16.msra.mxu0 0
        %1513 = vmatprep.subr.bf16.mxu0 0
        %1514 = vmatpush1.bf16.msra.mxu0 0
        %1515 = vmatprep.subr.bf16.mxu0 0
        %1516 = vmatpush1.bf16.msra.mxu0 0
        %1517 = vmatprep.subr.bf16.mxu0 0
        %1518 = vmatpush1.bf16.msra.mxu0 0
        %1519 = vmatprep.subr.bf16.mxu0 0
        %1520 = vmatpush1.bf16.msra.mxu0 0
        %1521 = vmatprep.subr.bf16.mxu0 0
        %1522 = vmatpush1.bf16.msra.mxu0 0
        %1523 = vmatprep.mubr.bf16.mxu0 0
        %1524 = vmatmul.mubr.bf16.gmra.mrb[0].mxu0 %v1259
        %v1525 = vpop.f32.mrb[0].mxu0
        %v1526 = vadd.f32 %v1306, %v1525
        %v1527 = vpop.f32.mrb[0].mxu0
        %v1528 = vpop.f32.mrb[0].mxu0
        %v1529 = vadd.f32 %v1306, %v1528
        %v1530 = vpop.f32.mrb[0].mxu0
        %1531 = vmatprep.mubr.bf16.mxu0 0
        %1532 = vmatmul.mubr.bf16.gmra.mrb[0].mxu0 %v1260
        %v1533 = vpop.f32.mrb[0].mxu0
        %v1534 = vadd.f32 %v1306, %v1533
        %v1535 = vpop.f32.mrb[0].mxu0
        %v1536 = vpop.f32.mrb[0].mxu0
        %v1537 = vadd.f32 %v1306, %v1536
        %v1538 = vpop.f32.mrb[0].mxu0
        %1539 = vdwg.mxu0
        %v1540 = vld [vmem:[%s1157] sm:$0xf]
        %v1541 = vld [vmem:[%s1157 + $0x4] sm:$0xf]
        %v1542 = vld [vmem:[%s1157 + $0x8] sm:$0xf]
        %v1543 = vld [vmem:[%s1157 + $0xc] sm:$0xf]
        %v1544 = vld [vmem:[%s1157 + $0x10] sm:$0xf]
        %v1545 = vld [vmem:[%s1157 + $0x14] sm:$0xf]
        %v1546 = vld [vmem:[%s1157 + $0x18] sm:$0xf]
        %v1547 = vld [vmem:[%s1157 + $0x1c] sm:$0xf]
        %v1548 = vld [vmem:[%s1157 + $0x20] sm:$0xf]
        %v1549 = vld [vmem:[%s1157 + $0x24] sm:$0xf]
        %v1550 = vld [vmem:[%s1157 + $0x28] sm:$0xf]
        %v1551 = vld [vmem:[%s1157 + $0x2c] sm:$0xf]
        %v1552 = vld [vmem:[%s1157 + $0x30] sm:$0xf]
        %v1553 = vld [vmem:[%s1157 + $0x34] sm:$0xf]
        %v1554 = vld [vmem:[%s1157 + $0x38] sm:$0xf]
        %v1555 = vld [vmem:[%s1157 + $0x3c] sm:$0xf]
        %v1556 = vpack.c.bf16 %v1473, %v1473
        %v1557 = vpack.c.bf16 %v1477, %v1477
        %v1558 = vpack.c.bf16 %v1483, %v1483
        %v1559 = vpack.c.bf16 %v1487, %v1487
        %v1560 = vpack.c.bf16 %v1475, %v1475
        %v1561 = vpack.c.bf16 %v1479, %v1479
        %v1562 = vpack.c.bf16 %v1485, %v1485
        %v1563 = vpack.c.bf16 %v1489, %v1489
        %v1564 = vpack.c.bf16 %v1526, %v1526
        %v1565 = vpack.c.bf16 %v1529, %v1529
        %v1566 = vpack.c.bf16 %v1534, %v1534
        %v1567 = vpack.c.bf16 %v1537, %v1537
        %vm1568 = vcmask 130048
        %v1570 = vsel %vm1568, %v1556, 0
        %v1573 = vsel %vm1568, %v1560, 0
        %1575 = vmatprep.subr.bf16.mxu0 0
        %1576 = vmatpush1.bf16.xpose.msra.mxu0 %v1573
        %1577 = vmatprep.subr.bf16.mxu0 0
        %1578 = vmatpush1.bf16.xpose.msra.mxu0 0
        %1579 = vmatprep.subr.bf16.mxu0 0
        %1580 = vmatpush1.bf16.xpose.msra.mxu0 0
        %1581 = vmatprep.subr.bf16.mxu0 0
        %1582 = vmatpush1.bf16.xpose.msra.mxu0 0
        %1583 = vmatprep.subr.bf16.mxu0 0
        %1584 = vmatpush1.bf16.xpose.msra.mxu0 0
        %1585 = vmatprep.subr.bf16.mxu0 0
        %1586 = vmatpush1.bf16.xpose.msra.mxu0 0
        %1587 = vmatprep.subr.bf16.mxu0 0
        %1588 = vmatpush1.bf16.xpose.msra.mxu0 0
        %1589 = vmatprep.subr.bf16.mxu0 0
        %1590 = vmatpush1.bf16.xpose.msra.mxu0 0
        %1591 = vmatprep.subr.bf16.mxu0 0
        %1592 = vmatpush1.bf16.xpose.msra.mxu0 0
        %1593 = vmatprep.subr.bf16.mxu0 0
        %1594 = vmatpush1.bf16.xpose.msra.mxu0 0
        %1595 = vmatprep.subr.bf16.mxu0 0
        %1596 = vmatpush1.bf16.xpose.msra.mxu0 0
        %1597 = vmatprep.subr.bf16.mxu0 0
        %1598 = vmatpush1.bf16.xpose.msra.mxu0 0
        %1599 = vmatprep.subr.bf16.mxu0 0
        %1600 = vmatpush1.bf16.xpose.msra.mxu0 0
        %1601 = vmatprep.subr.bf16.mxu0 0
        %1602 = vmatpush1.bf16.xpose.msra.mxu0 0
        %1603 = vmatprep.subr.bf16.mxu0 0
        %1604 = vmatpush1.bf16.xpose.msra.mxu0 0
        %1605 = vmatprep.subr.bf16.mxu0 0
        %1606 = vmatpush1.bf16.xpose.msra.mxu0 0
        %1607 = vmatprep.mubr.bf16.mxu0 0
        %1608 = vmatmul.mubr.bf16.gmra.mrb[0].mxu0 %v1570
        %v1609 = vpop.f32.mrb[0].mxu0
        %v1610 = vadd.f32 0.0, %v1609
        %v1611 = vpop.f32.mrb[0].mxu0
        %v1612 = vpop.f32.mrb[0].mxu0
        %v1613 = vpop.f32.mrb[0].mxu0
        %1614 = vdwg.mxu0
        %v1616 = vsel %vm1568, %v1557, 0
        %v1619 = vsel %vm1568, %v1561, 0
        %1621 = vmatprep.subr.bf16.mxu0 0
        %1622 = vmatpush1.bf16.xpose.msra.mxu0 %v1619
        %1623 = vmatprep.subr.bf16.mxu0 0
        %1624 = vmatpush1.bf16.xpose.msra.mxu0 0
        %1625 = vmatprep.subr.bf16.mxu0 0
        %1626 = vmatpush1.bf16.xpose.msra.mxu0 0
        %1627 = vmatprep.subr.bf16.mxu0 0
        %1628 = vmatpush1.bf16.xpose.msra.mxu0 0
        %1629 = vmatprep.subr.bf16.mxu0 0
        %1630 = vmatpush1.bf16.xpose.msra.mxu0 0
        %1631 = vmatprep.subr.bf16.mxu0 0
        %1632 = vmatpush1.bf16.xpose.msra.mxu0 0
        %1633 = vmatprep.subr.bf16.mxu0 0
        %1634 = vmatpush1.bf16.xpose.msra.mxu0 0
        %1635 = vmatprep.subr.bf16.mxu0 0
        %1636 = vmatpush1.bf16.xpose.msra.mxu0 0
        %1637 = vmatprep.subr.bf16.mxu0 0
        %1638 = vmatpush1.bf16.xpose.msra.mxu0 0
        %1639 = vmatprep.subr.bf16.mxu0 0
        %1640 = vmatpush1.bf16.xpose.msra.mxu0 0
        %1641 = vmatprep.subr.bf16.mxu0 0
        %1642 = vmatpush1.bf16.xpose.msra.mxu0 0
        %1643 = vmatprep.subr.bf16.mxu0 0
        %1644 = vmatpush1.bf16.xpose.msra.mxu0 0
        %1645 = vmatprep.subr.bf16.mxu0 0
        %1646 = vmatpush1.bf16.xpose.msra.mxu0 0
        %1647 = vmatprep.subr.bf16.mxu0 0
        %1648 = vmatpush1.bf16.xpose.msra.mxu0 0
        %1649 = vmatprep.subr.bf16.mxu0 0
        %1650 = vmatpush1.bf16.xpose.msra.mxu0 0
        %1651 = vmatprep.subr.bf16.mxu0 0
        %1652 = vmatpush1.bf16.xpose.msra.mxu0 0
        %1653 = vmatprep.mubr.bf16.mxu0 0
        %1654 = vmatmul.mubr.bf16.gmra.mrb[0].mxu0 %v1616
        %v1655 = vpop.f32.mrb[0].mxu0
        %v1656 = vadd.f32 0.0, %v1655
        %v1657 = vpop.f32.mrb[0].mxu0
        %v1658 = vpop.f32.mrb[0].mxu0
        %v1659 = vpop.f32.mrb[0].mxu0
        %1660 = vdwg.mxu0
        %v1662 = vsel %vm1568, %v1558, 0
        %v1665 = vsel %vm1568, %v1562, 0
        %1667 = vmatprep.subr.bf16.mxu0 0
        %1668 = vmatpush1.bf16.xpose.msra.mxu0 %v1665
        %1669 = vmatprep.subr.bf16.mxu0 0
        %1670 = vmatpush1.bf16.xpose.msra.mxu0 0
        %1671 = vmatprep.subr.bf16.mxu0 0
        %1672 = vmatpush1.bf16.xpose.msra.mxu0 0
        %1673 = vmatprep.subr.bf16.mxu0 0
        %1674 = vmatpush1.bf16.xpose.msra.mxu0 0
        %1675 = vmatprep.subr.bf16.mxu0 0
        %1676 = vmatpush1.bf16.xpose.msra.mxu0 0
        %1677 = vmatprep.subr.bf16.mxu0 0
        %1678 = vmatpush1.bf16.xpose.msra.mxu0 0
        %1679 = vmatprep.subr.bf16.mxu0 0
        %1680 = vmatpush1.bf16.xpose.msra.mxu0 0
        %1681 = vmatprep.subr.bf16.mxu0 0
        %1682 = vmatpush1.bf16.xpose.msra.mxu0 0
        %1683 = vmatprep.subr.bf16.mxu0 0
        %1684 = vmatpush1.bf16.xpose.msra.mxu0 0
        %1685 = vmatprep.subr.bf16.mxu0 0
        %1686 = vmatpush1.bf16.xpose.msra.mxu0 0
        %1687 = vmatprep.subr.bf16.mxu0 0
        %1688 = vmatpush1.bf16.xpose.msra.mxu0 0
        %1689 = vmatprep.subr.bf16.mxu0 0
        %1690 = vmatpush1.bf16.xpose.msra.mxu0 0
        %1691 = vmatprep.subr.bf16.mxu0 0
        %1692 = vmatpush1.bf16.xpose.msra.mxu0 0
        %1693 = vmatprep.subr.bf16.mxu0 0
        %1694 = vmatpush1.bf16.xpose.msra.mxu0 0
        %1695 = vmatprep.subr.bf16.mxu0 0
        %1696 = vmatpush1.bf16.xpose.msra.mxu0 0
        %1697 = vmatprep.subr.bf16.mxu0 0
        %1698 = vmatpush1.bf16.xpose.msra.mxu0 0
        %1699 = vmatprep.mubr.bf16.mxu0 0
        %1700 = vmatmul.mubr.bf16.gmra.mrb[0].mxu0 %v1662
        %v1701 = vpop.f32.mrb[0].mxu0
        %v1702 = vadd.f32 0.0, %v1701
        %v1703 = vpop.f32.mrb[0].mxu0
        %v1704 = vpop.f32.mrb[0].mxu0
        %v1705 = vpop.f32.mrb[0].mxu0
        %1706 = vdwg.mxu0
        %v1708 = vsel %vm1568, %v1559, 0
        %v1711 = vsel %vm1568, %v1563, 0
        %1713 = vmatprep.subr.bf16.mxu0 0
        %1714 = vmatpush1.bf16.xpose.msra.mxu0 %v1711
        %1715 = vmatprep.subr.bf16.mxu0 0
        %1716 = vmatpush1.bf16.xpose.msra.mxu0 0
        %1717 = vmatprep.subr.bf16.mxu0 0
        %1718 = vmatpush1.bf16.xpose.msra.mxu0 0
        %1719 = vmatprep.subr.bf16.mxu0 0
        %1720 = vmatpush1.bf16.xpose.msra.mxu0 0
        %1721 = vmatprep.subr.bf16.mxu0 0
        %1722 = vmatpush1.bf16.xpose.msra.mxu0 0
        %1723 = vmatprep.subr.bf16.mxu0 0
        %1724 = vmatpush1.bf16.xpose.msra.mxu0 0
        %1725 = vmatprep.subr.bf16.mxu0 0
        %1726 = vmatpush1.bf16.xpose.msra.mxu0 0
        %1727 = vmatprep.subr.bf16.mxu0 0
        %1728 = vmatpush1.bf16.xpose.msra.mxu0 0
        %1729 = vmatprep.subr.bf16.mxu0 0
        %1730 = vmatpush1.bf16.xpose.msra.mxu0 0
        %1731 = vmatprep.subr.bf16.mxu0 0
        %1732 = vmatpush1.bf16.xpose.msra.mxu0 0
        %1733 = vmatprep.subr.bf16.mxu0 0
        %1734 = vmatpush1.bf16.xpose.msra.mxu0 0
        %1735 = vmatprep.subr.bf16.mxu0 0
        %1736 = vmatpush1.bf16.xpose.msra.mxu0 0
        %1737 = vmatprep.subr.bf16.mxu0 0
        %1738 = vmatpush1.bf16.xpose.msra.mxu0 0
        %1739 = vmatprep.subr.bf16.mxu0 0
        %1740 = vmatpush1.bf16.xpose.msra.mxu0 0
        %1741 = vmatprep.subr.bf16.mxu0 0
        %1742 = vmatpush1.bf16.xpose.msra.mxu0 0
        %1743 = vmatprep.subr.bf16.mxu0 0
        %1744 = vmatpush1.bf16.xpose.msra.mxu0 0
        %1745 = vmatprep.mubr.bf16.mxu0 0
        %1746 = vmatmul.mubr.bf16.gmra.mrb[0].mxu0 %v1708
        %v1747 = vpop.f32.mrb[0].mxu0
        %v1748 = vadd.f32 0.0, %v1747
        %v1749 = vpop.f32.mrb[0].mxu0
        %v1750 = vpop.f32.mrb[0].mxu0
        %v1751 = vpop.f32.mrb[0].mxu0
        %1752 = vdwg.mxu0
        %vm1753 = vcmask 64512
        %v1754 = vsel %vm1753, %v1610, -inf
        %1755 = vmax.xlane.f32.xlu0 %v1754
        %v1756 = vpop.xlane.xlu0 %1755
        %v1757 = vsel %vm1753, %v1656, -inf
        %1758 = vmax.xlane.f32.xlu0 %v1757
        %v1759 = vpop.xlane.xlu0 %1758
        %v1760 = vsel %vm1753, %v1702, -inf
        %1761 = vmax.xlane.f32.xlu0 %v1760
        %v1762 = vpop.xlane.xlu0 %1761
        %v1763 = vsel %vm1753, %v1748, -inf
        %1764 = vmax.xlane.f32.xlu0 %v1763
        %v1765 = vpop.xlane.xlu0 %1764
        %v1766 = vsub.f32 %v1610, %v1756
        %v1767 = vsub.f32 %v1656, %v1759
        %v1768 = vsub.f32 %v1702, %v1762
        %v1769 = vsub.f32 %v1748, %v1765
        %v1770 = vmul.f32 %v1766, 1.442695
        %v1771 = vpow.pop %v1770
        %v1772 = vmul.f32 %v1767, 1.442695
        %v1773 = vpow.pop %v1772
        %v1774 = vmul.f32 %v1768, 1.442695
        %v1775 = vpow.pop %v1774
        %v1776 = vmul.f32 %v1769, 1.442695
        %v1777 = vpow.pop %v1776
        %v1778 = vsel %vm1753, %v1771, 0.0
        %1779 = vadd.xlane.f32.xlu0 %v1778
        %v1780 = vpop.xlane.xlu0 %1779
        %v1781 = vsel %vm1753, %v1773, 0.0
        %1782 = vadd.xlane.f32.xlu0 %v1781
        %v1783 = vpop.xlane.xlu0 %1782
        %v1784 = vsel %vm1753, %v1775, 0.0
        %1785 = vadd.xlane.f32.xlu0 %v1784
        %v1786 = vpop.xlane.xlu0 %1785
        %v1787 = vsel %vm1753, %v1777, 0.0
        %1788 = vadd.xlane.f32.xlu0 %v1787
        %v1789 = vpop.xlane.xlu0 %1788
        %v1790 = vrcp.pop %v1780
        %v1791 = vrcp.pop %v1783
        %v1792 = vrcp.pop %v1786
        %v1793 = vrcp.pop %v1789
        %v1794 = vmul.f32 %v1771, %v1790
        %v1795 = vmul.f32 %v1773, %v1791
        %v1796 = vmul.f32 %v1775, %v1792
        %v1797 = vmul.f32 %v1777, %v1793
        %v1798 = vpack.c.bf16 %v1794, %v1794
        %v1799 = vpack.c.bf16 %v1795, %v1795
        %v1800 = vpack.c.bf16 %v1796, %v1796
        %v1801 = vpack.c.bf16 %v1797, %v1797
        %v1803 = vsel %vm1753, %v1798, 0
        %vm1805 = vcmask 1043456
        %v1807 = vsel %vm1805, %v1564, 0
        %1809 = vmatprep.subr.bf16.mxu0 0
        %1810 = vmatpush1.bf16.msra.mxu0 %v1807
        %1811 = vmatprep.subr.bf16.mxu0 0
        %1812 = vmatpush1.bf16.msra.mxu0 0
        %1813 = vmatprep.subr.bf16.mxu0 0
        %1814 = vmatpush1.bf16.msra.mxu0 0
        %1815 = vmatprep.subr.bf16.mxu0 0
        %1816 = vmatpush1.bf16.msra.mxu0 0
        %1817 = vmatprep.subr.bf16.mxu0 0
        %1818 = vmatpush1.bf16.msra.mxu0 0
        %1819 = vmatprep.subr.bf16.mxu0 0
        %1820 = vmatpush1.bf16.msra.mxu0 0
        %1821 = vmatprep.subr.bf16.mxu0 0
        %1822 = vmatpush1.bf16.msra.mxu0 0
        %1823 = vmatprep.subr.bf16.mxu0 0
        %1824 = vmatpush1.bf16.msra.mxu0 0
        %1825 = vmatprep.subr.bf16.mxu0 0
        %1826 = vmatpush1.bf16.msra.mxu0 0
        %1827 = vmatprep.subr.bf16.mxu0 0
        %1828 = vmatpush1.bf16.msra.mxu0 0
        %1829 = vmatprep.subr.bf16.mxu0 0
        %1830 = vmatpush1.bf16.msra.mxu0 0
        %1831 = vmatprep.subr.bf16.mxu0 0
        %1832 = vmatpush1.bf16.msra.mxu0 0
        %1833 = vmatprep.subr.bf16.mxu0 0
        %1834 = vmatpush1.bf16.msra.mxu0 0
        %1835 = vmatprep.subr.bf16.mxu0 0
        %1836 = vmatpush1.bf16.msra.mxu0 0
        %1837 = vmatprep.subr.bf16.mxu0 0
        %1838 = vmatpush1.bf16.msra.mxu0 0
        %1839 = vmatprep.subr.bf16.mxu0 0
        %1840 = vmatpush1.bf16.msra.mxu0 0
        %1841 = vmatprep.mubr.bf16.mxu0 0
        %1842 = vmatmul.mubr.bf16.gmra.mrb[0].mxu0 %v1803
        %v1843 = vpop.f32.mrb[0].mxu0
        %v1844 = vadd.f32 0.0, %v1843
        %v1845 = vpop.f32.mrb[0].mxu0
        %v1846 = vpop.f32.mrb[0].mxu0
        %v1847 = vpop.f32.mrb[0].mxu0
        %1848 = vdwg.mxu0
        %v1850 = vsel %vm1753, %v1799, 0
        %v1853 = vsel %vm1805, %v1565, 0
        %1855 = vmatprep.subr.bf16.mxu0 0
        %1856 = vmatpush1.bf16.msra.mxu0 %v1853
        %1857 = vmatprep.subr.bf16.mxu0 0
        %1858 = vmatpush1.bf16.msra.mxu0 0
        %1859 = vmatprep.subr.bf16.mxu0 0
        %1860 = vmatpush1.bf16.msra.mxu0 0
        %1861 = vmatprep.subr.bf16.mxu0 0
        %1862 = vmatpush1.bf16.msra.mxu0 0
        %1863 = vmatprep.subr.bf16.mxu0 0
        %1864 = vmatpush1.bf16.msra.mxu0 0
        %1865 = vmatprep.subr.bf16.mxu0 0
        %1866 = vmatpush1.bf16.msra.mxu0 0
        %1867 = vmatprep.subr.bf16.mxu0 0
        %1868 = vmatpush1.bf16.msra.mxu0 0
        %1869 = vmatprep.subr.bf16.mxu0 0
        %1870 = vmatpush1.bf16.msra.mxu0 0
        %1871 = vmatprep.subr.bf16.mxu0 0
        %1872 = vmatpush1.bf16.msra.mxu0 0
        %1873 = vmatprep.subr.bf16.mxu0 0
        %1874 = vmatpush1.bf16.msra.mxu0 0
        %1875 = vmatprep.subr.bf16.mxu0 0
        %1876 = vmatpush1.bf16.msra.mxu0 0
        %1877 = vmatprep.subr.bf16.mxu0 0
        %1878 = vmatpush1.bf16.msra.mxu0 0
        %1879 = vmatprep.subr.bf16.mxu0 0
        %1880 = vmatpush1.bf16.msra.mxu0 0
        %1881 = vmatprep.subr.bf16.mxu0 0
        %1882 = vmatpush1.bf16.msra.mxu0 0
        %1883 = vmatprep.subr.bf16.mxu0 0
        %1884 = vmatpush1.bf16.msra.mxu0 0
        %1885 = vmatprep.subr.bf16.mxu0 0
        %1886 = vmatpush1.bf16.msra.mxu0 0
        %1887 = vmatprep.mubr.bf16.mxu0 0
        %1888 = vmatmul.mubr.bf16.gmra.mrb[0].mxu0 %v1850
        %v1889 = vpop.f32.mrb[0].mxu0
        %v1890 = vadd.f32 0.0, %v1889
        %v1891 = vpop.f32.mrb[0].mxu0
        %v1892 = vpop.f32.mrb[0].mxu0
        %v1893 = vpop.f32.mrb[0].mxu0
        %1894 = vdwg.mxu0
        %v1896 = vsel %vm1753, %v1800, 0
        %v1899 = vsel %vm1805, %v1566, 0
        %1901 = vmatprep.subr.bf16.mxu0 0
        %1902 = vmatpush1.bf16.msra.mxu0 %v1899
        %1903 = vmatprep.subr.bf16.mxu0 0
        %1904 = vmatpush1.bf16.msra.mxu0 0
        %1905 = vmatprep.subr.bf16.mxu0 0
        %1906 = vmatpush1.bf16.msra.mxu0 0
        %1907 = vmatprep.subr.bf16.mxu0 0
        %1908 = vmatpush1.bf16.msra.mxu0 0
        %1909 = vmatprep.subr.bf16.mxu0 0
        %1910 = vmatpush1.bf16.msra.mxu0 0
        %1911 = vmatprep.subr.bf16.mxu0 0
        %1912 = vmatpush1.bf16.msra.mxu0 0
        %1913 = vmatprep.subr.bf16.mxu0 0
        %1914 = vmatpush1.bf16.msra.mxu0 0
        %1915 = vmatprep.subr.bf16.mxu0 0
        %1916 = vmatpush1.bf16.msra.mxu0 0
        %1917 = vmatprep.subr.bf16.mxu0 0
        %1918 = vmatpush1.bf16.msra.mxu0 0
        %1919 = vmatprep.subr.bf16.mxu0 0
        %1920 = vmatpush1.bf16.msra.mxu0 0
        %1921 = vmatprep.subr.bf16.mxu0 0
        %1922 = vmatpush1.bf16.msra.mxu0 0
        %1923 = vmatprep.subr.bf16.mxu0 0
        %1924 = vmatpush1.bf16.msra.mxu0 0
        %1925 = vmatprep.subr.bf16.mxu0 0
        %1926 = vmatpush1.bf16.msra.mxu0 0
        %1927 = vmatprep.subr.bf16.mxu0 0
        %1928 = vmatpush1.bf16.msra.mxu0 0
        %1929 = vmatprep.subr.bf16.mxu0 0
        %1930 = vmatpush1.bf16.msra.mxu0 0
        %1931 = vmatprep.subr.bf16.mxu0 0
        %1932 = vmatpush1.bf16.msra.mxu0 0
        %1933 = vmatprep.mubr.bf16.mxu0 0
        %1934 = vmatmul.mubr.bf16.gmra.mrb[0].mxu0 %v1896
        %v1935 = vpop.f32.mrb[0].mxu0
        %v1936 = vadd.f32 0.0, %v1935
        %v1937 = vpop.f32.mrb[0].mxu0
        %v1938 = vpop.f32.mrb[0].mxu0
        %v1939 = vpop.f32.mrb[0].mxu0
        %1940 = vdwg.mxu0
        %v1942 = vsel %vm1753, %v1801, 0
        %v1945 = vsel %vm1805, %v1567, 0
        %1947 = vmatprep.subr.bf16.mxu0 0
        %1948 = vmatpush1.bf16.msra.mxu0 %v1945
        %1949 = vmatprep.subr.bf16.mxu0 0
        %1950 = vmatpush1.bf16.msra.mxu0 0
        %1951 = vmatprep.subr.bf16.mxu0 0
        %1952 = vmatpush1.bf16.msra.mxu0 0
        %1953 = vmatprep.subr.bf16.mxu0 0
        %1954 = vmatpush1.bf16.msra.mxu0 0
        %1955 = vmatprep.subr.bf16.mxu0 0
        %1956 = vmatpush1.bf16.msra.mxu0 0
        %1957 = vmatprep.subr.bf16.mxu0 0
        %1958 = vmatpush1.bf16.msra.mxu0 0
        %1959 = vmatprep.subr.bf16.mxu0 0
        %1960 = vmatpush1.bf16.msra.mxu0 0
        %1961 = vmatprep.subr.bf16.mxu0 0
        %1962 = vmatpush1.bf16.msra.mxu0 0
        %1963 = vmatprep.subr.bf16.mxu0 0
        %1964 = vmatpush1.bf16.msra.mxu0 0
        %1965 = vmatprep.subr.bf16.mxu0 0
        %1966 = vmatpush1.bf16.msra.mxu0 0
        %1967 = vmatprep.subr.bf16.mxu0 0
        %1968 = vmatpush1.bf16.msra.mxu0 0
        %1969 = vmatprep.subr.bf16.mxu0 0
        %1970 = vmatpush1.bf16.msra.mxu0 0
        %1971 = vmatprep.subr.bf16.mxu0 0
        %1972 = vmatpush1.bf16.msra.mxu0 0
        %1973 = vmatprep.subr.bf16.mxu0 0
        %1974 = vmatpush1.bf16.msra.mxu0 0
        %1975 = vmatprep.subr.bf16.mxu0 0
        %1976 = vmatpush1.bf16.msra.mxu0 0
        %1977 = vmatprep.subr.bf16.mxu0 0
        %1978 = vmatpush1.bf16.msra.mxu0 0
        %1979 = vmatprep.mubr.bf16.mxu0 0
        %1980 = vmatmul.mubr.bf16.gmra.mrb[0].mxu0 %v1942
        %v1981 = vpop.f32.mrb[0].mxu0
        %v1982 = vadd.f32 0.0, %v1981
        %v1983 = vpop.f32.mrb[0].mxu0
        %v1984 = vpop.f32.mrb[0].mxu0
        %v1985 = vpop.f32.mrb[0].mxu0
        %1986 = vdwg.mxu0
        %v1987 = vpack.c.bf16 %v1890, %v1844
        %v1988 = vpack.c.bf16 %v1982, %v1936
        %1990 = vrot.lane.b32.xlu0 %v1556, 112
        %v1991 = vpop.permute.xlu0 %1990
        %1993 = vrot.lane.b32.xlu0 %v1560, 112
        %v1994 = vpop.permute.xlu0 %1993
        %v1996 = vsel %vm1568, %v1991, 0
        %v1999 = vsel %vm1568, %v1994, 0
        %2001 = vmatprep.subr.bf16.mxu0 0
        %2002 = vmatpush1.bf16.xpose.msra.mxu0 %v1999
        %2003 = vmatprep.subr.bf16.mxu0 0
        %2004 = vmatpush1.bf16.xpose.msra.mxu0 0
        %2005 = vmatprep.subr.bf16.mxu0 0
        %2006 = vmatpush1.bf16.xpose.msra.mxu0 0
        %2007 = vmatprep.subr.bf16.mxu0 0
        %2008 = vmatpush1.bf16.xpose.msra.mxu0 0
        %2009 = vmatprep.subr.bf16.mxu0 0
        %2010 = vmatpush1.bf16.xpose.msra.mxu0 0
        %2011 = vmatprep.subr.bf16.mxu0 0
        %2012 = vmatpush1.bf16.xpose.msra.mxu0 0
        %2013 = vmatprep.subr.bf16.mxu0 0
        %2014 = vmatpush1.bf16.xpose.msra.mxu0 0
        %2015 = vmatprep.subr.bf16.mxu0 0
        %2016 = vmatpush1.bf16.xpose.msra.mxu0 0
        %2017 = vmatprep.subr.bf16.mxu0 0
        %2018 = vmatpush1.bf16.xpose.msra.mxu0 0
        %2019 = vmatprep.subr.bf16.mxu0 0
        %2020 = vmatpush1.bf16.xpose.msra.mxu0 0
        %2021 = vmatprep.subr.bf16.mxu0 0
        %2022 = vmatpush1.bf16.xpose.msra.mxu0 0
        %2023 = vmatprep.subr.bf16.mxu0 0
        %2024 = vmatpush1.bf16.xpose.msra.mxu0 0
        %2025 = vmatprep.subr.bf16.mxu0 0
        %2026 = vmatpush1.bf16.xpose.msra.mxu0 0
        %2027 = vmatprep.subr.bf16.mxu0 0
        %2028 = vmatpush1.bf16.xpose.msra.mxu0 0
        %2029 = vmatprep.subr.bf16.mxu0 0
        %2030 = vmatpush1.bf16.xpose.msra.mxu0 0
        %2031 = vmatprep.subr.bf16.mxu0 0
        %2032 = vmatpush1.bf16.xpose.msra.mxu0 0
        %2033 = vmatprep.mubr.bf16.mxu0 0
        %2034 = vmatmul.mubr.bf16.gmra.mrb[0].mxu0 %v1996
        %v2035 = vpop.f32.mrb[0].mxu0
        %v2036 = vadd.f32 0.0, %v2035
        %v2037 = vpop.f32.mrb[0].mxu0
        %v2038 = vpop.f32.mrb[0].mxu0
        %v2039 = vpop.f32.mrb[0].mxu0
        %2040 = vdwg.mxu0
        %2042 = vrot.lane.b32.xlu0 %v1557, 112
        %v2043 = vpop.permute.xlu0 %2042
        %2045 = vrot.lane.b32.xlu0 %v1561, 112
        %v2046 = vpop.permute.xlu0 %2045
        %v2048 = vsel %vm1568, %v2043, 0
        %v2051 = vsel %vm1568, %v2046, 0
        %2053 = vmatprep.subr.bf16.mxu0 0
        %2054 = vmatpush1.bf16.xpose.msra.mxu0 %v2051
        %2055 = vmatprep.subr.bf16.mxu0 0
        %2056 = vmatpush1.bf16.xpose.msra.mxu0 0
        %2057 = vmatprep.subr.bf16.mxu0 0
        %2058 = vmatpush1.bf16.xpose.msra.mxu0 0
        %2059 = vmatprep.subr.bf16.mxu0 0
        %2060 = vmatpush1.bf16.xpose.msra.mxu0 0
        %2061 = vmatprep.subr.bf16.mxu0 0
        %2062 = vmatpush1.bf16.xpose.msra.mxu0 0
        %2063 = vmatprep.subr.bf16.mxu0 0
        %2064 = vmatpush1.bf16.xpose.msra.mxu0 0
        %2065 = vmatprep.subr.bf16.mxu0 0
        %2066 = vmatpush1.bf16.xpose.msra.mxu0 0
        %2067 = vmatprep.subr.bf16.mxu0 0
        %2068 = vmatpush1.bf16.xpose.msra.mxu0 0
        %2069 = vmatprep.subr.bf16.mxu0 0
        %2070 = vmatpush1.bf16.xpose.msra.mxu0 0
        %2071 = vmatprep.subr.bf16.mxu0 0
        %2072 = vmatpush1.bf16.xpose.msra.mxu0 0
        %2073 = vmatprep.subr.bf16.mxu0 0
        %2074 = vmatpush1.bf16.xpose.msra.mxu0 0
        %2075 = vmatprep.subr.bf16.mxu0 0
        %2076 = vmatpush1.bf16.xpose.msra.mxu0 0
        %2077 = vmatprep.subr.bf16.mxu0 0
        %2078 = vmatpush1.bf16.xpose.msra.mxu0 0
        %2079 = vmatprep.subr.bf16.mxu0 0
        %2080 = vmatpush1.bf16.xpose.msra.mxu0 0
        %2081 = vmatprep.subr.bf16.mxu0 0
        %2082 = vmatpush1.bf16.xpose.msra.mxu0 0
        %2083 = vmatprep.subr.bf16.mxu0 0
        %2084 = vmatpush1.bf16.xpose.msra.mxu0 0
        %2085 = vmatprep.mubr.bf16.mxu0 0
        %2086 = vmatmul.mubr.bf16.gmra.mrb[0].mxu0 %v2048
        %v2087 = vpop.f32.mrb[0].mxu0
        %v2088 = vadd.f32 0.0, %v2087
        %v2089 = vpop.f32.mrb[0].mxu0
        %v2090 = vpop.f32.mrb[0].mxu0
        %v2091 = vpop.f32.mrb[0].mxu0
        %2092 = vdwg.mxu0
        %2094 = vrot.lane.b32.xlu0 %v1558, 112
        %v2095 = vpop.permute.xlu0 %2094
        %2097 = vrot.lane.b32.xlu0 %v1562, 112
        %v2098 = vpop.permute.xlu0 %2097
        %v2100 = vsel %vm1568, %v2095, 0
        %v2103 = vsel %vm1568, %v2098, 0
        %2105 = vmatprep.subr.bf16.mxu0 0
        %2106 = vmatpush1.bf16.xpose.msra.mxu0 %v2103
        %2107 = vmatprep.subr.bf16.mxu0 0
        %2108 = vmatpush1.bf16.xpose.msra.mxu0 0
        %2109 = vmatprep.subr.bf16.mxu0 0
        %2110 = vmatpush1.bf16.xpose.msra.mxu0 0
        %2111 = vmatprep.subr.bf16.mxu0 0
        %2112 = vmatpush1.bf16.xpose.msra.mxu0 0
        %2113 = vmatprep.subr.bf16.mxu0 0
        %2114 = vmatpush1.bf16.xpose.msra.mxu0 0
        %2115 = vmatprep.subr.bf16.mxu0 0
        %2116 = vmatpush1.bf16.xpose.msra.mxu0 0
        %2117 = vmatprep.subr.bf16.mxu0 0
        %2118 = vmatpush1.bf16.xpose.msra.mxu0 0
        %2119 = vmatprep.subr.bf16.mxu0 0
        %2120 = vmatpush1.bf16.xpose.msra.mxu0 0
        %2121 = vmatprep.subr.bf16.mxu0 0
        %2122 = vmatpush1.bf16.xpose.msra.mxu0 0
        %2123 = vmatprep.subr.bf16.mxu0 0
        %2124 = vmatpush1.bf16.xpose.msra.mxu0 0
        %2125 = vmatprep.subr.bf16.mxu0 0
        %2126 = vmatpush1.bf16.xpose.msra.mxu0 0
        %2127 = vmatprep.subr.bf16.mxu0 0
        %2128 = vmatpush1.bf16.xpose.msra.mxu0 0
        %2129 = vmatprep.subr.bf16.mxu0 0
        %2130 = vmatpush1.bf16.xpose.msra.mxu0 0
        %2131 = vmatprep.subr.bf16.mxu0 0
        %2132 = vmatpush1.bf16.xpose.msra.mxu0 0
        %2133 = vmatprep.subr.bf16.mxu0 0
        %2134 = vmatpush1.bf16.xpose.msra.mxu0 0
        %2135 = vmatprep.subr.bf16.mxu0 0
        %2136 = vmatpush1.bf16.xpose.msra.mxu0 0
        %2137 = vmatprep.mubr.bf16.mxu0 0
        %2138 = vmatmul.mubr.bf16.gmra.mrb[0].mxu0 %v2100
        %v2139 = vpop.f32.mrb[0].mxu0
        %v2140 = vadd.f32 0.0, %v2139
        %v2141 = vpop.f32.mrb[0].mxu0
        %v2142 = vpop.f32.mrb[0].mxu0
        %v2143 = vpop.f32.mrb[0].mxu0
        %2144 = vdwg.mxu0
        %2146 = vrot.lane.b32.xlu0 %v1559, 112
        %v2147 = vpop.permute.xlu0 %2146
        %2149 = vrot.lane.b32.xlu0 %v1563, 112
        %v2150 = vpop.permute.xlu0 %2149
        %v2152 = vsel %vm1568, %v2147, 0
        %v2155 = vsel %vm1568, %v2150, 0
        %2157 = vmatprep.subr.bf16.mxu0 0
        %2158 = vmatpush1.bf16.xpose.msra.mxu0 %v2155
        %2159 = vmatprep.subr.bf16.mxu0 0
        %2160 = vmatpush1.bf16.xpose.msra.mxu0 0
        %2161 = vmatprep.subr.bf16.mxu0 0
        %2162 = vmatpush1.bf16.xpose.msra.mxu0 0
        %2163 = vmatprep.subr.bf16.mxu0 0
        %2164 = vmatpush1.bf16.xpose.msra.mxu0 0
        %2165 = vmatprep.subr.bf16.mxu0 0
        %2166 = vmatpush1.bf16.xpose.msra.mxu0 0
        %2167 = vmatprep.subr.bf16.mxu0 0
        %2168 = vmatpush1.bf16.xpose.msra.mxu0 0
        %2169 = vmatprep.subr.bf16.mxu0 0
        %2170 = vmatpush1.bf16.xpose.msra.mxu0 0
        %2171 = vmatprep.subr.bf16.mxu0 0
        %2172 = vmatpush1.bf16.xpose.msra.mxu0 0
        %2173 = vmatprep.subr.bf16.mxu0 0
        %2174 = vmatpush1.bf16.xpose.msra.mxu0 0
        %2175 = vmatprep.subr.bf16.mxu0 0
        %2176 = vmatpush1.bf16.xpose.msra.mxu0 0
        %2177 = vmatprep.subr.bf16.mxu0 0
        %2178 = vmatpush1.bf16.xpose.msra.mxu0 0
        %2179 = vmatprep.subr.bf16.mxu0 0
        %2180 = vmatpush1.bf16.xpose.msra.mxu0 0
        %2181 = vmatprep.subr.bf16.mxu0 0
        %2182 = vmatpush1.bf16.xpose.msra.mxu0 0
        %2183 = vmatprep.subr.bf16.mxu0 0
        %2184 = vmatpush1.bf16.xpose.msra.mxu0 0
        %2185 = vmatprep.subr.bf16.mxu0 0
        %2186 = vmatpush1.bf16.xpose.msra.mxu0 0
        %2187 = vmatprep.subr.bf16.mxu0 0
        %2188 = vmatpush1.bf16.xpose.msra.mxu0 0
        %2189 = vmatprep.mubr.bf16.mxu0 0
        %2190 = vmatmul.mubr.bf16.gmra.mrb[0].mxu0 %v2152
        %v2191 = vpop.f32.mrb[0].mxu0
        %v2192 = vadd.f32 0.0, %v2191
        %v2193 = vpop.f32.mrb[0].mxu0
        %v2194 = vpop.f32.mrb[0].mxu0
        %v2195 = vpop.f32.mrb[0].mxu0
        %2196 = vdwg.mxu0
        %v2197 = vsel %vm1753, %v2036, -inf
        %2198 = vmax.xlane.f32.xlu0 %v2197
        %v2199 = vpop.xlane.xlu0 %2198
        %v2200 = vsel %vm1753, %v2088, -inf
        %2201 = vmax.xlane.f32.xlu0 %v2200
        %v2202 = vpop.xlane.xlu0 %2201
        %v2203 = vsel %vm1753, %v2140, -inf
        %2204 = vmax.xlane.f32.xlu0 %v2203
        %v2205 = vpop.xlane.xlu0 %2204
        %v2206 = vsel %vm1753, %v2192, -inf
        %2207 = vmax.xlane.f32.xlu0 %v2206
        %v2208 = vpop.xlane.xlu0 %2207
        %v2209 = vsub.f32 %v2036, %v2199
        %v2210 = vsub.f32 %v2088, %v2202
        %v2211 = vsub.f32 %v2140, %v2205
        %v2212 = vsub.f32 %v2192, %v2208
        %v2213 = vmul.f32 %v2209, 1.442695
        %v2214 = vpow.pop %v2213
        %v2215 = vmul.f32 %v2210, 1.442695
        %v2216 = vpow.pop %v2215
        %v2217 = vmul.f32 %v2211, 1.442695
        %v2218 = vpow.pop %v2217
        %v2219 = vmul.f32 %v2212, 1.442695
        %v2220 = vpow.pop %v2219
        %v2221 = vsel %vm1753, %v2214, 0.0
        %2222 = vadd.xlane.f32.xlu0 %v2221
        %v2223 = vpop.xlane.xlu0 %2222
        %v2224 = vsel %vm1753, %v2216, 0.0
        %2225 = vadd.xlane.f32.xlu0 %v2224
        %v2226 = vpop.xlane.xlu0 %2225
        %v2227 = vsel %vm1753, %v2218, 0.0
        %2228 = vadd.xlane.f32.xlu0 %v2227
        %v2229 = vpop.xlane.xlu0 %2228
        %v2230 = vsel %vm1753, %v2220, 0.0
        %2231 = vadd.xlane.f32.xlu0 %v2230
        %v2232 = vpop.xlane.xlu0 %2231
        %v2233 = vrcp.pop %v2223
        %v2234 = vrcp.pop %v2226
        %v2235 = vrcp.pop %v2229
        %v2236 = vrcp.pop %v2232
        %v2237 = vmul.f32 %v2214, %v2233
        %v2238 = vmul.f32 %v2216, %v2234
        %v2239 = vmul.f32 %v2218, %v2235
        %v2240 = vmul.f32 %v2220, %v2236
        %v2241 = vpack.c.bf16 %v2237, %v2237
        %v2242 = vpack.c.bf16 %v2238, %v2238
        %v2243 = vpack.c.bf16 %v2239, %v2239
        %v2244 = vpack.c.bf16 %v2240, %v2240
        %2246 = vrot.lane.b32.xlu0 %v1564, 112
        %v2247 = vpop.permute.xlu0 %2246
        %v2249 = vsel %vm1753, %v2241, 0
        %v2252 = vsel %vm1805, %v2247, 0
        %2254 = vmatprep.subr.bf16.mxu0 0
        %2255 = vmatpush1.bf16.msra.mxu0 %v2252
        %2256 = vmatprep.subr.bf16.mxu0 0
        %2257 = vmatpush1.bf16.msra.mxu0 0
        %2258 = vmatprep.subr.bf16.mxu0 0
        %2259 = vmatpush1.bf16.msra.mxu0 0
        %2260 = vmatprep.subr.bf16.mxu0 0
        %2261 = vmatpush1.bf16.msra.mxu0 0
        %2262 = vmatprep.subr.bf16.mxu0 0
        %2263 = vmatpush1.bf16.msra.mxu0 0
        %2264 = vmatprep.subr.bf16.mxu0 0
        %2265 = vmatpush1.bf16.msra.mxu0 0
        %2266 = vmatprep.subr.bf16.mxu0 0
        %2267 = vmatpush1.bf16.msra.mxu0 0
        %2268 = vmatprep.subr.bf16.mxu0 0
        %2269 = vmatpush1.bf16.msra.mxu0 0
        %2270 = vmatprep.subr.bf16.mxu0 0
        %2271 = vmatpush1.bf16.msra.mxu0 0
        %2272 = vmatprep.subr.bf16.mxu0 0
        %2273 = vmatpush1.bf16.msra.mxu0 0
        %2274 = vmatprep.subr.bf16.mxu0 0
        %2275 = vmatpush1.bf16.msra.mxu0 0
        %2276 = vmatprep.subr.bf16.mxu0 0
        %2277 = vmatpush1.bf16.msra.mxu0 0
        %2278 = vmatprep.subr.bf16.mxu0 0
        %2279 = vmatpush1.bf16.msra.mxu0 0
        %2280 = vmatprep.subr.bf16.mxu0 0
        %2281 = vmatpush1.bf16.msra.mxu0 0
        %2282 = vmatprep.subr.bf16.mxu0 0
        %2283 = vmatpush1.bf16.msra.mxu0 0
        %2284 = vmatprep.subr.bf16.mxu0 0
        %2285 = vmatpush1.bf16.msra.mxu0 0
        %2286 = vmatprep.mubr.bf16.mxu0 0
        %2287 = vmatmul.mubr.bf16.gmra.mrb[0].mxu0 %v2249
        %v2288 = vpop.f32.mrb[0].mxu0
        %v2289 = vadd.f32 0.0, %v2288
        %v2290 = vpop.f32.mrb[0].mxu0
        %v2291 = vpop.f32.mrb[0].mxu0
        %v2292 = vpop.f32.mrb[0].mxu0
        %2293 = vdwg.mxu0
        %2295 = vrot.lane.b32.xlu0 %v1565, 112
        %v2296 = vpop.permute.xlu0 %2295
        %v2298 = vsel %vm1753, %v2242, 0
        %v2301 = vsel %vm1805, %v2296, 0
        %2303 = vmatprep.subr.bf16.mxu0 0
        %2304 = vmatpush1.bf16.msra.mxu0 %v2301
        %2305 = vmatprep.subr.bf16.mxu0 0
        %2306 = vmatpush1.bf16.msra.mxu0 0
        %2307 = vmatprep.subr.bf16.mxu0 0
        %2308 = vmatpush1.bf16.msra.mxu0 0
        %2309 = vmatprep.subr.bf16.mxu0 0
        %2310 = vmatpush1.bf16.msra.mxu0 0
        %2311 = vmatprep.subr.bf16.mxu0 0
        %2312 = vmatpush1.bf16.msra.mxu0 0
        %2313 = vmatprep.subr.bf16.mxu0 0
        %2314 = vmatpush1.bf16.msra.mxu0 0
        %2315 = vmatprep.subr.bf16.mxu0 0
        %2316 = vmatpush1.bf16.msra.mxu0 0
        %2317 = vmatprep.subr.bf16.mxu0 0
        %2318 = vmatpush1.bf16.msra.mxu0 0
        %2319 = vmatprep.subr.bf16.mxu0 0
        %2320 = vmatpush1.bf16.msra.mxu0 0
        %2321 = vmatprep.subr.bf16.mxu0 0
        %2322 = vmatpush1.bf16.msra.mxu0 0
        %2323 = vmatprep.subr.bf16.mxu0 0
        %2324 = vmatpush1.bf16.msra.mxu0 0
        %2325 = vmatprep.subr.bf16.mxu0 0
        %2326 = vmatpush1.bf16.msra.mxu0 0
        %2327 = vmatprep.subr.bf16.mxu0 0
        %2328 = vmatpush1.bf16.msra.mxu0 0
        %2329 = vmatprep.subr.bf16.mxu0 0
        %2330 = vmatpush1.bf16.msra.mxu0 0
        %2331 = vmatprep.subr.bf16.mxu0 0
        %2332 = vmatpush1.bf16.msra.mxu0 0
        %2333 = vmatprep.subr.bf16.mxu0 0
        %2334 = vmatpush1.bf16.msra.mxu0 0
        %2335 = vmatprep.mubr.bf16.mxu0 0
        %2336 = vmatmul.mubr.bf16.gmra.mrb[0].mxu0 %v2298
        %v2337 = vpop.f32.mrb[0].mxu0
        %v2338 = vadd.f32 0.0, %v2337
        %v2339 = vpop.f32.mrb[0].mxu0
        %v2340 = vpop.f32.mrb[0].mxu0
        %v2341 = vpop.f32.mrb[0].mxu0
        %2342 = vdwg.mxu0
        %2344 = vrot.lane.b32.xlu0 %v1566, 112
        %v2345 = vpop.permute.xlu0 %2344
        %v2347 = vsel %vm1753, %v2243, 0
        %v2350 = vsel %vm1805, %v2345, 0
        %2352 = vmatprep.subr.bf16.mxu0 0
        %2353 = vmatpush1.bf16.msra.mxu0 %v2350
        %2354 = vmatprep.subr.bf16.mxu0 0
        %2355 = vmatpush1.bf16.msra.mxu0 0
        %2356 = vmatprep.subr.bf16.mxu0 0
        %2357 = vmatpush1.bf16.msra.mxu0 0
        %2358 = vmatprep.subr.bf16.mxu0 0
        %2359 = vmatpush1.bf16.msra.mxu0 0
        %2360 = vmatprep.subr.bf16.mxu0 0
        %2361 = vmatpush1.bf16.msra.mxu0 0
        %2362 = vmatprep.subr.bf16.mxu0 0
        %2363 = vmatpush1.bf16.msra.mxu0 0
        %2364 = vmatprep.subr.bf16.mxu0 0
        %2365 = vmatpush1.bf16.msra.mxu0 0
        %2366 = vmatprep.subr.bf16.mxu0 0
        %2367 = vmatpush1.bf16.msra.mxu0 0
        %2368 = vmatprep.subr.bf16.mxu0 0
        %2369 = vmatpush1.bf16.msra.mxu0 0
        %2370 = vmatprep.subr.bf16.mxu0 0
        %2371 = vmatpush1.bf16.msra.mxu0 0
        %2372 = vmatprep.subr.bf16.mxu0 0
        %2373 = vmatpush1.bf16.msra.mxu0 0
        %2374 = vmatprep.subr.bf16.mxu0 0
        %2375 = vmatpush1.bf16.msra.mxu0 0
        %2376 = vmatprep.subr.bf16.mxu0 0
        %2377 = vmatpush1.bf16.msra.mxu0 0
        %2378 = vmatprep.subr.bf16.mxu0 0
        %2379 = vmatpush1.bf16.msra.mxu0 0
        %2380 = vmatprep.subr.bf16.mxu0 0
        %2381 = vmatpush1.bf16.msra.mxu0 0
        %2382 = vmatprep.subr.bf16.mxu0 0
        %2383 = vmatpush1.bf16.msra.mxu0 0
        %2384 = vmatprep.mubr.bf16.mxu0 0
        %2385 = vmatmul.mubr.bf16.gmra.mrb[0].mxu0 %v2347
        %v2386 = vpop.f32.mrb[0].mxu0
        %v2387 = vadd.f32 0.0, %v2386
        %v2388 = vpop.f32.mrb[0].mxu0
        %v2389 = vpop.f32.mrb[0].mxu0
        %v2390 = vpop.f32.mrb[0].mxu0
        %2391 = vdwg.mxu0
        %2393 = vrot.lane.b32.xlu0 %v1567, 112
        %v2394 = vpop.permute.xlu0 %2393
        %v2396 = vsel %vm1753, %v2244, 0
        %v2399 = vsel %vm1805, %v2394, 0
        %2401 = vmatprep.subr.bf16.mxu0 0
        %2402 = vmatpush1.bf16.msra.mxu0 %v2399
        %2403 = vmatprep.subr.bf16.mxu0 0
        %2404 = vmatpush1.bf16.msra.mxu0 0
        %2405 = vmatprep.subr.bf16.mxu0 0
        %2406 = vmatpush1.bf16.msra.mxu0 0
        %2407 = vmatprep.subr.bf16.mxu0 0
        %2408 = vmatpush1.bf16.msra.mxu0 0
        %2409 = vmatprep.subr.bf16.mxu0 0
        %2410 = vmatpush1.bf16.msra.mxu0 0
        %2411 = vmatprep.subr.bf16.mxu0 0
        %2412 = vmatpush1.bf16.msra.mxu0 0
        %2413 = vmatprep.subr.bf16.mxu0 0
        %2414 = vmatpush1.bf16.msra.mxu0 0
        %2415 = vmatprep.subr.bf16.mxu0 0
        %2416 = vmatpush1.bf16.msra.mxu0 0
        %2417 = vmatprep.subr.bf16.mxu0 0
        %2418 = vmatpush1.bf16.msra.mxu0 0
        %2419 = vmatprep.subr.bf16.mxu0 0
        %2420 = vmatpush1.bf16.msra.mxu0 0
        %2421 = vmatprep.subr.bf16.mxu0 0
        %2422 = vmatpush1.bf16.msra.mxu0 0
        %2423 = vmatprep.subr.bf16.mxu0 0
        %2424 = vmatpush1.bf16.msra.mxu0 0
        %2425 = vmatprep.subr.bf16.mxu0 0
        %2426 = vmatpush1.bf16.msra.mxu0 0
        %2427 = vmatprep.subr.bf16.mxu0 0
        %2428 = vmatpush1.bf16.msra.mxu0 0
        %2429 = vmatprep.subr.bf16.mxu0 0
        %2430 = vmatpush1.bf16.msra.mxu0 0
        %2431 = vmatprep.subr.bf16.mxu0 0
        %2432 = vmatpush1.bf16.msra.mxu0 0
        %2433 = vmatprep.mubr.bf16.mxu0 0
        %2434 = vmatmul.mubr.bf16.gmra.mrb[0].mxu0 %v2396
        %v2435 = vpop.f32.mrb[0].mxu0
        %v2436 = vadd.f32 0.0, %v2435
        %v2437 = vpop.f32.mrb[0].mxu0
        %v2438 = vpop.f32.mrb[0].mxu0
        %v2439 = vpop.f32.mrb[0].mxu0
        %2440 = vdwg.mxu0
        %v2441 = vpack.c.bf16 %v2338, %v2289
        %v2442 = vpack.c.bf16 %v2436, %v2387
        %v2445 = vunpack.c.l.b16 %v1542
        %v2446 = vunpack.c.l.b16 %v1543
        %v2447 = vpack.c.b16 %v2446, %v2445
        %v2450 = vsel %vm1568, %v2441, 0
        %v2453 = vsel %vm1568, %v2442, 0
        %2455 = vmatprep.subr.bf16.mxu0 0
        %2456 = vmatpush1.bf16.msra.mxu0 %v2447
        %2457 = vmatprep.subr.bf16.mxu0 0
        %2458 = vmatpush1.bf16.msra.mxu0 0
        %2459 = vmatprep.subr.bf16.mxu0 0
        %2460 = vmatpush1.bf16.msra.mxu0 0
        %2461 = vmatprep.subr.bf16.mxu0 0
        %2462 = vmatpush1.bf16.msra.mxu0 0
        %2463 = vmatprep.subr.bf16.mxu0 0
        %2464 = vmatpush1.bf16.msra.mxu0 0
        %2465 = vmatprep.subr.bf16.mxu0 0
        %2466 = vmatpush1.bf16.msra.mxu0 0
        %2467 = vmatprep.subr.bf16.mxu0 0
        %2468 = vmatpush1.bf16.msra.mxu0 0
        %2469 = vmatprep.subr.bf16.mxu0 0
        %2470 = vmatpush1.bf16.msra.mxu0 0
        %2471 = vmatprep.subr.bf16.mxu0 0
        %2472 = vmatpush1.bf16.msra.mxu0 0
        %2473 = vmatprep.subr.bf16.mxu0 0
        %2474 = vmatpush1.bf16.msra.mxu0 0
        %2475 = vmatprep.subr.bf16.mxu0 0
        %2476 = vmatpush1.bf16.msra.mxu0 0
        %2477 = vmatprep.subr.bf16.mxu0 0
        %2478 = vmatpush1.bf16.msra.mxu0 0
        %2479 = vmatprep.subr.bf16.mxu0 0
        %2480 = vmatpush1.bf16.msra.mxu0 0
        %2481 = vmatprep.subr.bf16.mxu0 0
        %2482 = vmatpush1.bf16.msra.mxu0 0
        %2483 = vmatprep.subr.bf16.mxu0 0
        %2484 = vmatpush1.bf16.msra.mxu0 0
        %2485 = vmatprep.subr.bf16.mxu0 0
        %2486 = vmatpush1.bf16.msra.mxu0 0
        %2487 = vmatprep.mubr.bf16.mxu0 0
        %2488 = vmatmul.mubr.bf16.gmra.mrb[0].mxu0 %v2450
        %v2489 = vpop.f32.mrb[0].mxu0
        %v2490 = vadd.f32 0.0, %v2489
        %v2491 = vpop.f32.mrb[0].mxu0
        %v2492 = vpop.f32.mrb[0].mxu0
        %v2493 = vadd.f32 0.0, %v2492
        %v2494 = vpop.f32.mrb[0].mxu0
        %2495 = vmatprep.mubr.bf16.mxu0 0
        %2496 = vmatmul.mubr.bf16.gmra.mrb[0].mxu0 %v2453
        %v2497 = vpop.f32.mrb[0].mxu0
        %v2498 = vadd.f32 0.0, %v2497
        %v2499 = vpop.f32.mrb[0].mxu0
        %v2500 = vpop.f32.mrb[0].mxu0
        %v2501 = vadd.f32 0.0, %v2500
        %v2502 = vpop.f32.mrb[0].mxu0
        %2503 = vdwg.mxu0
        %v2506 = vunpack.c.l.b16 %v1540
        %v2507 = vunpack.c.l.b16 %v1541
        %v2508 = vpack.c.b16 %v2507, %v2506
        %v2511 = vsel %vm1568, %v1987, 0
        %v2514 = vsel %vm1568, %v1988, 0
        %2516 = vmatprep.subr.bf16.mxu0 0
        %2517 = vmatpush1.bf16.msra.mxu0 %v2508
        %2518 = vmatprep.subr.bf16.mxu0 0
        %2519 = vmatpush1.bf16.msra.mxu0 0
        %2520 = vmatprep.subr.bf16.mxu0 0
        %2521 = vmatpush1.bf16.msra.mxu0 0
        %2522 = vmatprep.subr.bf16.mxu0 0
        %2523 = vmatpush1.bf16.msra.mxu0 0
        %2524 = vmatprep.subr.bf16.mxu0 0
        %2525 = vmatpush1.bf16.msra.mxu0 0
        %2526 = vmatprep.subr.bf16.mxu0 0
        %2527 = vmatpush1.bf16.msra.mxu0 0
        %2528 = vmatprep.subr.bf16.mxu0 0
        %2529 = vmatpush1.bf16.msra.mxu0 0
        %2530 = vmatprep.subr.bf16.mxu0 0
        %2531 = vmatpush1.bf16.msra.mxu0 0
        %2532 = vmatprep.subr.bf16.mxu0 0
        %2533 = vmatpush1.bf16.msra.mxu0 0
        %2534 = vmatprep.subr.bf16.mxu0 0
        %2535 = vmatpush1.bf16.msra.mxu0 0
        %2536 = vmatprep.subr.bf16.mxu0 0
        %2537 = vmatpush1.bf16.msra.mxu0 0
        %2538 = vmatprep.subr.bf16.mxu0 0
        %2539 = vmatpush1.bf16.msra.mxu0 0
        %2540 = vmatprep.subr.bf16.mxu0 0
        %2541 = vmatpush1.bf16.msra.mxu0 0
        %2542 = vmatprep.subr.bf16.mxu0 0
        %2543 = vmatpush1.bf16.msra.mxu0 0
        %2544 = vmatprep.subr.bf16.mxu0 0
        %2545 = vmatpush1.bf16.msra.mxu0 0
        %2546 = vmatprep.subr.bf16.mxu0 0
        %2547 = vmatpush1.bf16.msra.mxu0 0
        %2548 = vmatprep.mubr.bf16.mxu0 0
        %2549 = vmatmul.mubr.bf16.gmra.mrb[0].mxu0 %v2511
        %v2550 = vpop.f32.mrb[0].mxu0
        %v2551 = vadd.f32 %v2490, %v2550
        %v2552 = vpop.f32.mrb[0].mxu0
        %v2553 = vpop.f32.mrb[0].mxu0
        %v2554 = vadd.f32 %v2493, %v2553
        %v2555 = vpop.f32.mrb[0].mxu0
        %2556 = vmatprep.mubr.bf16.mxu0 0
        %2557 = vmatmul.mubr.bf16.gmra.mrb[0].mxu0 %v2514
        %v2558 = vpop.f32.mrb[0].mxu0
        %v2559 = vadd.f32 %v2498, %v2558
        %v2560 = vpop.f32.mrb[0].mxu0
        %v2561 = vpop.f32.mrb[0].mxu0
        %v2562 = vadd.f32 %v2501, %v2561
        %v2563 = vpop.f32.mrb[0].mxu0
        %2564 = vdwg.mxu0
        %2565 = vrot.lane.b32.xlu0 %v1556, 96
        %v2566 = vpop.permute.xlu0 %2565
        %2567 = vrot.lane.b32.xlu0 %v1560, 96
        %v2568 = vpop.permute.xlu0 %2567
        %v2570 = vsel %vm1568, %v2566, 0
        %v2573 = vsel %vm1568, %v2568, 0
        %2575 = vmatprep.subr.bf16.mxu0 0
        %2576 = vmatpush1.bf16.xpose.msra.mxu0 %v2573
        %2577 = vmatprep.subr.bf16.mxu0 0
        %2578 = vmatpush1.bf16.xpose.msra.mxu0 0
        %2579 = vmatprep.subr.bf16.mxu0 0
        %2580 = vmatpush1.bf16.xpose.msra.mxu0 0
        %2581 = vmatprep.subr.bf16.mxu0 0
        %2582 = vmatpush1.bf16.xpose.msra.mxu0 0
        %2583 = vmatprep.subr.bf16.mxu0 0
        %2584 = vmatpush1.bf16.xpose.msra.mxu0 0
        %2585 = vmatprep.subr.bf16.mxu0 0
        %2586 = vmatpush1.bf16.xpose.msra.mxu0 0
        %2587 = vmatprep.subr.bf16.mxu0 0
        %2588 = vmatpush1.bf16.xpose.msra.mxu0 0
        %2589 = vmatprep.subr.bf16.mxu0 0
        %2590 = vmatpush1.bf16.xpose.msra.mxu0 0
        %2591 = vmatprep.subr.bf16.mxu0 0
        %2592 = vmatpush1.bf16.xpose.msra.mxu0 0
        %2593 = vmatprep.subr.bf16.mxu0 0
        %2594 = vmatpush1.bf16.xpose.msra.mxu0 0
        %2595 = vmatprep.subr.bf16.mxu0 0
        %2596 = vmatpush1.bf16.xpose.msra.mxu0 0
        %2597 = vmatprep.subr.bf16.mxu0 0
        %2598 = vmatpush1.bf16.xpose.msra.mxu0 0
        %2599 = vmatprep.subr.bf16.mxu0 0
        %2600 = vmatpush1.bf16.xpose.msra.mxu0 0
        %2601 = vmatprep.subr.bf16.mxu0 0
        %2602 = vmatpush1.bf16.xpose.msra.mxu0 0
        %2603 = vmatprep.subr.bf16.mxu0 0
        %2604 = vmatpush1.bf16.xpose.msra.mxu0 0
        %2605 = vmatprep.subr.bf16.mxu0 0
        %2606 = vmatpush1.bf16.xpose.msra.mxu0 0
        %2607 = vmatprep.mubr.bf16.mxu0 0
        %2608 = vmatmul.mubr.bf16.gmra.mrb[0].mxu0 %v2570
        %v2609 = vpop.f32.mrb[0].mxu0
        %v2610 = vadd.f32 0.0, %v2609
        %v2611 = vpop.f32.mrb[0].mxu0
        %v2612 = vpop.f32.mrb[0].mxu0
        %v2613 = vpop.f32.mrb[0].mxu0
        %2614 = vdwg.mxu0
        %2615 = vrot.lane.b32.xlu0 %v1557, 96
        %v2616 = vpop.permute.xlu0 %2615
        %2617 = vrot.lane.b32.xlu0 %v1561, 96
        %v2618 = vpop.permute.xlu0 %2617
        %v2620 = vsel %vm1568, %v2616, 0
        %v2623 = vsel %vm1568, %v2618, 0
        %2625 = vmatprep.subr.bf16.mxu0 0
        %2626 = vmatpush1.bf16.xpose.msra.mxu0 %v2623
        %2627 = vmatprep.subr.bf16.mxu0 0
        %2628 = vmatpush1.bf16.xpose.msra.mxu0 0
        %2629 = vmatprep.subr.bf16.mxu0 0
        %2630 = vmatpush1.bf16.xpose.msra.mxu0 0
        %2631 = vmatprep.subr.bf16.mxu0 0
        %2632 = vmatpush1.bf16.xpose.msra.mxu0 0
        %2633 = vmatprep.subr.bf16.mxu0 0
        %2634 = vmatpush1.bf16.xpose.msra.mxu0 0
        %2635 = vmatprep.subr.bf16.mxu0 0
        %2636 = vmatpush1.bf16.xpose.msra.mxu0 0
        %2637 = vmatprep.subr.bf16.mxu0 0
        %2638 = vmatpush1.bf16.xpose.msra.mxu0 0
        %2639 = vmatprep.subr.bf16.mxu0 0
        %2640 = vmatpush1.bf16.xpose.msra.mxu0 0
        %2641 = vmatprep.subr.bf16.mxu0 0
        %2642 = vmatpush1.bf16.xpose.msra.mxu0 0
        %2643 = vmatprep.subr.bf16.mxu0 0
        %2644 = vmatpush1.bf16.xpose.msra.mxu0 0
        %2645 = vmatprep.subr.bf16.mxu0 0
        %2646 = vmatpush1.bf16.xpose.msra.mxu0 0
        %2647 = vmatprep.subr.bf16.mxu0 0
        %2648 = vmatpush1.bf16.xpose.msra.mxu0 0
        %2649 = vmatprep.subr.bf16.mxu0 0
        %2650 = vmatpush1.bf16.xpose.msra.mxu0 0
        %2651 = vmatprep.subr.bf16.mxu0 0
        %2652 = vmatpush1.bf16.xpose.msra.mxu0 0
        %2653 = vmatprep.subr.bf16.mxu0 0
        %2654 = vmatpush1.bf16.xpose.msra.mxu0 0
        %2655 = vmatprep.subr.bf16.mxu0 0
        %2656 = vmatpush1.bf16.xpose.msra.mxu0 0
        %2657 = vmatprep.mubr.bf16.mxu0 0
        %2658 = vmatmul.mubr.bf16.gmra.mrb[0].mxu0 %v2620
        %v2659 = vpop.f32.mrb[0].mxu0
        %v2660 = vadd.f32 0.0, %v2659
        %v2661 = vpop.f32.mrb[0].mxu0
        %v2662 = vpop.f32.mrb[0].mxu0
        %v2663 = vpop.f32.mrb[0].mxu0
        %2664 = vdwg.mxu0
        %2665 = vrot.lane.b32.xlu0 %v1558, 96
        %v2666 = vpop.permute.xlu0 %2665
        %2667 = vrot.lane.b32.xlu0 %v1562, 96
        %v2668 = vpop.permute.xlu0 %2667
        %v2670 = vsel %vm1568, %v2666, 0
        %v2673 = vsel %vm1568, %v2668, 0
        %2675 = vmatprep.subr.bf16.mxu0 0
        %2676 = vmatpush1.bf16.xpose.msra.mxu0 %v2673
        %2677 = vmatprep.subr.bf16.mxu0 0
        %2678 = vmatpush1.bf16.xpose.msra.mxu0 0
        %2679 = vmatprep.subr.bf16.mxu0 0
        %2680 = vmatpush1.bf16.xpose.msra.mxu0 0
        %2681 = vmatprep.subr.bf16.mxu0 0
        %2682 = vmatpush1.bf16.xpose.msra.mxu0 0
        %2683 = vmatprep.subr.bf16.mxu0 0
        %2684 = vmatpush1.bf16.xpose.msra.mxu0 0
        %2685 = vmatprep.subr.bf16.mxu0 0
        %2686 = vmatpush1.bf16.xpose.msra.mxu0 0
        %2687 = vmatprep.subr.bf16.mxu0 0
        %2688 = vmatpush1.bf16.xpose.msra.mxu0 0
        %2689 = vmatprep.subr.bf16.mxu0 0
        %2690 = vmatpush1.bf16.xpose.msra.mxu0 0
        %2691 = vmatprep.subr.bf16.mxu0 0
        %2692 = vmatpush1.bf16.xpose.msra.mxu0 0
        %2693 = vmatprep.subr.bf16.mxu0 0
        %2694 = vmatpush1.bf16.xpose.msra.mxu0 0
        %2695 = vmatprep.subr.bf16.mxu0 0
        %2696 = vmatpush1.bf16.xpose.msra.mxu0 0
        %2697 = vmatprep.subr.bf16.mxu0 0
        %2698 = vmatpush1.bf16.xpose.msra.mxu0 0
        %2699 = vmatprep.subr.bf16.mxu0 0
        %2700 = vmatpush1.bf16.xpose.msra.mxu0 0
        %2701 = vmatprep.subr.bf16.mxu0 0
        %2702 = vmatpush1.bf16.xpose.msra.mxu0 0
        %2703 = vmatprep.subr.bf16.mxu0 0
        %2704 = vmatpush1.bf16.xpose.msra.mxu0 0
        %2705 = vmatprep.subr.bf16.mxu0 0
        %2706 = vmatpush1.bf16.xpose.msra.mxu0 0
        %2707 = vmatprep.mubr.bf16.mxu0 0
        %2708 = vmatmul.mubr.bf16.gmra.mrb[0].mxu0 %v2670
        %v2709 = vpop.f32.mrb[0].mxu0
        %v2710 = vadd.f32 0.0, %v2709
        %v2711 = vpop.f32.mrb[0].mxu0
        %v2712 = vpop.f32.mrb[0].mxu0
        %v2713 = vpop.f32.mrb[0].mxu0
        %2714 = vdwg.mxu0
        %2715 = vrot.lane.b32.xlu0 %v1559, 96
        %v2716 = vpop.permute.xlu0 %2715
        %2717 = vrot.lane.b32.xlu0 %v1563, 96
        %v2718 = vpop.permute.xlu0 %2717
        %v2720 = vsel %vm1568, %v2716, 0
        %v2723 = vsel %vm1568, %v2718, 0
        %2725 = vmatprep.subr.bf16.mxu0 0
        %2726 = vmatpush1.bf16.xpose.msra.mxu0 %v2723
        %2727 = vmatprep.subr.bf16.mxu0 0
        %2728 = vmatpush1.bf16.xpose.msra.mxu0 0
        %2729 = vmatprep.subr.bf16.mxu0 0
        %2730 = vmatpush1.bf16.xpose.msra.mxu0 0
        %2731 = vmatprep.subr.bf16.mxu0 0
        %2732 = vmatpush1.bf16.xpose.msra.mxu0 0
        %2733 = vmatprep.subr.bf16.mxu0 0
        %2734 = vmatpush1.bf16.xpose.msra.mxu0 0
        %2735 = vmatprep.subr.bf16.mxu0 0
        %2736 = vmatpush1.bf16.xpose.msra.mxu0 0
        %2737 = vmatprep.subr.bf16.mxu0 0
        %2738 = vmatpush1.bf16.xpose.msra.mxu0 0
        %2739 = vmatprep.subr.bf16.mxu0 0
        %2740 = vmatpush1.bf16.xpose.msra.mxu0 0
        %2741 = vmatprep.subr.bf16.mxu0 0
        %2742 = vmatpush1.bf16.xpose.msra.mxu0 0
        %2743 = vmatprep.subr.bf16.mxu0 0
        %2744 = vmatpush1.bf16.xpose.msra.mxu0 0
        %2745 = vmatprep.subr.bf16.mxu0 0
        %2746 = vmatpush1.bf16.xpose.msra.mxu0 0
        %2747 = vmatprep.subr.bf16.mxu0 0
        %2748 = vmatpush1.bf16.xpose.msra.mxu0 0
        %2749 = vmatprep.subr.bf16.mxu0 0
        %2750 = vmatpush1.bf16.xpose.msra.mxu0 0
        %2751 = vmatprep.subr.bf16.mxu0 0
        %2752 = vmatpush1.bf16.xpose.msra.mxu0 0
        %2753 = vmatprep.subr.bf16.mxu0 0
        %2754 = vmatpush1.bf16.xpose.msra.mxu0 0
        %2755 = vmatprep.subr.bf16.mxu0 0
        %2756 = vmatpush1.bf16.xpose.msra.mxu0 0
        %2757 = vmatprep.mubr.bf16.mxu0 0
        %2758 = vmatmul.mubr.bf16.gmra.mrb[0].mxu0 %v2720
        %v2759 = vpop.f32.mrb[0].mxu0
        %v2760 = vadd.f32 0.0, %v2759
        %v2761 = vpop.f32.mrb[0].mxu0
        %v2762 = vpop.f32.mrb[0].mxu0
        %v2763 = vpop.f32.mrb[0].mxu0
        %2764 = vdwg.mxu0
        %v2765 = vsel %vm1753, %v2610, -inf
        %2766 = vmax.xlane.f32.xlu0 %v2765
        %v2767 = vpop.xlane.xlu0 %2766
        %v2768 = vsel %vm1753, %v2660, -inf
        %2769 = vmax.xlane.f32.xlu0 %v2768
        %v2770 = vpop.xlane.xlu0 %2769
        %v2771 = vsel %vm1753, %v2710, -inf
        %2772 = vmax.xlane.f32.xlu0 %v2771
        %v2773 = vpop.xlane.xlu0 %2772
        %v2774 = vsel %vm1753, %v2760, -inf
        %2775 = vmax.xlane.f32.xlu0 %v2774
        %v2776 = vpop.xlane.xlu0 %2775
        %v2777 = vsub.f32 %v2610, %v2767
        %v2778 = vsub.f32 %v2660, %v2770
        %v2779 = vsub.f32 %v2710, %v2773
        %v2780 = vsub.f32 %v2760, %v2776
        %v2781 = vmul.f32 %v2777, 1.442695
        %v2782 = vpow.pop %v2781
        %v2783 = vmul.f32 %v2778, 1.442695
        %v2784 = vpow.pop %v2783
        %v2785 = vmul.f32 %v2779, 1.442695
        %v2786 = vpow.pop %v2785
        %v2787 = vmul.f32 %v2780, 1.442695
        %v2788 = vpow.pop %v2787
        %v2789 = vsel %vm1753, %v2782, 0.0
        %2790 = vadd.xlane.f32.xlu0 %v2789
        %v2791 = vpop.xlane.xlu0 %2790
        %v2792 = vsel %vm1753, %v2784, 0.0
        %2793 = vadd.xlane.f32.xlu0 %v2792
        %v2794 = vpop.xlane.xlu0 %2793
        %v2795 = vsel %vm1753, %v2786, 0.0
        %2796 = vadd.xlane.f32.xlu0 %v2795
        %v2797 = vpop.xlane.xlu0 %2796
        %v2798 = vsel %vm1753, %v2788, 0.0
        %2799 = vadd.xlane.f32.xlu0 %v2798
        %v2800 = vpop.xlane.xlu0 %2799
        %v2801 = vrcp.pop %v2791
        %v2802 = vrcp.pop %v2794
        %v2803 = vrcp.pop %v2797
        %v2804 = vrcp.pop %v2800
        %v2805 = vmul.f32 %v2782, %v2801
        %v2806 = vmul.f32 %v2784, %v2802
        %v2807 = vmul.f32 %v2786, %v2803
        %v2808 = vmul.f32 %v2788, %v2804
        %v2809 = vpack.c.bf16 %v2805, %v2805
        %v2810 = vpack.c.bf16 %v2806, %v2806
        %v2811 = vpack.c.bf16 %v2807, %v2807
        %v2812 = vpack.c.bf16 %v2808, %v2808
        %2813 = vrot.lane.b32.xlu0 %v1564, 96
        %v2814 = vpop.permute.xlu0 %2813
        %v2816 = vsel %vm1753, %v2809, 0
        %v2819 = vsel %vm1805, %v2814, 0
        %2821 = vmatprep.subr.bf16.mxu0 0
        %2822 = vmatpush1.bf16.msra.mxu0 %v2819
        %2823 = vmatprep.subr.bf16.mxu0 0
        %2824 = vmatpush1.bf16.msra.mxu0 0
        %2825 = vmatprep.subr.bf16.mxu0 0
        %2826 = vmatpush1.bf16.msra.mxu0 0
        %2827 = vmatprep.subr.bf16.mxu0 0
        %2828 = vmatpush1.bf16.msra.mxu0 0
        %2829 = vmatprep.subr.bf16.mxu0 0
        %2830 = vmatpush1.bf16.msra.mxu0 0
        %2831 = vmatprep.subr.bf16.mxu0 0
        %2832 = vmatpush1.bf16.msra.mxu0 0
        %2833 = vmatprep.subr.bf16.mxu0 0
        %2834 = vmatpush1.bf16.msra.mxu0 0
        %2835 = vmatprep.subr.bf16.mxu0 0
        %2836 = vmatpush1.bf16.msra.mxu0 0
        %2837 = vmatprep.subr.bf16.mxu0 0
        %2838 = vmatpush1.bf16.msra.mxu0 0
        %2839 = vmatprep.subr.bf16.mxu0 0
        %2840 = vmatpush1.bf16.msra.mxu0 0
        %2841 = vmatprep.subr.bf16.mxu0 0
        %2842 = vmatpush1.bf16.msra.mxu0 0
        %2843 = vmatprep.subr.bf16.mxu0 0
        %2844 = vmatpush1.bf16.msra.mxu0 0
        %2845 = vmatprep.subr.bf16.mxu0 0
        %2846 = vmatpush1.bf16.msra.mxu0 0
        %2847 = vmatprep.subr.bf16.mxu0 0
        %2848 = vmatpush1.bf16.msra.mxu0 0
        %2849 = vmatprep.subr.bf16.mxu0 0
        %2850 = vmatpush1.bf16.msra.mxu0 0
        %2851 = vmatprep.subr.bf16.mxu0 0
        %2852 = vmatpush1.bf16.msra.mxu0 0
        %2853 = vmatprep.mubr.bf16.mxu0 0
        %2854 = vmatmul.mubr.bf16.gmra.mrb[0].mxu0 %v2816
        %v2855 = vpop.f32.mrb[0].mxu0
        %v2856 = vadd.f32 0.0, %v2855
        %v2857 = vpop.f32.mrb[0].mxu0
        %v2858 = vpop.f32.mrb[0].mxu0
        %v2859 = vpop.f32.mrb[0].mxu0
        %2860 = vdwg.mxu0
        %2861 = vrot.lane.b32.xlu0 %v1565, 96
        %v2862 = vpop.permute.xlu0 %2861
        %v2864 = vsel %vm1753, %v2810, 0
        %v2867 = vsel %vm1805, %v2862, 0
        %2869 = vmatprep.subr.bf16.mxu0 0
        %2870 = vmatpush1.bf16.msra.mxu0 %v2867
        %2871 = vmatprep.subr.bf16.mxu0 0
        %2872 = vmatpush1.bf16.msra.mxu0 0
        %2873 = vmatprep.subr.bf16.mxu0 0
        %2874 = vmatpush1.bf16.msra.mxu0 0
        %2875 = vmatprep.subr.bf16.mxu0 0
        %2876 = vmatpush1.bf16.msra.mxu0 0
        %2877 = vmatprep.subr.bf16.mxu0 0
        %2878 = vmatpush1.bf16.msra.mxu0 0
        %2879 = vmatprep.subr.bf16.mxu0 0
        %2880 = vmatpush1.bf16.msra.mxu0 0
        %2881 = vmatprep.subr.bf16.mxu0 0
        %2882 = vmatpush1.bf16.msra.mxu0 0
        %2883 = vmatprep.subr.bf16.mxu0 0
        %2884 = vmatpush1.bf16.msra.mxu0 0
        %2885 = vmatprep.subr.bf16.mxu0 0
        %2886 = vmatpush1.bf16.msra.mxu0 0
        %2887 = vmatprep.subr.bf16.mxu0 0
        %2888 = vmatpush1.bf16.msra.mxu0 0
        %2889 = vmatprep.subr.bf16.mxu0 0
        %2890 = vmatpush1.bf16.msra.mxu0 0
        %2891 = vmatprep.subr.bf16.mxu0 0
        %2892 = vmatpush1.bf16.msra.mxu0 0
        %2893 = vmatprep.subr.bf16.mxu0 0
        %2894 = vmatpush1.bf16.msra.mxu0 0
        %2895 = vmatprep.subr.bf16.mxu0 0
        %2896 = vmatpush1.bf16.msra.mxu0 0
        %2897 = vmatprep.subr.bf16.mxu0 0
        %2898 = vmatpush1.bf16.msra.mxu0 0
        %2899 = vmatprep.subr.bf16.mxu0 0
        %2900 = vmatpush1.bf16.msra.mxu0 0
        %2901 = vmatprep.mubr.bf16.mxu0 0
        %2902 = vmatmul.mubr.bf16.gmra.mrb[0].mxu0 %v2864
        %v2903 = vpop.f32.mrb[0].mxu0
        %v2904 = vadd.f32 0.0, %v2903
        %v2905 = vpop.f32.mrb[0].mxu0
        %v2906 = vpop.f32.mrb[0].mxu0
        %v2907 = vpop.f32.mrb[0].mxu0
        %2908 = vdwg.mxu0
        %2909 = vrot.lane.b32.xlu0 %v1566, 96
        %v2910 = vpop.permute.xlu0 %2909
        %v2912 = vsel %vm1753, %v2811, 0
        %v2915 = vsel %vm1805, %v2910, 0
        %2917 = vmatprep.subr.bf16.mxu0 0
        %2918 = vmatpush1.bf16.msra.mxu0 %v2915
        %2919 = vmatprep.subr.bf16.mxu0 0
        %2920 = vmatpush1.bf16.msra.mxu0 0
        %2921 = vmatprep.subr.bf16.mxu0 0
        %2922 = vmatpush1.bf16.msra.mxu0 0
        %2923 = vmatprep.subr.bf16.mxu0 0
        %2924 = vmatpush1.bf16.msra.mxu0 0
        %2925 = vmatprep.subr.bf16.mxu0 0
        %2926 = vmatpush1.bf16.msra.mxu0 0
        %2927 = vmatprep.subr.bf16.mxu0 0
        %2928 = vmatpush1.bf16.msra.mxu0 0
        %2929 = vmatprep.subr.bf16.mxu0 0
        %2930 = vmatpush1.bf16.msra.mxu0 0
        %2931 = vmatprep.subr.bf16.mxu0 0
        %2932 = vmatpush1.bf16.msra.mxu0 0
        %2933 = vmatprep.subr.bf16.mxu0 0
        %2934 = vmatpush1.bf16.msra.mxu0 0
        %2935 = vmatprep.subr.bf16.mxu0 0
        %2936 = vmatpush1.bf16.msra.mxu0 0
        %2937 = vmatprep.subr.bf16.mxu0 0
        %2938 = vmatpush1.bf16.msra.mxu0 0
        %2939 = vmatprep.subr.bf16.mxu0 0
        %2940 = vmatpush1.bf16.msra.mxu0 0
        %2941 = vmatprep.subr.bf16.mxu0 0
        %2942 = vmatpush1.bf16.msra.mxu0 0
        %2943 = vmatprep.subr.bf16.mxu0 0
        %2944 = vmatpush1.bf16.msra.mxu0 0
        %2945 = vmatprep.subr.bf16.mxu0 0
        %2946 = vmatpush1.bf16.msra.mxu0 0
        %2947 = vmatprep.subr.bf16.mxu0 0
        %2948 = vmatpush1.bf16.msra.mxu0 0
        %2949 = vmatprep.mubr.bf16.mxu0 0
        %2950 = vmatmul.mubr.bf16.gmra.mrb[0].mxu0 %v2912
        %v2951 = vpop.f32.mrb[0].mxu0
        %v2952 = vadd.f32 0.0, %v2951
        %v2953 = vpop.f32.mrb[0].mxu0
        %v2954 = vpop.f32.mrb[0].mxu0
        %v2955 = vpop.f32.mrb[0].mxu0
        %2956 = vdwg.mxu0
        %2957 = vrot.lane.b32.xlu0 %v1567, 96
        %v2958 = vpop.permute.xlu0 %2957
        %v2960 = vsel %vm1753, %v2812, 0
        %v2963 = vsel %vm1805, %v2958, 0
        %2965 = vmatprep.subr.bf16.mxu0 0
        %2966 = vmatpush1.bf16.msra.mxu0 %v2963
        %2967 = vmatprep.subr.bf16.mxu0 0
        %2968 = vmatpush1.bf16.msra.mxu0 0
        %2969 = vmatprep.subr.bf16.mxu0 0
        %2970 = vmatpush1.bf16.msra.mxu0 0
        %2971 = vmatprep.subr.bf16.mxu0 0
        %2972 = vmatpush1.bf16.msra.mxu0 0
        %2973 = vmatprep.subr.bf16.mxu0 0
        %2974 = vmatpush1.bf16.msra.mxu0 0
        %2975 = vmatprep.subr.bf16.mxu0 0
        %2976 = vmatpush1.bf16.msra.mxu0 0
        %2977 = vmatprep.subr.bf16.mxu0 0
        %2978 = vmatpush1.bf16.msra.mxu0 0
        %2979 = vmatprep.subr.bf16.mxu0 0
        %2980 = vmatpush1.bf16.msra.mxu0 0
        %2981 = vmatprep.subr.bf16.mxu0 0
        %2982 = vmatpush1.bf16.msra.mxu0 0
        %2983 = vmatprep.subr.bf16.mxu0 0
        %2984 = vmatpush1.bf16.msra.mxu0 0
        %2985 = vmatprep.subr.bf16.mxu0 0
        %2986 = vmatpush1.bf16.msra.mxu0 0
        %2987 = vmatprep.subr.bf16.mxu0 0
        %2988 = vmatpush1.bf16.msra.mxu0 0
        %2989 = vmatprep.subr.bf16.mxu0 0
        %2990 = vmatpush1.bf16.msra.mxu0 0
        %2991 = vmatprep.subr.bf16.mxu0 0
        %2992 = vmatpush1.bf16.msra.mxu0 0
        %2993 = vmatprep.subr.bf16.mxu0 0
        %2994 = vmatpush1.bf16.msra.mxu0 0
        %2995 = vmatprep.subr.bf16.mxu0 0
        %2996 = vmatpush1.bf16.msra.mxu0 0
        %2997 = vmatprep.mubr.bf16.mxu0 0
        %2998 = vmatmul.mubr.bf16.gmra.mrb[0].mxu0 %v2960
        %v2999 = vpop.f32.mrb[0].mxu0
        %v3000 = vadd.f32 0.0, %v2999
        %v3001 = vpop.f32.mrb[0].mxu0
        %v3002 = vpop.f32.mrb[0].mxu0
        %v3003 = vpop.f32.mrb[0].mxu0
        %3004 = vdwg.mxu0
        %v3005 = vpack.c.bf16 %v2904, %v2856
        %v3006 = vpack.c.bf16 %v3000, %v2952
        %v3009 = vunpack.c.l.b16 %v1544
        %v3010 = vunpack.c.l.b16 %v1545
        %v3011 = vpack.c.b16 %v3010, %v3009
        %v3014 = vsel %vm1568, %v3005, 0
        %v3017 = vsel %vm1568, %v3006, 0
        %3019 = vmatprep.subr.bf16.mxu0 0
        %3020 = vmatpush1.bf16.msra.mxu0 %v3011
        %3021 = vmatprep.subr.bf16.mxu0 0
        %3022 = vmatpush1.bf16.msra.mxu0 0
        %3023 = vmatprep.subr.bf16.mxu0 0
        %3024 = vmatpush1.bf16.msra.mxu0 0
        %3025 = vmatprep.subr.bf16.mxu0 0
        %3026 = vmatpush1.bf16.msra.mxu0 0
        %3027 = vmatprep.subr.bf16.mxu0 0
        %3028 = vmatpush1.bf16.msra.mxu0 0
        %3029 = vmatprep.subr.bf16.mxu0 0
        %3030 = vmatpush1.bf16.msra.mxu0 0
        %3031 = vmatprep.subr.bf16.mxu0 0
        %3032 = vmatpush1.bf16.msra.mxu0 0
        %3033 = vmatprep.subr.bf16.mxu0 0
        %3034 = vmatpush1.bf16.msra.mxu0 0
        %3035 = vmatprep.subr.bf16.mxu0 0
        %3036 = vmatpush1.bf16.msra.mxu0 0
        %3037 = vmatprep.subr.bf16.mxu0 0
        %3038 = vmatpush1.bf16.msra.mxu0 0
        %3039 = vmatprep.subr.bf16.mxu0 0
        %3040 = vmatpush1.bf16.msra.mxu0 0
        %3041 = vmatprep.subr.bf16.mxu0 0
        %3042 = vmatpush1.bf16.msra.mxu0 0
        %3043 = vmatprep.subr.bf16.mxu0 0
        %3044 = vmatpush1.bf16.msra.mxu0 0
        %3045 = vmatprep.subr.bf16.mxu0 0
        %3046 = vmatpush1.bf16.msra.mxu0 0
        %3047 = vmatprep.subr.bf16.mxu0 0
        %3048 = vmatpush1.bf16.msra.mxu0 0
        %3049 = vmatprep.subr.bf16.mxu0 0
        %3050 = vmatpush1.bf16.msra.mxu0 0
        %3051 = vmatprep.mubr.bf16.mxu0 0
        %3052 = vmatmul.mubr.bf16.gmra.mrb[0].mxu0 %v3014
        %v3053 = vpop.f32.mrb[0].mxu0
        %v3054 = vadd.f32 0.0, %v3053
        %v3055 = vpop.f32.mrb[0].mxu0
        %v3056 = vpop.f32.mrb[0].mxu0
        %v3057 = vadd.f32 0.0, %v3056
        %v3058 = vpop.f32.mrb[0].mxu0
        %3059 = vmatprep.mubr.bf16.mxu0 0
        %3060 = vmatmul.mubr.bf16.gmra.mrb[0].mxu0 %v3017
        %v3061 = vpop.f32.mrb[0].mxu0
        %v3062 = vadd.f32 0.0, %v3061
        %v3063 = vpop.f32.mrb[0].mxu0
        %v3064 = vpop.f32.mrb[0].mxu0
        %v3065 = vadd.f32 0.0, %v3064
        %v3066 = vpop.f32.mrb[0].mxu0
        %3067 = vdwg.mxu0
        %v3068 = vadd.f32 %v2551, %v3054
        %v3069 = vadd.f32 %v2554, %v3057
        %v3070 = vadd.f32 %v2559, %v3062
        %v3071 = vadd.f32 %v2562, %v3065
        %3072 = vrot.lane.b32.xlu0 %v1556, 80
        %v3073 = vpop.permute.xlu0 %3072
        %3074 = vrot.lane.b32.xlu0 %v1560, 80
        %v3075 = vpop.permute.xlu0 %3074
        %v3077 = vsel %vm1568, %v3073, 0
        %v3080 = vsel %vm1568, %v3075, 0
        %3082 = vmatprep.subr.bf16.mxu0 0
        %3083 = vmatpush1.bf16.xpose.msra.mxu0 %v3080
        %3084 = vmatprep.subr.bf16.mxu0 0
        %3085 = vmatpush1.bf16.xpose.msra.mxu0 0
        %3086 = vmatprep.subr.bf16.mxu0 0
        %3087 = vmatpush1.bf16.xpose.msra.mxu0 0
        %3088 = vmatprep.subr.bf16.mxu0 0
        %3089 = vmatpush1.bf16.xpose.msra.mxu0 0
        %3090 = vmatprep.subr.bf16.mxu0 0
        %3091 = vmatpush1.bf16.xpose.msra.mxu0 0
        %3092 = vmatprep.subr.bf16.mxu0 0
        %3093 = vmatpush1.bf16.xpose.msra.mxu0 0
        %3094 = vmatprep.subr.bf16.mxu0 0
        %3095 = vmatpush1.bf16.xpose.msra.mxu0 0
        %3096 = vmatprep.subr.bf16.mxu0 0
        %3097 = vmatpush1.bf16.xpose.msra.mxu0 0
        %3098 = vmatprep.subr.bf16.mxu0 0
        %3099 = vmatpush1.bf16.xpose.msra.mxu0 0
        %3100 = vmatprep.subr.bf16.mxu0 0
        %3101 = vmatpush1.bf16.xpose.msra.mxu0 0
        %3102 = vmatprep.subr.bf16.mxu0 0
        %3103 = vmatpush1.bf16.xpose.msra.mxu0 0
        %3104 = vmatprep.subr.bf16.mxu0 0
        %3105 = vmatpush1.bf16.xpose.msra.mxu0 0
        %3106 = vmatprep.subr.bf16.mxu0 0
        %3107 = vmatpush1.bf16.xpose.msra.mxu0 0
        %3108 = vmatprep.subr.bf16.mxu0 0
        %3109 = vmatpush1.bf16.xpose.msra.mxu0 0
        %3110 = vmatprep.subr.bf16.mxu0 0
        %3111 = vmatpush1.bf16.xpose.msra.mxu0 0
        %3112 = vmatprep.subr.bf16.mxu0 0
        %3113 = vmatpush1.bf16.xpose.msra.mxu0 0
        %3114 = vmatprep.mubr.bf16.mxu0 0
        %3115 = vmatmul.mubr.bf16.gmra.mrb[0].mxu0 %v3077
        %v3116 = vpop.f32.mrb[0].mxu0
        %v3117 = vadd.f32 0.0, %v3116
        %v3118 = vpop.f32.mrb[0].mxu0
        %v3119 = vpop.f32.mrb[0].mxu0
        %v3120 = vpop.f32.mrb[0].mxu0
        %3121 = vdwg.mxu0
        %3122 = vrot.lane.b32.xlu0 %v1557, 80
        %v3123 = vpop.permute.xlu0 %3122
        %3124 = vrot.lane.b32.xlu0 %v1561, 80
        %v3125 = vpop.permute.xlu0 %3124
        %v3127 = vsel %vm1568, %v3123, 0
        %v3130 = vsel %vm1568, %v3125, 0
        %3132 = vmatprep.subr.bf16.mxu0 0
        %3133 = vmatpush1.bf16.xpose.msra.mxu0 %v3130
        %3134 = vmatprep.subr.bf16.mxu0 0
        %3135 = vmatpush1.bf16.xpose.msra.mxu0 0
        %3136 = vmatprep.subr.bf16.mxu0 0
        %3137 = vmatpush1.bf16.xpose.msra.mxu0 0
        %3138 = vmatprep.subr.bf16.mxu0 0
        %3139 = vmatpush1.bf16.xpose.msra.mxu0 0
        %3140 = vmatprep.subr.bf16.mxu0 0
        %3141 = vmatpush1.bf16.xpose.msra.mxu0 0
        %3142 = vmatprep.subr.bf16.mxu0 0
        %3143 = vmatpush1.bf16.xpose.msra.mxu0 0
        %3144 = vmatprep.subr.bf16.mxu0 0
        %3145 = vmatpush1.bf16.xpose.msra.mxu0 0
        %3146 = vmatprep.subr.bf16.mxu0 0
        %3147 = vmatpush1.bf16.xpose.msra.mxu0 0
        %3148 = vmatprep.subr.bf16.mxu0 0
        %3149 = vmatpush1.bf16.xpose.msra.mxu0 0
        %3150 = vmatprep.subr.bf16.mxu0 0
        %3151 = vmatpush1.bf16.xpose.msra.mxu0 0
        %3152 = vmatprep.subr.bf16.mxu0 0
        %3153 = vmatpush1.bf16.xpose.msra.mxu0 0
        %3154 = vmatprep.subr.bf16.mxu0 0
        %3155 = vmatpush1.bf16.xpose.msra.mxu0 0
        %3156 = vmatprep.subr.bf16.mxu0 0
        %3157 = vmatpush1.bf16.xpose.msra.mxu0 0
        %3158 = vmatprep.subr.bf16.mxu0 0
        %3159 = vmatpush1.bf16.xpose.msra.mxu0 0
        %3160 = vmatprep.subr.bf16.mxu0 0
        %3161 = vmatpush1.bf16.xpose.msra.mxu0 0
        %3162 = vmatprep.subr.bf16.mxu0 0
        %3163 = vmatpush1.bf16.xpose.msra.mxu0 0
        %3164 = vmatprep.mubr.bf16.mxu0 0
        %3165 = vmatmul.mubr.bf16.gmra.mrb[0].mxu0 %v3127
        %v3166 = vpop.f32.mrb[0].mxu0
        %v3167 = vadd.f32 0.0, %v3166
        %v3168 = vpop.f32.mrb[0].mxu0
        %v3169 = vpop.f32.mrb[0].mxu0
        %v3170 = vpop.f32.mrb[0].mxu0
        %3171 = vdwg.mxu0
        %3172 = vrot.lane.b32.xlu0 %v1558, 80
        %v3173 = vpop.permute.xlu0 %3172
        %3174 = vrot.lane.b32.xlu0 %v1562, 80
        %v3175 = vpop.permute.xlu0 %3174
        %v3177 = vsel %vm1568, %v3173, 0
        %v3180 = vsel %vm1568, %v3175, 0
        %3182 = vmatprep.subr.bf16.mxu0 0
        %3183 = vmatpush1.bf16.xpose.msra.mxu0 %v3180
        %3184 = vmatprep.subr.bf16.mxu0 0
        %3185 = vmatpush1.bf16.xpose.msra.mxu0 0
        %3186 = vmatprep.subr.bf16.mxu0 0
        %3187 = vmatpush1.bf16.xpose.msra.mxu0 0
        %3188 = vmatprep.subr.bf16.mxu0 0
        %3189 = vmatpush1.bf16.xpose.msra.mxu0 0
        %3190 = vmatprep.subr.bf16.mxu0 0
        %3191 = vmatpush1.bf16.xpose.msra.mxu0 0
        %3192 = vmatprep.subr.bf16.mxu0 0
        %3193 = vmatpush1.bf16.xpose.msra.mxu0 0
        %3194 = vmatprep.subr.bf16.mxu0 0
        %3195 = vmatpush1.bf16.xpose.msra.mxu0 0
        %3196 = vmatprep.subr.bf16.mxu0 0
        %3197 = vmatpush1.bf16.xpose.msra.mxu0 0
        %3198 = vmatprep.subr.bf16.mxu0 0
        %3199 = vmatpush1.bf16.xpose.msra.mxu0 0
        %3200 = vmatprep.subr.bf16.mxu0 0
        %3201 = vmatpush1.bf16.xpose.msra.mxu0 0
        %3202 = vmatprep.subr.bf16.mxu0 0
        %3203 = vmatpush1.bf16.xpose.msra.mxu0 0
        %3204 = vmatprep.subr.bf16.mxu0 0
        %3205 = vmatpush1.bf16.xpose.msra.mxu0 0
        %3206 = vmatprep.subr.bf16.mxu0 0
        %3207 = vmatpush1.bf16.xpose.msra.mxu0 0
        %3208 = vmatprep.subr.bf16.mxu0 0
        %3209 = vmatpush1.bf16.xpose.msra.mxu0 0
        %3210 = vmatprep.subr.bf16.mxu0 0
        %3211 = vmatpush1.bf16.xpose.msra.mxu0 0
        %3212 = vmatprep.subr.bf16.mxu0 0
        %3213 = vmatpush1.bf16.xpose.msra.mxu0 0
        %3214 = vmatprep.mubr.bf16.mxu0 0
        %3215 = vmatmul.mubr.bf16.gmra.mrb[0].mxu0 %v3177
        %v3216 = vpop.f32.mrb[0].mxu0
        %v3217 = vadd.f32 0.0, %v3216
        %v3218 = vpop.f32.mrb[0].mxu0
        %v3219 = vpop.f32.mrb[0].mxu0
        %v3220 = vpop.f32.mrb[0].mxu0
        %3221 = vdwg.mxu0
        %3222 = vrot.lane.b32.xlu0 %v1559, 80
        %v3223 = vpop.permute.xlu0 %3222
        %3224 = vrot.lane.b32.xlu0 %v1563, 80
        %v3225 = vpop.permute.xlu0 %3224
        %v3227 = vsel %vm1568, %v3223, 0
        %v3230 = vsel %vm1568, %v3225, 0
        %3232 = vmatprep.subr.bf16.mxu0 0
        %3233 = vmatpush1.bf16.xpose.msra.mxu0 %v3230
        %3234 = vmatprep.subr.bf16.mxu0 0
        %3235 = vmatpush1.bf16.xpose.msra.mxu0 0
        %3236 = vmatprep.subr.bf16.mxu0 0
        %3237 = vmatpush1.bf16.xpose.msra.mxu0 0
        %3238 = vmatprep.subr.bf16.mxu0 0
        %3239 = vmatpush1.bf16.xpose.msra.mxu0 0
        %3240 = vmatprep.subr.bf16.mxu0 0
        %3241 = vmatpush1.bf16.xpose.msra.mxu0 0
        %3242 = vmatprep.subr.bf16.mxu0 0
        %3243 = vmatpush1.bf16.xpose.msra.mxu0 0
        %3244 = vmatprep.subr.bf16.mxu0 0
        %3245 = vmatpush1.bf16.xpose.msra.mxu0 0
        %3246 = vmatprep.subr.bf16.mxu0 0
        %3247 = vmatpush1.bf16.xpose.msra.mxu0 0
        %3248 = vmatprep.subr.bf16.mxu0 0
        %3249 = vmatpush1.bf16.xpose.msra.mxu0 0
        %3250 = vmatprep.subr.bf16.mxu0 0
        %3251 = vmatpush1.bf16.xpose.msra.mxu0 0
        %3252 = vmatprep.subr.bf16.mxu0 0
        %3253 = vmatpush1.bf16.xpose.msra.mxu0 0
        %3254 = vmatprep.subr.bf16.mxu0 0
        %3255 = vmatpush1.bf16.xpose.msra.mxu0 0
        %3256 = vmatprep.subr.bf16.mxu0 0
        %3257 = vmatpush1.bf16.xpose.msra.mxu0 0
        %3258 = vmatprep.subr.bf16.mxu0 0
        %3259 = vmatpush1.bf16.xpose.msra.mxu0 0
        %3260 = vmatprep.subr.bf16.mxu0 0
        %3261 = vmatpush1.bf16.xpose.msra.mxu0 0
        %3262 = vmatprep.subr.bf16.mxu0 0
        %3263 = vmatpush1.bf16.xpose.msra.mxu0 0
        %3264 = vmatprep.mubr.bf16.mxu0 0
        %3265 = vmatmul.mubr.bf16.gmra.mrb[0].mxu0 %v3227
        %v3266 = vpop.f32.mrb[0].mxu0
        %v3267 = vadd.f32 0.0, %v3266
        %v3268 = vpop.f32.mrb[0].mxu0
        %v3269 = vpop.f32.mrb[0].mxu0
        %v3270 = vpop.f32.mrb[0].mxu0
        %3271 = vdwg.mxu0
        %v3272 = vsel %vm1753, %v3117, -inf
        %3273 = vmax.xlane.f32.xlu0 %v3272
        %v3274 = vpop.xlane.xlu0 %3273
        %v3275 = vsel %vm1753, %v3167, -inf
        %3276 = vmax.xlane.f32.xlu0 %v3275
        %v3277 = vpop.xlane.xlu0 %3276
        %v3278 = vsel %vm1753, %v3217, -inf
        %3279 = vmax.xlane.f32.xlu0 %v3278
        %v3280 = vpop.xlane.xlu0 %3279
        %v3281 = vsel %vm1753, %v3267, -inf
        %3282 = vmax.xlane.f32.xlu0 %v3281
        %v3283 = vpop.xlane.xlu0 %3282
        %v3284 = vsub.f32 %v3117, %v3274
        %v3285 = vsub.f32 %v3167, %v3277
        %v3286 = vsub.f32 %v3217, %v3280
        %v3287 = vsub.f32 %v3267, %v3283
        %v3288 = vmul.f32 %v3284, 1.442695
        %v3289 = vpow.pop %v3288
        %v3290 = vmul.f32 %v3285, 1.442695
        %v3291 = vpow.pop %v3290
        %v3292 = vmul.f32 %v3286, 1.442695
        %v3293 = vpow.pop %v3292
        %v3294 = vmul.f32 %v3287, 1.442695
        %v3295 = vpow.pop %v3294
        %v3296 = vsel %vm1753, %v3289, 0.0
        %3297 = vadd.xlane.f32.xlu0 %v3296
        %v3298 = vpop.xlane.xlu0 %3297
        %v3299 = vsel %vm1753, %v3291, 0.0
        %3300 = vadd.xlane.f32.xlu0 %v3299
        %v3301 = vpop.xlane.xlu0 %3300
        %v3302 = vsel %vm1753, %v3293, 0.0
        %3303 = vadd.xlane.f32.xlu0 %v3302
        %v3304 = vpop.xlane.xlu0 %3303
        %v3305 = vsel %vm1753, %v3295, 0.0
        %3306 = vadd.xlane.f32.xlu0 %v3305
        %v3307 = vpop.xlane.xlu0 %3306
        %v3308 = vrcp.pop %v3298
        %v3309 = vrcp.pop %v3301
        %v3310 = vrcp.pop %v3304
        %v3311 = vrcp.pop %v3307
        %v3312 = vmul.f32 %v3289, %v3308
        %v3313 = vmul.f32 %v3291, %v3309
        %v3314 = vmul.f32 %v3293, %v3310
        %v3315 = vmul.f32 %v3295, %v3311
        %v3316 = vpack.c.bf16 %v3312, %v3312
        %v3317 = vpack.c.bf16 %v3313, %v3313
        %v3318 = vpack.c.bf16 %v3314, %v3314
        %v3319 = vpack.c.bf16 %v3315, %v3315
        %3320 = vrot.lane.b32.xlu0 %v1564, 80
        %v3321 = vpop.permute.xlu0 %3320
        %v3323 = vsel %vm1753, %v3316, 0
        %v3326 = vsel %vm1805, %v3321, 0
        %3328 = vmatprep.subr.bf16.mxu0 0
        %3329 = vmatpush1.bf16.msra.mxu0 %v3326
        %3330 = vmatprep.subr.bf16.mxu0 0
        %3331 = vmatpush1.bf16.msra.mxu0 0
        %3332 = vmatprep.subr.bf16.mxu0 0
        %3333 = vmatpush1.bf16.msra.mxu0 0
        %3334 = vmatprep.subr.bf16.mxu0 0
        %3335 = vmatpush1.bf16.msra.mxu0 0
        %3336 = vmatprep.subr.bf16.mxu0 0
        %3337 = vmatpush1.bf16.msra.mxu0 0
        %3338 = vmatprep.subr.bf16.mxu0 0
        %3339 = vmatpush1.bf16.msra.mxu0 0
        %3340 = vmatprep.subr.bf16.mxu0 0
        %3341 = vmatpush1.bf16.msra.mxu0 0
        %3342 = vmatprep.subr.bf16.mxu0 0
        %3343 = vmatpush1.bf16.msra.mxu0 0
        %3344 = vmatprep.subr.bf16.mxu0 0
        %3345 = vmatpush1.bf16.msra.mxu0 0
        %3346 = vmatprep.subr.bf16.mxu0 0
        %3347 = vmatpush1.bf16.msra.mxu0 0
        %3348 = vmatprep.subr.bf16.mxu0 0
        %3349 = vmatpush1.bf16.msra.mxu0 0
        %3350 = vmatprep.subr.bf16.mxu0 0
        %3351 = vmatpush1.bf16.msra.mxu0 0
        %3352 = vmatprep.subr.bf16.mxu0 0
        %3353 = vmatpush1.bf16.msra.mxu0 0
        %3354 = vmatprep.subr.bf16.mxu0 0
        %3355 = vmatpush1.bf16.msra.mxu0 0
        %3356 = vmatprep.subr.bf16.mxu0 0
        %3357 = vmatpush1.bf16.msra.mxu0 0
        %3358 = vmatprep.subr.bf16.mxu0 0
        %3359 = vmatpush1.bf16.msra.mxu0 0
        %3360 = vmatprep.mubr.bf16.mxu0 0
        %3361 = vmatmul.mubr.bf16.gmra.mrb[0].mxu0 %v3323
        %v3362 = vpop.f32.mrb[0].mxu0
        %v3363 = vadd.f32 0.0, %v3362
        %v3364 = vpop.f32.mrb[0].mxu0
        %v3365 = vpop.f32.mrb[0].mxu0
        %v3366 = vpop.f32.mrb[0].mxu0
        %3367 = vdwg.mxu0
        %3368 = vrot.lane.b32.xlu0 %v1565, 80
        %v3369 = vpop.permute.xlu0 %3368
        %v3371 = vsel %vm1753, %v3317, 0
        %v3374 = vsel %vm1805, %v3369, 0
        %3376 = vmatprep.subr.bf16.mxu0 0
        %3377 = vmatpush1.bf16.msra.mxu0 %v3374
        %3378 = vmatprep.subr.bf16.mxu0 0
        %3379 = vmatpush1.bf16.msra.mxu0 0
        %3380 = vmatprep.subr.bf16.mxu0 0
        %3381 = vmatpush1.bf16.msra.mxu0 0
        %3382 = vmatprep.subr.bf16.mxu0 0
        %3383 = vmatpush1.bf16.msra.mxu0 0
        %3384 = vmatprep.subr.bf16.mxu0 0
        %3385 = vmatpush1.bf16.msra.mxu0 0
        %3386 = vmatprep.subr.bf16.mxu0 0
        %3387 = vmatpush1.bf16.msra.mxu0 0
        %3388 = vmatprep.subr.bf16.mxu0 0
        %3389 = vmatpush1.bf16.msra.mxu0 0
        %3390 = vmatprep.subr.bf16.mxu0 0
        %3391 = vmatpush1.bf16.msra.mxu0 0
        %3392 = vmatprep.subr.bf16.mxu0 0
        %3393 = vmatpush1.bf16.msra.mxu0 0
        %3394 = vmatprep.subr.bf16.mxu0 0
        %3395 = vmatpush1.bf16.msra.mxu0 0
        %3396 = vmatprep.subr.bf16.mxu0 0
        %3397 = vmatpush1.bf16.msra.mxu0 0
        %3398 = vmatprep.subr.bf16.mxu0 0
        %3399 = vmatpush1.bf16.msra.mxu0 0
        %3400 = vmatprep.subr.bf16.mxu0 0
        %3401 = vmatpush1.bf16.msra.mxu0 0
        %3402 = vmatprep.subr.bf16.mxu0 0
        %3403 = vmatpush1.bf16.msra.mxu0 0
        %3404 = vmatprep.subr.bf16.mxu0 0
        %3405 = vmatpush1.bf16.msra.mxu0 0
        %3406 = vmatprep.subr.bf16.mxu0 0
        %3407 = vmatpush1.bf16.msra.mxu0 0
        %3408 = vmatprep.mubr.bf16.mxu0 0
        %3409 = vmatmul.mubr.bf16.gmra.mrb[0].mxu0 %v3371
        %v3410 = vpop.f32.mrb[0].mxu0
        %v3411 = vadd.f32 0.0, %v3410
        %v3412 = vpop.f32.mrb[0].mxu0
        %v3413 = vpop.f32.mrb[0].mxu0
        %v3414 = vpop.f32.mrb[0].mxu0
        %3415 = vdwg.mxu0
        %3416 = vrot.lane.b32.xlu0 %v1566, 80
        %v3417 = vpop.permute.xlu0 %3416
        %v3419 = vsel %vm1753, %v3318, 0
        %v3422 = vsel %vm1805, %v3417, 0
        %3424 = vmatprep.subr.bf16.mxu0 0
        %3425 = vmatpush1.bf16.msra.mxu0 %v3422
        %3426 = vmatprep.subr.bf16.mxu0 0
        %3427 = vmatpush1.bf16.msra.mxu0 0
        %3428 = vmatprep.subr.bf16.mxu0 0
        %3429 = vmatpush1.bf16.msra.mxu0 0
        %3430 = vmatprep.subr.bf16.mxu0 0
        %3431 = vmatpush1.bf16.msra.mxu0 0
        %3432 = vmatprep.subr.bf16.mxu0 0
        %3433 = vmatpush1.bf16.msra.mxu0 0
        %3434 = vmatprep.subr.bf16.mxu0 0
        %3435 = vmatpush1.bf16.msra.mxu0 0
        %3436 = vmatprep.subr.bf16.mxu0 0
        %3437 = vmatpush1.bf16.msra.mxu0 0
        %3438 = vmatprep.subr.bf16.mxu0 0
        %3439 = vmatpush1.bf16.msra.mxu0 0
        %3440 = vmatprep.subr.bf16.mxu0 0
        %3441 = vmatpush1.bf16.msra.mxu0 0
        %3442 = vmatprep.subr.bf16.mxu0 0
        %3443 = vmatpush1.bf16.msra.mxu0 0
        %3444 = vmatprep.subr.bf16.mxu0 0
        %3445 = vmatpush1.bf16.msra.mxu0 0
        %3446 = vmatprep.subr.bf16.mxu0 0
        %3447 = vmatpush1.bf16.msra.mxu0 0
        %3448 = vmatprep.subr.bf16.mxu0 0
        %3449 = vmatpush1.bf16.msra.mxu0 0
        %3450 = vmatprep.subr.bf16.mxu0 0
        %3451 = vmatpush1.bf16.msra.mxu0 0
        %3452 = vmatprep.subr.bf16.mxu0 0
        %3453 = vmatpush1.bf16.msra.mxu0 0
        %3454 = vmatprep.subr.bf16.mxu0 0
        %3455 = vmatpush1.bf16.msra.mxu0 0
        %3456 = vmatprep.mubr.bf16.mxu0 0
        %3457 = vmatmul.mubr.bf16.gmra.mrb[0].mxu0 %v3419
        %v3458 = vpop.f32.mrb[0].mxu0
        %v3459 = vadd.f32 0.0, %v3458
        %v3460 = vpop.f32.mrb[0].mxu0
        %v3461 = vpop.f32.mrb[0].mxu0
        %v3462 = vpop.f32.mrb[0].mxu0
        %3463 = vdwg.mxu0
        %3464 = vrot.lane.b32.xlu0 %v1567, 80
        %v3465 = vpop.permute.xlu0 %3464
        %v3467 = vsel %vm1753, %v3319, 0
        %v3470 = vsel %vm1805, %v3465, 0
        %3472 = vmatprep.subr.bf16.mxu0 0
        %3473 = vmatpush1.bf16.msra.mxu0 %v3470
        %3474 = vmatprep.subr.bf16.mxu0 0
        %3475 = vmatpush1.bf16.msra.mxu0 0
        %3476 = vmatprep.subr.bf16.mxu0 0
        %3477 = vmatpush1.bf16.msra.mxu0 0
        %3478 = vmatprep.subr.bf16.mxu0 0
        %3479 = vmatpush1.bf16.msra.mxu0 0
        %3480 = vmatprep.subr.bf16.mxu0 0
        %3481 = vmatpush1.bf16.msra.mxu0 0
        %3482 = vmatprep.subr.bf16.mxu0 0
        %3483 = vmatpush1.bf16.msra.mxu0 0
        %3484 = vmatprep.subr.bf16.mxu0 0
        %3485 = vmatpush1.bf16.msra.mxu0 0
        %3486 = vmatprep.subr.bf16.mxu0 0
        %3487 = vmatpush1.bf16.msra.mxu0 0
        %3488 = vmatprep.subr.bf16.mxu0 0
        %3489 = vmatpush1.bf16.msra.mxu0 0
        %3490 = vmatprep.subr.bf16.mxu0 0
        %3491 = vmatpush1.bf16.msra.mxu0 0
        %3492 = vmatprep.subr.bf16.mxu0 0
        %3493 = vmatpush1.bf16.msra.mxu0 0
        %3494 = vmatprep.subr.bf16.mxu0 0
        %3495 = vmatpush1.bf16.msra.mxu0 0
        %3496 = vmatprep.subr.bf16.mxu0 0
        %3497 = vmatpush1.bf16.msra.mxu0 0
        %3498 = vmatprep.subr.bf16.mxu0 0
        %3499 = vmatpush1.bf16.msra.mxu0 0
        %3500 = vmatprep.subr.bf16.mxu0 0
        %3501 = vmatpush1.bf16.msra.mxu0 0
        %3502 = vmatprep.subr.bf16.mxu0 0
        %3503 = vmatpush1.bf16.msra.mxu0 0
        %3504 = vmatprep.mubr.bf16.mxu0 0
        %3505 = vmatmul.mubr.bf16.gmra.mrb[0].mxu0 %v3467
        %v3506 = vpop.f32.mrb[0].mxu0
        %v3507 = vadd.f32 0.0, %v3506
        %v3508 = vpop.f32.mrb[0].mxu0
        %v3509 = vpop.f32.mrb[0].mxu0
        %v3510 = vpop.f32.mrb[0].mxu0
        %3511 = vdwg.mxu0
        %v3512 = vpack.c.bf16 %v3411, %v3363
        %v3513 = vpack.c.bf16 %v3507, %v3459
        %v3516 = vunpack.c.l.b16 %v1546
        %v3517 = vunpack.c.l.b16 %v1547
        %v3518 = vpack.c.b16 %v3517, %v3516
        %v3521 = vsel %vm1568, %v3512, 0
        %v3524 = vsel %vm1568, %v3513, 0
        %3526 = vmatprep.subr.bf16.mxu0 0
        %3527 = vmatpush1.bf16.msra.mxu0 %v3518
        %3528 = vmatprep.subr.bf16.mxu0 0
        %3529 = vmatpush1.bf16.msra.mxu0 0
        %3530 = vmatprep.subr.bf16.mxu0 0
        %3531 = vmatpush1.bf16.msra.mxu0 0
        %3532 = vmatprep.subr.bf16.mxu0 0
        %3533 = vmatpush1.bf16.msra.mxu0 0
        %3534 = vmatprep.subr.bf16.mxu0 0
        %3535 = vmatpush1.bf16.msra.mxu0 0
        %3536 = vmatprep.subr.bf16.mxu0 0
        %3537 = vmatpush1.bf16.msra.mxu0 0
        %3538 = vmatprep.subr.bf16.mxu0 0
        %3539 = vmatpush1.bf16.msra.mxu0 0
        %3540 = vmatprep.subr.bf16.mxu0 0
        %3541 = vmatpush1.bf16.msra.mxu0 0
        %3542 = vmatprep.subr.bf16.mxu0 0
        %3543 = vmatpush1.bf16.msra.mxu0 0
        %3544 = vmatprep.subr.bf16.mxu0 0
        %3545 = vmatpush1.bf16.msra.mxu0 0
        %3546 = vmatprep.subr.bf16.mxu0 0
        %3547 = vmatpush1.bf16.msra.mxu0 0
        %3548 = vmatprep.subr.bf16.mxu0 0
        %3549 = vmatpush1.bf16.msra.mxu0 0
        %3550 = vmatprep.subr.bf16.mxu0 0
        %3551 = vmatpush1.bf16.msra.mxu0 0
        %3552 = vmatprep.subr.bf16.mxu0 0
        %3553 = vmatpush1.bf16.msra.mxu0 0
        %3554 = vmatprep.subr.bf16.mxu0 0
        %3555 = vmatpush1.bf16.msra.mxu0 0
        %3556 = vmatprep.subr.bf16.mxu0 0
        %3557 = vmatpush1.bf16.msra.mxu0 0
        %3558 = vmatprep.mubr.bf16.mxu0 0
        %3559 = vmatmul.mubr.bf16.gmra.mrb[0].mxu0 %v3521
        %v3560 = vpop.f32.mrb[0].mxu0
        %v3561 = vadd.f32 0.0, %v3560
        %v3562 = vpop.f32.mrb[0].mxu0
        %v3563 = vpop.f32.mrb[0].mxu0
        %v3564 = vadd.f32 0.0, %v3563
        %v3565 = vpop.f32.mrb[0].mxu0
        %3566 = vmatprep.mubr.bf16.mxu0 0
        %3567 = vmatmul.mubr.bf16.gmra.mrb[0].mxu0 %v3524
        %v3568 = vpop.f32.mrb[0].mxu0
        %v3569 = vadd.f32 0.0, %v3568
        %v3570 = vpop.f32.mrb[0].mxu0
        %v3571 = vpop.f32.mrb[0].mxu0
        %v3572 = vadd.f32 0.0, %v3571
        %v3573 = vpop.f32.mrb[0].mxu0
        %3574 = vdwg.mxu0
        %v3575 = vadd.f32 %v3068, %v3561
        %v3576 = vadd.f32 %v3069, %v3564
        %v3577 = vadd.f32 %v3070, %v3569
        %v3578 = vadd.f32 %v3071, %v3572
        %3579 = vrot.lane.b32.xlu0 %v1556, 64
        %v3580 = vpop.permute.xlu0 %3579
        %3581 = vrot.lane.b32.xlu0 %v1560, 64
        %v3582 = vpop.permute.xlu0 %3581
        %v3584 = vsel %vm1568, %v3580, 0
        %v3587 = vsel %vm1568, %v3582, 0
        %3589 = vmatprep.subr.bf16.mxu0 0
        %3590 = vmatpush1.bf16.xpose.msra.mxu0 %v3587
        %3591 = vmatprep.subr.bf16.mxu0 0
        %3592 = vmatpush1.bf16.xpose.msra.mxu0 0
        %3593 = vmatprep.subr.bf16.mxu0 0
        %3594 = vmatpush1.bf16.xpose.msra.mxu0 0
        %3595 = vmatprep.subr.bf16.mxu0 0
        %3596 = vmatpush1.bf16.xpose.msra.mxu0 0
        %3597 = vmatprep.subr.bf16.mxu0 0
        %3598 = vmatpush1.bf16.xpose.msra.mxu0 0
        %3599 = vmatprep.subr.bf16.mxu0 0
        %3600 = vmatpush1.bf16.xpose.msra.mxu0 0
        %3601 = vmatprep.subr.bf16.mxu0 0
        %3602 = vmatpush1.bf16.xpose.msra.mxu0 0
        %3603 = vmatprep.subr.bf16.mxu0 0
        %3604 = vmatpush1.bf16.xpose.msra.mxu0 0
        %3605 = vmatprep.subr.bf16.mxu0 0
        %3606 = vmatpush1.bf16.xpose.msra.mxu0 0
        %3607 = vmatprep.subr.bf16.mxu0 0
        %3608 = vmatpush1.bf16.xpose.msra.mxu0 0
        %3609 = vmatprep.subr.bf16.mxu0 0
        %3610 = vmatpush1.bf16.xpose.msra.mxu0 0
        %3611 = vmatprep.subr.bf16.mxu0 0
        %3612 = vmatpush1.bf16.xpose.msra.mxu0 0
        %3613 = vmatprep.subr.bf16.mxu0 0
        %3614 = vmatpush1.bf16.xpose.msra.mxu0 0
        %3615 = vmatprep.subr.bf16.mxu0 0
        %3616 = vmatpush1.bf16.xpose.msra.mxu0 0
        %3617 = vmatprep.subr.bf16.mxu0 0
        %3618 = vmatpush1.bf16.xpose.msra.mxu0 0
        %3619 = vmatprep.subr.bf16.mxu0 0
        %3620 = vmatpush1.bf16.xpose.msra.mxu0 0
        %3621 = vmatprep.mubr.bf16.mxu0 0
        %3622 = vmatmul.mubr.bf16.gmra.mrb[0].mxu0 %v3584
        %v3623 = vpop.f32.mrb[0].mxu0
        %v3624 = vadd.f32 0.0, %v3623
        %v3625 = vpop.f32.mrb[0].mxu0
        %v3626 = vpop.f32.mrb[0].mxu0
        %v3627 = vpop.f32.mrb[0].mxu0
        %3628 = vdwg.mxu0
        %3629 = vrot.lane.b32.xlu0 %v1557, 64
        %v3630 = vpop.permute.xlu0 %3629
        %3631 = vrot.lane.b32.xlu0 %v1561, 64
        %v3632 = vpop.permute.xlu0 %3631
        %v3634 = vsel %vm1568, %v3630, 0
        %v3637 = vsel %vm1568, %v3632, 0
        %3639 = vmatprep.subr.bf16.mxu0 0
        %3640 = vmatpush1.bf16.xpose.msra.mxu0 %v3637
        %3641 = vmatprep.subr.bf16.mxu0 0
        %3642 = vmatpush1.bf16.xpose.msra.mxu0 0
        %3643 = vmatprep.subr.bf16.mxu0 0
        %3644 = vmatpush1.bf16.xpose.msra.mxu0 0
        %3645 = vmatprep.subr.bf16.mxu0 0
        %3646 = vmatpush1.bf16.xpose.msra.mxu0 0
        %3647 = vmatprep.subr.bf16.mxu0 0
        %3648 = vmatpush1.bf16.xpose.msra.mxu0 0
        %3649 = vmatprep.subr.bf16.mxu0 0
        %3650 = vmatpush1.bf16.xpose.msra.mxu0 0
        %3651 = vmatprep.subr.bf16.mxu0 0
        %3652 = vmatpush1.bf16.xpose.msra.mxu0 0
        %3653 = vmatprep.subr.bf16.mxu0 0
        %3654 = vmatpush1.bf16.xpose.msra.mxu0 0
        %3655 = vmatprep.subr.bf16.mxu0 0
        %3656 = vmatpush1.bf16.xpose.msra.mxu0 0
        %3657 = vmatprep.subr.bf16.mxu0 0
        %3658 = vmatpush1.bf16.xpose.msra.mxu0 0
        %3659 = vmatprep.subr.bf16.mxu0 0
        %3660 = vmatpush1.bf16.xpose.msra.mxu0 0
        %3661 = vmatprep.subr.bf16.mxu0 0
        %3662 = vmatpush1.bf16.xpose.msra.mxu0 0
        %3663 = vmatprep.subr.bf16.mxu0 0
        %3664 = vmatpush1.bf16.xpose.msra.mxu0 0
        %3665 = vmatprep.subr.bf16.mxu0 0
        %3666 = vmatpush1.bf16.xpose.msra.mxu0 0
        %3667 = vmatprep.subr.bf16.mxu0 0
        %3668 = vmatpush1.bf16.xpose.msra.mxu0 0
        %3669 = vmatprep.subr.bf16.mxu0 0
        %3670 = vmatpush1.bf16.xpose.msra.mxu0 0
        %3671 = vmatprep.mubr.bf16.mxu0 0
        %3672 = vmatmul.mubr.bf16.gmra.mrb[0].mxu0 %v3634
        %v3673 = vpop.f32.mrb[0].mxu0
        %v3674 = vadd.f32 0.0, %v3673
        %v3675 = vpop.f32.mrb[0].mxu0
        %v3676 = vpop.f32.mrb[0].mxu0
        %v3677 = vpop.f32.mrb[0].mxu0
        %3678 = vdwg.mxu0
        %3679 = vrot.lane.b32.xlu0 %v1558, 64
        %v3680 = vpop.permute.xlu0 %3679
        %3681 = vrot.lane.b32.xlu0 %v1562, 64
        %v3682 = vpop.permute.xlu0 %3681
        %v3684 = vsel %vm1568, %v3680, 0
        %v3687 = vsel %vm1568, %v3682, 0
        %3689 = vmatprep.subr.bf16.mxu0 0
        %3690 = vmatpush1.bf16.xpose.msra.mxu0 %v3687
        %3691 = vmatprep.subr.bf16.mxu0 0
        %3692 = vmatpush1.bf16.xpose.msra.mxu0 0
        %3693 = vmatprep.subr.bf16.mxu0 0
        %3694 = vmatpush1.bf16.xpose.msra.mxu0 0
        %3695 = vmatprep.subr.bf16.mxu0 0
        %3696 = vmatpush1.bf16.xpose.msra.mxu0 0
        %3697 = vmatprep.subr.bf16.mxu0 0
        %3698 = vmatpush1.bf16.xpose.msra.mxu0 0
        %3699 = vmatprep.subr.bf16.mxu0 0
        %3700 = vmatpush1.bf16.xpose.msra.mxu0 0
        %3701 = vmatprep.subr.bf16.mxu0 0
        %3702 = vmatpush1.bf16.xpose.msra.mxu0 0
        %3703 = vmatprep.subr.bf16.mxu0 0
        %3704 = vmatpush1.bf16.xpose.msra.mxu0 0
        %3705 = vmatprep.subr.bf16.mxu0 0
        %3706 = vmatpush1.bf16.xpose.msra.mxu0 0
        %3707 = vmatprep.subr.bf16.mxu0 0
        %3708 = vmatpush1.bf16.xpose.msra.mxu0 0
        %3709 = vmatprep.subr.bf16.mxu0 0
        %3710 = vmatpush1.bf16.xpose.msra.mxu0 0
        %3711 = vmatprep.subr.bf16.mxu0 0
        %3712 = vmatpush1.bf16.xpose.msra.mxu0 0
        %3713 = vmatprep.subr.bf16.mxu0 0
        %3714 = vmatpush1.bf16.xpose.msra.mxu0 0
        %3715 = vmatprep.subr.bf16.mxu0 0
        %3716 = vmatpush1.bf16.xpose.msra.mxu0 0
        %3717 = vmatprep.subr.bf16.mxu0 0
        %3718 = vmatpush1.bf16.xpose.msra.mxu0 0
        %3719 = vmatprep.subr.bf16.mxu0 0
        %3720 = vmatpush1.bf16.xpose.msra.mxu0 0
        %3721 = vmatprep.mubr.bf16.mxu0 0
        %3722 = vmatmul.mubr.bf16.gmra.mrb[0].mxu0 %v3684
        %v3723 = vpop.f32.mrb[0].mxu0
        %v3724 = vadd.f32 0.0, %v3723
        %v3725 = vpop.f32.mrb[0].mxu0
        %v3726 = vpop.f32.mrb[0].mxu0
        %v3727 = vpop.f32.mrb[0].mxu0
        %3728 = vdwg.mxu0
        %3729 = vrot.lane.b32.xlu0 %v1559, 64
        %v3730 = vpop.permute.xlu0 %3729
        %3731 = vrot.lane.b32.xlu0 %v1563, 64
        %v3732 = vpop.permute.xlu0 %3731
        %v3734 = vsel %vm1568, %v3730, 0
        %v3737 = vsel %vm1568, %v3732, 0
        %3739 = vmatprep.subr.bf16.mxu0 0
        %3740 = vmatpush1.bf16.xpose.msra.mxu0 %v3737
        %3741 = vmatprep.subr.bf16.mxu0 0
        %3742 = vmatpush1.bf16.xpose.msra.mxu0 0
        %3743 = vmatprep.subr.bf16.mxu0 0
        %3744 = vmatpush1.bf16.xpose.msra.mxu0 0
        %3745 = vmatprep.subr.bf16.mxu0 0
        %3746 = vmatpush1.bf16.xpose.msra.mxu0 0
        %3747 = vmatprep.subr.bf16.mxu0 0
        %3748 = vmatpush1.bf16.xpose.msra.mxu0 0
        %3749 = vmatprep.subr.bf16.mxu0 0
        %3750 = vmatpush1.bf16.xpose.msra.mxu0 0
        %3751 = vmatprep.subr.bf16.mxu0 0
        %3752 = vmatpush1.bf16.xpose.msra.mxu0 0
        %3753 = vmatprep.subr.bf16.mxu0 0
        %3754 = vmatpush1.bf16.xpose.msra.mxu0 0
        %3755 = vmatprep.subr.bf16.mxu0 0
        %3756 = vmatpush1.bf16.xpose.msra.mxu0 0
        %3757 = vmatprep.subr.bf16.mxu0 0
        %3758 = vmatpush1.bf16.xpose.msra.mxu0 0
        %3759 = vmatprep.subr.bf16.mxu0 0
        %3760 = vmatpush1.bf16.xpose.msra.mxu0 0
        %3761 = vmatprep.subr.bf16.mxu0 0
        %3762 = vmatpush1.bf16.xpose.msra.mxu0 0
        %3763 = vmatprep.subr.bf16.mxu0 0
        %3764 = vmatpush1.bf16.xpose.msra.mxu0 0
        %3765 = vmatprep.subr.bf16.mxu0 0
        %3766 = vmatpush1.bf16.xpose.msra.mxu0 0
        %3767 = vmatprep.subr.bf16.mxu0 0
        %3768 = vmatpush1.bf16.xpose.msra.mxu0 0
        %3769 = vmatprep.subr.bf16.mxu0 0
        %3770 = vmatpush1.bf16.xpose.msra.mxu0 0
        %3771 = vmatprep.mubr.bf16.mxu0 0
        %3772 = vmatmul.mubr.bf16.gmra.mrb[0].mxu0 %v3734
        %v3773 = vpop.f32.mrb[0].mxu0
        %v3774 = vadd.f32 0.0, %v3773
        %v3775 = vpop.f32.mrb[0].mxu0
        %v3776 = vpop.f32.mrb[0].mxu0
        %v3777 = vpop.f32.mrb[0].mxu0
        %3778 = vdwg.mxu0
        %v3779 = vsel %vm1753, %v3624, -inf
        %3780 = vmax.xlane.f32.xlu0 %v3779
        %v3781 = vpop.xlane.xlu0 %3780
        %v3782 = vsel %vm1753, %v3674, -inf
        %3783 = vmax.xlane.f32.xlu0 %v3782
        %v3784 = vpop.xlane.xlu0 %3783
        %v3785 = vsel %vm1753, %v3724, -inf
        %3786 = vmax.xlane.f32.xlu0 %v3785
        %v3787 = vpop.xlane.xlu0 %3786
        %v3788 = vsel %vm1753, %v3774, -inf
        %3789 = vmax.xlane.f32.xlu0 %v3788
        %v3790 = vpop.xlane.xlu0 %3789
        %v3791 = vsub.f32 %v3624, %v3781
        %v3792 = vsub.f32 %v3674, %v3784
        %v3793 = vsub.f32 %v3724, %v3787
        %v3794 = vsub.f32 %v3774, %v3790
        %v3795 = vmul.f32 %v3791, 1.442695
        %v3796 = vpow.pop %v3795
        %v3797 = vmul.f32 %v3792, 1.442695
        %v3798 = vpow.pop %v3797
        %v3799 = vmul.f32 %v3793, 1.442695
        %v3800 = vpow.pop %v3799
        %v3801 = vmul.f32 %v3794, 1.442695
        %v3802 = vpow.pop %v3801
        %v3803 = vsel %vm1753, %v3796, 0.0
        %3804 = vadd.xlane.f32.xlu0 %v3803
        %v3805 = vpop.xlane.xlu0 %3804
        %v3806 = vsel %vm1753, %v3798, 0.0
        %3807 = vadd.xlane.f32.xlu0 %v3806
        %v3808 = vpop.xlane.xlu0 %3807
        %v3809 = vsel %vm1753, %v3800, 0.0
        %3810 = vadd.xlane.f32.xlu0 %v3809
        %v3811 = vpop.xlane.xlu0 %3810
        %v3812 = vsel %vm1753, %v3802, 0.0
        %3813 = vadd.xlane.f32.xlu0 %v3812
        %v3814 = vpop.xlane.xlu0 %3813
        %v3815 = vrcp.pop %v3805
        %v3816 = vrcp.pop %v3808
        %v3817 = vrcp.pop %v3811
        %v3818 = vrcp.pop %v3814
        %v3819 = vmul.f32 %v3796, %v3815
        %v3820 = vmul.f32 %v3798, %v3816
        %v3821 = vmul.f32 %v3800, %v3817
        %v3822 = vmul.f32 %v3802, %v3818
        %v3823 = vpack.c.bf16 %v3819, %v3819
        %v3824 = vpack.c.bf16 %v3820, %v3820
        %v3825 = vpack.c.bf16 %v3821, %v3821
        %v3826 = vpack.c.bf16 %v3822, %v3822
        %3827 = vrot.lane.b32.xlu0 %v1564, 64
        %v3828 = vpop.permute.xlu0 %3827
        %v3830 = vsel %vm1753, %v3823, 0
        %v3833 = vsel %vm1805, %v3828, 0
        %3835 = vmatprep.subr.bf16.mxu0 0
        %3836 = vmatpush1.bf16.msra.mxu0 %v3833
        %3837 = vmatprep.subr.bf16.mxu0 0
        %3838 = vmatpush1.bf16.msra.mxu0 0
        %3839 = vmatprep.subr.bf16.mxu0 0
        %3840 = vmatpush1.bf16.msra.mxu0 0
        %3841 = vmatprep.subr.bf16.mxu0 0
        %3842 = vmatpush1.bf16.msra.mxu0 0
        %3843 = vmatprep.subr.bf16.mxu0 0
        %3844 = vmatpush1.bf16.msra.mxu0 0
        %3845 = vmatprep.subr.bf16.mxu0 0
        %3846 = vmatpush1.bf16.msra.mxu0 0
        %3847 = vmatprep.subr.bf16.mxu0 0
        %3848 = vmatpush1.bf16.msra.mxu0 0
        %3849 = vmatprep.subr.bf16.mxu0 0
        %3850 = vmatpush1.bf16.msra.mxu0 0
        %3851 = vmatprep.subr.bf16.mxu0 0
        %3852 = vmatpush1.bf16.msra.mxu0 0
        %3853 = vmatprep.subr.bf16.mxu0 0
        %3854 = vmatpush1.bf16.msra.mxu0 0
        %3855 = vmatprep.subr.bf16.mxu0 0
        %3856 = vmatpush1.bf16.msra.mxu0 0
        %3857 = vmatprep.subr.bf16.mxu0 0
        %3858 = vmatpush1.bf16.msra.mxu0 0
        %3859 = vmatprep.subr.bf16.mxu0 0
        %3860 = vmatpush1.bf16.msra.mxu0 0
        %3861 = vmatprep.subr.bf16.mxu0 0
        %3862 = vmatpush1.bf16.msra.mxu0 0
        %3863 = vmatprep.subr.bf16.mxu0 0
        %3864 = vmatpush1.bf16.msra.mxu0 0
        %3865 = vmatprep.subr.bf16.mxu0 0
        %3866 = vmatpush1.bf16.msra.mxu0 0
        %3867 = vmatprep.mubr.bf16.mxu0 0
        %3868 = vmatmul.mubr.bf16.gmra.mrb[0].mxu0 %v3830
        %v3869 = vpop.f32.mrb[0].mxu0
        %v3870 = vadd.f32 0.0, %v3869
        %v3871 = vpop.f32.mrb[0].mxu0
        %v3872 = vpop.f32.mrb[0].mxu0
        %v3873 = vpop.f32.mrb[0].mxu0
        %3874 = vdwg.mxu0
        %3875 = vrot.lane.b32.xlu0 %v1565, 64
        %v3876 = vpop.permute.xlu0 %3875
        %v3878 = vsel %vm1753, %v3824, 0
        %v3881 = vsel %vm1805, %v3876, 0
        %3883 = vmatprep.subr.bf16.mxu0 0
        %3884 = vmatpush1.bf16.msra.mxu0 %v3881
        %3885 = vmatprep.subr.bf16.mxu0 0
        %3886 = vmatpush1.bf16.msra.mxu0 0
        %3887 = vmatprep.subr.bf16.mxu0 0
        %3888 = vmatpush1.bf16.msra.mxu0 0
        %3889 = vmatprep.subr.bf16.mxu0 0
        %3890 = vmatpush1.bf16.msra.mxu0 0
        %3891 = vmatprep.subr.bf16.mxu0 0
        %3892 = vmatpush1.bf16.msra.mxu0 0
        %3893 = vmatprep.subr.bf16.mxu0 0
        %3894 = vmatpush1.bf16.msra.mxu0 0
        %3895 = vmatprep.subr.bf16.mxu0 0
        %3896 = vmatpush1.bf16.msra.mxu0 0
        %3897 = vmatprep.subr.bf16.mxu0 0
        %3898 = vmatpush1.bf16.msra.mxu0 0
        %3899 = vmatprep.subr.bf16.mxu0 0
        %3900 = vmatpush1.bf16.msra.mxu0 0
        %3901 = vmatprep.subr.bf16.mxu0 0
        %3902 = vmatpush1.bf16.msra.mxu0 0
        %3903 = vmatprep.subr.bf16.mxu0 0
        %3904 = vmatpush1.bf16.msra.mxu0 0
        %3905 = vmatprep.subr.bf16.mxu0 0
        %3906 = vmatpush1.bf16.msra.mxu0 0
        %3907 = vmatprep.subr.bf16.mxu0 0
        %3908 = vmatpush1.bf16.msra.mxu0 0
        %3909 = vmatprep.subr.bf16.mxu0 0
        %3910 = vmatpush1.bf16.msra.mxu0 0
        %3911 = vmatprep.subr.bf16.mxu0 0
        %3912 = vmatpush1.bf16.msra.mxu0 0
        %3913 = vmatprep.subr.bf16.mxu0 0
        %3914 = vmatpush1.bf16.msra.mxu0 0
        %3915 = vmatprep.mubr.bf16.mxu0 0
        %3916 = vmatmul.mubr.bf16.gmra.mrb[0].mxu0 %v3878
        %v3917 = vpop.f32.mrb[0].mxu0
        %v3918 = vadd.f32 0.0, %v3917
        %v3919 = vpop.f32.mrb[0].mxu0
        %v3920 = vpop.f32.mrb[0].mxu0
        %v3921 = vpop.f32.mrb[0].mxu0
        %3922 = vdwg.mxu0
        %3923 = vrot.lane.b32.xlu0 %v1566, 64
        %v3924 = vpop.permute.xlu0 %3923
        %v3926 = vsel %vm1753, %v3825, 0
        %v3929 = vsel %vm1805, %v3924, 0
        %3931 = vmatprep.subr.bf16.mxu0 0
        %3932 = vmatpush1.bf16.msra.mxu0 %v3929
        %3933 = vmatprep.subr.bf16.mxu0 0
        %3934 = vmatpush1.bf16.msra.mxu0 0
        %3935 = vmatprep.subr.bf16.mxu0 0
        %3936 = vmatpush1.bf16.msra.mxu0 0
        %3937 = vmatprep.subr.bf16.mxu0 0
        %3938 = vmatpush1.bf16.msra.mxu0 0
        %3939 = vmatprep.subr.bf16.mxu0 0
        %3940 = vmatpush1.bf16.msra.mxu0 0
        %3941 = vmatprep.subr.bf16.mxu0 0
        %3942 = vmatpush1.bf16.msra.mxu0 0
        %3943 = vmatprep.subr.bf16.mxu0 0
        %3944 = vmatpush1.bf16.msra.mxu0 0
        %3945 = vmatprep.subr.bf16.mxu0 0
        %3946 = vmatpush1.bf16.msra.mxu0 0
        %3947 = vmatprep.subr.bf16.mxu0 0
        %3948 = vmatpush1.bf16.msra.mxu0 0
        %3949 = vmatprep.subr.bf16.mxu0 0
        %3950 = vmatpush1.bf16.msra.mxu0 0
        %3951 = vmatprep.subr.bf16.mxu0 0
        %3952 = vmatpush1.bf16.msra.mxu0 0
        %3953 = vmatprep.subr.bf16.mxu0 0
        %3954 = vmatpush1.bf16.msra.mxu0 0
        %3955 = vmatprep.subr.bf16.mxu0 0
        %3956 = vmatpush1.bf16.msra.mxu0 0
        %3957 = vmatprep.subr.bf16.mxu0 0
        %3958 = vmatpush1.bf16.msra.mxu0 0
        %3959 = vmatprep.subr.bf16.mxu0 0
        %3960 = vmatpush1.bf16.msra.mxu0 0
        %3961 = vmatprep.subr.bf16.mxu0 0
        %3962 = vmatpush1.bf16.msra.mxu0 0
        %3963 = vmatprep.mubr.bf16.mxu0 0
        %3964 = vmatmul.mubr.bf16.gmra.mrb[0].mxu0 %v3926
        %v3965 = vpop.f32.mrb[0].mxu0
        %v3966 = vadd.f32 0.0, %v3965
        %v3967 = vpop.f32.mrb[0].mxu0
        %v3968 = vpop.f32.mrb[0].mxu0
        %v3969 = vpop.f32.mrb[0].mxu0
        %3970 = vdwg.mxu0
        %3971 = vrot.lane.b32.xlu0 %v1567, 64
        %v3972 = vpop.permute.xlu0 %3971
        %v3974 = vsel %vm1753, %v3826, 0
        %v3977 = vsel %vm1805, %v3972, 0
        %3979 = vmatprep.subr.bf16.mxu0 0
        %3980 = vmatpush1.bf16.msra.mxu0 %v3977
        %3981 = vmatprep.subr.bf16.mxu0 0
        %3982 = vmatpush1.bf16.msra.mxu0 0
        %3983 = vmatprep.subr.bf16.mxu0 0
        %3984 = vmatpush1.bf16.msra.mxu0 0
        %3985 = vmatprep.subr.bf16.mxu0 0
        %3986 = vmatpush1.bf16.msra.mxu0 0
        %3987 = vmatprep.subr.bf16.mxu0 0
        %3988 = vmatpush1.bf16.msra.mxu0 0
        %3989 = vmatprep.subr.bf16.mxu0 0
        %3990 = vmatpush1.bf16.msra.mxu0 0
        %3991 = vmatprep.subr.bf16.mxu0 0
        %3992 = vmatpush1.bf16.msra.mxu0 0
        %3993 = vmatprep.subr.bf16.mxu0 0
        %3994 = vmatpush1.bf16.msra.mxu0 0
        %3995 = vmatprep.subr.bf16.mxu0 0
        %3996 = vmatpush1.bf16.msra.mxu0 0
        %3997 = vmatprep.subr.bf16.mxu0 0
        %3998 = vmatpush1.bf16.msra.mxu0 0
        %3999 = vmatprep.subr.bf16.mxu0 0
        %4000 = vmatpush1.bf16.msra.mxu0 0
        %4001 = vmatprep.subr.bf16.mxu0 0
        %4002 = vmatpush1.bf16.msra.mxu0 0
        %4003 = vmatprep.subr.bf16.mxu0 0
        %4004 = vmatpush1.bf16.msra.mxu0 0
        %4005 = vmatprep.subr.bf16.mxu0 0
        %4006 = vmatpush1.bf16.msra.mxu0 0
        %4007 = vmatprep.subr.bf16.mxu0 0
        %4008 = vmatpush1.bf16.msra.mxu0 0
        %4009 = vmatprep.subr.bf16.mxu0 0
        %4010 = vmatpush1.bf16.msra.mxu0 0
        %4011 = vmatprep.mubr.bf16.mxu0 0
        %4012 = vmatmul.mubr.bf16.gmra.mrb[0].mxu0 %v3974
        %v4013 = vpop.f32.mrb[0].mxu0
        %v4014 = vadd.f32 0.0, %v4013
        %v4015 = vpop.f32.mrb[0].mxu0
        %v4016 = vpop.f32.mrb[0].mxu0
        %v4017 = vpop.f32.mrb[0].mxu0
        %4018 = vdwg.mxu0
        %v4019 = vpack.c.bf16 %v3918, %v3870
        %v4020 = vpack.c.bf16 %v4014, %v3966
        %v4023 = vunpack.c.l.b16 %v1548
        %v4024 = vunpack.c.l.b16 %v1549
        %v4025 = vpack.c.b16 %v4024, %v4023
        %v4028 = vsel %vm1568, %v4019, 0
        %v4031 = vsel %vm1568, %v4020, 0
        %4033 = vmatprep.subr.bf16.mxu0 0
        %4034 = vmatpush1.bf16.msra.mxu0 %v4025
        %4035 = vmatprep.subr.bf16.mxu0 0
        %4036 = vmatpush1.bf16.msra.mxu0 0
        %4037 = vmatprep.subr.bf16.mxu0 0
        %4038 = vmatpush1.bf16.msra.mxu0 0
        %4039 = vmatprep.subr.bf16.mxu0 0
        %4040 = vmatpush1.bf16.msra.mxu0 0
        %4041 = vmatprep.subr.bf16.mxu0 0
        %4042 = vmatpush1.bf16.msra.mxu0 0
        %4043 = vmatprep.subr.bf16.mxu0 0
        %4044 = vmatpush1.bf16.msra.mxu0 0
        %4045 = vmatprep.subr.bf16.mxu0 0
        %4046 = vmatpush1.bf16.msra.mxu0 0
        %4047 = vmatprep.subr.bf16.mxu0 0
        %4048 = vmatpush1.bf16.msra.mxu0 0
        %4049 = vmatprep.subr.bf16.mxu0 0
        %4050 = vmatpush1.bf16.msra.mxu0 0
        %4051 = vmatprep.subr.bf16.mxu0 0
        %4052 = vmatpush1.bf16.msra.mxu0 0
        %4053 = vmatprep.subr.bf16.mxu0 0
        %4054 = vmatpush1.bf16.msra.mxu0 0
        %4055 = vmatprep.subr.bf16.mxu0 0
        %4056 = vmatpush1.bf16.msra.mxu0 0
        %4057 = vmatprep.subr.bf16.mxu0 0
        %4058 = vmatpush1.bf16.msra.mxu0 0
        %4059 = vmatprep.subr.bf16.mxu0 0
        %4060 = vmatpush1.bf16.msra.mxu0 0
        %4061 = vmatprep.subr.bf16.mxu0 0
        %4062 = vmatpush1.bf16.msra.mxu0 0
        %4063 = vmatprep.subr.bf16.mxu0 0
        %4064 = vmatpush1.bf16.msra.mxu0 0
        %4065 = vmatprep.mubr.bf16.mxu0 0
        %4066 = vmatmul.mubr.bf16.gmra.mrb[0].mxu0 %v4028
        %v4067 = vpop.f32.mrb[0].mxu0
        %v4068 = vadd.f32 0.0, %v4067
        %v4069 = vpop.f32.mrb[0].mxu0
        %v4070 = vpop.f32.mrb[0].mxu0
        %v4071 = vadd.f32 0.0, %v4070
        %v4072 = vpop.f32.mrb[0].mxu0
        %4073 = vmatprep.mubr.bf16.mxu0 0
        %4074 = vmatmul.mubr.bf16.gmra.mrb[0].mxu0 %v4031
        %v4075 = vpop.f32.mrb[0].mxu0
        %v4076 = vadd.f32 0.0, %v4075
        %v4077 = vpop.f32.mrb[0].mxu0
        %v4078 = vpop.f32.mrb[0].mxu0
        %v4079 = vadd.f32 0.0, %v4078
        %v4080 = vpop.f32.mrb[0].mxu0
        %4081 = vdwg.mxu0
        %v4082 = vadd.f32 %v3575, %v4068
        %v4083 = vadd.f32 %v3576, %v4071
        %v4084 = vadd.f32 %v3577, %v4076
        %v4085 = vadd.f32 %v3578, %v4079
        %4086 = vrot.lane.b32.xlu0 %v1556, 48
        %v4087 = vpop.permute.xlu0 %4086
        %4088 = vrot.lane.b32.xlu0 %v1560, 48
        %v4089 = vpop.permute.xlu0 %4088
        %v4091 = vsel %vm1568, %v4087, 0
        %v4094 = vsel %vm1568, %v4089, 0
        %4096 = vmatprep.subr.bf16.mxu0 0
        %4097 = vmatpush1.bf16.xpose.msra.mxu0 %v4094
        %4098 = vmatprep.subr.bf16.mxu0 0
        %4099 = vmatpush1.bf16.xpose.msra.mxu0 0
        %4100 = vmatprep.subr.bf16.mxu0 0
        %4101 = vmatpush1.bf16.xpose.msra.mxu0 0
        %4102 = vmatprep.subr.bf16.mxu0 0
        %4103 = vmatpush1.bf16.xpose.msra.mxu0 0
        %4104 = vmatprep.subr.bf16.mxu0 0
        %4105 = vmatpush1.bf16.xpose.msra.mxu0 0
        %4106 = vmatprep.subr.bf16.mxu0 0
        %4107 = vmatpush1.bf16.xpose.msra.mxu0 0
        %4108 = vmatprep.subr.bf16.mxu0 0
        %4109 = vmatpush1.bf16.xpose.msra.mxu0 0
        %4110 = vmatprep.subr.bf16.mxu0 0
        %4111 = vmatpush1.bf16.xpose.msra.mxu0 0
        %4112 = vmatprep.subr.bf16.mxu0 0
        %4113 = vmatpush1.bf16.xpose.msra.mxu0 0
        %4114 = vmatprep.subr.bf16.mxu0 0
        %4115 = vmatpush1.bf16.xpose.msra.mxu0 0
        %4116 = vmatprep.subr.bf16.mxu0 0
        %4117 = vmatpush1.bf16.xpose.msra.mxu0 0
        %4118 = vmatprep.subr.bf16.mxu0 0
        %4119 = vmatpush1.bf16.xpose.msra.mxu0 0
        %4120 = vmatprep.subr.bf16.mxu0 0
        %4121 = vmatpush1.bf16.xpose.msra.mxu0 0
        %4122 = vmatprep.subr.bf16.mxu0 0
        %4123 = vmatpush1.bf16.xpose.msra.mxu0 0
        %4124 = vmatprep.subr.bf16.mxu0 0
        %4125 = vmatpush1.bf16.xpose.msra.mxu0 0
        %4126 = vmatprep.subr.bf16.mxu0 0
        %4127 = vmatpush1.bf16.xpose.msra.mxu0 0
        %4128 = vmatprep.mubr.bf16.mxu0 0
        %4129 = vmatmul.mubr.bf16.gmra.mrb[0].mxu0 %v4091
        %v4130 = vpop.f32.mrb[0].mxu0
        %v4131 = vadd.f32 0.0, %v4130
        %v4132 = vpop.f32.mrb[0].mxu0
        %v4133 = vpop.f32.mrb[0].mxu0
        %v4134 = vpop.f32.mrb[0].mxu0
        %4135 = vdwg.mxu0
        %4136 = vrot.lane.b32.xlu0 %v1557, 48
        %v4137 = vpop.permute.xlu0 %4136
        %4138 = vrot.lane.b32.xlu0 %v1561, 48
        %v4139 = vpop.permute.xlu0 %4138
        %v4141 = vsel %vm1568, %v4137, 0
        %v4144 = vsel %vm1568, %v4139, 0
        %4146 = vmatprep.subr.bf16.mxu0 0
        %4147 = vmatpush1.bf16.xpose.msra.mxu0 %v4144
        %4148 = vmatprep.subr.bf16.mxu0 0
        %4149 = vmatpush1.bf16.xpose.msra.mxu0 0
        %4150 = vmatprep.subr.bf16.mxu0 0
        %4151 = vmatpush1.bf16.xpose.msra.mxu0 0
        %4152 = vmatprep.subr.bf16.mxu0 0
        %4153 = vmatpush1.bf16.xpose.msra.mxu0 0
        %4154 = vmatprep.subr.bf16.mxu0 0
        %4155 = vmatpush1.bf16.xpose.msra.mxu0 0
        %4156 = vmatprep.subr.bf16.mxu0 0
        %4157 = vmatpush1.bf16.xpose.msra.mxu0 0
        %4158 = vmatprep.subr.bf16.mxu0 0
        %4159 = vmatpush1.bf16.xpose.msra.mxu0 0
        %4160 = vmatprep.subr.bf16.mxu0 0
        %4161 = vmatpush1.bf16.xpose.msra.mxu0 0
        %4162 = vmatprep.subr.bf16.mxu0 0
        %4163 = vmatpush1.bf16.xpose.msra.mxu0 0
        %4164 = vmatprep.subr.bf16.mxu0 0
        %4165 = vmatpush1.bf16.xpose.msra.mxu0 0
        %4166 = vmatprep.subr.bf16.mxu0 0
        %4167 = vmatpush1.bf16.xpose.msra.mxu0 0
        %4168 = vmatprep.subr.bf16.mxu0 0
        %4169 = vmatpush1.bf16.xpose.msra.mxu0 0
        %4170 = vmatprep.subr.bf16.mxu0 0
        %4171 = vmatpush1.bf16.xpose.msra.mxu0 0
        %4172 = vmatprep.subr.bf16.mxu0 0
        %4173 = vmatpush1.bf16.xpose.msra.mxu0 0
        %4174 = vmatprep.subr.bf16.mxu0 0
        %4175 = vmatpush1.bf16.xpose.msra.mxu0 0
        %4176 = vmatprep.subr.bf16.mxu0 0
        %4177 = vmatpush1.bf16.xpose.msra.mxu0 0
        %4178 = vmatprep.mubr.bf16.mxu0 0
        %4179 = vmatmul.mubr.bf16.gmra.mrb[0].mxu0 %v4141
        %v4180 = vpop.f32.mrb[0].mxu0
        %v4181 = vadd.f32 0.0, %v4180
        %v4182 = vpop.f32.mrb[0].mxu0
        %v4183 = vpop.f32.mrb[0].mxu0
        %v4184 = vpop.f32.mrb[0].mxu0
        %4185 = vdwg.mxu0
        %4186 = vrot.lane.b32.xlu0 %v1558, 48
        %v4187 = vpop.permute.xlu0 %4186
        %4188 = vrot.lane.b32.xlu0 %v1562, 48
        %v4189 = vpop.permute.xlu0 %4188
        %v4191 = vsel %vm1568, %v4187, 0
        %v4194 = vsel %vm1568, %v4189, 0
        %4196 = vmatprep.subr.bf16.mxu0 0
        %4197 = vmatpush1.bf16.xpose.msra.mxu0 %v4194
        %4198 = vmatprep.subr.bf16.mxu0 0
        %4199 = vmatpush1.bf16.xpose.msra.mxu0 0
        %4200 = vmatprep.subr.bf16.mxu0 0
        %4201 = vmatpush1.bf16.xpose.msra.mxu0 0
        %4202 = vmatprep.subr.bf16.mxu0 0
        %4203 = vmatpush1.bf16.xpose.msra.mxu0 0
        %4204 = vmatprep.subr.bf16.mxu0 0
        %4205 = vmatpush1.bf16.xpose.msra.mxu0 0
        %4206 = vmatprep.subr.bf16.mxu0 0
        %4207 = vmatpush1.bf16.xpose.msra.mxu0 0
        %4208 = vmatprep.subr.bf16.mxu0 0
        %4209 = vmatpush1.bf16.xpose.msra.mxu0 0
        %4210 = vmatprep.subr.bf16.mxu0 0
        %4211 = vmatpush1.bf16.xpose.msra.mxu0 0
        %4212 = vmatprep.subr.bf16.mxu0 0
        %4213 = vmatpush1.bf16.xpose.msra.mxu0 0
        %4214 = vmatprep.subr.bf16.mxu0 0
        %4215 = vmatpush1.bf16.xpose.msra.mxu0 0
        %4216 = vmatprep.subr.bf16.mxu0 0
        %4217 = vmatpush1.bf16.xpose.msra.mxu0 0
        %4218 = vmatprep.subr.bf16.mxu0 0
        %4219 = vmatpush1.bf16.xpose.msra.mxu0 0
        %4220 = vmatprep.subr.bf16.mxu0 0
        %4221 = vmatpush1.bf16.xpose.msra.mxu0 0
        %4222 = vmatprep.subr.bf16.mxu0 0
        %4223 = vmatpush1.bf16.xpose.msra.mxu0 0
        %4224 = vmatprep.subr.bf16.mxu0 0
        %4225 = vmatpush1.bf16.xpose.msra.mxu0 0
        %4226 = vmatprep.subr.bf16.mxu0 0
        %4227 = vmatpush1.bf16.xpose.msra.mxu0 0
        %4228 = vmatprep.mubr.bf16.mxu0 0
        %4229 = vmatmul.mubr.bf16.gmra.mrb[0].mxu0 %v4191
        %v4230 = vpop.f32.mrb[0].mxu0
        %v4231 = vadd.f32 0.0, %v4230
        %v4232 = vpop.f32.mrb[0].mxu0
        %v4233 = vpop.f32.mrb[0].mxu0
        %v4234 = vpop.f32.mrb[0].mxu0
        %4235 = vdwg.mxu0
        %4236 = vrot.lane.b32.xlu0 %v1559, 48
        %v4237 = vpop.permute.xlu0 %4236
        %4238 = vrot.lane.b32.xlu0 %v1563, 48
        %v4239 = vpop.permute.xlu0 %4238
        %v4241 = vsel %vm1568, %v4237, 0
        %v4244 = vsel %vm1568, %v4239, 0
        %4246 = vmatprep.subr.bf16.mxu0 0
        %4247 = vmatpush1.bf16.xpose.msra.mxu0 %v4244
        %4248 = vmatprep.subr.bf16.mxu0 0
        %4249 = vmatpush1.bf16.xpose.msra.mxu0 0
        %4250 = vmatprep.subr.bf16.mxu0 0
        %4251 = vmatpush1.bf16.xpose.msra.mxu0 0
        %4252 = vmatprep.subr.bf16.mxu0 0
        %4253 = vmatpush1.bf16.xpose.msra.mxu0 0
        %4254 = vmatprep.subr.bf16.mxu0 0
        %4255 = vmatpush1.bf16.xpose.msra.mxu0 0
        %4256 = vmatprep.subr.bf16.mxu0 0
        %4257 = vmatpush1.bf16.xpose.msra.mxu0 0
        %4258 = vmatprep.subr.bf16.mxu0 0
        %4259 = vmatpush1.bf16.xpose.msra.mxu0 0
        %4260 = vmatprep.subr.bf16.mxu0 0
        %4261 = vmatpush1.bf16.xpose.msra.mxu0 0
        %4262 = vmatprep.subr.bf16.mxu0 0
        %4263 = vmatpush1.bf16.xpose.msra.mxu0 0
        %4264 = vmatprep.subr.bf16.mxu0 0
        %4265 = vmatpush1.bf16.xpose.msra.mxu0 0
        %4266 = vmatprep.subr.bf16.mxu0 0
        %4267 = vmatpush1.bf16.xpose.msra.mxu0 0
        %4268 = vmatprep.subr.bf16.mxu0 0
        %4269 = vmatpush1.bf16.xpose.msra.mxu0 0
        %4270 = vmatprep.subr.bf16.mxu0 0
        %4271 = vmatpush1.bf16.xpose.msra.mxu0 0
        %4272 = vmatprep.subr.bf16.mxu0 0
        %4273 = vmatpush1.bf16.xpose.msra.mxu0 0
        %4274 = vmatprep.subr.bf16.mxu0 0
        %4275 = vmatpush1.bf16.xpose.msra.mxu0 0
        %4276 = vmatprep.subr.bf16.mxu0 0
        %4277 = vmatpush1.bf16.xpose.msra.mxu0 0
        %4278 = vmatprep.mubr.bf16.mxu0 0
        %4279 = vmatmul.mubr.bf16.gmra.mrb[0].mxu0 %v4241
        %v4280 = vpop.f32.mrb[0].mxu0
        %v4281 = vadd.f32 0.0, %v4280
        %v4282 = vpop.f32.mrb[0].mxu0
        %v4283 = vpop.f32.mrb[0].mxu0
        %v4284 = vpop.f32.mrb[0].mxu0
        %4285 = vdwg.mxu0
        %v4286 = vsel %vm1753, %v4131, -inf
        %4287 = vmax.xlane.f32.xlu0 %v4286
        %v4288 = vpop.xlane.xlu0 %4287
        %v4289 = vsel %vm1753, %v4181, -inf
        %4290 = vmax.xlane.f32.xlu0 %v4289
        %v4291 = vpop.xlane.xlu0 %4290
        %v4292 = vsel %vm1753, %v4231, -inf
        %4293 = vmax.xlane.f32.xlu0 %v4292
        %v4294 = vpop.xlane.xlu0 %4293
        %v4295 = vsel %vm1753, %v4281, -inf
        %4296 = vmax.xlane.f32.xlu0 %v4295
        %v4297 = vpop.xlane.xlu0 %4296
        %v4298 = vsub.f32 %v4131, %v4288
        %v4299 = vsub.f32 %v4181, %v4291
        %v4300 = vsub.f32 %v4231, %v4294
        %v4301 = vsub.f32 %v4281, %v4297
        %v4302 = vmul.f32 %v4298, 1.442695
        %v4303 = vpow.pop %v4302
        %v4304 = vmul.f32 %v4299, 1.442695
        %v4305 = vpow.pop %v4304
        %v4306 = vmul.f32 %v4300, 1.442695
        %v4307 = vpow.pop %v4306
        %v4308 = vmul.f32 %v4301, 1.442695
        %v4309 = vpow.pop %v4308
        %v4310 = vsel %vm1753, %v4303, 0.0
        %4311 = vadd.xlane.f32.xlu0 %v4310
        %v4312 = vpop.xlane.xlu0 %4311
        %v4313 = vsel %vm1753, %v4305, 0.0
        %4314 = vadd.xlane.f32.xlu0 %v4313
        %v4315 = vpop.xlane.xlu0 %4314
        %v4316 = vsel %vm1753, %v4307, 0.0
        %4317 = vadd.xlane.f32.xlu0 %v4316
        %v4318 = vpop.xlane.xlu0 %4317
        %v4319 = vsel %vm1753, %v4309, 0.0
        %4320 = vadd.xlane.f32.xlu0 %v4319
        %v4321 = vpop.xlane.xlu0 %4320
        %v4322 = vrcp.pop %v4312
        %v4323 = vrcp.pop %v4315
        %v4324 = vrcp.pop %v4318
        %v4325 = vrcp.pop %v4321
        %v4326 = vmul.f32 %v4303, %v4322
        %v4327 = vmul.f32 %v4305, %v4323
        %v4328 = vmul.f32 %v4307, %v4324
        %v4329 = vmul.f32 %v4309, %v4325
        %v4330 = vpack.c.bf16 %v4326, %v4326
        %v4331 = vpack.c.bf16 %v4327, %v4327
        %v4332 = vpack.c.bf16 %v4328, %v4328
        %v4333 = vpack.c.bf16 %v4329, %v4329
        %4334 = vrot.lane.b32.xlu0 %v1564, 48
        %v4335 = vpop.permute.xlu0 %4334
        %v4337 = vsel %vm1753, %v4330, 0
        %v4340 = vsel %vm1805, %v4335, 0
        %4342 = vmatprep.subr.bf16.mxu0 0
        %4343 = vmatpush1.bf16.msra.mxu0 %v4340
        %4344 = vmatprep.subr.bf16.mxu0 0
        %4345 = vmatpush1.bf16.msra.mxu0 0
        %4346 = vmatprep.subr.bf16.mxu0 0
        %4347 = vmatpush1.bf16.msra.mxu0 0
        %4348 = vmatprep.subr.bf16.mxu0 0
        %4349 = vmatpush1.bf16.msra.mxu0 0
        %4350 = vmatprep.subr.bf16.mxu0 0
        %4351 = vmatpush1.bf16.msra.mxu0 0
        %4352 = vmatprep.subr.bf16.mxu0 0
        %4353 = vmatpush1.bf16.msra.mxu0 0
        %4354 = vmatprep.subr.bf16.mxu0 0
        %4355 = vmatpush1.bf16.msra.mxu0 0
        %4356 = vmatprep.subr.bf16.mxu0 0
        %4357 = vmatpush1.bf16.msra.mxu0 0
        %4358 = vmatprep.subr.bf16.mxu0 0
        %4359 = vmatpush1.bf16.msra.mxu0 0
        %4360 = vmatprep.subr.bf16.mxu0 0
        %4361 = vmatpush1.bf16.msra.mxu0 0
        %4362 = vmatprep.subr.bf16.mxu0 0
        %4363 = vmatpush1.bf16.msra.mxu0 0
        %4364 = vmatprep.subr.bf16.mxu0 0
        %4365 = vmatpush1.bf16.msra.mxu0 0
        %4366 = vmatprep.subr.bf16.mxu0 0
        %4367 = vmatpush1.bf16.msra.mxu0 0
        %4368 = vmatprep.subr.bf16.mxu0 0
        %4369 = vmatpush1.bf16.msra.mxu0 0
        %4370 = vmatprep.subr.bf16.mxu0 0
        %4371 = vmatpush1.bf16.msra.mxu0 0
        %4372 = vmatprep.subr.bf16.mxu0 0
        %4373 = vmatpush1.bf16.msra.mxu0 0
        %4374 = vmatprep.mubr.bf16.mxu0 0
        %4375 = vmatmul.mubr.bf16.gmra.mrb[0].mxu0 %v4337
        %v4376 = vpop.f32.mrb[0].mxu0
        %v4377 = vadd.f32 0.0, %v4376
        %v4378 = vpop.f32.mrb[0].mxu0
        %v4379 = vpop.f32.mrb[0].mxu0
        %v4380 = vpop.f32.mrb[0].mxu0
        %4381 = vdwg.mxu0
        %4382 = vrot.lane.b32.xlu0 %v1565, 48
        %v4383 = vpop.permute.xlu0 %4382
        %v4385 = vsel %vm1753, %v4331, 0
        %v4388 = vsel %vm1805, %v4383, 0
        %4390 = vmatprep.subr.bf16.mxu0 0
        %4391 = vmatpush1.bf16.msra.mxu0 %v4388
        %4392 = vmatprep.subr.bf16.mxu0 0
        %4393 = vmatpush1.bf16.msra.mxu0 0
        %4394 = vmatprep.subr.bf16.mxu0 0
        %4395 = vmatpush1.bf16.msra.mxu0 0
        %4396 = vmatprep.subr.bf16.mxu0 0
        %4397 = vmatpush1.bf16.msra.mxu0 0
        %4398 = vmatprep.subr.bf16.mxu0 0
        %4399 = vmatpush1.bf16.msra.mxu0 0
        %4400 = vmatprep.subr.bf16.mxu0 0
        %4401 = vmatpush1.bf16.msra.mxu0 0
        %4402 = vmatprep.subr.bf16.mxu0 0
        %4403 = vmatpush1.bf16.msra.mxu0 0
        %4404 = vmatprep.subr.bf16.mxu0 0
        %4405 = vmatpush1.bf16.msra.mxu0 0
        %4406 = vmatprep.subr.bf16.mxu0 0
        %4407 = vmatpush1.bf16.msra.mxu0 0
        %4408 = vmatprep.subr.bf16.mxu0 0
        %4409 = vmatpush1.bf16.msra.mxu0 0
        %4410 = vmatprep.subr.bf16.mxu0 0
        %4411 = vmatpush1.bf16.msra.mxu0 0
        %4412 = vmatprep.subr.bf16.mxu0 0
        %4413 = vmatpush1.bf16.msra.mxu0 0
        %4414 = vmatprep.subr.bf16.mxu0 0
        %4415 = vmatpush1.bf16.msra.mxu0 0
        %4416 = vmatprep.subr.bf16.mxu0 0
        %4417 = vmatpush1.bf16.msra.mxu0 0
        %4418 = vmatprep.subr.bf16.mxu0 0
        %4419 = vmatpush1.bf16.msra.mxu0 0
        %4420 = vmatprep.subr.bf16.mxu0 0
        %4421 = vmatpush1.bf16.msra.mxu0 0
        %4422 = vmatprep.mubr.bf16.mxu0 0
        %4423 = vmatmul.mubr.bf16.gmra.mrb[0].mxu0 %v4385
        %v4424 = vpop.f32.mrb[0].mxu0
        %v4425 = vadd.f32 0.0, %v4424
        %v4426 = vpop.f32.mrb[0].mxu0
        %v4427 = vpop.f32.mrb[0].mxu0
        %v4428 = vpop.f32.mrb[0].mxu0
        %4429 = vdwg.mxu0
        %4430 = vrot.lane.b32.xlu0 %v1566, 48
        %v4431 = vpop.permute.xlu0 %4430
        %v4433 = vsel %vm1753, %v4332, 0
        %v4436 = vsel %vm1805, %v4431, 0
        %4438 = vmatprep.subr.bf16.mxu0 0
        %4439 = vmatpush1.bf16.msra.mxu0 %v4436
        %4440 = vmatprep.subr.bf16.mxu0 0
        %4441 = vmatpush1.bf16.msra.mxu0 0
        %4442 = vmatprep.subr.bf16.mxu0 0
        %4443 = vmatpush1.bf16.msra.mxu0 0
        %4444 = vmatprep.subr.bf16.mxu0 0
        %4445 = vmatpush1.bf16.msra.mxu0 0
        %4446 = vmatprep.subr.bf16.mxu0 0
        %4447 = vmatpush1.bf16.msra.mxu0 0
        %4448 = vmatprep.subr.bf16.mxu0 0
        %4449 = vmatpush1.bf16.msra.mxu0 0
        %4450 = vmatprep.subr.bf16.mxu0 0
        %4451 = vmatpush1.bf16.msra.mxu0 0
        %4452 = vmatprep.subr.bf16.mxu0 0
        %4453 = vmatpush1.bf16.msra.mxu0 0
        %4454 = vmatprep.subr.bf16.mxu0 0
        %4455 = vmatpush1.bf16.msra.mxu0 0
        %4456 = vmatprep.subr.bf16.mxu0 0
        %4457 = vmatpush1.bf16.msra.mxu0 0
        %4458 = vmatprep.subr.bf16.mxu0 0
        %4459 = vmatpush1.bf16.msra.mxu0 0
        %4460 = vmatprep.subr.bf16.mxu0 0
        %4461 = vmatpush1.bf16.msra.mxu0 0
        %4462 = vmatprep.subr.bf16.mxu0 0
        %4463 = vmatpush1.bf16.msra.mxu0 0
        %4464 = vmatprep.subr.bf16.mxu0 0
        %4465 = vmatpush1.bf16.msra.mxu0 0
        %4466 = vmatprep.subr.bf16.mxu0 0
        %4467 = vmatpush1.bf16.msra.mxu0 0
        %4468 = vmatprep.subr.bf16.mxu0 0
        %4469 = vmatpush1.bf16.msra.mxu0 0
        %4470 = vmatprep.mubr.bf16.mxu0 0
        %4471 = vmatmul.mubr.bf16.gmra.mrb[0].mxu0 %v4433
        %v4472 = vpop.f32.mrb[0].mxu0
        %v4473 = vadd.f32 0.0, %v4472
        %v4474 = vpop.f32.mrb[0].mxu0
        %v4475 = vpop.f32.mrb[0].mxu0
        %v4476 = vpop.f32.mrb[0].mxu0
        %4477 = vdwg.mxu0
        %4478 = vrot.lane.b32.xlu0 %v1567, 48
        %v4479 = vpop.permute.xlu0 %4478
        %v4481 = vsel %vm1753, %v4333, 0
        %v4484 = vsel %vm1805, %v4479, 0
        %4486 = vmatprep.subr.bf16.mxu0 0
        %4487 = vmatpush1.bf16.msra.mxu0 %v4484
        %4488 = vmatprep.subr.bf16.mxu0 0
        %4489 = vmatpush1.bf16.msra.mxu0 0
        %4490 = vmatprep.subr.bf16.mxu0 0
        %4491 = vmatpush1.bf16.msra.mxu0 0
        %4492 = vmatprep.subr.bf16.mxu0 0
        %4493 = vmatpush1.bf16.msra.mxu0 0
        %4494 = vmatprep.subr.bf16.mxu0 0
        %4495 = vmatpush1.bf16.msra.mxu0 0
        %4496 = vmatprep.subr.bf16.mxu0 0
        %4497 = vmatpush1.bf16.msra.mxu0 0
        %4498 = vmatprep.subr.bf16.mxu0 0
        %4499 = vmatpush1.bf16.msra.mxu0 0
        %4500 = vmatprep.subr.bf16.mxu0 0
        %4501 = vmatpush1.bf16.msra.mxu0 0
        %4502 = vmatprep.subr.bf16.mxu0 0
        %4503 = vmatpush1.bf16.msra.mxu0 0
        %4504 = vmatprep.subr.bf16.mxu0 0
        %4505 = vmatpush1.bf16.msra.mxu0 0
        %4506 = vmatprep.subr.bf16.mxu0 0
        %4507 = vmatpush1.bf16.msra.mxu0 0
        %4508 = vmatprep.subr.bf16.mxu0 0
        %4509 = vmatpush1.bf16.msra.mxu0 0
        %4510 = vmatprep.subr.bf16.mxu0 0
        %4511 = vmatpush1.bf16.msra.mxu0 0
        %4512 = vmatprep.subr.bf16.mxu0 0
        %4513 = vmatpush1.bf16.msra.mxu0 0
        %4514 = vmatprep.subr.bf16.mxu0 0
        %4515 = vmatpush1.bf16.msra.mxu0 0
        %4516 = vmatprep.subr.bf16.mxu0 0
        %4517 = vmatpush1.bf16.msra.mxu0 0
        %4518 = vmatprep.mubr.bf16.mxu0 0
        %4519 = vmatmul.mubr.bf16.gmra.mrb[0].mxu0 %v4481
        %v4520 = vpop.f32.mrb[0].mxu0
        %v4521 = vadd.f32 0.0, %v4520
        %v4522 = vpop.f32.mrb[0].mxu0
        %v4523 = vpop.f32.mrb[0].mxu0
        %v4524 = vpop.f32.mrb[0].mxu0
        %4525 = vdwg.mxu0
        %v4526 = vpack.c.bf16 %v4425, %v4377
        %v4527 = vpack.c.bf16 %v4521, %v4473
        %v4530 = vunpack.c.l.b16 %v1550
        %v4531 = vunpack.c.l.b16 %v1551
        %v4532 = vpack.c.b16 %v4531, %v4530
        %v4535 = vsel %vm1568, %v4526, 0
        %v4538 = vsel %vm1568, %v4527, 0
        %4540 = vmatprep.subr.bf16.mxu0 0
        %4541 = vmatpush1.bf16.msra.mxu0 %v4532
        %4542 = vmatprep.subr.bf16.mxu0 0
        %4543 = vmatpush1.bf16.msra.mxu0 0
        %4544 = vmatprep.subr.bf16.mxu0 0
        %4545 = vmatpush1.bf16.msra.mxu0 0
        %4546 = vmatprep.subr.bf16.mxu0 0
        %4547 = vmatpush1.bf16.msra.mxu0 0
        %4548 = vmatprep.subr.bf16.mxu0 0
        %4549 = vmatpush1.bf16.msra.mxu0 0
        %4550 = vmatprep.subr.bf16.mxu0 0
        %4551 = vmatpush1.bf16.msra.mxu0 0
        %4552 = vmatprep.subr.bf16.mxu0 0
        %4553 = vmatpush1.bf16.msra.mxu0 0
        %4554 = vmatprep.subr.bf16.mxu0 0
        %4555 = vmatpush1.bf16.msra.mxu0 0
        %4556 = vmatprep.subr.bf16.mxu0 0
        %4557 = vmatpush1.bf16.msra.mxu0 0
        %4558 = vmatprep.subr.bf16.mxu0 0
        %4559 = vmatpush1.bf16.msra.mxu0 0
        %4560 = vmatprep.subr.bf16.mxu0 0
        %4561 = vmatpush1.bf16.msra.mxu0 0
        %4562 = vmatprep.subr.bf16.mxu0 0
        %4563 = vmatpush1.bf16.msra.mxu0 0
        %4564 = vmatprep.subr.bf16.mxu0 0
        %4565 = vmatpush1.bf16.msra.mxu0 0
        %4566 = vmatprep.subr.bf16.mxu0 0
        %4567 = vmatpush1.bf16.msra.mxu0 0
        %4568 = vmatprep.subr.bf16.mxu0 0
        %4569 = vmatpush1.bf16.msra.mxu0 0
        %4570 = vmatprep.subr.bf16.mxu0 0
        %4571 = vmatpush1.bf16.msra.mxu0 0
        %4572 = vmatprep.mubr.bf16.mxu0 0
        %4573 = vmatmul.mubr.bf16.gmra.mrb[0].mxu0 %v4535
        %v4574 = vpop.f32.mrb[0].mxu0
        %v4575 = vadd.f32 0.0, %v4574
        %v4576 = vpop.f32.mrb[0].mxu0
        %v4577 = vpop.f32.mrb[0].mxu0
        %v4578 = vadd.f32 0.0, %v4577
        %v4579 = vpop.f32.mrb[0].mxu0
        %4580 = vmatprep.mubr.bf16.mxu0 0
        %4581 = vmatmul.mubr.bf16.gmra.mrb[0].mxu0 %v4538
        %v4582 = vpop.f32.mrb[0].mxu0
        %v4583 = vadd.f32 0.0, %v4582
        %v4584 = vpop.f32.mrb[0].mxu0
        %v4585 = vpop.f32.mrb[0].mxu0
        %v4586 = vadd.f32 0.0, %v4585
        %v4587 = vpop.f32.mrb[0].mxu0
        %4588 = vdwg.mxu0
        %v4589 = vadd.f32 %v4082, %v4575
        %v4590 = vadd.f32 %v4083, %v4578
        %v4591 = vadd.f32 %v4084, %v4583
        %v4592 = vadd.f32 %v4085, %v4586
        %4593 = vrot.lane.b32.xlu0 %v1556, 32
        %v4594 = vpop.permute.xlu0 %4593
        %4595 = vrot.lane.b32.xlu0 %v1560, 32
        %v4596 = vpop.permute.xlu0 %4595
        %v4598 = vsel %vm1568, %v4594, 0
        %v4601 = vsel %vm1568, %v4596, 0
        %4603 = vmatprep.subr.bf16.mxu0 0
        %4604 = vmatpush1.bf16.xpose.msra.mxu0 %v4601
        %4605 = vmatprep.subr.bf16.mxu0 0
        %4606 = vmatpush1.bf16.xpose.msra.mxu0 0
        %4607 = vmatprep.subr.bf16.mxu0 0
        %4608 = vmatpush1.bf16.xpose.msra.mxu0 0
        %4609 = vmatprep.subr.bf16.mxu0 0
        %4610 = vmatpush1.bf16.xpose.msra.mxu0 0
        %4611 = vmatprep.subr.bf16.mxu0 0
        %4612 = vmatpush1.bf16.xpose.msra.mxu0 0
        %4613 = vmatprep.subr.bf16.mxu0 0
        %4614 = vmatpush1.bf16.xpose.msra.mxu0 0
        %4615 = vmatprep.subr.bf16.mxu0 0
        %4616 = vmatpush1.bf16.xpose.msra.mxu0 0
        %4617 = vmatprep.subr.bf16.mxu0 0
        %4618 = vmatpush1.bf16.xpose.msra.mxu0 0
        %4619 = vmatprep.subr.bf16.mxu0 0
        %4620 = vmatpush1.bf16.xpose.msra.mxu0 0
        %4621 = vmatprep.subr.bf16.mxu0 0
        %4622 = vmatpush1.bf16.xpose.msra.mxu0 0
        %4623 = vmatprep.subr.bf16.mxu0 0
        %4624 = vmatpush1.bf16.xpose.msra.mxu0 0
        %4625 = vmatprep.subr.bf16.mxu0 0
        %4626 = vmatpush1.bf16.xpose.msra.mxu0 0
        %4627 = vmatprep.subr.bf16.mxu0 0
        %4628 = vmatpush1.bf16.xpose.msra.mxu0 0
        %4629 = vmatprep.subr.bf16.mxu0 0
        %4630 = vmatpush1.bf16.xpose.msra.mxu0 0
        %4631 = vmatprep.subr.bf16.mxu0 0
        %4632 = vmatpush1.bf16.xpose.msra.mxu0 0
        %4633 = vmatprep.subr.bf16.mxu0 0
        %4634 = vmatpush1.bf16.xpose.msra.mxu0 0
        %4635 = vmatprep.mubr.bf16.mxu0 0
        %4636 = vmatmul.mubr.bf16.gmra.mrb[0].mxu0 %v4598
        %v4637 = vpop.f32.mrb[0].mxu0
        %v4638 = vadd.f32 0.0, %v4637
        %v4639 = vpop.f32.mrb[0].mxu0
        %v4640 = vpop.f32.mrb[0].mxu0
        %v4641 = vpop.f32.mrb[0].mxu0
        %4642 = vdwg.mxu0
        %4643 = vrot.lane.b32.xlu0 %v1557, 32
        %v4644 = vpop.permute.xlu0 %4643
        %4645 = vrot.lane.b32.xlu0 %v1561, 32
        %v4646 = vpop.permute.xlu0 %4645
        %v4648 = vsel %vm1568, %v4644, 0
        %v4651 = vsel %vm1568, %v4646, 0
        %4653 = vmatprep.subr.bf16.mxu0 0
        %4654 = vmatpush1.bf16.xpose.msra.mxu0 %v4651
        %4655 = vmatprep.subr.bf16.mxu0 0
        %4656 = vmatpush1.bf16.xpose.msra.mxu0 0
        %4657 = vmatprep.subr.bf16.mxu0 0
        %4658 = vmatpush1.bf16.xpose.msra.mxu0 0
        %4659 = vmatprep.subr.bf16.mxu0 0
        %4660 = vmatpush1.bf16.xpose.msra.mxu0 0
        %4661 = vmatprep.subr.bf16.mxu0 0
        %4662 = vmatpush1.bf16.xpose.msra.mxu0 0
        %4663 = vmatprep.subr.bf16.mxu0 0
        %4664 = vmatpush1.bf16.xpose.msra.mxu0 0
        %4665 = vmatprep.subr.bf16.mxu0 0
        %4666 = vmatpush1.bf16.xpose.msra.mxu0 0
        %4667 = vmatprep.subr.bf16.mxu0 0
        %4668 = vmatpush1.bf16.xpose.msra.mxu0 0
        %4669 = vmatprep.subr.bf16.mxu0 0
        %4670 = vmatpush1.bf16.xpose.msra.mxu0 0
        %4671 = vmatprep.subr.bf16.mxu0 0
        %4672 = vmatpush1.bf16.xpose.msra.mxu0 0
        %4673 = vmatprep.subr.bf16.mxu0 0
        %4674 = vmatpush1.bf16.xpose.msra.mxu0 0
        %4675 = vmatprep.subr.bf16.mxu0 0
        %4676 = vmatpush1.bf16.xpose.msra.mxu0 0
        %4677 = vmatprep.subr.bf16.mxu0 0
        %4678 = vmatpush1.bf16.xpose.msra.mxu0 0
        %4679 = vmatprep.subr.bf16.mxu0 0
        %4680 = vmatpush1.bf16.xpose.msra.mxu0 0
        %4681 = vmatprep.subr.bf16.mxu0 0
        %4682 = vmatpush1.bf16.xpose.msra.mxu0 0
        %4683 = vmatprep.subr.bf16.mxu0 0
        %4684 = vmatpush1.bf16.xpose.msra.mxu0 0
        %4685 = vmatprep.mubr.bf16.mxu0 0
        %4686 = vmatmul.mubr.bf16.gmra.mrb[0].mxu0 %v4648
        %v4687 = vpop.f32.mrb[0].mxu0
        %v4688 = vadd.f32 0.0, %v4687
        %v4689 = vpop.f32.mrb[0].mxu0
        %v4690 = vpop.f32.mrb[0].mxu0
        %v4691 = vpop.f32.mrb[0].mxu0
        %4692 = vdwg.mxu0
        %4693 = vrot.lane.b32.xlu0 %v1558, 32
        %v4694 = vpop.permute.xlu0 %4693
        %4695 = vrot.lane.b32.xlu0 %v1562, 32
        %v4696 = vpop.permute.xlu0 %4695
        %v4698 = vsel %vm1568, %v4694, 0
        %v4701 = vsel %vm1568, %v4696, 0
        %4703 = vmatprep.subr.bf16.mxu0 0
        %4704 = vmatpush1.bf16.xpose.msra.mxu0 %v4701
        %4705 = vmatprep.subr.bf16.mxu0 0
        %4706 = vmatpush1.bf16.xpose.msra.mxu0 0
        %4707 = vmatprep.subr.bf16.mxu0 0
        %4708 = vmatpush1.bf16.xpose.msra.mxu0 0
        %4709 = vmatprep.subr.bf16.mxu0 0
        %4710 = vmatpush1.bf16.xpose.msra.mxu0 0
        %4711 = vmatprep.subr.bf16.mxu0 0
        %4712 = vmatpush1.bf16.xpose.msra.mxu0 0
        %4713 = vmatprep.subr.bf16.mxu0 0
        %4714 = vmatpush1.bf16.xpose.msra.mxu0 0
        %4715 = vmatprep.subr.bf16.mxu0 0
        %4716 = vmatpush1.bf16.xpose.msra.mxu0 0
        %4717 = vmatprep.subr.bf16.mxu0 0
        %4718 = vmatpush1.bf16.xpose.msra.mxu0 0
        %4719 = vmatprep.subr.bf16.mxu0 0
        %4720 = vmatpush1.bf16.xpose.msra.mxu0 0
        %4721 = vmatprep.subr.bf16.mxu0 0
        %4722 = vmatpush1.bf16.xpose.msra.mxu0 0
        %4723 = vmatprep.subr.bf16.mxu0 0
        %4724 = vmatpush1.bf16.xpose.msra.mxu0 0
        %4725 = vmatprep.subr.bf16.mxu0 0
        %4726 = vmatpush1.bf16.xpose.msra.mxu0 0
        %4727 = vmatprep.subr.bf16.mxu0 0
        %4728 = vmatpush1.bf16.xpose.msra.mxu0 0
        %4729 = vmatprep.subr.bf16.mxu0 0
        %4730 = vmatpush1.bf16.xpose.msra.mxu0 0
        %4731 = vmatprep.subr.bf16.mxu0 0
        %4732 = vmatpush1.bf16.xpose.msra.mxu0 0
        %4733 = vmatprep.subr.bf16.mxu0 0
        %4734 = vmatpush1.bf16.xpose.msra.mxu0 0
        %4735 = vmatprep.mubr.bf16.mxu0 0
        %4736 = vmatmul.mubr.bf16.gmra.mrb[0].mxu0 %v4698
        %v4737 = vpop.f32.mrb[0].mxu0
        %v4738 = vadd.f32 0.0, %v4737
        %v4739 = vpop.f32.mrb[0].mxu0
        %v4740 = vpop.f32.mrb[0].mxu0
        %v4741 = vpop.f32.mrb[0].mxu0
        %4742 = vdwg.mxu0
        %4743 = vrot.lane.b32.xlu0 %v1559, 32
        %v4744 = vpop.permute.xlu0 %4743
        %4745 = vrot.lane.b32.xlu0 %v1563, 32
        %v4746 = vpop.permute.xlu0 %4745
        %v4748 = vsel %vm1568, %v4744, 0
        %v4751 = vsel %vm1568, %v4746, 0
        %4753 = vmatprep.subr.bf16.mxu0 0
        %4754 = vmatpush1.bf16.xpose.msra.mxu0 %v4751
        %4755 = vmatprep.subr.bf16.mxu0 0
        %4756 = vmatpush1.bf16.xpose.msra.mxu0 0
        %4757 = vmatprep.subr.bf16.mxu0 0
        %4758 = vmatpush1.bf16.xpose.msra.mxu0 0
        %4759 = vmatprep.subr.bf16.mxu0 0
        %4760 = vmatpush1.bf16.xpose.msra.mxu0 0
        %4761 = vmatprep.subr.bf16.mxu0 0
        %4762 = vmatpush1.bf16.xpose.msra.mxu0 0
        %4763 = vmatprep.subr.bf16.mxu0 0
        %4764 = vmatpush1.bf16.xpose.msra.mxu0 0
        %4765 = vmatprep.subr.bf16.mxu0 0
        %4766 = vmatpush1.bf16.xpose.msra.mxu0 0
        %4767 = vmatprep.subr.bf16.mxu0 0
        %4768 = vmatpush1.bf16.xpose.msra.mxu0 0
        %4769 = vmatprep.subr.bf16.mxu0 0
        %4770 = vmatpush1.bf16.xpose.msra.mxu0 0
        %4771 = vmatprep.subr.bf16.mxu0 0
        %4772 = vmatpush1.bf16.xpose.msra.mxu0 0
        %4773 = vmatprep.subr.bf16.mxu0 0
        %4774 = vmatpush1.bf16.xpose.msra.mxu0 0
        %4775 = vmatprep.subr.bf16.mxu0 0
        %4776 = vmatpush1.bf16.xpose.msra.mxu0 0
        %4777 = vmatprep.subr.bf16.mxu0 0
        %4778 = vmatpush1.bf16.xpose.msra.mxu0 0
        %4779 = vmatprep.subr.bf16.mxu0 0
        %4780 = vmatpush1.bf16.xpose.msra.mxu0 0
        %4781 = vmatprep.subr.bf16.mxu0 0
        %4782 = vmatpush1.bf16.xpose.msra.mxu0 0
        %4783 = vmatprep.subr.bf16.mxu0 0
        %4784 = vmatpush1.bf16.xpose.msra.mxu0 0
        %4785 = vmatprep.mubr.bf16.mxu0 0
        %4786 = vmatmul.mubr.bf16.gmra.mrb[0].mxu0 %v4748
        %v4787 = vpop.f32.mrb[0].mxu0
        %v4788 = vadd.f32 0.0, %v4787
        %v4789 = vpop.f32.mrb[0].mxu0
        %v4790 = vpop.f32.mrb[0].mxu0
        %v4791 = vpop.f32.mrb[0].mxu0
        %4792 = vdwg.mxu0
        %v4793 = vsel %vm1753, %v4638, -inf
        %4794 = vmax.xlane.f32.xlu0 %v4793
        %v4795 = vpop.xlane.xlu0 %4794
        %v4796 = vsel %vm1753, %v4688, -inf
        %4797 = vmax.xlane.f32.xlu0 %v4796
        %v4798 = vpop.xlane.xlu0 %4797
        %v4799 = vsel %vm1753, %v4738, -inf
        %4800 = vmax.xlane.f32.xlu0 %v4799
        %v4801 = vpop.xlane.xlu0 %4800
        %v4802 = vsel %vm1753, %v4788, -inf
        %4803 = vmax.xlane.f32.xlu0 %v4802
        %v4804 = vpop.xlane.xlu0 %4803
        %v4805 = vsub.f32 %v4638, %v4795
        %v4806 = vsub.f32 %v4688, %v4798
        %v4807 = vsub.f32 %v4738, %v4801
        %v4808 = vsub.f32 %v4788, %v4804
        %v4809 = vmul.f32 %v4805, 1.442695
        %v4810 = vpow.pop %v4809
        %v4811 = vmul.f32 %v4806, 1.442695
        %v4812 = vpow.pop %v4811
        %v4813 = vmul.f32 %v4807, 1.442695
        %v4814 = vpow.pop %v4813
        %v4815 = vmul.f32 %v4808, 1.442695
        %v4816 = vpow.pop %v4815
        %v4817 = vsel %vm1753, %v4810, 0.0
        %4818 = vadd.xlane.f32.xlu0 %v4817
        %v4819 = vpop.xlane.xlu0 %4818
        %v4820 = vsel %vm1753, %v4812, 0.0
        %4821 = vadd.xlane.f32.xlu0 %v4820
        %v4822 = vpop.xlane.xlu0 %4821
        %v4823 = vsel %vm1753, %v4814, 0.0
        %4824 = vadd.xlane.f32.xlu0 %v4823
        %v4825 = vpop.xlane.xlu0 %4824
        %v4826 = vsel %vm1753, %v4816, 0.0
        %4827 = vadd.xlane.f32.xlu0 %v4826
        %v4828 = vpop.xlane.xlu0 %4827
        %v4829 = vrcp.pop %v4819
        %v4830 = vrcp.pop %v4822
        %v4831 = vrcp.pop %v4825
        %v4832 = vrcp.pop %v4828
        %v4833 = vmul.f32 %v4810, %v4829
        %v4834 = vmul.f32 %v4812, %v4830
        %v4835 = vmul.f32 %v4814, %v4831
        %v4836 = vmul.f32 %v4816, %v4832
        %v4837 = vpack.c.bf16 %v4833, %v4833
        %v4838 = vpack.c.bf16 %v4834, %v4834
        %v4839 = vpack.c.bf16 %v4835, %v4835
        %v4840 = vpack.c.bf16 %v4836, %v4836
        %4841 = vrot.lane.b32.xlu0 %v1564, 32
        %v4842 = vpop.permute.xlu0 %4841
        %v4844 = vsel %vm1753, %v4837, 0
        %v4847 = vsel %vm1805, %v4842, 0
        %4849 = vmatprep.subr.bf16.mxu0 0
        %4850 = vmatpush1.bf16.msra.mxu0 %v4847
        %4851 = vmatprep.subr.bf16.mxu0 0
        %4852 = vmatpush1.bf16.msra.mxu0 0
        %4853 = vmatprep.subr.bf16.mxu0 0
        %4854 = vmatpush1.bf16.msra.mxu0 0
        %4855 = vmatprep.subr.bf16.mxu0 0
        %4856 = vmatpush1.bf16.msra.mxu0 0
        %4857 = vmatprep.subr.bf16.mxu0 0
        %4858 = vmatpush1.bf16.msra.mxu0 0
        %4859 = vmatprep.subr.bf16.mxu0 0
        %4860 = vmatpush1.bf16.msra.mxu0 0
        %4861 = vmatprep.subr.bf16.mxu0 0
        %4862 = vmatpush1.bf16.msra.mxu0 0
        %4863 = vmatprep.subr.bf16.mxu0 0
        %4864 = vmatpush1.bf16.msra.mxu0 0
        %4865 = vmatprep.subr.bf16.mxu0 0
        %4866 = vmatpush1.bf16.msra.mxu0 0
        %4867 = vmatprep.subr.bf16.mxu0 0
        %4868 = vmatpush1.bf16.msra.mxu0 0
        %4869 = vmatprep.subr.bf16.mxu0 0
        %4870 = vmatpush1.bf16.msra.mxu0 0
        %4871 = vmatprep.subr.bf16.mxu0 0
        %4872 = vmatpush1.bf16.msra.mxu0 0
        %4873 = vmatprep.subr.bf16.mxu0 0
        %4874 = vmatpush1.bf16.msra.mxu0 0
        %4875 = vmatprep.subr.bf16.mxu0 0
        %4876 = vmatpush1.bf16.msra.mxu0 0
        %4877 = vmatprep.subr.bf16.mxu0 0
        %4878 = vmatpush1.bf16.msra.mxu0 0
        %4879 = vmatprep.subr.bf16.mxu0 0
        %4880 = vmatpush1.bf16.msra.mxu0 0
        %4881 = vmatprep.mubr.bf16.mxu0 0
        %4882 = vmatmul.mubr.bf16.gmra.mrb[0].mxu0 %v4844
        %v4883 = vpop.f32.mrb[0].mxu0
        %v4884 = vadd.f32 0.0, %v4883
        %v4885 = vpop.f32.mrb[0].mxu0
        %v4886 = vpop.f32.mrb[0].mxu0
        %v4887 = vpop.f32.mrb[0].mxu0
        %4888 = vdwg.mxu0
        %4889 = vrot.lane.b32.xlu0 %v1565, 32
        %v4890 = vpop.permute.xlu0 %4889
        %v4892 = vsel %vm1753, %v4838, 0
        %v4895 = vsel %vm1805, %v4890, 0
        %4897 = vmatprep.subr.bf16.mxu0 0
        %4898 = vmatpush1.bf16.msra.mxu0 %v4895
        %4899 = vmatprep.subr.bf16.mxu0 0
        %4900 = vmatpush1.bf16.msra.mxu0 0
        %4901 = vmatprep.subr.bf16.mxu0 0
        %4902 = vmatpush1.bf16.msra.mxu0 0
        %4903 = vmatprep.subr.bf16.mxu0 0
        %4904 = vmatpush1.bf16.msra.mxu0 0
        %4905 = vmatprep.subr.bf16.mxu0 0
        %4906 = vmatpush1.bf16.msra.mxu0 0
        %4907 = vmatprep.subr.bf16.mxu0 0
        %4908 = vmatpush1.bf16.msra.mxu0 0
        %4909 = vmatprep.subr.bf16.mxu0 0
        %4910 = vmatpush1.bf16.msra.mxu0 0
        %4911 = vmatprep.subr.bf16.mxu0 0
        %4912 = vmatpush1.bf16.msra.mxu0 0
        %4913 = vmatprep.subr.bf16.mxu0 0
        %4914 = vmatpush1.bf16.msra.mxu0 0
        %4915 = vmatprep.subr.bf16.mxu0 0
        %4916 = vmatpush1.bf16.msra.mxu0 0
        %4917 = vmatprep.subr.bf16.mxu0 0
        %4918 = vmatpush1.bf16.msra.mxu0 0
        %4919 = vmatprep.subr.bf16.mxu0 0
        %4920 = vmatpush1.bf16.msra.mxu0 0
        %4921 = vmatprep.subr.bf16.mxu0 0
        %4922 = vmatpush1.bf16.msra.mxu0 0
        %4923 = vmatprep.subr.bf16.mxu0 0
        %4924 = vmatpush1.bf16.msra.mxu0 0
        %4925 = vmatprep.subr.bf16.mxu0 0
        %4926 = vmatpush1.bf16.msra.mxu0 0
        %4927 = vmatprep.subr.bf16.mxu0 0
        %4928 = vmatpush1.bf16.msra.mxu0 0
        %4929 = vmatprep.mubr.bf16.mxu0 0
        %4930 = vmatmul.mubr.bf16.gmra.mrb[0].mxu0 %v4892
        %v4931 = vpop.f32.mrb[0].mxu0
        %v4932 = vadd.f32 0.0, %v4931
        %v4933 = vpop.f32.mrb[0].mxu0
        %v4934 = vpop.f32.mrb[0].mxu0
        %v4935 = vpop.f32.mrb[0].mxu0
        %4936 = vdwg.mxu0
        %4937 = vrot.lane.b32.xlu0 %v1566, 32
        %v4938 = vpop.permute.xlu0 %4937
        %v4940 = vsel %vm1753, %v4839, 0
        %v4943 = vsel %vm1805, %v4938, 0
        %4945 = vmatprep.subr.bf16.mxu0 0
        %4946 = vmatpush1.bf16.msra.mxu0 %v4943
        %4947 = vmatprep.subr.bf16.mxu0 0
        %4948 = vmatpush1.bf16.msra.mxu0 0
        %4949 = vmatprep.subr.bf16.mxu0 0
        %4950 = vmatpush1.bf16.msra.mxu0 0
        %4951 = vmatprep.subr.bf16.mxu0 0
        %4952 = vmatpush1.bf16.msra.mxu0 0
        %4953 = vmatprep.subr.bf16.mxu0 0
        %4954 = vmatpush1.bf16.msra.mxu0 0
        %4955 = vmatprep.subr.bf16.mxu0 0
        %4956 = vmatpush1.bf16.msra.mxu0 0
        %4957 = vmatprep.subr.bf16.mxu0 0
        %4958 = vmatpush1.bf16.msra.mxu0 0
        %4959 = vmatprep.subr.bf16.mxu0 0
        %4960 = vmatpush1.bf16.msra.mxu0 0
        %4961 = vmatprep.subr.bf16.mxu0 0
        %4962 = vmatpush1.bf16.msra.mxu0 0
        %4963 = vmatprep.subr.bf16.mxu0 0
        %4964 = vmatpush1.bf16.msra.mxu0 0
        %4965 = vmatprep.subr.bf16.mxu0 0
        %4966 = vmatpush1.bf16.msra.mxu0 0
        %4967 = vmatprep.subr.bf16.mxu0 0
        %4968 = vmatpush1.bf16.msra.mxu0 0
        %4969 = vmatprep.subr.bf16.mxu0 0
        %4970 = vmatpush1.bf16.msra.mxu0 0
        %4971 = vmatprep.subr.bf16.mxu0 0
        %4972 = vmatpush1.bf16.msra.mxu0 0
        %4973 = vmatprep.subr.bf16.mxu0 0
        %4974 = vmatpush1.bf16.msra.mxu0 0
        %4975 = vmatprep.subr.bf16.mxu0 0
        %4976 = vmatpush1.bf16.msra.mxu0 0
        %4977 = vmatprep.mubr.bf16.mxu0 0
        %4978 = vmatmul.mubr.bf16.gmra.mrb[0].mxu0 %v4940
        %v4979 = vpop.f32.mrb[0].mxu0
        %v4980 = vadd.f32 0.0, %v4979
        %v4981 = vpop.f32.mrb[0].mxu0
        %v4982 = vpop.f32.mrb[0].mxu0
        %v4983 = vpop.f32.mrb[0].mxu0
        %4984 = vdwg.mxu0
        %4985 = vrot.lane.b32.xlu0 %v1567, 32
        %v4986 = vpop.permute.xlu0 %4985
        %v4988 = vsel %vm1753, %v4840, 0
        %v4991 = vsel %vm1805, %v4986, 0
        %4993 = vmatprep.subr.bf16.mxu0 0
        %4994 = vmatpush1.bf16.msra.mxu0 %v4991
        %4995 = vmatprep.subr.bf16.mxu0 0
        %4996 = vmatpush1.bf16.msra.mxu0 0
        %4997 = vmatprep.subr.bf16.mxu0 0
        %4998 = vmatpush1.bf16.msra.mxu0 0
        %4999 = vmatprep.subr.bf16.mxu0 0
        %5000 = vmatpush1.bf16.msra.mxu0 0
        %5001 = vmatprep.subr.bf16.mxu0 0
        %5002 = vmatpush1.bf16.msra.mxu0 0
        %5003 = vmatprep.subr.bf16.mxu0 0
        %5004 = vmatpush1.bf16.msra.mxu0 0
        %5005 = vmatprep.subr.bf16.mxu0 0
        %5006 = vmatpush1.bf16.msra.mxu0 0
        %5007 = vmatprep.subr.bf16.mxu0 0
        %5008 = vmatpush1.bf16.msra.mxu0 0
        %5009 = vmatprep.subr.bf16.mxu0 0
        %5010 = vmatpush1.bf16.msra.mxu0 0
        %5011 = vmatprep.subr.bf16.mxu0 0
        %5012 = vmatpush1.bf16.msra.mxu0 0
        %5013 = vmatprep.subr.bf16.mxu0 0
        %5014 = vmatpush1.bf16.msra.mxu0 0
        %5015 = vmatprep.subr.bf16.mxu0 0
        %5016 = vmatpush1.bf16.msra.mxu0 0
        %5017 = vmatprep.subr.bf16.mxu0 0
        %5018 = vmatpush1.bf16.msra.mxu0 0
        %5019 = vmatprep.subr.bf16.mxu0 0
        %5020 = vmatpush1.bf16.msra.mxu0 0
        %5021 = vmatprep.subr.bf16.mxu0 0
        %5022 = vmatpush1.bf16.msra.mxu0 0
        %5023 = vmatprep.subr.bf16.mxu0 0
        %5024 = vmatpush1.bf16.msra.mxu0 0
        %5025 = vmatprep.mubr.bf16.mxu0 0
        %5026 = vmatmul.mubr.bf16.gmra.mrb[0].mxu0 %v4988
        %v5027 = vpop.f32.mrb[0].mxu0
        %v5028 = vadd.f32 0.0, %v5027
        %v5029 = vpop.f32.mrb[0].mxu0
        %v5030 = vpop.f32.mrb[0].mxu0
        %v5031 = vpop.f32.mrb[0].mxu0
        %5032 = vdwg.mxu0
        %v5033 = vpack.c.bf16 %v4932, %v4884
        %v5034 = vpack.c.bf16 %v5028, %v4980
        %v5037 = vunpack.c.l.b16 %v1552
        %v5038 = vunpack.c.l.b16 %v1553
        %v5039 = vpack.c.b16 %v5038, %v5037
        %v5042 = vsel %vm1568, %v5033, 0
        %v5045 = vsel %vm1568, %v5034, 0
        %5047 = vmatprep.subr.bf16.mxu0 0
        %5048 = vmatpush1.bf16.msra.mxu0 %v5039
        %5049 = vmatprep.subr.bf16.mxu0 0
        %5050 = vmatpush1.bf16.msra.mxu0 0
        %5051 = vmatprep.subr.bf16.mxu0 0
        %5052 = vmatpush1.bf16.msra.mxu0 0
        %5053 = vmatprep.subr.bf16.mxu0 0
        %5054 = vmatpush1.bf16.msra.mxu0 0
        %5055 = vmatprep.subr.bf16.mxu0 0
        %5056 = vmatpush1.bf16.msra.mxu0 0
        %5057 = vmatprep.subr.bf16.mxu0 0
        %5058 = vmatpush1.bf16.msra.mxu0 0
        %5059 = vmatprep.subr.bf16.mxu0 0
        %5060 = vmatpush1.bf16.msra.mxu0 0
        %5061 = vmatprep.subr.bf16.mxu0 0
        %5062 = vmatpush1.bf16.msra.mxu0 0
        %5063 = vmatprep.subr.bf16.mxu0 0
        %5064 = vmatpush1.bf16.msra.mxu0 0
        %5065 = vmatprep.subr.bf16.mxu0 0
        %5066 = vmatpush1.bf16.msra.mxu0 0
        %5067 = vmatprep.subr.bf16.mxu0 0
        %5068 = vmatpush1.bf16.msra.mxu0 0
        %5069 = vmatprep.subr.bf16.mxu0 0
        %5070 = vmatpush1.bf16.msra.mxu0 0
        %5071 = vmatprep.subr.bf16.mxu0 0
        %5072 = vmatpush1.bf16.msra.mxu0 0
        %5073 = vmatprep.subr.bf16.mxu0 0
        %5074 = vmatpush1.bf16.msra.mxu0 0
        %5075 = vmatprep.subr.bf16.mxu0 0
        %5076 = vmatpush1.bf16.msra.mxu0 0
        %5077 = vmatprep.subr.bf16.mxu0 0
        %5078 = vmatpush1.bf16.msra.mxu0 0
        %5079 = vmatprep.mubr.bf16.mxu0 0
        %5080 = vmatmul.mubr.bf16.gmra.mrb[0].mxu0 %v5042
        %v5081 = vpop.f32.mrb[0].mxu0
        %v5082 = vadd.f32 0.0, %v5081
        %v5083 = vpop.f32.mrb[0].mxu0
        %v5084 = vpop.f32.mrb[0].mxu0
        %v5085 = vadd.f32 0.0, %v5084
        %v5086 = vpop.f32.mrb[0].mxu0
        %5087 = vmatprep.mubr.bf16.mxu0 0
        %5088 = vmatmul.mubr.bf16.gmra.mrb[0].mxu0 %v5045
        %v5089 = vpop.f32.mrb[0].mxu0
        %v5090 = vadd.f32 0.0, %v5089
        %v5091 = vpop.f32.mrb[0].mxu0
        %v5092 = vpop.f32.mrb[0].mxu0
        %v5093 = vadd.f32 0.0, %v5092
        %v5094 = vpop.f32.mrb[0].mxu0
        %5095 = vdwg.mxu0
        %v5096 = vadd.f32 %v4589, %v5082
        %v5097 = vadd.f32 %v4590, %v5085
        %v5098 = vadd.f32 %v4591, %v5090
        %v5099 = vadd.f32 %v4592, %v5093
        %5100 = vrot.lane.b32.xlu0 %v1556, 16
        %v5101 = vpop.permute.xlu0 %5100
        %5102 = vrot.lane.b32.xlu0 %v1560, 16
        %v5103 = vpop.permute.xlu0 %5102
        %v5105 = vsel %vm1568, %v5101, 0
        %v5108 = vsel %vm1568, %v5103, 0
        %5110 = vmatprep.subr.bf16.mxu0 0
        %5111 = vmatpush1.bf16.xpose.msra.mxu0 %v5108
        %5112 = vmatprep.subr.bf16.mxu0 0
        %5113 = vmatpush1.bf16.xpose.msra.mxu0 0
        %5114 = vmatprep.subr.bf16.mxu0 0
        %5115 = vmatpush1.bf16.xpose.msra.mxu0 0
        %5116 = vmatprep.subr.bf16.mxu0 0
        %5117 = vmatpush1.bf16.xpose.msra.mxu0 0
        %5118 = vmatprep.subr.bf16.mxu0 0
        %5119 = vmatpush1.bf16.xpose.msra.mxu0 0
        %5120 = vmatprep.subr.bf16.mxu0 0
        %5121 = vmatpush1.bf16.xpose.msra.mxu0 0
        %5122 = vmatprep.subr.bf16.mxu0 0
        %5123 = vmatpush1.bf16.xpose.msra.mxu0 0
        %5124 = vmatprep.subr.bf16.mxu0 0
        %5125 = vmatpush1.bf16.xpose.msra.mxu0 0
        %5126 = vmatprep.subr.bf16.mxu0 0
        %5127 = vmatpush1.bf16.xpose.msra.mxu0 0
        %5128 = vmatprep.subr.bf16.mxu0 0
        %5129 = vmatpush1.bf16.xpose.msra.mxu0 0
        %5130 = vmatprep.subr.bf16.mxu0 0
        %5131 = vmatpush1.bf16.xpose.msra.mxu0 0
        %5132 = vmatprep.subr.bf16.mxu0 0
        %5133 = vmatpush1.bf16.xpose.msra.mxu0 0
        %5134 = vmatprep.subr.bf16.mxu0 0
        %5135 = vmatpush1.bf16.xpose.msra.mxu0 0
        %5136 = vmatprep.subr.bf16.mxu0 0
        %5137 = vmatpush1.bf16.xpose.msra.mxu0 0
        %5138 = vmatprep.subr.bf16.mxu0 0
        %5139 = vmatpush1.bf16.xpose.msra.mxu0 0
        %5140 = vmatprep.subr.bf16.mxu0 0
        %5141 = vmatpush1.bf16.xpose.msra.mxu0 0
        %5142 = vmatprep.mubr.bf16.mxu0 0
        %5143 = vmatmul.mubr.bf16.gmra.mrb[0].mxu0 %v5105
        %v5144 = vpop.f32.mrb[0].mxu0
        %v5145 = vadd.f32 0.0, %v5144
        %v5146 = vpop.f32.mrb[0].mxu0
        %v5147 = vpop.f32.mrb[0].mxu0
        %v5148 = vpop.f32.mrb[0].mxu0
        %5149 = vdwg.mxu0
        %5150 = vrot.lane.b32.xlu0 %v1557, 16
        %v5151 = vpop.permute.xlu0 %5150
        %5152 = vrot.lane.b32.xlu0 %v1561, 16
        %v5153 = vpop.permute.xlu0 %5152
        %v5155 = vsel %vm1568, %v5151, 0
        %v5158 = vsel %vm1568, %v5153, 0
        %5160 = vmatprep.subr.bf16.mxu0 0
        %5161 = vmatpush1.bf16.xpose.msra.mxu0 %v5158
        %5162 = vmatprep.subr.bf16.mxu0 0
        %5163 = vmatpush1.bf16.xpose.msra.mxu0 0
        %5164 = vmatprep.subr.bf16.mxu0 0
        %5165 = vmatpush1.bf16.xpose.msra.mxu0 0
        %5166 = vmatprep.subr.bf16.mxu0 0
        %5167 = vmatpush1.bf16.xpose.msra.mxu0 0
        %5168 = vmatprep.subr.bf16.mxu0 0
        %5169 = vmatpush1.bf16.xpose.msra.mxu0 0
        %5170 = vmatprep.subr.bf16.mxu0 0
        %5171 = vmatpush1.bf16.xpose.msra.mxu0 0
        %5172 = vmatprep.subr.bf16.mxu0 0
        %5173 = vmatpush1.bf16.xpose.msra.mxu0 0
        %5174 = vmatprep.subr.bf16.mxu0 0
        %5175 = vmatpush1.bf16.xpose.msra.mxu0 0
        %5176 = vmatprep.subr.bf16.mxu0 0
        %5177 = vmatpush1.bf16.xpose.msra.mxu0 0
        %5178 = vmatprep.subr.bf16.mxu0 0
        %5179 = vmatpush1.bf16.xpose.msra.mxu0 0
        %5180 = vmatprep.subr.bf16.mxu0 0
        %5181 = vmatpush1.bf16.xpose.msra.mxu0 0
        %5182 = vmatprep.subr.bf16.mxu0 0
        %5183 = vmatpush1.bf16.xpose.msra.mxu0 0
        %5184 = vmatprep.subr.bf16.mxu0 0
        %5185 = vmatpush1.bf16.xpose.msra.mxu0 0
        %5186 = vmatprep.subr.bf16.mxu0 0
        %5187 = vmatpush1.bf16.xpose.msra.mxu0 0
        %5188 = vmatprep.subr.bf16.mxu0 0
        %5189 = vmatpush1.bf16.xpose.msra.mxu0 0
        %5190 = vmatprep.subr.bf16.mxu0 0
        %5191 = vmatpush1.bf16.xpose.msra.mxu0 0
        %5192 = vmatprep.mubr.bf16.mxu0 0
        %5193 = vmatmul.mubr.bf16.gmra.mrb[0].mxu0 %v5155
        %v5194 = vpop.f32.mrb[0].mxu0
        %v5195 = vadd.f32 0.0, %v5194
        %v5196 = vpop.f32.mrb[0].mxu0
        %v5197 = vpop.f32.mrb[0].mxu0
        %v5198 = vpop.f32.mrb[0].mxu0
        %5199 = vdwg.mxu0
        %5200 = vrot.lane.b32.xlu0 %v1558, 16
        %v5201 = vpop.permute.xlu0 %5200
        %5202 = vrot.lane.b32.xlu0 %v1562, 16
        %v5203 = vpop.permute.xlu0 %5202
        %v5205 = vsel %vm1568, %v5201, 0
        %v5208 = vsel %vm1568, %v5203, 0
        %5210 = vmatprep.subr.bf16.mxu0 0
        %5211 = vmatpush1.bf16.xpose.msra.mxu0 %v5208
        %5212 = vmatprep.subr.bf16.mxu0 0
        %5213 = vmatpush1.bf16.xpose.msra.mxu0 0
        %5214 = vmatprep.subr.bf16.mxu0 0
        %5215 = vmatpush1.bf16.xpose.msra.mxu0 0
        %5216 = vmatprep.subr.bf16.mxu0 0
        %5217 = vmatpush1.bf16.xpose.msra.mxu0 0
        %5218 = vmatprep.subr.bf16.mxu0 0
        %5219 = vmatpush1.bf16.xpose.msra.mxu0 0
        %5220 = vmatprep.subr.bf16.mxu0 0
        %5221 = vmatpush1.bf16.xpose.msra.mxu0 0
        %5222 = vmatprep.subr.bf16.mxu0 0
        %5223 = vmatpush1.bf16.xpose.msra.mxu0 0
        %5224 = vmatprep.subr.bf16.mxu0 0
        %5225 = vmatpush1.bf16.xpose.msra.mxu0 0
        %5226 = vmatprep.subr.bf16.mxu0 0
        %5227 = vmatpush1.bf16.xpose.msra.mxu0 0
        %5228 = vmatprep.subr.bf16.mxu0 0
        %5229 = vmatpush1.bf16.xpose.msra.mxu0 0
        %5230 = vmatprep.subr.bf16.mxu0 0
        %5231 = vmatpush1.bf16.xpose.msra.mxu0 0
        %5232 = vmatprep.subr.bf16.mxu0 0
        %5233 = vmatpush1.bf16.xpose.msra.mxu0 0
        %5234 = vmatprep.subr.bf16.mxu0 0
        %5235 = vmatpush1.bf16.xpose.msra.mxu0 0
        %5236 = vmatprep.subr.bf16.mxu0 0
        %5237 = vmatpush1.bf16.xpose.msra.mxu0 0
        %5238 = vmatprep.subr.bf16.mxu0 0
        %5239 = vmatpush1.bf16.xpose.msra.mxu0 0
        %5240 = vmatprep.subr.bf16.mxu0 0
        %5241 = vmatpush1.bf16.xpose.msra.mxu0 0
        %5242 = vmatprep.mubr.bf16.mxu0 0
        %5243 = vmatmul.mubr.bf16.gmra.mrb[0].mxu0 %v5205
        %v5244 = vpop.f32.mrb[0].mxu0
        %v5245 = vadd.f32 0.0, %v5244
        %v5246 = vpop.f32.mrb[0].mxu0
        %v5247 = vpop.f32.mrb[0].mxu0
        %v5248 = vpop.f32.mrb[0].mxu0
        %5249 = vdwg.mxu0
        %5250 = vrot.lane.b32.xlu0 %v1559, 16
        %v5251 = vpop.permute.xlu0 %5250
        %5252 = vrot.lane.b32.xlu0 %v1563, 16
        %v5253 = vpop.permute.xlu0 %5252
        %v5255 = vsel %vm1568, %v5251, 0
        %v5258 = vsel %vm1568, %v5253, 0
        %5260 = vmatprep.subr.bf16.mxu0 0
        %5261 = vmatpush1.bf16.xpose.msra.mxu0 %v5258
        %5262 = vmatprep.subr.bf16.mxu0 0
        %5263 = vmatpush1.bf16.xpose.msra.mxu0 0
        %5264 = vmatprep.subr.bf16.mxu0 0
        %5265 = vmatpush1.bf16.xpose.msra.mxu0 0
        %5266 = vmatprep.subr.bf16.mxu0 0
        %5267 = vmatpush1.bf16.xpose.msra.mxu0 0
        %5268 = vmatprep.subr.bf16.mxu0 0
        %5269 = vmatpush1.bf16.xpose.msra.mxu0 0
        %5270 = vmatprep.subr.bf16.mxu0 0
        %5271 = vmatpush1.bf16.xpose.msra.mxu0 0
        %5272 = vmatprep.subr.bf16.mxu0 0
        %5273 = vmatpush1.bf16.xpose.msra.mxu0 0
        %5274 = vmatprep.subr.bf16.mxu0 0
        %5275 = vmatpush1.bf16.xpose.msra.mxu0 0
        %5276 = vmatprep.subr.bf16.mxu0 0
        %5277 = vmatpush1.bf16.xpose.msra.mxu0 0
        %5278 = vmatprep.subr.bf16.mxu0 0
        %5279 = vmatpush1.bf16.xpose.msra.mxu0 0
        %5280 = vmatprep.subr.bf16.mxu0 0
        %5281 = vmatpush1.bf16.xpose.msra.mxu0 0
        %5282 = vmatprep.subr.bf16.mxu0 0
        %5283 = vmatpush1.bf16.xpose.msra.mxu0 0
        %5284 = vmatprep.subr.bf16.mxu0 0
        %5285 = vmatpush1.bf16.xpose.msra.mxu0 0
        %5286 = vmatprep.subr.bf16.mxu0 0
        %5287 = vmatpush1.bf16.xpose.msra.mxu0 0
        %5288 = vmatprep.subr.bf16.mxu0 0
        %5289 = vmatpush1.bf16.xpose.msra.mxu0 0
        %5290 = vmatprep.subr.bf16.mxu0 0
        %5291 = vmatpush1.bf16.xpose.msra.mxu0 0
        %5292 = vmatprep.mubr.bf16.mxu0 0
        %5293 = vmatmul.mubr.bf16.gmra.mrb[0].mxu0 %v5255
        %v5294 = vpop.f32.mrb[0].mxu0
        %v5295 = vadd.f32 0.0, %v5294
        %v5296 = vpop.f32.mrb[0].mxu0
        %v5297 = vpop.f32.mrb[0].mxu0
        %v5298 = vpop.f32.mrb[0].mxu0
        %5299 = vdwg.mxu0
        %v5300 = vsel %vm1753, %v5145, -inf
        %5301 = vmax.xlane.f32.xlu0 %v5300
        %v5302 = vpop.xlane.xlu0 %5301
        %v5303 = vsel %vm1753, %v5195, -inf
        %5304 = vmax.xlane.f32.xlu0 %v5303
        %v5305 = vpop.xlane.xlu0 %5304
        %v5306 = vsel %vm1753, %v5245, -inf
        %5307 = vmax.xlane.f32.xlu0 %v5306
        %v5308 = vpop.xlane.xlu0 %5307
        %v5309 = vsel %vm1753, %v5295, -inf
        %5310 = vmax.xlane.f32.xlu0 %v5309
        %v5311 = vpop.xlane.xlu0 %5310
        %v5312 = vsub.f32 %v5145, %v5302
        %v5313 = vsub.f32 %v5195, %v5305
        %v5314 = vsub.f32 %v5245, %v5308
        %v5315 = vsub.f32 %v5295, %v5311
        %v5316 = vmul.f32 %v5312, 1.442695
        %v5317 = vpow.pop %v5316
        %v5318 = vmul.f32 %v5313, 1.442695
        %v5319 = vpow.pop %v5318
        %v5320 = vmul.f32 %v5314, 1.442695
        %v5321 = vpow.pop %v5320
        %v5322 = vmul.f32 %v5315, 1.442695
        %v5323 = vpow.pop %v5322
        %v5324 = vsel %vm1753, %v5317, 0.0
        %5325 = vadd.xlane.f32.xlu0 %v5324
        %v5326 = vpop.xlane.xlu0 %5325
        %v5327 = vsel %vm1753, %v5319, 0.0
        %5328 = vadd.xlane.f32.xlu0 %v5327
        %v5329 = vpop.xlane.xlu0 %5328
        %v5330 = vsel %vm1753, %v5321, 0.0
        %5331 = vadd.xlane.f32.xlu0 %v5330
        %v5332 = vpop.xlane.xlu0 %5331
        %v5333 = vsel %vm1753, %v5323, 0.0
        %5334 = vadd.xlane.f32.xlu0 %v5333
        %v5335 = vpop.xlane.xlu0 %5334
        %v5336 = vrcp.pop %v5326
        %v5337 = vrcp.pop %v5329
        %v5338 = vrcp.pop %v5332
        %v5339 = vrcp.pop %v5335
        %v5340 = vmul.f32 %v5317, %v5336
        %v5341 = vmul.f32 %v5319, %v5337
        %v5342 = vmul.f32 %v5321, %v5338
        %v5343 = vmul.f32 %v5323, %v5339
        %v5344 = vpack.c.bf16 %v5340, %v5340
        %v5345 = vpack.c.bf16 %v5341, %v5341
        %v5346 = vpack.c.bf16 %v5342, %v5342
        %v5347 = vpack.c.bf16 %v5343, %v5343
        %5348 = vrot.lane.b32.xlu0 %v1564, 16
        %v5349 = vpop.permute.xlu0 %5348
        %v5351 = vsel %vm1753, %v5344, 0
        %v5354 = vsel %vm1805, %v5349, 0
        %5356 = vmatprep.subr.bf16.mxu0 0
        %5357 = vmatpush1.bf16.msra.mxu0 %v5354
        %5358 = vmatprep.subr.bf16.mxu0 0
        %5359 = vmatpush1.bf16.msra.mxu0 0
        %5360 = vmatprep.subr.bf16.mxu0 0
        %5361 = vmatpush1.bf16.msra.mxu0 0
        %5362 = vmatprep.subr.bf16.mxu0 0
        %5363 = vmatpush1.bf16.msra.mxu0 0
        %5364 = vmatprep.subr.bf16.mxu0 0
        %5365 = vmatpush1.bf16.msra.mxu0 0
        %5366 = vmatprep.subr.bf16.mxu0 0
        %5367 = vmatpush1.bf16.msra.mxu0 0
        %5368 = vmatprep.subr.bf16.mxu0 0
        %5369 = vmatpush1.bf16.msra.mxu0 0
        %5370 = vmatprep.subr.bf16.mxu0 0
        %5371 = vmatpush1.bf16.msra.mxu0 0
        %5372 = vmatprep.subr.bf16.mxu0 0
        %5373 = vmatpush1.bf16.msra.mxu0 0
        %5374 = vmatprep.subr.bf16.mxu0 0
        %5375 = vmatpush1.bf16.msra.mxu0 0
        %5376 = vmatprep.subr.bf16.mxu0 0
        %5377 = vmatpush1.bf16.msra.mxu0 0
        %5378 = vmatprep.subr.bf16.mxu0 0
        %5379 = vmatpush1.bf16.msra.mxu0 0
        %5380 = vmatprep.subr.bf16.mxu0 0
        %5381 = vmatpush1.bf16.msra.mxu0 0
        %5382 = vmatprep.subr.bf16.mxu0 0
        %5383 = vmatpush1.bf16.msra.mxu0 0
        %5384 = vmatprep.subr.bf16.mxu0 0
        %5385 = vmatpush1.bf16.msra.mxu0 0
        %5386 = vmatprep.subr.bf16.mxu0 0
        %5387 = vmatpush1.bf16.msra.mxu0 0
        %5388 = vmatprep.mubr.bf16.mxu0 0
        %5389 = vmatmul.mubr.bf16.gmra.mrb[0].mxu0 %v5351
        %v5390 = vpop.f32.mrb[0].mxu0
        %v5391 = vadd.f32 0.0, %v5390
        %v5392 = vpop.f32.mrb[0].mxu0
        %v5393 = vpop.f32.mrb[0].mxu0
        %v5394 = vpop.f32.mrb[0].mxu0
        %5395 = vdwg.mxu0
        %5396 = vrot.lane.b32.xlu0 %v1565, 16
        %v5397 = vpop.permute.xlu0 %5396
        %v5399 = vsel %vm1753, %v5345, 0
        %v5402 = vsel %vm1805, %v5397, 0
        %5404 = vmatprep.subr.bf16.mxu0 0
        %5405 = vmatpush1.bf16.msra.mxu0 %v5402
        %5406 = vmatprep.subr.bf16.mxu0 0
        %5407 = vmatpush1.bf16.msra.mxu0 0
        %5408 = vmatprep.subr.bf16.mxu0 0
        %5409 = vmatpush1.bf16.msra.mxu0 0
        %5410 = vmatprep.subr.bf16.mxu0 0
        %5411 = vmatpush1.bf16.msra.mxu0 0
        %5412 = vmatprep.subr.bf16.mxu0 0
        %5413 = vmatpush1.bf16.msra.mxu0 0
        %5414 = vmatprep.subr.bf16.mxu0 0
        %5415 = vmatpush1.bf16.msra.mxu0 0
        %5416 = vmatprep.subr.bf16.mxu0 0
        %5417 = vmatpush1.bf16.msra.mxu0 0
        %5418 = vmatprep.subr.bf16.mxu0 0
        %5419 = vmatpush1.bf16.msra.mxu0 0
        %5420 = vmatprep.subr.bf16.mxu0 0
        %5421 = vmatpush1.bf16.msra.mxu0 0
        %5422 = vmatprep.subr.bf16.mxu0 0
        %5423 = vmatpush1.bf16.msra.mxu0 0
        %5424 = vmatprep.subr.bf16.mxu0 0
        %5425 = vmatpush1.bf16.msra.mxu0 0
        %5426 = vmatprep.subr.bf16.mxu0 0
        %5427 = vmatpush1.bf16.msra.mxu0 0
        %5428 = vmatprep.subr.bf16.mxu0 0
        %5429 = vmatpush1.bf16.msra.mxu0 0
        %5430 = vmatprep.subr.bf16.mxu0 0
        %5431 = vmatpush1.bf16.msra.mxu0 0
        %5432 = vmatprep.subr.bf16.mxu0 0
        %5433 = vmatpush1.bf16.msra.mxu0 0
        %5434 = vmatprep.subr.bf16.mxu0 0
        %5435 = vmatpush1.bf16.msra.mxu0 0
        %5436 = vmatprep.mubr.bf16.mxu0 0
        %5437 = vmatmul.mubr.bf16.gmra.mrb[0].mxu0 %v5399
        %v5438 = vpop.f32.mrb[0].mxu0
        %v5439 = vadd.f32 0.0, %v5438
        %v5440 = vpop.f32.mrb[0].mxu0
        %v5441 = vpop.f32.mrb[0].mxu0
        %v5442 = vpop.f32.mrb[0].mxu0
        %5443 = vdwg.mxu0
        %5444 = vrot.lane.b32.xlu0 %v1566, 16
        %v5445 = vpop.permute.xlu0 %5444
        %v5447 = vsel %vm1753, %v5346, 0
        %v5450 = vsel %vm1805, %v5445, 0
        %5452 = vmatprep.subr.bf16.mxu0 0
        %5453 = vmatpush1.bf16.msra.mxu0 %v5450
        %5454 = vmatprep.subr.bf16.mxu0 0
        %5455 = vmatpush1.bf16.msra.mxu0 0
        %5456 = vmatprep.subr.bf16.mxu0 0
        %5457 = vmatpush1.bf16.msra.mxu0 0
        %5458 = vmatprep.subr.bf16.mxu0 0
        %5459 = vmatpush1.bf16.msra.mxu0 0
        %5460 = vmatprep.subr.bf16.mxu0 0
        %5461 = vmatpush1.bf16.msra.mxu0 0
        %5462 = vmatprep.subr.bf16.mxu0 0
        %5463 = vmatpush1.bf16.msra.mxu0 0
        %5464 = vmatprep.subr.bf16.mxu0 0
        %5465 = vmatpush1.bf16.msra.mxu0 0
        %5466 = vmatprep.subr.bf16.mxu0 0
        %5467 = vmatpush1.bf16.msra.mxu0 0
        %5468 = vmatprep.subr.bf16.mxu0 0
        %5469 = vmatpush1.bf16.msra.mxu0 0
        %5470 = vmatprep.subr.bf16.mxu0 0
        %5471 = vmatpush1.bf16.msra.mxu0 0
        %5472 = vmatprep.subr.bf16.mxu0 0
        %5473 = vmatpush1.bf16.msra.mxu0 0
        %5474 = vmatprep.subr.bf16.mxu0 0
        %5475 = vmatpush1.bf16.msra.mxu0 0
        %5476 = vmatprep.subr.bf16.mxu0 0
        %5477 = vmatpush1.bf16.msra.mxu0 0
        %5478 = vmatprep.subr.bf16.mxu0 0
        %5479 = vmatpush1.bf16.msra.mxu0 0
        %5480 = vmatprep.subr.bf16.mxu0 0
        %5481 = vmatpush1.bf16.msra.mxu0 0
        %5482 = vmatprep.subr.bf16.mxu0 0
        %5483 = vmatpush1.bf16.msra.mxu0 0
        %5484 = vmatprep.mubr.bf16.mxu0 0
        %5485 = vmatmul.mubr.bf16.gmra.mrb[0].mxu0 %v5447
        %v5486 = vpop.f32.mrb[0].mxu0
        %v5487 = vadd.f32 0.0, %v5486
        %v5488 = vpop.f32.mrb[0].mxu0
        %v5489 = vpop.f32.mrb[0].mxu0
        %v5490 = vpop.f32.mrb[0].mxu0
        %5491 = vdwg.mxu0
        %5492 = vrot.lane.b32.xlu0 %v1567, 16
        %v5493 = vpop.permute.xlu0 %5492
        %v5495 = vsel %vm1753, %v5347, 0
        %v5498 = vsel %vm1805, %v5493, 0
        %5500 = vmatprep.subr.bf16.mxu0 0
        %5501 = vmatpush1.bf16.msra.mxu0 %v5498
        %5502 = vmatprep.subr.bf16.mxu0 0
        %5503 = vmatpush1.bf16.msra.mxu0 0
        %5504 = vmatprep.subr.bf16.mxu0 0
        %5505 = vmatpush1.bf16.msra.mxu0 0
        %5506 = vmatprep.subr.bf16.mxu0 0
        %5507 = vmatpush1.bf16.msra.mxu0 0
        %5508 = vmatprep.subr.bf16.mxu0 0
        %5509 = vmatpush1.bf16.msra.mxu0 0
        %5510 = vmatprep.subr.bf16.mxu0 0
        %5511 = vmatpush1.bf16.msra.mxu0 0
        %5512 = vmatprep.subr.bf16.mxu0 0
        %5513 = vmatpush1.bf16.msra.mxu0 0
        %5514 = vmatprep.subr.bf16.mxu0 0
        %5515 = vmatpush1.bf16.msra.mxu0 0
        %5516 = vmatprep.subr.bf16.mxu0 0
        %5517 = vmatpush1.bf16.msra.mxu0 0
        %5518 = vmatprep.subr.bf16.mxu0 0
        %5519 = vmatpush1.bf16.msra.mxu0 0
        %5520 = vmatprep.subr.bf16.mxu0 0
        %5521 = vmatpush1.bf16.msra.mxu0 0
        %5522 = vmatprep.subr.bf16.mxu0 0
        %5523 = vmatpush1.bf16.msra.mxu0 0
        %5524 = vmatprep.subr.bf16.mxu0 0
        %5525 = vmatpush1.bf16.msra.mxu0 0
        %5526 = vmatprep.subr.bf16.mxu0 0
        %5527 = vmatpush1.bf16.msra.mxu0 0
        %5528 = vmatprep.subr.bf16.mxu0 0
        %5529 = vmatpush1.bf16.msra.mxu0 0
        %5530 = vmatprep.subr.bf16.mxu0 0
        %5531 = vmatpush1.bf16.msra.mxu0 0
        %5532 = vmatprep.mubr.bf16.mxu0 0
        %5533 = vmatmul.mubr.bf16.gmra.mrb[0].mxu0 %v5495
        %v5534 = vpop.f32.mrb[0].mxu0
        %v5535 = vadd.f32 0.0, %v5534
        %v5536 = vpop.f32.mrb[0].mxu0
        %v5537 = vpop.f32.mrb[0].mxu0
        %v5538 = vpop.f32.mrb[0].mxu0
        %5539 = vdwg.mxu0
        %v5540 = vpack.c.bf16 %v5439, %v5391
        %v5541 = vpack.c.bf16 %v5535, %v5487
        %v5544 = vunpack.c.l.b16 %v1554
        %v5545 = vunpack.c.l.b16 %v1555
        %v5546 = vpack.c.b16 %v5545, %v5544
        %v5549 = vsel %vm1568, %v5540, 0
        %v5552 = vsel %vm1568, %v5541, 0
        %5554 = vmatprep.subr.bf16.mxu0 0
        %5555 = vmatpush1.bf16.msra.mxu0 %v5546
        %5556 = vmatprep.subr.bf16.mxu0 0
        %5557 = vmatpush1.bf16.msra.mxu0 0
        %5558 = vmatprep.subr.bf16.mxu0 0
        %5559 = vmatpush1.bf16.msra.mxu0 0
        %5560 = vmatprep.subr.bf16.mxu0 0
        %5561 = vmatpush1.bf16.msra.mxu0 0
        %5562 = vmatprep.subr.bf16.mxu0 0
        %5563 = vmatpush1.bf16.msra.mxu0 0
        %5564 = vmatprep.subr.bf16.mxu0 0
        %5565 = vmatpush1.bf16.msra.mxu0 0
        %5566 = vmatprep.subr.bf16.mxu0 0
        %5567 = vmatpush1.bf16.msra.mxu0 0
        %5568 = vmatprep.subr.bf16.mxu0 0
        %5569 = vmatpush1.bf16.msra.mxu0 0
        %5570 = vmatprep.subr.bf16.mxu0 0
        %5571 = vmatpush1.bf16.msra.mxu0 0
        %5572 = vmatprep.subr.bf16.mxu0 0
        %5573 = vmatpush1.bf16.msra.mxu0 0
        %5574 = vmatprep.subr.bf16.mxu0 0
        %5575 = vmatpush1.bf16.msra.mxu0 0
        %5576 = vmatprep.subr.bf16.mxu0 0
        %5577 = vmatpush1.bf16.msra.mxu0 0
        %5578 = vmatprep.subr.bf16.mxu0 0
        %5579 = vmatpush1.bf16.msra.mxu0 0
        %5580 = vmatprep.subr.bf16.mxu0 0
        %5581 = vmatpush1.bf16.msra.mxu0 0
        %5582 = vmatprep.subr.bf16.mxu0 0
        %5583 = vmatpush1.bf16.msra.mxu0 0
        %5584 = vmatprep.subr.bf16.mxu0 0
        %5585 = vmatpush1.bf16.msra.mxu0 0
        %5586 = vmatprep.mubr.bf16.mxu0 0
        %5587 = vmatmul.mubr.bf16.gmra.mrb[0].mxu0 %v5549
        %v5588 = vpop.f32.mrb[0].mxu0
        %v5589 = vadd.f32 0.0, %v5588
        %v5590 = vpop.f32.mrb[0].mxu0
        %v5591 = vpop.f32.mrb[0].mxu0
        %v5592 = vadd.f32 0.0, %v5591
        %v5593 = vpop.f32.mrb[0].mxu0
        %5594 = vmatprep.mubr.bf16.mxu0 0
        %5595 = vmatmul.mubr.bf16.gmra.mrb[0].mxu0 %v5552
        %v5596 = vpop.f32.mrb[0].mxu0
        %v5597 = vadd.f32 0.0, %v5596
        %v5598 = vpop.f32.mrb[0].mxu0
        %v5599 = vpop.f32.mrb[0].mxu0
        %v5600 = vadd.f32 0.0, %v5599
        %v5601 = vpop.f32.mrb[0].mxu0
        %5602 = vdwg.mxu0
        %v5603 = vadd.f32 %v5096, %v5589
        %v5604 = vadd.f32 %v5097, %v5592
        %v5605 = vadd.f32 %v5098, %v5597
        %v5606 = vadd.f32 %v5099, %v5600
        %v5607 = vld [vmem:[%s984] sm:$0x1]
        %v5609 = vlaneseq
        %v5610 = vshrl.u32 %v5609, 7
        %v5611 = vsub.s32 0, %v5610
        %v5612 = vrot.slane %v5607, %v5611
        %v5614 = vadd.f32 %v5603, %v5612
        %v5615 = vadd.f32 %v5604, %v5612
        %v5616 = vadd.f32 %v5605, %v5612
        %v5617 = vadd.f32 %v5606, %v5612
        %v5618 = vadd.f32 %v1255, %v5614
        %v5619 = vadd.f32 %v1256, %v5615
        %v5620 = vadd.f32 %v1257, %v5616
        %v5621 = vadd.f32 %v1258, %v5617
        %v5622 = vld [vmem:[%s992] sm:$0x1]
        %v5623 = vld [vmem:[%s1000] sm:$0x1]
        %5624 = vadd.xlane.f32.xlu0 %v5618
        %v5625 = vpop.xlane.xlu0 %5624
        %5626 = vadd.xlane.f32.xlu0 %v5619
        %v5627 = vpop.xlane.xlu0 %5626
        %5628 = vadd.xlane.f32.xlu0 %v5620
        %v5629 = vpop.xlane.xlu0 %5628
        %5630 = vadd.xlane.f32.xlu0 %v5621
        %v5631 = vpop.xlane.xlu0 %5630
        %v5632 = vrcp.pop 128.0
        %v5633 = vmul.f32 %v5625, %v5632
        %v5634 = vmul.f32 %v5627, %v5632
        %v5635 = vmul.f32 %v5629, %v5632
        %v5636 = vmul.f32 %v5631, %v5632
        %v5637 = vsub.f32 %v5618, %v5633
        %v5638 = vsub.f32 %v5619, %v5634
        %v5639 = vsub.f32 %v5620, %v5635
        %v5640 = vsub.f32 %v5621, %v5636
        %v5641 = vmul.f32 %v5637, %v5637
        %v5642 = vmul.f32 %v5638, %v5638
        %v5643 = vmul.f32 %v5639, %v5639
        %v5644 = vmul.f32 %v5640, %v5640
        %5645 = vadd.xlane.f32.xlu0 %v5641
        %v5646 = vpop.xlane.xlu0 %5645
        %5647 = vadd.xlane.f32.xlu0 %v5642
        %v5648 = vpop.xlane.xlu0 %5647
        %5649 = vadd.xlane.f32.xlu0 %v5643
        %v5650 = vpop.xlane.xlu0 %5649
        %5651 = vadd.xlane.f32.xlu0 %v5644
        %v5652 = vpop.xlane.xlu0 %5651
        %v5653 = vmul.f32 %v5646, %v5632
        %v5654 = vmul.f32 %v5648, %v5632
        %v5655 = vmul.f32 %v5650, %v5632
        %v5656 = vmul.f32 %v5652, %v5632
        %v5657 = vadd.f32 %v5653, 1e-05
        %v5658 = vadd.f32 %v5654, 1e-05
        %v5659 = vadd.f32 %v5655, 1e-05
        %v5660 = vadd.f32 %v5656, 1e-05
        %v5661 = vrsqrt.pop %v5657
        %v5662 = vrsqrt.pop %v5658
        %v5663 = vrsqrt.pop %v5659
        %v5664 = vrsqrt.pop %v5660
        %v5665 = vmul.f32 %v5637, %v5661
        %v5666 = vmul.f32 %v5638, %v5662
        %v5667 = vmul.f32 %v5639, %v5663
        %v5668 = vmul.f32 %v5640, %v5664
        %v5670 = vlaneseq
        %v5671 = vshrl.u32 %v5670, 7
        %v5672 = vsub.s32 0, %v5671
        %v5673 = vrot.slane %v5622, %v5672
        %v5675 = vmul.f32 %v5665, %v5673
        %v5676 = vmul.f32 %v5666, %v5673
        %v5677 = vmul.f32 %v5667, %v5673
        %v5678 = vmul.f32 %v5668, %v5673
        %v5680 = vlaneseq
        %v5681 = vshrl.u32 %v5680, 7
        %v5682 = vsub.s32 0, %v5681
        %v5683 = vrot.slane %v5623, %v5682
        %v5685 = vadd.f32 %v5675, %v5683
        %v5686 = vadd.f32 %v5676, %v5683
        %v5687 = vadd.f32 %v5677, %v5683
        %v5688 = vadd.f32 %v5678, %v5683
        %v5689 = vpack.c.bf16 %v5686, %v5685
        %v5690 = vpack.c.bf16 %v5688, %v5687
        %v5691 = vld [vmem:[%s1009] sm:$0xff]
        %v5692 = vld [vmem:[%s1009 + $0x8] sm:$0xff]
        %v5693 = vld [vmem:[%s1009 + $0x10] sm:$0xff]
        %v5694 = vld [vmem:[%s1009 + $0x18] sm:$0xff]
        %v5695 = vld [vmem:[%s1009 + $0x20] sm:$0xff]
        %v5696 = vld [vmem:[%s1009 + $0x28] sm:$0xff]
        %v5697 = vld [vmem:[%s1009 + $0x30] sm:$0xff]
        %v5698 = vld [vmem:[%s1009 + $0x38] sm:$0xff]
        %v5699 = vld [vmem:[%s1009 + $0x40] sm:$0xff]
        %v5700 = vld [vmem:[%s1009 + $0x48] sm:$0xff]
        %v5701 = vld [vmem:[%s1009 + $0x50] sm:$0xff]
        %v5702 = vld [vmem:[%s1009 + $0x58] sm:$0xff]
        %v5703 = vld [vmem:[%s1009 + $0x60] sm:$0xff]
        %v5704 = vld [vmem:[%s1009 + $0x68] sm:$0xff]
        %v5705 = vld [vmem:[%s1009 + $0x70] sm:$0xff]
        %v5706 = vld [vmem:[%s1009 + $0x78] sm:$0xff]
        %v5707 = vld [vmem:[%s1018] sm:$0x3]
        %v5709 = vlaneseq
        %v5710 = vshrl.u32 %v5709, 7
        %v5711 = vsub.s32 0, %v5710
        %v5712 = vrot.slane %v5707, %v5711
        %v5713 = vlaneseq
        %v5714 = vshrl.u32 %v5713, 7
        %v5715 = vsub.s32 1, %v5714
        %v5716 = vrot.slane %v5707, %v5715
        %v5735 = vunpack.c.l.b16 %v5691
        %v5736 = vunpack.c.h.b16 %v5691
        %v5737 = vunpack.c.l.b16 %v5692
        %v5738 = vunpack.c.h.b16 %v5692
        %v5739 = vunpack.c.l.b16 %v5693
        %v5740 = vunpack.c.h.b16 %v5693
        %v5741 = vunpack.c.l.b16 %v5694
        %v5742 = vunpack.c.h.b16 %v5694
        %v5743 = vunpack.c.l.b16 %v5695
        %v5744 = vunpack.c.h.b16 %v5695
        %v5745 = vunpack.c.l.b16 %v5696
        %v5746 = vunpack.c.h.b16 %v5696
        %v5747 = vunpack.c.l.b16 %v5697
        %v5748 = vunpack.c.h.b16 %v5697
        %v5749 = vunpack.c.l.b16 %v5698
        %v5750 = vunpack.c.h.b16 %v5698
        %v5751 = vunpack.c.l.b16 %v5699
        %v5752 = vunpack.c.h.b16 %v5699
        %v5753 = vunpack.c.l.b16 %v5700
        %v5754 = vunpack.c.h.b16 %v5700
        %v5755 = vunpack.c.l.b16 %v5701
        %v5756 = vunpack.c.h.b16 %v5701
        %v5757 = vunpack.c.l.b16 %v5702
        %v5758 = vunpack.c.h.b16 %v5702
        %v5759 = vunpack.c.l.b16 %v5703
        %v5760 = vunpack.c.h.b16 %v5703
        %v5761 = vunpack.c.l.b16 %v5704
        %v5762 = vunpack.c.h.b16 %v5704
        %v5763 = vunpack.c.l.b16 %v5705
        %v5764 = vunpack.c.h.b16 %v5705
        %v5765 = vunpack.c.l.b16 %v5706
        %v5766 = vunpack.c.h.b16 %v5706
        %v5767 = vpack.c.b16 %v5737, %v5735
        %v5768 = vpack.c.b16 %v5738, %v5736
        %v5769 = vpack.c.b16 %v5741, %v5739
        %v5770 = vpack.c.b16 %v5742, %v5740
        %v5771 = vpack.c.b16 %v5745, %v5743
        %v5772 = vpack.c.b16 %v5746, %v5744
        %v5773 = vpack.c.b16 %v5749, %v5747
        %v5774 = vpack.c.b16 %v5750, %v5748
        %v5775 = vpack.c.b16 %v5753, %v5751
        %v5776 = vpack.c.b16 %v5754, %v5752
        %v5777 = vpack.c.b16 %v5757, %v5755
        %v5778 = vpack.c.b16 %v5758, %v5756
        %v5779 = vpack.c.b16 %v5761, %v5759
        %v5780 = vpack.c.b16 %v5762, %v5760
        %v5781 = vpack.c.b16 %v5765, %v5763
        %v5782 = vpack.c.b16 %v5766, %v5764
        %5799 = vmatprep.subr.bf16.mxu0 %v5768
        %5800 = vmatpush1.bf16.msra.mxu0 %v5767
        %5801 = vmatprep.subr.bf16.mxu0 %v5770
        %5802 = vmatpush1.bf16.msra.mxu0 %v5769
        %5803 = vmatprep.subr.bf16.mxu0 %v5772
        %5804 = vmatpush1.bf16.msra.mxu0 %v5771
        %5805 = vmatprep.subr.bf16.mxu0 %v5774
        %5806 = vmatpush1.bf16.msra.mxu0 %v5773
        %5807 = vmatprep.subr.bf16.mxu0 %v5776
        %5808 = vmatpush1.bf16.msra.mxu0 %v5775
        %5809 = vmatprep.subr.bf16.mxu0 %v5778
        %5810 = vmatpush1.bf16.msra.mxu0 %v5777
        %5811 = vmatprep.subr.bf16.mxu0 %v5780
        %5812 = vmatpush1.bf16.msra.mxu0 %v5779
        %5813 = vmatprep.subr.bf16.mxu0 %v5782
        %5814 = vmatpush1.bf16.msra.mxu0 %v5781
        %5815 = vmatprep.subr.bf16.mxu0 0
        %5816 = vmatpush1.bf16.msra.mxu0 0
        %5817 = vmatprep.subr.bf16.mxu0 0
        %5818 = vmatpush1.bf16.msra.mxu0 0
        %5819 = vmatprep.subr.bf16.mxu0 0
        %5820 = vmatpush1.bf16.msra.mxu0 0
        %5821 = vmatprep.subr.bf16.mxu0 0
        %5822 = vmatpush1.bf16.msra.mxu0 0
        %5823 = vmatprep.subr.bf16.mxu0 0
        %5824 = vmatpush1.bf16.msra.mxu0 0
        %5825 = vmatprep.subr.bf16.mxu0 0
        %5826 = vmatpush1.bf16.msra.mxu0 0
        %5827 = vmatprep.subr.bf16.mxu0 0
        %5828 = vmatpush1.bf16.msra.mxu0 0
        %5829 = vmatprep.subr.bf16.mxu0 0
        %5830 = vmatpush1.bf16.msra.mxu0 0
        %5831 = vmatprep.mubr.bf16.mxu0 0
        %5832 = vmatmul.mubr.bf16.gmra.mrb[0].mxu0 %v5689
        %v5833 = vpop.f32.mrb[0].mxu0
        %v5834 = vadd.f32 %v5712, %v5833
        %v5835 = vpop.f32.mrb[0].mxu0
        %v5836 = vadd.f32 %v5716, %v5835
        %v5837 = vpop.f32.mrb[0].mxu0
        %v5838 = vadd.f32 %v5712, %v5837
        %v5839 = vpop.f32.mrb[0].mxu0
        %v5840 = vadd.f32 %v5716, %v5839
        %5841 = vmatprep.mubr.bf16.mxu0 0
        %5842 = vmatmul.mubr.bf16.gmra.mrb[0].mxu0 %v5690
        %v5843 = vpop.f32.mrb[0].mxu0
        %v5844 = vadd.f32 %v5712, %v5843
        %v5845 = vpop.f32.mrb[0].mxu0
        %v5846 = vadd.f32 %v5716, %v5845
        %v5847 = vpop.f32.mrb[0].mxu0
        %v5848 = vadd.f32 %v5712, %v5847
        %v5849 = vpop.f32.mrb[0].mxu0
        %v5850 = vadd.f32 %v5716, %v5849
        %5851 = vdwg.mxu0
        %v5852 = vmul.f32 %v5834, 0.5
        %v5853 = vmul.f32 %v5836, 0.5
        %v5854 = vmul.f32 %v5838, 0.5
        %v5855 = vmul.f32 %v5840, 0.5
        %v5856 = vmul.f32 %v5844, 0.5
        %v5857 = vmul.f32 %v5846, 0.5
        %v5858 = vmul.f32 %v5848, 0.5
        %v5859 = vmul.f32 %v5850, 0.5
        %v5860 = vmul.f32 %v5834, 0.70710677
        %v5861 = vmul.f32 %v5836, 0.70710677
        %v5862 = vmul.f32 %v5838, 0.70710677
        %v5863 = vmul.f32 %v5840, 0.70710677
        %v5864 = vmul.f32 %v5844, 0.70710677
        %v5865 = vmul.f32 %v5846, 0.70710677
        %v5866 = vmul.f32 %v5848, 0.70710677
        %v5867 = vmul.f32 %v5850, 0.70710677
        %v5868 = verf.f32.pop %v5860
        %v5869 = verf.f32.pop %v5861
        %v5870 = verf.f32.pop %v5862
        %v5871 = verf.f32.pop %v5863
        %v5872 = verf.f32.pop %v5864
        %v5873 = verf.f32.pop %v5865
        %v5874 = verf.f32.pop %v5866
        %v5875 = verf.f32.pop %v5867
        %v5876 = vadd.f32 %v5868, 1.0
        %v5877 = vadd.f32 %v5869, 1.0
        %v5878 = vadd.f32 %v5870, 1.0
        %v5879 = vadd.f32 %v5871, 1.0
        %v5880 = vadd.f32 %v5872, 1.0
        %v5881 = vadd.f32 %v5873, 1.0
        %v5882 = vadd.f32 %v5874, 1.0
        %v5883 = vadd.f32 %v5875, 1.0
        %v5884 = vmul.f32 %v5852, %v5876
        %v5885 = vmul.f32 %v5853, %v5877
        %v5886 = vmul.f32 %v5854, %v5878
        %v5887 = vmul.f32 %v5855, %v5879
        %v5888 = vmul.f32 %v5856, %v5880
        %v5889 = vmul.f32 %v5857, %v5881
        %v5890 = vmul.f32 %v5858, %v5882
        %v5891 = vmul.f32 %v5859, %v5883
        %v5892 = vpack.c.bf16 %v5886, %v5884
        %v5893 = vpack.c.bf16 %v5887, %v5885
        %v5894 = vpack.c.bf16 %v5890, %v5888
        %v5895 = vpack.c.bf16 %v5891, %v5889
        %v5896 = vld [vmem:[%s1027] sm:$0xf]
        %v5897 = vld [vmem:[%s1027 + $0x4] sm:$0xf]
        %v5898 = vld [vmem:[%s1027 + $0x8] sm:$0xf]
        %v5899 = vld [vmem:[%s1027 + $0xc] sm:$0xf]
        %v5900 = vld [vmem:[%s1027 + $0x10] sm:$0xf]
        %v5901 = vld [vmem:[%s1027 + $0x14] sm:$0xf]
        %v5902 = vld [vmem:[%s1027 + $0x18] sm:$0xf]
        %v5903 = vld [vmem:[%s1027 + $0x1c] sm:$0xf]
        %v5904 = vld [vmem:[%s1027 + $0x20] sm:$0xf]
        %v5905 = vld [vmem:[%s1027 + $0x24] sm:$0xf]
        %v5906 = vld [vmem:[%s1027 + $0x28] sm:$0xf]
        %v5907 = vld [vmem:[%s1027 + $0x2c] sm:$0xf]
        %v5908 = vld [vmem:[%s1027 + $0x30] sm:$0xf]
        %v5909 = vld [vmem:[%s1027 + $0x34] sm:$0xf]
        %v5910 = vld [vmem:[%s1027 + $0x38] sm:$0xf]
        %v5911 = vld [vmem:[%s1027 + $0x3c] sm:$0xf]
        %v5912 = vld [vmem:[%s1027 + $0x40] sm:$0xf]
        %v5913 = vld [vmem:[%s1027 + $0x44] sm:$0xf]
        %v5914 = vld [vmem:[%s1027 + $0x48] sm:$0xf]
        %v5915 = vld [vmem:[%s1027 + $0x4c] sm:$0xf]
        %v5916 = vld [vmem:[%s1027 + $0x50] sm:$0xf]
        %v5917 = vld [vmem:[%s1027 + $0x54] sm:$0xf]
        %v5918 = vld [vmem:[%s1027 + $0x58] sm:$0xf]
        %v5919 = vld [vmem:[%s1027 + $0x5c] sm:$0xf]
        %v5920 = vld [vmem:[%s1027 + $0x60] sm:$0xf]
        %v5921 = vld [vmem:[%s1027 + $0x64] sm:$0xf]
        %v5922 = vld [vmem:[%s1027 + $0x68] sm:$0xf]
        %v5923 = vld [vmem:[%s1027 + $0x6c] sm:$0xf]
        %v5924 = vld [vmem:[%s1027 + $0x70] sm:$0xf]
        %v5925 = vld [vmem:[%s1027 + $0x74] sm:$0xf]
        %v5926 = vld [vmem:[%s1027 + $0x78] sm:$0xf]
        %v5927 = vld [vmem:[%s1027 + $0x7c] sm:$0xf]
        %v5928 = vld [vmem:[%s1035] sm:$0x1]
        %v5930 = vlaneseq
        %v5931 = vshrl.u32 %v5930, 7
        %v5932 = vsub.s32 0, %v5931
        %v5933 = vrot.slane %v5928, %v5932
        %v5967 = vunpack.c.l.b16 %v5896
        %v5968 = vunpack.c.l.b16 %v5897
        %v5969 = vunpack.c.l.b16 %v5898
        %v5970 = vunpack.c.l.b16 %v5899
        %v5971 = vunpack.c.l.b16 %v5900
        %v5972 = vunpack.c.l.b16 %v5901
        %v5973 = vunpack.c.l.b16 %v5902
        %v5974 = vunpack.c.l.b16 %v5903
        %v5975 = vunpack.c.l.b16 %v5904
        %v5976 = vunpack.c.l.b16 %v5905
        %v5977 = vunpack.c.l.b16 %v5906
        %v5978 = vunpack.c.l.b16 %v5907
        %v5979 = vunpack.c.l.b16 %v5908
        %v5980 = vunpack.c.l.b16 %v5909
        %v5981 = vunpack.c.l.b16 %v5910
        %v5982 = vunpack.c.l.b16 %v5911
        %v5983 = vunpack.c.l.b16 %v5912
        %v5984 = vunpack.c.l.b16 %v5913
        %v5985 = vunpack.c.l.b16 %v5914
        %v5986 = vunpack.c.l.b16 %v5915
        %v5987 = vunpack.c.l.b16 %v5916
        %v5988 = vunpack.c.l.b16 %v5917
        %v5989 = vunpack.c.l.b16 %v5918
        %v5990 = vunpack.c.l.b16 %v5919
        %v5991 = vunpack.c.l.b16 %v5920
        %v5992 = vunpack.c.l.b16 %v5921
        %v5993 = vunpack.c.l.b16 %v5922
        %v5994 = vunpack.c.l.b16 %v5923
        %v5995 = vunpack.c.l.b16 %v5924
        %v5996 = vunpack.c.l.b16 %v5925
        %v5997 = vunpack.c.l.b16 %v5926
        %v5998 = vunpack.c.l.b16 %v5927
        %v5999 = vpack.c.b16 %v5968, %v5967
        %v6000 = vpack.c.b16 %v5970, %v5969
        %v6001 = vpack.c.b16 %v5972, %v5971
        %v6002 = vpack.c.b16 %v5974, %v5973
        %v6003 = vpack.c.b16 %v5976, %v5975
        %v6004 = vpack.c.b16 %v5978, %v5977
        %v6005 = vpack.c.b16 %v5980, %v5979
        %v6006 = vpack.c.b16 %v5982, %v5981
        %v6007 = vpack.c.b16 %v5984, %v5983
        %v6008 = vpack.c.b16 %v5986, %v5985
        %v6009 = vpack.c.b16 %v5988, %v5987
        %v6010 = vpack.c.b16 %v5990, %v5989
        %v6011 = vpack.c.b16 %v5992, %v5991
        %v6012 = vpack.c.b16 %v5994, %v5993
        %v6013 = vpack.c.b16 %v5996, %v5995
        %v6014 = vpack.c.b16 %v5998, %v5997
        %6031 = vmatprep.subr.bf16.mxu0 0
        %6032 = vmatpush1.bf16.msra.mxu0 %v5999
        %6033 = vmatprep.subr.bf16.mxu0 0
        %6034 = vmatpush1.bf16.msra.mxu0 %v6000
        %6035 = vmatprep.subr.bf16.mxu0 0
        %6036 = vmatpush1.bf16.msra.mxu0 %v6001
        %6037 = vmatprep.subr.bf16.mxu0 0
        %6038 = vmatpush1.bf16.msra.mxu0 %v6002
        %6039 = vmatprep.subr.bf16.mxu0 0
        %6040 = vmatpush1.bf16.msra.mxu0 %v6003
        %6041 = vmatprep.subr.bf16.mxu0 0
        %6042 = vmatpush1.bf16.msra.mxu0 %v6004
        %6043 = vmatprep.subr.bf16.mxu0 0
        %6044 = vmatpush1.bf16.msra.mxu0 %v6005
        %6045 = vmatprep.subr.bf16.mxu0 0
        %6046 = vmatpush1.bf16.msra.mxu0 %v6006
        %6047 = vmatprep.subr.bf16.mxu0 0
        %6048 = vmatpush1.bf16.msra.mxu0 %v6007
        %6049 = vmatprep.subr.bf16.mxu0 0
        %6050 = vmatpush1.bf16.msra.mxu0 %v6008
        %6051 = vmatprep.subr.bf16.mxu0 0
        %6052 = vmatpush1.bf16.msra.mxu0 %v6009
        %6053 = vmatprep.subr.bf16.mxu0 0
        %6054 = vmatpush1.bf16.msra.mxu0 %v6010
        %6055 = vmatprep.subr.bf16.mxu0 0
        %6056 = vmatpush1.bf16.msra.mxu0 %v6011
        %6057 = vmatprep.subr.bf16.mxu0 0
        %6058 = vmatpush1.bf16.msra.mxu0 %v6012
        %6059 = vmatprep.subr.bf16.mxu0 0
        %6060 = vmatpush1.bf16.msra.mxu0 %v6013
        %6061 = vmatprep.subr.bf16.mxu0 0
        %6062 = vmatpush1.bf16.msra.mxu0 %v6014
        %6063 = vmatprep.mubr.bf16.mxu0 %v5893
        %6064 = vmatmul.mubr.bf16.gmra.mrb[0].mxu0 %v5892
        %v6065 = vpop.f32.mrb[0].mxu0
        %v6066 = vadd.f32 %v5933, %v6065
        %v6067 = vpop.f32.mrb[0].mxu0
        %v6068 = vpop.f32.mrb[0].mxu0
        %v6069 = vadd.f32 %v5933, %v6068
        %v6070 = vpop.f32.mrb[0].mxu0
        %6071 = vmatprep.mubr.bf16.mxu0 %v5895
        %6072 = vmatmul.mubr.bf16.gmra.mrb[0].mxu0 %v5894
        %v6073 = vpop.f32.mrb[0].mxu0
        %v6074 = vadd.f32 %v5933, %v6073
        %v6075 = vpop.f32.mrb[0].mxu0
        %v6076 = vpop.f32.mrb[0].mxu0
        %v6077 = vadd.f32 %v5933, %v6076
        %v6078 = vpop.f32.mrb[0].mxu0
        %6079 = vdwg.mxu0
        %v6080 = vadd.f32 %v5685, %v6066
        %v6081 = vadd.f32 %v5686, %v6069
        %v6082 = vadd.f32 %v5687, %v6074
        %v6083 = vadd.f32 %v5688, %v6077
        %v6084 = vld [vmem:[%s1160] sm:$0x1]
        %v6085 = vld [vmem:[%s1163] sm:$0x1]
        %6086 = vadd.xlane.f32.xlu0 %v6080
        %v6087 = vpop.xlane.xlu0 %6086
        %6088 = vadd.xlane.f32.xlu0 %v6081
        %v6089 = vpop.xlane.xlu0 %6088
        %6090 = vadd.xlane.f32.xlu0 %v6082
        %v6091 = vpop.xlane.xlu0 %6090
        %6092 = vadd.xlane.f32.xlu0 %v6083
        %v6093 = vpop.xlane.xlu0 %6092
        %v6094 = vmul.f32 %v6087, %v5632
        %v6095 = vmul.f32 %v6089, %v5632
        %v6096 = vmul.f32 %v6091, %v5632
        %v6097 = vmul.f32 %v6093, %v5632
        %v6098 = vsub.f32 %v6080, %v6094
        %v6099 = vsub.f32 %v6081, %v6095
        %v6100 = vsub.f32 %v6082, %v6096
        %v6101 = vsub.f32 %v6083, %v6097
        %v6102 = vmul.f32 %v6098, %v6098
        %v6103 = vmul.f32 %v6099, %v6099
        %v6104 = vmul.f32 %v6100, %v6100
        %v6105 = vmul.f32 %v6101, %v6101
        %6106 = vadd.xlane.f32.xlu0 %v6102
        %v6107 = vpop.xlane.xlu0 %6106
        %6108 = vadd.xlane.f32.xlu0 %v6103
        %v6109 = vpop.xlane.xlu0 %6108
        %6110 = vadd.xlane.f32.xlu0 %v6104
        %v6111 = vpop.xlane.xlu0 %6110
        %6112 = vadd.xlane.f32.xlu0 %v6105
        %v6113 = vpop.xlane.xlu0 %6112
        %v6114 = vmul.f32 %v6107, %v5632
        %v6115 = vmul.f32 %v6109, %v5632
        %v6116 = vmul.f32 %v6111, %v5632
        %v6117 = vmul.f32 %v6113, %v5632
        %v6118 = vadd.f32 %v6114, 1e-05
        %v6119 = vadd.f32 %v6115, 1e-05
        %v6120 = vadd.f32 %v6116, 1e-05
        %v6121 = vadd.f32 %v6117, 1e-05
        %v6122 = vrsqrt.pop %v6118
        %v6123 = vrsqrt.pop %v6119
        %v6124 = vrsqrt.pop %v6120
        %v6125 = vrsqrt.pop %v6121
        %v6126 = vmul.f32 %v6098, %v6122
        %v6127 = vmul.f32 %v6099, %v6123
        %v6128 = vmul.f32 %v6100, %v6124
        %v6129 = vmul.f32 %v6101, %v6125
        %v6131 = vlaneseq
        %v6132 = vshrl.u32 %v6131, 7
        %v6133 = vsub.s32 0, %v6132
        %v6134 = vrot.slane %v6084, %v6133
        %v6136 = vmul.f32 %v6126, %v6134
        %v6137 = vmul.f32 %v6127, %v6134
        %v6138 = vmul.f32 %v6128, %v6134
        %v6139 = vmul.f32 %v6129, %v6134
        %v6141 = vlaneseq
        %v6142 = vshrl.u32 %v6141, 7
        %v6143 = vsub.s32 0, %v6142
        %v6144 = vrot.slane %v6085, %v6143
        %v6146 = vadd.f32 %v6136, %v6144
        %v6147 = vadd.f32 %v6137, %v6144
        %v6148 = vadd.f32 %v6138, %v6144
        %v6149 = vadd.f32 %v6139, %v6144
        %6150 = vst [vmem:[#allocation2] sm:$0xff] %v6146
        %6151 = vst [vmem:[#allocation2 + $0x8] sm:$0xff] %v6147
        %6152 = vst [vmem:[#allocation2 + $0x10] sm:$0xff] %v6148
        %6153 = vst [vmem:[#allocation2 + $0x18] sm:$0xff] %v6149
        %p6154 = scmp.eq.s32.totalorder %s62, 1
        // Predicated region
        $region169: #{tpu_custom_call.1} parent=115 // pred_check
          %p6155 = pneg %p6154
        $region170: #{tpu_custom_call.1} parent=115 // pred_check_branch
          %6157 = sbr.rel (%p6155) target = $region172
        $region171: #{tpu_custom_call.1} parent=115 // pred_region
          %v6158 = vld [vmem:[%s16] sm:$0x1]
          %v6159 = vld [vmem:[%s17] sm:$0x1]
          %v6164 = vrot.slane %v6147, 7
          %v6165 = vrot.slane %v6148, 6
          %vm6166 = vcmask 1041409
          %v6167 = vsel %vm6166, %v6165, %v6164
          %v6168 = vrot.slane %v6149, 5
          %vm6169 = vcmask 1042434
          %v6170 = vsel %vm6169, %v6168, %v6167
          %vm6173 = vcmask 1047559
          %v6174 = vsel %vm6173, %v6146, 0.0
          %6175 = vadd.xlane.f32.xlu0 %v6174
          %v6176 = vpop.xlane.xlu0 %6175
          %vm6177 = vcmask 1042432
          %v6178 = vsel %vm6177, %v6170, 0.0
          %6179 = vadd.xlane.f32.xlu0 %v6178
          %v6180 = vpop.xlane.xlu0 %6179
          %v6181 = vmul.f32 %v6176, %v5632
          %v6182 = vmul.f32 %v6180, %v5632
          %v6185 = vrot.slane %v6182, 1
          %v6186 = vrot.slane %v6182, 2
          %v6187 = vrot.slane %v6182, 3
          %v6192 = vsub.f32 %v6146, %v6181
          %v6193 = vsub.f32 %v6147, %v6185
          %v6194 = vsub.f32 %v6148, %v6186
          %v6195 = vsub.f32 %v6149, %v6187
          %v6196 = vmul.f32 %v6192, %v6192
          %v6197 = vmul.f32 %v6193, %v6193
          %v6198 = vmul.f32 %v6194, %v6194
          %v6199 = vmul.f32 %v6195, %v6195
          %v6204 = vrot.slane %v6197, 7
          %v6205 = vrot.slane %v6198, 6
          %v6206 = vsel %vm6166, %v6205, %v6204
          %v6207 = vrot.slane %v6199, 5
          %v6208 = vsel %vm6169, %v6207, %v6206
          %v6211 = vsel %vm6173, %v6196, 0.0
          %6212 = vadd.xlane.f32.xlu0 %v6211
          %v6213 = vpop.xlane.xlu0 %6212
          %v6214 = vsel %vm6177, %v6208, 0.0
          %6215 = vadd.xlane.f32.xlu0 %v6214
          %v6216 = vpop.xlane.xlu0 %6215
          %v6217 = vmul.f32 %v6213, %v5632
          %v6218 = vmul.f32 %v6216, %v5632
          %v6219 = vadd.f32 %v6217, 1e-05
          %v6220 = vadd.f32 %v6218, 1e-05
          %v6221 = vrsqrt.pop %v6219
          %v6222 = vrsqrt.pop %v6220
          %v6225 = vrot.slane %v6222, 1
          %v6226 = vrot.slane %v6222, 2
          %v6227 = vrot.slane %v6222, 3
          %v6232 = vmul.f32 %v6192, %v6221
          %v6233 = vmul.f32 %v6193, %v6225
          %v6234 = vmul.f32 %v6194, %v6226
          %v6235 = vmul.f32 %v6195, %v6227
          %v6237 = vlaneseq
          %v6238 = vshrl.u32 %v6237, 7
          %v6239 = vsub.s32 0, %v6238
          %v6240 = vrot.slane %v6158, %v6239
          %v6242 = vmul.f32 %v6232, %v6240
          %v6243 = vmul.f32 %v6233, %v6240
          %v6244 = vmul.f32 %v6234, %v6240
          %v6245 = vmul.f32 %v6235, %v6240
          %v6247 = vlaneseq
          %v6248 = vshrl.u32 %v6247, 7
          %v6249 = vsub.s32 0, %v6248
          %v6250 = vrot.slane %v6159, %v6249
          %v6252 = vadd.f32 %v6242, %v6250
          %v6253 = vadd.f32 %v6243, %v6250
          %v6254 = vadd.f32 %v6244, %v6250
          %v6255 = vadd.f32 %v6245, %v6250
          %v6256 = vpack.c.bf16 %v6252, %v6252
          %v6257 = vpack.c.bf16 %v6253, %v6253
          %v6258 = vpack.c.bf16 %v6254, %v6254
          %v6259 = vpack.c.bf16 %v6255, %v6255
          %v6260 = vld [vmem:[%s18] sm:$0xf]
          %v6261 = vld [vmem:[%s18 + $0x4] sm:$0xf]
          %v6262 = vld [vmem:[%s18 + $0x8] sm:$0xf]
          %v6263 = vld [vmem:[%s18 + $0xc] sm:$0xf]
          %v6264 = vld [vmem:[%s18 + $0x10] sm:$0xf]
          %v6265 = vld [vmem:[%s18 + $0x14] sm:$0xf]
          %v6266 = vld [vmem:[%s18 + $0x18] sm:$0xf]
          %v6267 = vld [vmem:[%s18 + $0x1c] sm:$0xf]
          %v6268 = vld [vmem:[%s18 + $0x20] sm:$0xf]
          %v6269 = vld [vmem:[%s18 + $0x24] sm:$0xf]
          %v6270 = vld [vmem:[%s18 + $0x28] sm:$0xf]
          %v6271 = vld [vmem:[%s18 + $0x2c] sm:$0xf]
          %v6272 = vld [vmem:[%s18 + $0x30] sm:$0xf]
          %v6273 = vld [vmem:[%s18 + $0x34] sm:$0xf]
          %v6274 = vld [vmem:[%s18 + $0x38] sm:$0xf]
          %v6275 = vld [vmem:[%s18 + $0x3c] sm:$0xf]
          %v6276 = vld [vmem:[%s19] sm:$0x1]
          %v6278 = vlaneseq
          %v6279 = vshrl.u32 %v6278, 7
          %v6280 = vsub.s32 0, %v6279
          %v6281 = vrot.slane %v6276, %v6280
          %v6287 = vunpack.c.l.b16 %v6256
          %v6288 = vunpack.c.l.b16 %v6257
          %v6289 = vunpack.c.l.b16 %v6258
          %v6290 = vunpack.c.l.b16 %v6259
          %v6291 = vrot.slane %v6287, 7
          %v6292 = vrot.slane %v6288, 6
          %v6293 = vsel %vm6166, %v6292, %v6291
          %v6294 = vrot.slane %v6289, 5
          %v6295 = vsel %vm6169, %v6294, %v6293
          %v6296 = vrot.slane %v6290, 4
          %vm6297 = vcmask 1043459
          %v6298 = vsel %vm6297, %v6296, %v6295
          %v6299 = vpack.c.b16 %v6298, %v6298
          %v6317 = vunpack.c.l.b16 %v6260
          %v6318 = vunpack.c.l.b16 %v6261
          %v6319 = vunpack.c.l.b16 %v6262
          %v6320 = vunpack.c.l.b16 %v6263
          %v6321 = vunpack.c.l.b16 %v6264
          %v6322 = vunpack.c.l.b16 %v6265
          %v6323 = vunpack.c.l.b16 %v6266
          %v6324 = vunpack.c.l.b16 %v6267
          %v6325 = vunpack.c.l.b16 %v6268
          %v6326 = vunpack.c.l.b16 %v6269
          %v6327 = vunpack.c.l.b16 %v6270
          %v6328 = vunpack.c.l.b16 %v6271
          %v6329 = vunpack.c.l.b16 %v6272
          %v6330 = vunpack.c.l.b16 %v6273
          %v6331 = vunpack.c.l.b16 %v6274
          %v6332 = vunpack.c.l.b16 %v6275
          %v6333 = vpack.c.b16 %v6318, %v6317
          %v6334 = vpack.c.b16 %v6320, %v6319
          %v6335 = vpack.c.b16 %v6322, %v6321
          %v6336 = vpack.c.b16 %v6324, %v6323
          %v6337 = vpack.c.b16 %v6326, %v6325
          %v6338 = vpack.c.b16 %v6328, %v6327
          %v6339 = vpack.c.b16 %v6330, %v6329
          %v6340 = vpack.c.b16 %v6332, %v6331
          %6349 = vmatprep.subr.bf16.mxu0 0
          %6350 = vmatpush1.bf16.msra.mxu0 %v6333
          %6351 = vmatprep.subr.bf16.mxu0 0
          %6352 = vmatpush1.bf16.msra.mxu0 %v6334
          %6353 = vmatprep.subr.bf16.mxu0 0
          %6354 = vmatpush1.bf16.msra.mxu0 %v6335
          %6355 = vmatprep.subr.bf16.mxu0 0
          %6356 = vmatpush1.bf16.msra.mxu0 %v6336
          %6357 = vmatprep.subr.bf16.mxu0 0
          %6358 = vmatpush1.bf16.msra.mxu0 %v6337
          %6359 = vmatprep.subr.bf16.mxu0 0
          %6360 = vmatpush1.bf16.msra.mxu0 %v6338
          %6361 = vmatprep.subr.bf16.mxu0 0
          %6362 = vmatpush1.bf16.msra.mxu0 %v6339
          %6363 = vmatprep.subr.bf16.mxu0 0
          %6364 = vmatpush1.bf16.msra.mxu0 %v6340
          %6365 = vmatprep.subr.bf16.mxu0 0
          %6366 = vmatpush1.bf16.msra.mxu0 0
          %6367 = vmatprep.subr.bf16.mxu0 0
          %6368 = vmatpush1.bf16.msra.mxu0 0
          %6369 = vmatprep.subr.bf16.mxu0 0
          %6370 = vmatpush1.bf16.msra.mxu0 0
          %6371 = vmatprep.subr.bf16.mxu0 0
          %6372 = vmatpush1.bf16.msra.mxu0 0
          %6373 = vmatprep.subr.bf16.mxu0 0
          %6374 = vmatpush1.bf16.msra.mxu0 0
          %6375 = vmatprep.subr.bf16.mxu0 0
          %6376 = vmatpush1.bf16.msra.mxu0 0
          %6377 = vmatprep.subr.bf16.mxu0 0
          %6378 = vmatpush1.bf16.msra.mxu0 0
          %6379 = vmatprep.subr.bf16.mxu0 0
          %6380 = vmatpush1.bf16.msra.mxu0 0
          %6381 = vmatprep.mubr.bf16.mxu0 0
          %6382 = vmatmul.mubr.bf16.gmra.mrb[0].mxu0 %v6299
          %v6383 = vpop.f32.mrb[0].mxu0
          %v6384 = vadd.f32 %v6281, %v6383
          %v6385 = vpop.f32.mrb[0].mxu0
          %v6386 = vpop.f32.mrb[0].mxu0
          %v6387 = vpop.f32.mrb[0].mxu0
          %6388 = vdwg.mxu0
          %v6389 = vmul.f32 %v6384, 0.5
          %v6390 = vmul.f32 %v6384, 0.70710677
          %v6391 = verf.f32.pop %v6390
          %v6392 = vadd.f32 %v6391, 1.0
          %v6393 = vmul.f32 %v6389, %v6392
          %v6394 = vpack.c.bf16 %v6393, %v6393
          %v6395 = vld [vmem:[%s20] sm:$0xf]
          %v6396 = vld [vmem:[%s20 + $0x4] sm:$0xf]
          %v6397 = vld [vmem:[%s20 + $0x8] sm:$0xf]
          %v6398 = vld [vmem:[%s20 + $0xc] sm:$0xf]
          %v6399 = vld [vmem:[%s20 + $0x10] sm:$0xf]
          %v6400 = vld [vmem:[%s20 + $0x14] sm:$0xf]
          %v6401 = vld [vmem:[%s20 + $0x18] sm:$0xf]
          %v6402 = vld [vmem:[%s20 + $0x1c] sm:$0xf]
          %v6403 = vld [vmem:[%s21] sm:$0x1]
          %v6405 = vlaneseq
          %v6406 = vshrl.u32 %v6405, 7
          %v6407 = vsub.s32 0, %v6406
          %v6408 = vrot.slane %v6403, %v6407
          %v6418 = vunpack.c.l.b16 %v6395
          %v6419 = vunpack.c.l.b16 %v6396
          %v6420 = vunpack.c.l.b16 %v6397
          %v6421 = vunpack.c.l.b16 %v6398
          %v6422 = vunpack.c.l.b16 %v6399
          %v6423 = vunpack.c.l.b16 %v6400
          %v6424 = vunpack.c.l.b16 %v6401
          %v6425 = vunpack.c.l.b16 %v6402
          %v6426 = vpack.c.b16 %v6419, %v6418
          %v6427 = vpack.c.b16 %v6421, %v6420
          %v6428 = vpack.c.b16 %v6423, %v6422
          %v6429 = vpack.c.b16 %v6425, %v6424
          %vm6434 = vcmask 523264
          %v6436 = vsel %vm6434, %v6394, 0
          %6438 = vmatprep.subr.bf16.mxu0 0
          %6439 = vmatpush1.bf16.msra.mxu0 %v6426
          %6440 = vmatprep.subr.bf16.mxu0 0
          %6441 = vmatpush1.bf16.msra.mxu0 %v6427
          %6442 = vmatprep.subr.bf16.mxu0 0
          %6443 = vmatpush1.bf16.msra.mxu0 %v6428
          %6444 = vmatprep.subr.bf16.mxu0 0
          %6445 = vmatpush1.bf16.msra.mxu0 %v6429
          %6446 = vmatprep.subr.bf16.mxu0 0
          %6447 = vmatpush1.bf16.msra.mxu0 0
          %6448 = vmatprep.subr.bf16.mxu0 0
          %6449 = vmatpush1.bf16.msra.mxu0 0
          %6450 = vmatprep.subr.bf16.mxu0 0
          %6451 = vmatpush1.bf16.msra.mxu0 0
          %6452 = vmatprep.subr.bf16.mxu0 0
          %6453 = vmatpush1.bf16.msra.mxu0 0
          %6454 = vmatprep.subr.bf16.mxu0 0
          %6455 = vmatpush1.bf16.msra.mxu0 0
          %6456 = vmatprep.subr.bf16.mxu0 0
          %6457 = vmatpush1.bf16.msra.mxu0 0
          %6458 = vmatprep.subr.bf16.mxu0 0
          %6459 = vmatpush1.bf16.msra.mxu0 0
          %6460 = vmatprep.subr.bf16.mxu0 0
          %6461 = vmatpush1.bf16.msra.mxu0 0
          %6462 = vmatprep.subr.bf16.mxu0 0
          %6463 = vmatpush1.bf16.msra.mxu0 0
          %6464 = vmatprep.subr.bf16.mxu0 0
          %6465 = vmatpush1.bf16.msra.mxu0 0
          %6466 = vmatprep.subr.bf16.mxu0 0
          %6467 = vmatpush1.bf16.msra.mxu0 0
          %6468 = vmatprep.subr.bf16.mxu0 0
          %6469 = vmatpush1.bf16.msra.mxu0 0
          %6470 = vmatprep.mubr.bf16.mxu0 0
          %6471 = vmatmul.mubr.bf16.gmra.mrb[0].mxu0 %v6436
          %v6472 = vpop.f32.mrb[0].mxu0
          %v6473 = vadd.f32 %v6408, %v6472
          %v6474 = vpop.f32.mrb[0].mxu0
          %v6475 = vpop.f32.mrb[0].mxu0
          %v6476 = vpop.f32.mrb[0].mxu0
          %6477 = vdwg.mxu0
          %v6478 = vmul.f32 %v6473, 0.5
          %v6479 = vmul.f32 %v6473, 0.70710677
          %v6480 = verf.f32.pop %v6479
          %v6481 = vadd.f32 %v6480, 1.0
          %v6482 = vmul.f32 %v6478, %v6481
          %v6483 = vpack.c.bf16 %v6482, %v6482
          %v6484 = vld [vmem:[%s22] sm:$0xf]
          %v6485 = vld [vmem:[%s22 + $0x4] sm:$0xf]
          %v6486 = vld [vmem:[%s22 + $0x8] sm:$0xf]
          %v6487 = vld [vmem:[%s22 + $0xc] sm:$0xf]
          %v6488 = vld [vmem:[%s23] sm:$0x1]
          %v6490 = vlaneseq
          %v6491 = vshrl.u32 %v6490, 7
          %v6492 = vsub.s32 0, %v6491
          %v6493 = vrot.slane %v6488, %v6492
          %v6499 = vunpack.c.l.b16 %v6484
          %v6500 = vunpack.c.l.b16 %v6485
          %v6501 = vunpack.c.l.b16 %v6486
          %v6502 = vunpack.c.l.b16 %v6487
          %v6503 = vpack.c.b16 %v6500, %v6499
          %v6504 = vpack.c.b16 %v6502, %v6501
          %vm6507 = vcmask 261120
          %v6509 = vsel %vm6507, %v6483, 0
          %6511 = vmatprep.subr.bf16.mxu0 0
          %6512 = vmatpush1.bf16.msra.mxu0 %v6503
          %6513 = vmatprep.subr.bf16.mxu0 0
          %6514 = vmatpush1.bf16.msra.mxu0 %v6504
          %6515 = vmatprep.subr.bf16.mxu0 0
          %6516 = vmatpush1.bf16.msra.mxu0 0
          %6517 = vmatprep.subr.bf16.mxu0 0
          %6518 = vmatpush1.bf16.msra.mxu0 0
          %6519 = vmatprep.subr.bf16.mxu0 0
          %6520 = vmatpush1.bf16.msra.mxu0 0
          %6521 = vmatprep.subr.bf16.mxu0 0
          %6522 = vmatpush1.bf16.msra.mxu0 0
          %6523 = vmatprep.subr.bf16.mxu0 0
          %6524 = vmatpush1.bf16.msra.mxu0 0
          %6525 = vmatprep.subr.bf16.mxu0 0
          %6526 = vmatpush1.bf16.msra.mxu0 0
          %6527 = vmatprep.subr.bf16.mxu0 0
          %6528 = vmatpush1.bf16.msra.mxu0 0
          %6529 = vmatprep.subr.bf16.mxu0 0
          %6530 = vmatpush1.bf16.msra.mxu0 0
          %6531 = vmatprep.subr.bf16.mxu0 0
          %6532 = vmatpush1.bf16.msra.mxu0 0
          %6533 = vmatprep.subr.bf16.mxu0 0
          %6534 = vmatpush1.bf16.msra.mxu0 0
          %6535 = vmatprep.subr.bf16.mxu0 0
          %6536 = vmatpush1.bf16.msra.mxu0 0
          %6537 = vmatprep.subr.bf16.mxu0 0
          %6538 = vmatpush1.bf16.msra.mxu0 0
          %6539 = vmatprep.subr.bf16.mxu0 0
          %6540 = vmatpush1.bf16.msra.mxu0 0
          %6541 = vmatprep.subr.bf16.mxu0 0
          %6542 = vmatpush1.bf16.msra.mxu0 0
          %6543 = vmatprep.mubr.bf16.mxu0 0
          %6544 = vmatmul.mubr.bf16.gmra.mrb[0].mxu0 %v6509
          %v6545 = vpop.f32.mrb[0].mxu0
          %v6546 = vadd.f32 %v6493, %v6545
          %v6547 = vpop.f32.mrb[0].mxu0
          %v6548 = vpop.f32.mrb[0].mxu0
          %v6549 = vpop.f32.mrb[0].mxu0
          %6550 = vdwg.mxu0
          %6551 = vst [vmem:[%s1151] sm:$0xf] %v6546
        $region172: #{tpu_custom_call.1} parent=115 // pred_fallthru
          _
        %s6552 = sand.u32 %s646, 1
        %s6553 = scalar_lea.sflag [#allocation5], %s6552
        %s6554 = sand.u32 %s646, 1
        %s6555 = smul.addr %s6554, 4
        %s6556 = scalar_lea.vmem [#allocation23], %s6555
        // Predicated region
        $region173: #{tpu_custom_call.1} parent=115 // pred_check
          %p6557 = pneg %p656
        $region174: #{tpu_custom_call.1} parent=115 // pred_check_branch
          %6559 = sbr.rel (%p6557) target = $region176
        $region175: #{tpu_custom_call.1} parent=115 // pred_region
          %s6561 = ssub.s32 64, 64
          %6562 = vsyncadd %s6553, %s6561
          %s6563 = smul.addr %s61, 64
          %s6564 = scalar_lea.hbm %s24, %s6563
          %s6566 = sshll.u32 %s6556, 4
          %s6567 = int_to_ptr.vmem [resolvable:$true] %s6566
          %6569 = dma.vmem_to_hbm [thread:$0]  %s6567, 64, %s6564, %s6553
        $region176: #{tpu_custom_call.1} parent=115 // pred_fallthru
          _
      $region116: #{tpu_custom_call.1} parent=5 // pred_fallthru
        _
      %p6570 = scmp.le.s32.totalorder 2, %s52
      // Predicated region
      $region177: #{tpu_custom_call.1} parent=5 // pred_check
        %p6571 = pneg %p6570
      $region178: #{tpu_custom_call.1} parent=5 // pred_check_branch
        %6573 = sbr.rel (%p6571) target = $region180
      $region179: #{tpu_custom_call.1} parent=5 // pred_region
        %s6574 = ssub.s32 %s52, 2
        // Predicated region
        $region181: #{tpu_custom_call.1} parent=179 // pred_check
          %p6575 = pneg %p662
        $region182: #{tpu_custom_call.1} parent=179 // pred_check_branch
          %6577 = sbr.rel (%p6575) target = $region184
        $region183: #{tpu_custom_call.1} parent=179 // pred_region
          %s6578 = sand.u32 %s647, 1
          %s6579 = scalar_lea.sflag [#allocation5], %s6578
          %s6580 = sand.u32 %s647, 1
          %s6581 = smul.addr %s6580, 4
          %s6582 = scalar_lea.vmem [#allocation23], %s6581
          %6583 = dma.done %s6579, 64
        $region184: #{tpu_custom_call.1} parent=179 // pred_fallthru
          _
      $region180: #{tpu_custom_call.1} parent=5 // pred_fallthru
        _
    $region6: #{tpu_custom_call.1} parent=1 // loop_footer
      %s56 = sadd.s32 1, %s52
    $region7: #{tpu_custom_call.1} parent=1 // loop_footer_branch
      %51 = sbr.rel target = $region3
    $region8: #{tpu_custom_call.1} parent=1 // loop_exit
      _
    %6584 = vsyncpa [#allocation4], 1
    %s6585 = scalar_lea.sflag [#allocation4], 1
    %6586 = vsyncpa %s6585, 1
    %6587 = vsyncpa [#allocation7], 1
    %6588 = vsyncpa [#allocation10], 1
    %s6589 = scalar_lea.sflag [#allocation10], 1
    %6590 = vsyncpa %s6589, 1
    %6591 = vsyncpa [#allocation13], 1
    %s6592 = scalar_lea.sflag [#allocation13], 1
    %6593 = vsyncpa %s6592, 1
    %6594 = vsyncpa [#allocation16], 1
    %s6595 = scalar_lea.sflag [#allocation16], 1
    %6596 = vsyncpa %s6595, 1
    %6597 = vsyncpa [#allocation19], 1
    %s6598 = scalar_lea.sflag [#allocation19], 1
    %6599 = vsyncpa %s6598, 1
    %6600 = vsyncpa [#allocation22], 1
    %s6601 = scalar_lea.sflag [#allocation22], 1
    %6602 = vsyncpa %s6601, 1
    %6603 = vsyncpa [#allocation5], 1
    %s6604 = scalar_lea.sflag [#allocation5], 1
    %6605 = vsyncpa %s6604, 1

</llo_original>
